<compile_context>
chip_gen: v7x
topology: tpu7x:2x2x1
jax: 0.10.0
libtpu: 0.0.40
codegen_flags: <defaults>
</compile_context>

<pallas_src>
import functools

import jax
import jax.numpy as jnp
from jax import lax
from jax.experimental import pallas as pl
from jax.experimental.pallas import tpu as pltpu

LRELU_SLOPE = 0.1
BN_EPS = 1e-5
_SENTINEL = -1e30        # finite stand-in for MaxPool2d's implicit -inf padding
_PAD_W = 8               # sentinel columns per side (8-aligned sublane concat)


def _round_up(a, b):
    return (a + b - 1) // b * b


def _lrelu(v):
    # LeakyReLU(0.1): max(v, 0.1*v) is exact for 0 < slope < 1 (one max vs cmp+select).
    return jnp.maximum(v, LRELU_SLOPE * v)


def _pool2d_valid(a, k):
    """'valid'-mode k x k stride-1 max pool over axes (1, 2) of an (N, H, W, C) array."""
    if k == 1:
        return a
    r = k - 1
    Hh, Ww = a.shape[1], a.shape[2]
    m = a[:, : Hh - r]
    for d in range(1, k):                       # pool along H (outer axis): cheap slices
        m = jnp.maximum(m, a[:, d: Hh - r + d])
    out = m[:, :, : Ww - r]
    for d in range(1, k):                       # pool along W (sublane axis)
        out = jnp.maximum(out, m[:, :, d: Ww - r + d])
    return out


# ---------------------------------------------------------------------------
# Fused SPP kernel: cv1 + composed {5,9,13} max pools + cv2
# ---------------------------------------------------------------------------
def _spp_fused_kernel(*refs, img_h, img_w, tile_h, halo, kernel_sizes,
                      fetch_halo, mask_rows, mask_cols):
    if fetch_halo:
        xc_ref, xt_ref, xb_ref, w1_ref, b1_ref, w2_ref, b2_ref, o_ref = refs
    else:
        xc_ref, w1_ref, b1_ref, w2_ref, b2_ref, o_ref = refs

    h = pl.program_id(1)
    nb, _, Wp, C1 = xc_ref.shape
    C_ = w1_ref.shape[1]
    C2 = w2_ref.shape[2]

    # --- assemble the bf16 input row window ---
    if fetch_halo:
        hb = xt_ref.shape[1]                               # 8-row halo blocks
        xwin = jnp.concatenate(
            [xt_ref[...][:, hb - halo:], xc_ref[...], xb_ref[...][:, :halo]], axis=1)
    else:
        xwin = xc_ref[...]                                 # halo handled with sentinel rows
    Hc = xwin.shape[1]

    # --- cv1: 1x1 conv (bf16 x bf16 -> f32) + folded-BN bias + LeakyReLU ---
    y = jnp.dot(xwin.reshape(nb * Hc * Wp, C1), w1_ref[...],
                preferred_element_type=jnp.float32)
    y = _lrelu(y + b1_ref[...]).reshape(nb, Hc, Wp, C_)

    # --- mask out-of-image rows/cols with a finite sentinel (== MaxPool2d -inf padding) ---
    if mask_rows:
        base = h * tile_h - (halo if fetch_halo else 0)
        row = lax.broadcasted_iota(jnp.int32, y.shape, 1) + base
        ok = row < img_h
        if fetch_halo:
            ok &= row >= 0
        y = jnp.where(ok, y, _SENTINEL)
    if mask_cols:
        col = lax.broadcasted_iota(jnp.int32, y.shape, 2)
        y = jnp.where(col < img_w, y, _SENTINEL)

    if not fetch_halo:                                     # single-tile: sentinel H halo
        padh = jnp.full((nb, halo, Wp, C_), _SENTINEL, jnp.float32)
        y = jnp.concatenate([padh, y, padh], axis=1)

    padw = jnp.full((nb, y.shape[1], _PAD_W, C_), _SENTINEL, jnp.float32)
    cur = jnp.concatenate([padw, y, padw], axis=2)         # (nb, tile_h+2*halo, Wp+16, C_)

    # --- interleaved pool chain + cv2: only ONE pooled tensor live at a time ---
    def branch_operand(a, k):
        mh, mw = halo - k // 2, _PAD_W - k // 2
        blk = a[:, mh:mh + tile_h, mw:mw + Wp, :]
        return blk.reshape(nb * tile_h * Wp, C_).astype(jnp.bfloat16)

    # TODO(synk): on v6e/v7x, pairing branches (K = 2*C_) would fill the 256-deep MXU when
    # C_ < 256; kept one matmul per branch for simplicity.
    acc = jnp.dot(branch_operand(cur, 1), w2_ref[0],
                  preferred_element_type=jnp.float32)
    prev_k = 1
    for i, k in enumerate(kernel_sizes):                   # p13 = pool5(pool5(pool5(y)))
        cur = _pool2d_valid(cur, k - prev_k + 1)
        acc = acc + jnp.dot(branch_operand(cur, k), w2_ref[i + 1],
                            preferred_element_type=jnp.float32)
        prev_k = k

    y2 = _lrelu(acc + b2_ref[...])
    o_ref[...] = y2.reshape(nb, tile_h, Wp, C2).astype(o_ref.dtype)


# ---------------------------------------------------------------------------
# Wrappers
# ---------------------------------------------------------------------------
def spp_forward_nhwc(params, x_nhwc, kernel_sizes=(5, 9, 13), tile_h=None,
                     batch_block=None):
    ks = tuple(int(k) for k in kernel_sizes)
    assert all(k % 2 == 1 for k in ks) and list(ks) == sorted(ks), ks
    halo = ks[-1] // 2
    assert halo <= _PAD_W, "largest pool kernel must be <= 17"
    nks = len(ks)

    N, H, W, C1 = x_nhwc.shape
    C_ = params["w1"].shape[1]
    C2 = params["w2"].shape[1]

    # --- VMEM budget (v5e/v6e: 128 MiB, v7x: 64 MiB) and explicit scoped limit ---
    try:
        vmem_cap = int(pltpu.get_tpu_info().vmem_capacity_bytes)
    except Exception:  # pragma: no cover - conservative fallback works on all gens
        vmem_cap = 64 * 1024 * 1024
    vmem_limit = int(0.85 * vmem_cap)
    budget = int(0.80 * vmem_limit)

    H8 = _round_up(H, 8)
    W_pad = _round_up(W, 8)

    def est(nb_, th_, fetch_halo_):
        """Rough per-step VMEM working-set estimate (bytes)."""
        Hw = th_ + 2 * halo
        Ww = W_pad + 2 * _PAD_W
        b = 2 * nb_ * th_ * W_pad * C1 * 2                     # x center, bf16, 2 buffers
        if fetch_halo_:
            b += 2 * 2 * nb_ * 8 * W_pad * C1 * 2              # two 8-row halo blocks
        b += 2 * nb_ * th_ * W_pad * C2 * 4                    # output, f32, 2 buffers
        b += (C1 * C_ + (nks + 1) * C_ * C2) * 2 + (C_ + C2) * 4
        b += nb_ * Hw * W_pad * C1 * 2                         # xwin (bf16)
        b += 2 * nb_ * Hw * Ww * C_ * 4                        # ywin + one live pooled array
        b += nb_ * th_ * W_pad * C_ * 2                        # bf16 branch operand
        b += nb_ * th_ * W_pad * (C2 + C_) * 4                 # f32 accumulator + crop temp
        return b

    # --- H tiling (shrink until the working set fits the budget) ---
    if tile_h is None:
        tile_h = min(64, H8)
        while tile_h > 8 and est(1, tile_h, _round_up(H, tile_h) > tile_h) > budget:
            tile_h -= 8
    else:
        tile_h = min(_round_up(tile_h, 8), H8)
    H_pad = _round_up(H, tile_h)
    fetch_halo = H_pad > tile_h

    # --- batch blocking: raises matmul M / amortizes per-step overhead for small maps ---
    if batch_block is None:
        nb = 1
        for d in range(min(N, 8), 0, -1):
            if N % d == 0 and est(d, tile_h, fetch_halo) <= budget:
                nb = d
                break
    else:
        nb = int(batch_block)
        assert N % nb == 0, (N, nb)

    # --- prepare operands: bf16 x, BN scales folded into bf16 weights, f32 biases ---
    x = x_nhwc.astype(jnp.bfloat16)
    if (H_pad, W_pad) != (H, W):
        x = jnp.pad(x, ((0, 0), (0, H_pad - H), (0, W_pad - W), (0, 0)))
    w1 = (params["w1"] * params["s1"][None, :]).astype(jnp.bfloat16)
    w2 = (params["w2"] * params["s2"][None, :]).astype(jnp.bfloat16)
    w2 = w2.reshape(nks + 1, C_, C2)                     # per-branch slabs of the cv2 weight
    b1 = params["b1"].reshape(1, C_).astype(jnp.float32)
    b2 = params["b2"].reshape(1, C2).astype(jnp.float32)

    mask_rows = fetch_halo or (H_pad != H)
    mask_cols = W_pad != W

    hpt = tile_h // 8
    n_hblk = H_pad // 8
    grid = (N // nb, H_pad // tile_h)

    kernel = functools.partial(
        _spp_fused_kernel, img_h=H, img_w=W, tile_h=tile_h, halo=halo,
        kernel_sizes=ks, fetch_halo=fetch_halo, mask_rows=mask_rows,
        mask_cols=mask_cols)

    x_specs = [pl.BlockSpec((nb, tile_h, W_pad, C1), lambda n, h: (n, h, 0, 0))]
    x_args = [x]
    if fetch_halo:
        # TODO(synk): halo rows are re-read from HBM (~16/tile_h extra x traffic); a manual
        # overlapping-window DMA (memory_space=pl.ANY) would remove the duplication.
        x_specs += [
            pl.BlockSpec((nb, 8, W_pad, C1),
                         lambda n, h: (n, jnp.maximum(h * hpt - 1, 0), 0, 0)),
            pl.BlockSpec((nb, 8, W_pad, C1),
                         lambda n, h: (n, jnp.minimum((h + 1) * hpt, n_hblk - 1), 0, 0)),
        ]
        x_args += [x, x]

    out = pl.pallas_call(
        kernel,
        out_shape=jax.ShapeDtypeStruct((N, H_pad, W_pad, C2), jnp.float32),
        grid_spec=pltpu.PrefetchScalarGridSpec(
            num_scalar_prefetch=0,
            grid=grid,
            in_specs=x_specs + [
                pl.BlockSpec((C1, C_), lambda n, h: (0, 0)),
                pl.BlockSpec((1, C_), lambda n, h: (0, 0)),
                pl.BlockSpec((nks + 1, C_, C2), lambda n, h: (0, 0, 0)),
                pl.BlockSpec((1, C2), lambda n, h: (0, 0)),
            ],
            out_specs=pl.BlockSpec((nb, tile_h, W_pad, C2),
                                   lambda n, h: (n, h, 0, 0)),
        ),
        compiler_params=pltpu.CompilerParams(
            dimension_semantics=("parallel", "parallel"),
            vmem_limit_bytes=vmem_limit),
    )(*x_args, w1, b1, w2, b2)

    return out[:, :H, :W, :]                              # drop the H/W padding


def spp_forward(params, x_nchw, kernel_sizes=(5, 9, 13), **kwargs):
    # TODO(synk): accept/return NHWC end-to-end to drop these two full-tensor transposes.
    x = jnp.transpose(x_nchw, (0, 2, 3, 1))
    y = spp_forward_nhwc(params, x, kernel_sizes, **kwargs)
    return jnp.transpose(y, (0, 3, 1, 2))


# ---------------------------------------------------------------------------
# Parameter init (deterministic, synthetic) with eval-mode BN folded to scale/bias
# ---------------------------------------------------------------------------
def _fold_bn(gamma, beta, mean, var):
    scale = gamma / jnp.sqrt(var + BN_EPS)
    bias = beta - mean * scale
    return scale, bias


def init_spp_params(key, c1, c2, e=0.5, kernel_sizes=(5, 9, 13)):
    c_ = int(c1 * e)
    k1, k2, k3, k4, k5, k6 = jax.random.split(key, 6)
    w1 = jax.random.normal(k1, (c1, c_), jnp.float32) * 0.1
    g1 = jax.random.uniform(k2, (c_,), jnp.float32, 0.5, 1.5)
    b1 = jax.random.normal(k3, (c_,), jnp.float32) * 0.1
    s1, bb1 = _fold_bn(g1, b1, jnp.zeros((c_,)), jnp.ones((c_,)))
    cin2 = c_ * (len(kernel_sizes) + 1)
    w2 = jax.random.normal(k4, (cin2, c2), jnp.float32) * 0.1
    g2 = jax.random.uniform(k5, (c2,), jnp.float32, 0.5, 1.5)
    b2 = jax.random.normal(k6, (c2,), jnp.float32) * 0.1
    s2, bb2 = _fold_bn(g2, b2, jnp.zeros((c2,)), jnp.ones((c2,)))
    return dict(w1=w1, s1=s1, b1=bb1, w2=w2, s2=s2, b2=bb2)


# ---------------------------------------------------------------------------
# Pure-JAX f32 reference (correctness check only)
# ---------------------------------------------------------------------------
def _ref_forward(params, x_nchw, kernel_sizes=(5, 9, 13)):
    x = jnp.transpose(x_nchw, (0, 2, 3, 1)).astype(jnp.float32)

    def pw(x, w, s, b):
        y = jnp.einsum("nhwc,cd->nhwd", x, w) * s + b
        return jnp.where(y >= 0, y, LRELU_SLOPE * y)

    def mp(x, k):
        p = k // 2
        return lax.reduce_window(
            x, -jnp.inf, lax.max, (1, k, k, 1), (1, 1, 1, 1),
            [(0, 0), (p, p), (p, p), (0, 0)])

    y1 = pw(x, params["w1"], params["s1"], params["b1"])
    cat = jnp.concatenate([y1] + [mp(y1, k) for k in kernel_sizes], axis=-1)
    y2 = pw(cat, params["w2"], params["s2"], params["b2"])
    return jnp.transpose(y2, (0, 3, 1, 2))


if __name__ == "__main__":
    key = jax.random.PRNGKey(0)

    cases = [
        # (N, C1, C2, H, W, kwargs)
        (2, 4, 8, 16, 16, {}),              # single H tile, no padding masks, batch-blocked
        (3, 4, 8, 13, 13, {}),              # odd spatial -> row/col masks + batch block of 3
        (2, 4, 8, 24, 16, dict(tile_h=8)),  # forced multi-tile: exercises the halo path
    ]
    for idx, (N, C1, C2, H, W, kw) in enumerate(cases):
        kp, kx, key = jax.random.split(key, 3)
        params = init_spp_params(kp, C1, C2, e=0.5)
        x = jax.random.normal(kx, (N, C1, H, W), jnp.float32)

        out = jax.block_until_ready(spp_forward(params, x, **kw))
        assert out.shape == (N, C2, H, W), (idx, out.shape)

        ref = jax.block_until_ready(_ref_forward(params, x))
        err = float(jnp.max(jnp.abs(out - ref)))
        # bf16 matmul operands (f32 accumulation) -> relaxed tolerance vs the f32 reference.
        assert jnp.allclose(out, ref, rtol=3e-2, atol=1.5e-2), (idx, err)

    print("KERNEL_OK")
</pallas_src>

<mosaic_0001>
module attributes {stable_mosaic.version = 11 : i64} {
  func.func @_spp_fused_kernel(%arg0: i32, %arg1: i32, %arg2: memref<2x16x16x4xbf16, #tpu.memory_space<vmem>>, %arg3: memref<4x2xbf16, #tpu.memory_space<vmem>>, %arg4: memref<1x2xf32, #tpu.memory_space<vmem>>, %arg5: memref<4x2x8xbf16, #tpu.memory_space<vmem>>, %arg6: memref<1x8xf32, #tpu.memory_space<vmem>>, %arg7: memref<2x16x16x8xf32, #tpu.memory_space<vmem>>) attributes {dimension_semantics = [#tpu.dimension_semantics<parallel>, #tpu.dimension_semantics<parallel>], iteration_bounds = array<i64: 1, 1>, scalar_prefetch = 0 : i64, scratch_operands = 0 : i64, tpu.core_type = #tpu.core_type<tc>, window_params = [{transform_indices = @transform_0, window_bounds = array<i64: 2, 16, 16, 4>}, {pipeline_mode = #tpu.pipeline_mode<synchronous>, transform_indices = @transform_1, window_bounds = array<i64: 4, 2>}, {pipeline_mode = #tpu.pipeline_mode<synchronous>, transform_indices = @transform_2, window_bounds = array<i64: 1, 2>}, {pipeline_mode = #tpu.pipeline_mode<synchronous>, transform_indices = @transform_3, window_bounds = array<i64: 4, 2, 8>}, {pipeline_mode = #tpu.pipeline_mode<synchronous>, transform_indices = @transform_4, window_bounds = array<i64: 1, 8>}, {transform_indices = @transform_5, window_bounds = array<i64: 2, 16, 16, 8>}]} {
    %c0 = arith.constant 0 : index
    %c0_0 = arith.constant 0 : index
    %c0_1 = arith.constant 0 : index
    %c0_2 = arith.constant 0 : index
    %0 = vector.load %arg2[%c0, %c0_0, %c0_1, %c0_2] : memref<2x16x16x4xbf16, #tpu.memory_space<vmem>>, vector<2x16x16x4xbf16>
    %1 = vector.shape_cast %0 : vector<2x16x16x4xbf16> to vector<512x4xbf16>
    %c0_3 = arith.constant 0 : index
    %c0_4 = arith.constant 0 : index
    %2 = vector.load %arg3[%c0_3, %c0_4] : memref<4x2xbf16, #tpu.memory_space<vmem>>, vector<4x2xbf16>
    %cst = arith.constant dense<0.000000e+00> : vector<512x2xf32>
    %3 = tpu.matmul %1, %2, %cst {dimension_numbers = #tpu.dot_dimension_numbers<[1], [0], [0], [1], [0, 0, 1, 1], [], []>} : vector<512x4xbf16>, vector<4x2xbf16>, vector<512x2xf32> -> vector<512x2xf32>
    %c0_5 = arith.constant 0 : index
    %c0_6 = arith.constant 0 : index
    %4 = vector.load %arg4[%c0_5, %c0_6] : memref<1x2xf32, #tpu.memory_space<vmem>>, vector<1x2xf32>
    %5 = vector.broadcast %4 : vector<1x2xf32> to vector<512x2xf32>
    %6 = arith.addf %3, %5 : vector<512x2xf32>
    %cst_7 = arith.constant 1.000000e-01 : f32
    %7 = vector.broadcast %cst_7 : f32 to vector<512x2xf32>
    %8 = arith.mulf %7, %6 : vector<512x2xf32>
    %9 = arith.maximumf %6, %8 : vector<512x2xf32>
    %10 = vector.shape_cast %9 : vector<512x2xf32> to vector<2x16x16x2xf32>
    %cst_8 = arith.constant -1.000000e+30 : f32
    %11 = vector.broadcast %cst_8 : f32 to vector<2x6x16x2xf32>
    %12 = tpu.concatenate %11, %10, %11 in 1 : vector<2x6x16x2xf32>, vector<2x16x16x2xf32>, vector<2x6x16x2xf32> -> vector<2x28x16x2xf32>
    %cst_9 = arith.constant -1.000000e+30 : f32
    %13 = vector.broadcast %cst_9 : f32 to vector<2x28x8x2xf32>
    %14 = tpu.concatenate %13, %12, %13 in 2 : vector<2x28x8x2xf32>, vector<2x28x16x2xf32>, vector<2x28x8x2xf32> -> vector<2x28x32x2xf32>
    %15 = vector.extract_strided_slice %14 {offsets = [0, 6, 8, 0], sizes = [2, 16, 16, 2], strides = [1, 1, 1, 1]} : vector<2x28x32x2xf32> to vector<2x16x16x2xf32>
    %16 = vector.shape_cast %15 : vector<2x16x16x2xf32> to vector<512x2xf32>
    %17 = arith.truncf %16 : vector<512x2xf32> to vector<512x2xbf16>
    %c0_10 = arith.constant 0 : index
    %c0_11 = arith.constant 0 : index
    %c0_12 = arith.constant 0 : index
    %18 = vector.load %arg5[%c0_10, %c0_11, %c0_12] : memref<4x2x8xbf16, #tpu.memory_space<vmem>>, vector<1x2x8xbf16>
    %19 = vector.shape_cast %18 : vector<1x2x8xbf16> to vector<2x8xbf16>
    %cst_13 = arith.constant dense<0.000000e+00> : vector<512x8xf32>
    %20 = tpu.matmul %17, %19, %cst_13 {dimension_numbers = #tpu.dot_dimension_numbers<[1], [0], [0], [1], [0, 0, 1, 1], [], []>} : vector<512x2xbf16>, vector<2x8xbf16>, vector<512x8xf32> -> vector<512x8xf32>
    %21 = vector.extract_strided_slice %14 {offsets = [0, 0, 0, 0], sizes = [2, 24, 32, 2], strides = [1, 1, 1, 1]} : vector<2x28x32x2xf32> to vector<2x24x32x2xf32>
    %22 = vector.extract_strided_slice %14 {offsets = [0, 1, 0, 0], sizes = [2, 24, 32, 2], strides = [1, 1, 1, 1]} : vector<2x28x32x2xf32> to vector<2x24x32x2xf32>
    %23 = arith.maximumf %21, %22 : vector<2x24x32x2xf32>
    %24 = vector.extract_strided_slice %14 {offsets = [0, 2, 0, 0], sizes = [2, 24, 32, 2], strides = [1, 1, 1, 1]} : vector<2x28x32x2xf32> to vector<2x24x32x2xf32>
    %25 = arith.maximumf %23, %24 : vector<2x24x32x2xf32>
    %26 = vector.extract_strided_slice %14 {offsets = [0, 3, 0, 0], sizes = [2, 24, 32, 2], strides = [1, 1, 1, 1]} : vector<2x28x32x2xf32> to vector<2x24x32x2xf32>
    %27 = arith.maximumf %25, %26 : vector<2x24x32x2xf32>
    %28 = vector.extract_strided_slice %14 {offsets = [0, 4, 0, 0], sizes = [2, 24, 32, 2], strides = [1, 1, 1, 1]} : vector<2x28x32x2xf32> to vector<2x24x32x2xf32>
    %29 = arith.maximumf %27, %28 : vector<2x24x32x2xf32>
    %30 = vector.extract_strided_slice %29 {offsets = [0, 0, 0, 0], sizes = [2, 24, 28, 2], strides = [1, 1, 1, 1]} : vector<2x24x32x2xf32> to vector<2x24x28x2xf32>
    %31 = vector.extract_strided_slice %29 {offsets = [0, 0, 1, 0], sizes = [2, 24, 28, 2], strides = [1, 1, 1, 1]} : vector<2x24x32x2xf32> to vector<2x24x28x2xf32>
    %32 = arith.maximumf %30, %31 : vector<2x24x28x2xf32>
    %33 = vector.extract_strided_slice %29 {offsets = [0, 0, 2, 0], sizes = [2, 24, 28, 2], strides = [1, 1, 1, 1]} : vector<2x24x32x2xf32> to vector<2x24x28x2xf32>
    %34 = arith.maximumf %32, %33 : vector<2x24x28x2xf32>
    %35 = vector.extract_strided_slice %29 {offsets = [0, 0, 3, 0], sizes = [2, 24, 28, 2], strides = [1, 1, 1, 1]} : vector<2x24x32x2xf32> to vector<2x24x28x2xf32>
    %36 = arith.maximumf %34, %35 : vector<2x24x28x2xf32>
    %37 = vector.extract_strided_slice %29 {offsets = [0, 0, 4, 0], sizes = [2, 24, 28, 2], strides = [1, 1, 1, 1]} : vector<2x24x32x2xf32> to vector<2x24x28x2xf32>
    %38 = arith.maximumf %36, %37 : vector<2x24x28x2xf32>
    %39 = vector.extract_strided_slice %38 {offsets = [0, 4, 6, 0], sizes = [2, 16, 16, 2], strides = [1, 1, 1, 1]} : vector<2x24x28x2xf32> to vector<2x16x16x2xf32>
    %40 = vector.shape_cast %39 : vector<2x16x16x2xf32> to vector<512x2xf32>
    %41 = arith.truncf %40 : vector<512x2xf32> to vector<512x2xbf16>
    %c1 = arith.constant 1 : index
    %c0_14 = arith.constant 0 : index
    %c0_15 = arith.constant 0 : index
    %42 = vector.load %arg5[%c1, %c0_14, %c0_15] : memref<4x2x8xbf16, #tpu.memory_space<vmem>>, vector<1x2x8xbf16>
    %43 = vector.shape_cast %42 : vector<1x2x8xbf16> to vector<2x8xbf16>
    %cst_16 = arith.constant dense<0.000000e+00> : vector<512x8xf32>
    %44 = tpu.matmul %41, %43, %cst_16 {dimension_numbers = #tpu.dot_dimension_numbers<[1], [0], [0], [1], [0, 0, 1, 1], [], []>} : vector<512x2xbf16>, vector<2x8xbf16>, vector<512x8xf32> -> vector<512x8xf32>
    %45 = arith.addf %20, %44 : vector<512x8xf32>
    %46 = vector.extract_strided_slice %38 {offsets = [0, 0, 0, 0], sizes = [2, 20, 28, 2], strides = [1, 1, 1, 1]} : vector<2x24x28x2xf32> to vector<2x20x28x2xf32>
    %47 = vector.extract_strided_slice %38 {offsets = [0, 1, 0, 0], sizes = [2, 20, 28, 2], strides = [1, 1, 1, 1]} : vector<2x24x28x2xf32> to vector<2x20x28x2xf32>
    %48 = arith.maximumf %46, %47 : vector<2x20x28x2xf32>
    %49 = vector.extract_strided_slice %38 {offsets = [0, 2, 0, 0], sizes = [2, 20, 28, 2], strides = [1, 1, 1, 1]} : vector<2x24x28x2xf32> to vector<2x20x28x2xf32>
    %50 = arith.maximumf %48, %49 : vector<2x20x28x2xf32>
    %51 = vector.extract_strided_slice %38 {offsets = [0, 3, 0, 0], sizes = [2, 20, 28, 2], strides = [1, 1, 1, 1]} : vector<2x24x28x2xf32> to vector<2x20x28x2xf32>
    %52 = arith.maximumf %50, %51 : vector<2x20x28x2xf32>
    %53 = vector.extract_strided_slice %38 {offsets = [0, 4, 0, 0], sizes = [2, 20, 28, 2], strides = [1, 1, 1, 1]} : vector<2x24x28x2xf32> to vector<2x20x28x2xf32>
    %54 = arith.maximumf %52, %53 : vector<2x20x28x2xf32>
    %55 = vector.extract_strided_slice %54 {offsets = [0, 0, 0, 0], sizes = [2, 20, 24, 2], strides = [1, 1, 1, 1]} : vector<2x20x28x2xf32> to vector<2x20x24x2xf32>
    %56 = vector.extract_strided_slice %54 {offsets = [0, 0, 1, 0], sizes = [2, 20, 24, 2], strides = [1, 1, 1, 1]} : vector<2x20x28x2xf32> to vector<2x20x24x2xf32>
    %57 = arith.maximumf %55, %56 : vector<2x20x24x2xf32>
    %58 = vector.extract_strided_slice %54 {offsets = [0, 0, 2, 0], sizes = [2, 20, 24, 2], strides = [1, 1, 1, 1]} : vector<2x20x28x2xf32> to vector<2x20x24x2xf32>
    %59 = arith.maximumf %57, %58 : vector<2x20x24x2xf32>
    %60 = vector.extract_strided_slice %54 {offsets = [0, 0, 3, 0], sizes = [2, 20, 24, 2], strides = [1, 1, 1, 1]} : vector<2x20x28x2xf32> to vector<2x20x24x2xf32>
    %61 = arith.maximumf %59, %60 : vector<2x20x24x2xf32>
    %62 = vector.extract_strided_slice %54 {offsets = [0, 0, 4, 0], sizes = [2, 20, 24, 2], strides = [1, 1, 1, 1]} : vector<2x20x28x2xf32> to vector<2x20x24x2xf32>
    %63 = arith.maximumf %61, %62 : vector<2x20x24x2xf32>
    %64 = vector.extract_strided_slice %63 {offsets = [0, 2, 4, 0], sizes = [2, 16, 16, 2], strides = [1, 1, 1, 1]} : vector<2x20x24x2xf32> to vector<2x16x16x2xf32>
    %65 = vector.shape_cast %64 : vector<2x16x16x2xf32> to vector<512x2xf32>
    %66 = arith.truncf %65 : vector<512x2xf32> to vector<512x2xbf16>
    %c2 = arith.constant 2 : index
    %c0_17 = arith.constant 0 : index
    %c0_18 = arith.constant 0 : index
    %67 = vector.load %arg5[%c2, %c0_17, %c0_18] : memref<4x2x8xbf16, #tpu.memory_space<vmem>>, vector<1x2x8xbf16>
    %68 = vector.shape_cast %67 : vector<1x2x8xbf16> to vector<2x8xbf16>
    %cst_19 = arith.constant dense<0.000000e+00> : vector<512x8xf32>
    %69 = tpu.matmul %66, %68, %cst_19 {dimension_numbers = #tpu.dot_dimension_numbers<[1], [0], [0], [1], [0, 0, 1, 1], [], []>} : vector<512x2xbf16>, vector<2x8xbf16>, vector<512x8xf32> -> vector<512x8xf32>
    %70 = arith.addf %45, %69 : vector<512x8xf32>
    %71 = vector.extract_strided_slice %63 {offsets = [0, 0, 0, 0], sizes = [2, 16, 24, 2], strides = [1, 1, 1, 1]} : vector<2x20x24x2xf32> to vector<2x16x24x2xf32>
    %72 = vector.extract_strided_slice %63 {offsets = [0, 1, 0, 0], sizes = [2, 16, 24, 2], strides = [1, 1, 1, 1]} : vector<2x20x24x2xf32> to vector<2x16x24x2xf32>
    %73 = arith.maximumf %71, %72 : vector<2x16x24x2xf32>
    %74 = vector.extract_strided_slice %63 {offsets = [0, 2, 0, 0], sizes = [2, 16, 24, 2], strides = [1, 1, 1, 1]} : vector<2x20x24x2xf32> to vector<2x16x24x2xf32>
    %75 = arith.maximumf %73, %74 : vector<2x16x24x2xf32>
    %76 = vector.extract_strided_slice %63 {offsets = [0, 3, 0, 0], sizes = [2, 16, 24, 2], strides = [1, 1, 1, 1]} : vector<2x20x24x2xf32> to vector<2x16x24x2xf32>
    %77 = arith.maximumf %75, %76 : vector<2x16x24x2xf32>
    %78 = vector.extract_strided_slice %63 {offsets = [0, 4, 0, 0], sizes = [2, 16, 24, 2], strides = [1, 1, 1, 1]} : vector<2x20x24x2xf32> to vector<2x16x24x2xf32>
    %79 = arith.maximumf %77, %78 : vector<2x16x24x2xf32>
    %80 = vector.extract_strided_slice %79 {offsets = [0, 0, 0, 0], sizes = [2, 16, 20, 2], strides = [1, 1, 1, 1]} : vector<2x16x24x2xf32> to vector<2x16x20x2xf32>
    %81 = vector.extract_strided_slice %79 {offsets = [0, 0, 1, 0], sizes = [2, 16, 20, 2], strides = [1, 1, 1, 1]} : vector<2x16x24x2xf32> to vector<2x16x20x2xf32>
    %82 = arith.maximumf %80, %81 : vector<2x16x20x2xf32>
    %83 = vector.extract_strided_slice %79 {offsets = [0, 0, 2, 0], sizes = [2, 16, 20, 2], strides = [1, 1, 1, 1]} : vector<2x16x24x2xf32> to vector<2x16x20x2xf32>
    %84 = arith.maximumf %82, %83 : vector<2x16x20x2xf32>
    %85 = vector.extract_strided_slice %79 {offsets = [0, 0, 3, 0], sizes = [2, 16, 20, 2], strides = [1, 1, 1, 1]} : vector<2x16x24x2xf32> to vector<2x16x20x2xf32>
    %86 = arith.maximumf %84, %85 : vector<2x16x20x2xf32>
    %87 = vector.extract_strided_slice %79 {offsets = [0, 0, 4, 0], sizes = [2, 16, 20, 2], strides = [1, 1, 1, 1]} : vector<2x16x24x2xf32> to vector<2x16x20x2xf32>
    %88 = arith.maximumf %86, %87 : vector<2x16x20x2xf32>
    %89 = vector.extract_strided_slice %88 {offsets = [0, 0, 2, 0], sizes = [2, 16, 16, 2], strides = [1, 1, 1, 1]} : vector<2x16x20x2xf32> to vector<2x16x16x2xf32>
    %90 = vector.shape_cast %89 : vector<2x16x16x2xf32> to vector<512x2xf32>
    %91 = arith.truncf %90 : vector<512x2xf32> to vector<512x2xbf16>
    %c3 = arith.constant 3 : index
    %c0_20 = arith.constant 0 : index
    %c0_21 = arith.constant 0 : index
    %92 = vector.load %arg5[%c3, %c0_20, %c0_21] : memref<4x2x8xbf16, #tpu.memory_space<vmem>>, vector<1x2x8xbf16>
    %93 = vector.shape_cast %92 : vector<1x2x8xbf16> to vector<2x8xbf16>
    %cst_22 = arith.constant dense<0.000000e+00> : vector<512x8xf32>
    %94 = tpu.matmul %91, %93, %cst_22 {dimension_numbers = #tpu.dot_dimension_numbers<[1], [0], [0], [1], [0, 0, 1, 1], [], []>} : vector<512x2xbf16>, vector<2x8xbf16>, vector<512x8xf32> -> vector<512x8xf32>
    %95 = arith.addf %70, %94 : vector<512x8xf32>
    %c0_23 = arith.constant 0 : index
    %c0_24 = arith.constant 0 : index
    %96 = vector.load %arg6[%c0_23, %c0_24] : memref<1x8xf32, #tpu.memory_space<vmem>>, vector<1x8xf32>
    %97 = vector.broadcast %96 : vector<1x8xf32> to vector<512x8xf32>
    %98 = arith.addf %95, %97 : vector<512x8xf32>
    %cst_25 = arith.constant 1.000000e-01 : f32
    %99 = vector.broadcast %cst_25 : f32 to vector<512x8xf32>
    %100 = arith.mulf %99, %98 : vector<512x8xf32>
    %101 = arith.maximumf %98, %100 : vector<512x8xf32>
    %102 = vector.shape_cast %101 : vector<512x8xf32> to vector<2x16x16x8xf32>
    %c0_26 = arith.constant 0 : index
    %c0_27 = arith.constant 0 : index
    %c0_28 = arith.constant 0 : index
    %c0_29 = arith.constant 0 : index
    %103 = vector.load %arg7[%c0_26, %c0_27, %c0_28, %c0_29] : memref<2x16x16x8xf32, #tpu.memory_space<vmem>>, vector<2x16x16x8xf32>
    tpu.vector_store %arg7[%c0_26, %c0_27, %c0_28, %c0_29], %102 {strides = array<i32>} : memref<2x16x16x8xf32, #tpu.memory_space<vmem>>, vector<2x16x16x8xf32>,
    return
  }
  func.func @transform_0(%arg0: i32, %arg1: i32) -> (i32, i32, i32, i32) {
    %c0_i32 = arith.constant 0 : i32
    %c0_i32_0 = arith.constant 0 : i32
    %c0_i32_1 = arith.constant 0 : i32
    return %arg0, %arg1, %c0_i32, %c0_i32_0 : i32, i32, i32, i32
  }
  func.func @transform_1(%arg0: i32, %arg1: i32) -> (i32, i32) {
    %c0_i32 = arith.constant 0 : i32
    %c0_i32_0 = arith.constant 0 : i32
    %c0_i32_1 = arith.constant 0 : i32
    return %c0_i32, %c0_i32_0 : i32, i32
  }
  func.func @transform_2(%arg0: i32, %arg1: i32) -> (i32, i32) {
    %c0_i32 = arith.constant 0 : i32
    %c0_i32_0 = arith.constant 0 : i32
    %c0_i32_1 = arith.constant 0 : i32
    return %c0_i32, %c0_i32_0 : i32, i32
  }
  func.func @transform_3(%arg0: i32, %arg1: i32) -> (i32, i32, i32) {
    %c0_i32 = arith.constant 0 : i32
    %c0_i32_0 = arith.constant 0 : i32
    %c0_i32_1 = arith.constant 0 : i32
    %c0_i32_2 = arith.constant 0 : i32
    return %c0_i32, %c0_i32_0, %c0_i32_1 : i32, i32, i32
  }
  func.func @transform_4(%arg0: i32, %arg1: i32) -> (i32, i32) {
    %c0_i32 = arith.constant 0 : i32
    %c0_i32_0 = arith.constant 0 : i32
    %c0_i32_1 = arith.constant 0 : i32
    return %c0_i32, %c0_i32_0 : i32, i32
  }
  func.func @transform_5(%arg0: i32, %arg1: i32) -> (i32, i32, i32, i32) {
    %c0_i32 = arith.constant 0 : i32
    %c0_i32_0 = arith.constant 0 : i32
    %c0_i32_1 = arith.constant 0 : i32
    return %arg0, %arg1, %c0_i32, %c0_i32_0 : i32, i32, i32, i32
  }
}

</mosaic_0001>

<llo_original>
// kernel: tpu_custom_call.1
$region0: #{tpu_custom_call.1}
  #allocation0 [shape = 'u32[]', space=smem, size = 0x4, offset = 0x4, fixed_abs, tag = 'smem constant byte address 0x4 - core index']
  #allocation1 [shape = 'u32[144,128]{1,0:T(1,128)}', space=vmem, size = 0x12000, scoped, tag = 'internal scratch']
  %s0 = inlined_call_operand.vmem [shape: bf16[2,16,16,4], index: 0, kind: input, shape index: {}]
  %s1 = inlined_call_operand.vmem [shape: bf16[4,2], index: 1, kind: input, shape index: {}]
  %s2 = inlined_call_operand.vmem [shape: f32[1,2], index: 2, kind: input, shape index: {}]
  %s3 = inlined_call_operand.vmem [shape: bf16[4,2,8], index: 3, kind: input, shape index: {}]
  %s4 = inlined_call_operand.vmem [shape: f32[1,8], index: 4, kind: input, shape index: {}]
  %s5 = inlined_call_operand.vmem [shape: f32[2,16,16,8], index: 5, kind: output, shape index: {}]
  %s6 = sld [smem:[#allocation0]]
  $region30: #{tpu_custom_call.1} parent=0
    _
  %s8 = ssub.s32 1, %s6
  %s9 = scalar_select 0, %s8, %s6
  // Predicated region
  $region2: #{tpu_custom_call.1} parent=0 // pred_check
    _
  $region3: #{tpu_custom_call.1} parent=0 // pred_check_branch
    %11 = sbr.rel (0) target = $region5
  $region4: #{tpu_custom_call.1} parent=0 // pred_region
    _
  $region5: #{tpu_custom_call.1} parent=0 // pred_fallthru
    _
  // Predicated region
  $region6: #{tpu_custom_call.1} parent=0 // pred_check
    _
  $region7: #{tpu_custom_call.1} parent=0 // pred_check_branch
    %13 = sbr.rel (0) target = $region9
  $region8: #{tpu_custom_call.1} parent=0 // pred_region
    _
  $region9: #{tpu_custom_call.1} parent=0 // pred_fallthru
    _
  // Predicated region
  $region10: #{tpu_custom_call.1} parent=0 // pred_check
    _
  $region11: #{tpu_custom_call.1} parent=0 // pred_check_branch
    %15 = sbr.rel (0) target = $region13
  $region12: #{tpu_custom_call.1} parent=0 // pred_region
    _
  $region13: #{tpu_custom_call.1} parent=0 // pred_fallthru
    _
  // Predicated region
  $region14: #{tpu_custom_call.1} parent=0 // pred_check
    _
  $region15: #{tpu_custom_call.1} parent=0 // pred_check_branch
    %17 = sbr.rel (0) target = $region17
  $region16: #{tpu_custom_call.1} parent=0 // pred_region
    _
  $region17: #{tpu_custom_call.1} parent=0 // pred_fallthru
    _
  // Predicated region
  $region18: #{tpu_custom_call.1} parent=0 // pred_check
    _
  $region19: #{tpu_custom_call.1} parent=0 // pred_check_branch
    %19 = sbr.rel (0) target = $region21
  $region20: #{tpu_custom_call.1} parent=0 // pred_region
    _
  $region21: #{tpu_custom_call.1} parent=0 // pred_fallthru
    _
  %v21 = vld [vmem:[%s0] sm:$0xf]
  %v22 = vld [vmem:[%s0 + $0x4] sm:$0xf]
  %v23 = vld [vmem:[%s0 + $0x8] sm:$0xf]
  %v24 = vld [vmem:[%s0 + $0xc] sm:$0xf]
  %v25 = vld [vmem:[%s0 + $0x10] sm:$0xf]
  %v26 = vld [vmem:[%s0 + $0x14] sm:$0xf]
  %v27 = vld [vmem:[%s0 + $0x18] sm:$0xf]
  %v28 = vld [vmem:[%s0 + $0x1c] sm:$0xf]
  %v29 = vld [vmem:[%s0 + $0x20] sm:$0xf]
  %v30 = vld [vmem:[%s0 + $0x24] sm:$0xf]
  %v31 = vld [vmem:[%s0 + $0x28] sm:$0xf]
  %v32 = vld [vmem:[%s0 + $0x2c] sm:$0xf]
  %v33 = vld [vmem:[%s0 + $0x30] sm:$0xf]
  %v34 = vld [vmem:[%s0 + $0x34] sm:$0xf]
  %v35 = vld [vmem:[%s0 + $0x38] sm:$0xf]
  %v36 = vld [vmem:[%s0 + $0x3c] sm:$0xf]
  %v37 = vld [vmem:[%s0 + $0x40] sm:$0xf]
  %v38 = vld [vmem:[%s0 + $0x44] sm:$0xf]
  %v39 = vld [vmem:[%s0 + $0x48] sm:$0xf]
  %v40 = vld [vmem:[%s0 + $0x4c] sm:$0xf]
  %v41 = vld [vmem:[%s0 + $0x50] sm:$0xf]
  %v42 = vld [vmem:[%s0 + $0x54] sm:$0xf]
  %v43 = vld [vmem:[%s0 + $0x58] sm:$0xf]
  %v44 = vld [vmem:[%s0 + $0x5c] sm:$0xf]
  %v45 = vld [vmem:[%s0 + $0x60] sm:$0xf]
  %v46 = vld [vmem:[%s0 + $0x64] sm:$0xf]
  %v47 = vld [vmem:[%s0 + $0x68] sm:$0xf]
  %v48 = vld [vmem:[%s0 + $0x6c] sm:$0xf]
  %v49 = vld [vmem:[%s0 + $0x70] sm:$0xf]
  %v50 = vld [vmem:[%s0 + $0x74] sm:$0xf]
  %v51 = vld [vmem:[%s0 + $0x78] sm:$0xf]
  %v52 = vld [vmem:[%s0 + $0x7c] sm:$0xf]
  %v53 = vld [vmem:[%s0 + $0x80] sm:$0xf]
  %v54 = vld [vmem:[%s0 + $0x84] sm:$0xf]
  %v55 = vld [vmem:[%s0 + $0x88] sm:$0xf]
  %v56 = vld [vmem:[%s0 + $0x8c] sm:$0xf]
  %v57 = vld [vmem:[%s0 + $0x90] sm:$0xf]
  %v58 = vld [vmem:[%s0 + $0x94] sm:$0xf]
  %v59 = vld [vmem:[%s0 + $0x98] sm:$0xf]
  %v60 = vld [vmem:[%s0 + $0x9c] sm:$0xf]
  %v61 = vld [vmem:[%s0 + $0xa0] sm:$0xf]
  %v62 = vld [vmem:[%s0 + $0xa4] sm:$0xf]
  %v63 = vld [vmem:[%s0 + $0xa8] sm:$0xf]
  %v64 = vld [vmem:[%s0 + $0xac] sm:$0xf]
  %v65 = vld [vmem:[%s0 + $0xb0] sm:$0xf]
  %v66 = vld [vmem:[%s0 + $0xb4] sm:$0xf]
  %v67 = vld [vmem:[%s0 + $0xb8] sm:$0xf]
  %v68 = vld [vmem:[%s0 + $0xbc] sm:$0xf]
  %v69 = vld [vmem:[%s0 + $0xc0] sm:$0xf]
  %v70 = vld [vmem:[%s0 + $0xc4] sm:$0xf]
  %v71 = vld [vmem:[%s0 + $0xc8] sm:$0xf]
  %v72 = vld [vmem:[%s0 + $0xcc] sm:$0xf]
  %v73 = vld [vmem:[%s0 + $0xd0] sm:$0xf]
  %v74 = vld [vmem:[%s0 + $0xd4] sm:$0xf]
  %v75 = vld [vmem:[%s0 + $0xd8] sm:$0xf]
  %v76 = vld [vmem:[%s0 + $0xdc] sm:$0xf]
  %v77 = vld [vmem:[%s0 + $0xe0] sm:$0xf]
  %v78 = vld [vmem:[%s0 + $0xe4] sm:$0xf]
  %v79 = vld [vmem:[%s0 + $0xe8] sm:$0xf]
  %v80 = vld [vmem:[%s0 + $0xec] sm:$0xf]
  %v81 = vld [vmem:[%s0 + $0xf0] sm:$0xf]
  %v82 = vld [vmem:[%s0 + $0xf4] sm:$0xf]
  %v83 = vld [vmem:[%s0 + $0xf8] sm:$0xf]
  %v84 = vld [vmem:[%s0 + $0xfc] sm:$0xf]
  %v85 = vld [vmem:[%s1] sm:$0x3]
  %v86 = vld [vmem:[%s2] sm:$0x1]
  %v88 = vlaneseq
  %v89 = vshrl.u32 %v88, 7
  %v90 = vsub.s32 0, %v89
  %v91 = vrot.slane %v86, %v90
  %v157 = vunpack.c.l.b16 %v21
  %v158 = vunpack.c.l.b16 %v22
  %v159 = vunpack.c.l.b16 %v23
  %v160 = vunpack.c.l.b16 %v24
  %v161 = vunpack.c.l.b16 %v25
  %v162 = vunpack.c.l.b16 %v26
  %v163 = vunpack.c.l.b16 %v27
  %v164 = vunpack.c.l.b16 %v28
  %v165 = vunpack.c.l.b16 %v29
  %v166 = vunpack.c.l.b16 %v30
  %v167 = vunpack.c.l.b16 %v31
  %v168 = vunpack.c.l.b16 %v32
  %v169 = vunpack.c.l.b16 %v33
  %v170 = vunpack.c.l.b16 %v34
  %v171 = vunpack.c.l.b16 %v35
  %v172 = vunpack.c.l.b16 %v36
  %v173 = vunpack.c.l.b16 %v37
  %v174 = vunpack.c.l.b16 %v38
  %v175 = vunpack.c.l.b16 %v39
  %v176 = vunpack.c.l.b16 %v40
  %v177 = vunpack.c.l.b16 %v41
  %v178 = vunpack.c.l.b16 %v42
  %v179 = vunpack.c.l.b16 %v43
  %v180 = vunpack.c.l.b16 %v44
  %v181 = vunpack.c.l.b16 %v45
  %v182 = vunpack.c.l.b16 %v46
  %v183 = vunpack.c.l.b16 %v47
  %v184 = vunpack.c.l.b16 %v48
  %v185 = vunpack.c.l.b16 %v49
  %v186 = vunpack.c.l.b16 %v50
  %v187 = vunpack.c.l.b16 %v51
  %v188 = vunpack.c.l.b16 %v52
  %v189 = vunpack.c.l.b16 %v53
  %v190 = vunpack.c.l.b16 %v54
  %v191 = vunpack.c.l.b16 %v55
  %v192 = vunpack.c.l.b16 %v56
  %v193 = vunpack.c.l.b16 %v57
  %v194 = vunpack.c.l.b16 %v58
  %v195 = vunpack.c.l.b16 %v59
  %v196 = vunpack.c.l.b16 %v60
  %v197 = vunpack.c.l.b16 %v61
  %v198 = vunpack.c.l.b16 %v62
  %v199 = vunpack.c.l.b16 %v63
  %v200 = vunpack.c.l.b16 %v64
  %v201 = vunpack.c.l.b16 %v65
  %v202 = vunpack.c.l.b16 %v66
  %v203 = vunpack.c.l.b16 %v67
  %v204 = vunpack.c.l.b16 %v68
  %v205 = vunpack.c.l.b16 %v69
  %v206 = vunpack.c.l.b16 %v70
  %v207 = vunpack.c.l.b16 %v71
  %v208 = vunpack.c.l.b16 %v72
  %v209 = vunpack.c.l.b16 %v73
  %v210 = vunpack.c.l.b16 %v74
  %v211 = vunpack.c.l.b16 %v75
  %v212 = vunpack.c.l.b16 %v76
  %v213 = vunpack.c.l.b16 %v77
  %v214 = vunpack.c.l.b16 %v78
  %v215 = vunpack.c.l.b16 %v79
  %v216 = vunpack.c.l.b16 %v80
  %v217 = vunpack.c.l.b16 %v81
  %v218 = vunpack.c.l.b16 %v82
  %v219 = vunpack.c.l.b16 %v83
  %v220 = vunpack.c.l.b16 %v84
  %v221 = vpack.c.b16 %v158, %v157
  %v222 = vpack.c.b16 %v160, %v159
  %v223 = vpack.c.b16 %v162, %v161
  %v224 = vpack.c.b16 %v164, %v163
  %v225 = vpack.c.b16 %v166, %v165
  %v226 = vpack.c.b16 %v168, %v167
  %v227 = vpack.c.b16 %v170, %v169
  %v228 = vpack.c.b16 %v172, %v171
  %v229 = vpack.c.b16 %v174, %v173
  %v230 = vpack.c.b16 %v176, %v175
  %v231 = vpack.c.b16 %v178, %v177
  %v232 = vpack.c.b16 %v180, %v179
  %v233 = vpack.c.b16 %v182, %v181
  %v234 = vpack.c.b16 %v184, %v183
  %v235 = vpack.c.b16 %v186, %v185
  %v236 = vpack.c.b16 %v188, %v187
  %v237 = vpack.c.b16 %v190, %v189
  %v238 = vpack.c.b16 %v192, %v191
  %v239 = vpack.c.b16 %v194, %v193
  %v240 = vpack.c.b16 %v196, %v195
  %v241 = vpack.c.b16 %v198, %v197
  %v242 = vpack.c.b16 %v200, %v199
  %v243 = vpack.c.b16 %v202, %v201
  %v244 = vpack.c.b16 %v204, %v203
  %v245 = vpack.c.b16 %v206, %v205
  %v246 = vpack.c.b16 %v208, %v207
  %v247 = vpack.c.b16 %v210, %v209
  %v248 = vpack.c.b16 %v212, %v211
  %v249 = vpack.c.b16 %v214, %v213
  %v250 = vpack.c.b16 %v216, %v215
  %v251 = vpack.c.b16 %v218, %v217
  %v252 = vpack.c.b16 %v220, %v219
  %vm253 = vcmask 31744
  %v255 = vsel %vm253, %v221, 0
  %v258 = vsel %vm253, %v222, 0
  %v261 = vsel %vm253, %v223, 0
  %v264 = vsel %vm253, %v224, 0
  %v267 = vsel %vm253, %v225, 0
  %v270 = vsel %vm253, %v226, 0
  %v273 = vsel %vm253, %v227, 0
  %v276 = vsel %vm253, %v228, 0
  %v279 = vsel %vm253, %v229, 0
  %v282 = vsel %vm253, %v230, 0
  %v285 = vsel %vm253, %v231, 0
  %v288 = vsel %vm253, %v232, 0
  %v291 = vsel %vm253, %v233, 0
  %v294 = vsel %vm253, %v234, 0
  %v297 = vsel %vm253, %v235, 0
  %v300 = vsel %vm253, %v236, 0
  %v303 = vsel %vm253, %v237, 0
  %v306 = vsel %vm253, %v238, 0
  %v309 = vsel %vm253, %v239, 0
  %v312 = vsel %vm253, %v240, 0
  %v315 = vsel %vm253, %v241, 0
  %v318 = vsel %vm253, %v242, 0
  %v321 = vsel %vm253, %v243, 0
  %v324 = vsel %vm253, %v244, 0
  %v327 = vsel %vm253, %v245, 0
  %v330 = vsel %vm253, %v246, 0
  %v333 = vsel %vm253, %v247, 0
  %v336 = vsel %vm253, %v248, 0
  %v339 = vsel %vm253, %v249, 0
  %v342 = vsel %vm253, %v250, 0
  %v345 = vsel %vm253, %v251, 0
  %v348 = vsel %vm253, %v252, 0
  %vm350 = vcmask 1041408
  %v352 = vsel %vm350, %v85, 0
  %354 = vmatprep.subr.bf16.mxu0 0
  %355 = vmatpush1.bf16.msra.mxu0 %v352
  %356 = vmatprep.subr.bf16.mxu0 0
  %357 = vmatpush1.bf16.msra.mxu0 0
  %358 = vmatprep.subr.bf16.mxu0 0
  %359 = vmatpush1.bf16.msra.mxu0 0
  %360 = vmatprep.subr.bf16.mxu0 0
  %361 = vmatpush1.bf16.msra.mxu0 0
  %362 = vmatprep.subr.bf16.mxu0 0
  %363 = vmatpush1.bf16.msra.mxu0 0
  %364 = vmatprep.subr.bf16.mxu0 0
  %365 = vmatpush1.bf16.msra.mxu0 0
  %366 = vmatprep.subr.bf16.mxu0 0
  %367 = vmatpush1.bf16.msra.mxu0 0
  %368 = vmatprep.subr.bf16.mxu0 0
  %369 = vmatpush1.bf16.msra.mxu0 0
  %370 = vmatprep.subr.bf16.mxu0 0
  %371 = vmatpush1.bf16.msra.mxu0 0
  %372 = vmatprep.subr.bf16.mxu0 0
  %373 = vmatpush1.bf16.msra.mxu0 0
  %374 = vmatprep.subr.bf16.mxu0 0
  %375 = vmatpush1.bf16.msra.mxu0 0
  %376 = vmatprep.subr.bf16.mxu0 0
  %377 = vmatpush1.bf16.msra.mxu0 0
  %378 = vmatprep.subr.bf16.mxu0 0
  %379 = vmatpush1.bf16.msra.mxu0 0
  %380 = vmatprep.subr.bf16.mxu0 0
  %381 = vmatpush1.bf16.msra.mxu0 0
  %382 = vmatprep.subr.bf16.mxu0 0
  %383 = vmatpush1.bf16.msra.mxu0 0
  %384 = vmatprep.subr.bf16.mxu0 0
  %385 = vmatpush1.bf16.msra.mxu0 0
  %386 = vmatprep.mubr.bf16.mxu0 0
  %387 = vmatmul.mubr.bf16.gmra.mrb[0].mxu0 %v255
  %v388 = vpop.f32.mrb[0].mxu0
  %v389 = vadd.f32 %v91, %v388
  %v390 = vpop.f32.mrb[0].mxu0
  %v391 = vpop.f32.mrb[0].mxu0
  %v392 = vadd.f32 %v91, %v391
  %v393 = vpop.f32.mrb[0].mxu0
  %394 = vmatprep.mubr.bf16.mxu0 0
  %395 = vmatmul.mubr.bf16.gmra.mrb[0].mxu0 %v258
  %v396 = vpop.f32.mrb[0].mxu0
  %v397 = vadd.f32 %v91, %v396
  %v398 = vpop.f32.mrb[0].mxu0
  %v399 = vpop.f32.mrb[0].mxu0
  %v400 = vadd.f32 %v91, %v399
  %v401 = vpop.f32.mrb[0].mxu0
  %402 = vmatprep.mubr.bf16.mxu0 0
  %403 = vmatmul.mubr.bf16.gmra.mrb[0].mxu0 %v261
  %v404 = vpop.f32.mrb[0].mxu0
  %v405 = vadd.f32 %v91, %v404
  %v406 = vpop.f32.mrb[0].mxu0
  %v407 = vpop.f32.mrb[0].mxu0
  %v408 = vadd.f32 %v91, %v407
  %v409 = vpop.f32.mrb[0].mxu0
  %410 = vmatprep.mubr.bf16.mxu0 0
  %411 = vmatmul.mubr.bf16.gmra.mrb[0].mxu0 %v264
  %v412 = vpop.f32.mrb[0].mxu0
  %v413 = vadd.f32 %v91, %v412
  %v414 = vpop.f32.mrb[0].mxu0
  %v415 = vpop.f32.mrb[0].mxu0
  %v416 = vadd.f32 %v91, %v415
  %v417 = vpop.f32.mrb[0].mxu0
  %418 = vmatprep.mubr.bf16.mxu0 0
  %419 = vmatmul.mubr.bf16.gmra.mrb[0].mxu0 %v267
  %v420 = vpop.f32.mrb[0].mxu0
  %v421 = vadd.f32 %v91, %v420
  %v422 = vpop.f32.mrb[0].mxu0
  %v423 = vpop.f32.mrb[0].mxu0
  %v424 = vadd.f32 %v91, %v423
  %v425 = vpop.f32.mrb[0].mxu0
  %426 = vmatprep.mubr.bf16.mxu0 0
  %427 = vmatmul.mubr.bf16.gmra.mrb[0].mxu0 %v270
  %v428 = vpop.f32.mrb[0].mxu0
  %v429 = vadd.f32 %v91, %v428
  %v430 = vpop.f32.mrb[0].mxu0
  %v431 = vpop.f32.mrb[0].mxu0
  %v432 = vadd.f32 %v91, %v431
  %v433 = vpop.f32.mrb[0].mxu0
  %434 = vmatprep.mubr.bf16.mxu0 0
  %435 = vmatmul.mubr.bf16.gmra.mrb[0].mxu0 %v273
  %v436 = vpop.f32.mrb[0].mxu0
  %v437 = vadd.f32 %v91, %v436
  %v438 = vpop.f32.mrb[0].mxu0
  %v439 = vpop.f32.mrb[0].mxu0
  %v440 = vadd.f32 %v91, %v439
  %v441 = vpop.f32.mrb[0].mxu0
  %442 = vmatprep.mubr.bf16.mxu0 0
  %443 = vmatmul.mubr.bf16.gmra.mrb[0].mxu0 %v276
  %v444 = vpop.f32.mrb[0].mxu0
  %v445 = vadd.f32 %v91, %v444
  %v446 = vpop.f32.mrb[0].mxu0
  %v447 = vpop.f32.mrb[0].mxu0
  %v448 = vadd.f32 %v91, %v447
  %v449 = vpop.f32.mrb[0].mxu0
  %450 = vmatprep.mubr.bf16.mxu0 0
  %451 = vmatmul.mubr.bf16.gmra.mrb[0].mxu0 %v279
  %v452 = vpop.f32.mrb[0].mxu0
  %v453 = vadd.f32 %v91, %v452
  %v454 = vpop.f32.mrb[0].mxu0
  %v455 = vpop.f32.mrb[0].mxu0
  %v456 = vadd.f32 %v91, %v455
  %v457 = vpop.f32.mrb[0].mxu0
  %458 = vmatprep.mubr.bf16.mxu0 0
  %459 = vmatmul.mubr.bf16.gmra.mrb[0].mxu0 %v282
  %v460 = vpop.f32.mrb[0].mxu0
  %v461 = vadd.f32 %v91, %v460
  %v462 = vpop.f32.mrb[0].mxu0
  %v463 = vpop.f32.mrb[0].mxu0
  %v464 = vadd.f32 %v91, %v463
  %v465 = vpop.f32.mrb[0].mxu0
  %466 = vmatprep.mubr.bf16.mxu0 0
  %467 = vmatmul.mubr.bf16.gmra.mrb[0].mxu0 %v285
  %v468 = vpop.f32.mrb[0].mxu0
  %v469 = vadd.f32 %v91, %v468
  %v470 = vpop.f32.mrb[0].mxu0
  %v471 = vpop.f32.mrb[0].mxu0
  %v472 = vadd.f32 %v91, %v471
  %v473 = vpop.f32.mrb[0].mxu0
  %474 = vmatprep.mubr.bf16.mxu0 0
  %475 = vmatmul.mubr.bf16.gmra.mrb[0].mxu0 %v288
  %v476 = vpop.f32.mrb[0].mxu0
  %v477 = vadd.f32 %v91, %v476
  %v478 = vpop.f32.mrb[0].mxu0
  %v479 = vpop.f32.mrb[0].mxu0
  %v480 = vadd.f32 %v91, %v479
  %v481 = vpop.f32.mrb[0].mxu0
  %482 = vmatprep.mubr.bf16.mxu0 0
  %483 = vmatmul.mubr.bf16.gmra.mrb[0].mxu0 %v291
  %v484 = vpop.f32.mrb[0].mxu0
  %v485 = vadd.f32 %v91, %v484
  %v486 = vpop.f32.mrb[0].mxu0
  %v487 = vpop.f32.mrb[0].mxu0
  %v488 = vadd.f32 %v91, %v487
  %v489 = vpop.f32.mrb[0].mxu0
  %490 = vmatprep.mubr.bf16.mxu0 0
  %491 = vmatmul.mubr.bf16.gmra.mrb[0].mxu0 %v294
  %v492 = vpop.f32.mrb[0].mxu0
  %v493 = vadd.f32 %v91, %v492
  %v494 = vpop.f32.mrb[0].mxu0
  %v495 = vpop.f32.mrb[0].mxu0
  %v496 = vadd.f32 %v91, %v495
  %v497 = vpop.f32.mrb[0].mxu0
  %498 = vmatprep.mubr.bf16.mxu0 0
  %499 = vmatmul.mubr.bf16.gmra.mrb[0].mxu0 %v297
  %v500 = vpop.f32.mrb[0].mxu0
  %v501 = vadd.f32 %v91, %v500
  %v502 = vpop.f32.mrb[0].mxu0
  %v503 = vpop.f32.mrb[0].mxu0
  %v504 = vadd.f32 %v91, %v503
  %v505 = vpop.f32.mrb[0].mxu0
  %506 = vmatprep.mubr.bf16.mxu0 0
  %507 = vmatmul.mubr.bf16.gmra.mrb[0].mxu0 %v300
  %v508 = vpop.f32.mrb[0].mxu0
  %v509 = vadd.f32 %v91, %v508
  %v510 = vpop.f32.mrb[0].mxu0
  %v511 = vpop.f32.mrb[0].mxu0
  %v512 = vadd.f32 %v91, %v511
  %v513 = vpop.f32.mrb[0].mxu0
  %514 = vmatprep.mubr.bf16.mxu0 0
  %515 = vmatmul.mubr.bf16.gmra.mrb[0].mxu0 %v303
  %v516 = vpop.f32.mrb[0].mxu0
  %v517 = vadd.f32 %v91, %v516
  %v518 = vpop.f32.mrb[0].mxu0
  %v519 = vpop.f32.mrb[0].mxu0
  %v520 = vadd.f32 %v91, %v519
  %v521 = vpop.f32.mrb[0].mxu0
  %522 = vmatprep.mubr.bf16.mxu0 0
  %523 = vmatmul.mubr.bf16.gmra.mrb[0].mxu0 %v306
  %v524 = vpop.f32.mrb[0].mxu0
  %v525 = vadd.f32 %v91, %v524
  %v526 = vpop.f32.mrb[0].mxu0
  %v527 = vpop.f32.mrb[0].mxu0
  %v528 = vadd.f32 %v91, %v527
  %v529 = vpop.f32.mrb[0].mxu0
  %530 = vmatprep.mubr.bf16.mxu0 0
  %531 = vmatmul.mubr.bf16.gmra.mrb[0].mxu0 %v309
  %v532 = vpop.f32.mrb[0].mxu0
  %v533 = vadd.f32 %v91, %v532
  %v534 = vpop.f32.mrb[0].mxu0
  %v535 = vpop.f32.mrb[0].mxu0
  %v536 = vadd.f32 %v91, %v535
  %v537 = vpop.f32.mrb[0].mxu0
  %538 = vmatprep.mubr.bf16.mxu0 0
  %539 = vmatmul.mubr.bf16.gmra.mrb[0].mxu0 %v312
  %v540 = vpop.f32.mrb[0].mxu0
  %v541 = vadd.f32 %v91, %v540
  %v542 = vpop.f32.mrb[0].mxu0
  %v543 = vpop.f32.mrb[0].mxu0
  %v544 = vadd.f32 %v91, %v543
  %v545 = vpop.f32.mrb[0].mxu0
  %546 = vmatprep.mubr.bf16.mxu0 0
  %547 = vmatmul.mubr.bf16.gmra.mrb[0].mxu0 %v315
  %v548 = vpop.f32.mrb[0].mxu0
  %v549 = vadd.f32 %v91, %v548
  %v550 = vpop.f32.mrb[0].mxu0
  %v551 = vpop.f32.mrb[0].mxu0
  %v552 = vadd.f32 %v91, %v551
  %v553 = vpop.f32.mrb[0].mxu0
  %554 = vmatprep.mubr.bf16.mxu0 0
  %555 = vmatmul.mubr.bf16.gmra.mrb[0].mxu0 %v318
  %v556 = vpop.f32.mrb[0].mxu0
  %v557 = vadd.f32 %v91, %v556
  %v558 = vpop.f32.mrb[0].mxu0
  %v559 = vpop.f32.mrb[0].mxu0
  %v560 = vadd.f32 %v91, %v559
  %v561 = vpop.f32.mrb[0].mxu0
  %562 = vmatprep.mubr.bf16.mxu0 0
  %563 = vmatmul.mubr.bf16.gmra.mrb[0].mxu0 %v321
  %v564 = vpop.f32.mrb[0].mxu0
  %v565 = vadd.f32 %v91, %v564
  %v566 = vpop.f32.mrb[0].mxu0
  %v567 = vpop.f32.mrb[0].mxu0
  %v568 = vadd.f32 %v91, %v567
  %v569 = vpop.f32.mrb[0].mxu0
  %570 = vmatprep.mubr.bf16.mxu0 0
  %571 = vmatmul.mubr.bf16.gmra.mrb[0].mxu0 %v324
  %v572 = vpop.f32.mrb[0].mxu0
  %v573 = vadd.f32 %v91, %v572
  %v574 = vpop.f32.mrb[0].mxu0
  %v575 = vpop.f32.mrb[0].mxu0
  %v576 = vadd.f32 %v91, %v575
  %v577 = vpop.f32.mrb[0].mxu0
  %578 = vmatprep.mubr.bf16.mxu0 0
  %579 = vmatmul.mubr.bf16.gmra.mrb[0].mxu0 %v327
  %v580 = vpop.f32.mrb[0].mxu0
  %v581 = vadd.f32 %v91, %v580
  %v582 = vpop.f32.mrb[0].mxu0
  %v583 = vpop.f32.mrb[0].mxu0
  %v584 = vadd.f32 %v91, %v583
  %v585 = vpop.f32.mrb[0].mxu0
  %586 = vmatprep.mubr.bf16.mxu0 0
  %587 = vmatmul.mubr.bf16.gmra.mrb[0].mxu0 %v330
  %v588 = vpop.f32.mrb[0].mxu0
  %v589 = vadd.f32 %v91, %v588
  %v590 = vpop.f32.mrb[0].mxu0
  %v591 = vpop.f32.mrb[0].mxu0
  %v592 = vadd.f32 %v91, %v591
  %v593 = vpop.f32.mrb[0].mxu0
  %594 = vmatprep.mubr.bf16.mxu0 0
  %595 = vmatmul.mubr.bf16.gmra.mrb[0].mxu0 %v333
  %v596 = vpop.f32.mrb[0].mxu0
  %v597 = vadd.f32 %v91, %v596
  %v598 = vpop.f32.mrb[0].mxu0
  %v599 = vpop.f32.mrb[0].mxu0
  %v600 = vadd.f32 %v91, %v599
  %v601 = vpop.f32.mrb[0].mxu0
  %602 = vmatprep.mubr.bf16.mxu0 0
  %603 = vmatmul.mubr.bf16.gmra.mrb[0].mxu0 %v336
  %v604 = vpop.f32.mrb[0].mxu0
  %v605 = vadd.f32 %v91, %v604
  %v606 = vpop.f32.mrb[0].mxu0
  %v607 = vpop.f32.mrb[0].mxu0
  %v608 = vadd.f32 %v91, %v607
  %v609 = vpop.f32.mrb[0].mxu0
  %610 = vmatprep.mubr.bf16.mxu0 0
  %611 = vmatmul.mubr.bf16.gmra.mrb[0].mxu0 %v339
  %v612 = vpop.f32.mrb[0].mxu0
  %v613 = vadd.f32 %v91, %v612
  %v614 = vpop.f32.mrb[0].mxu0
  %v615 = vpop.f32.mrb[0].mxu0
  %v616 = vadd.f32 %v91, %v615
  %v617 = vpop.f32.mrb[0].mxu0
  %618 = vmatprep.mubr.bf16.mxu0 0
  %619 = vmatmul.mubr.bf16.gmra.mrb[0].mxu0 %v342
  %v620 = vpop.f32.mrb[0].mxu0
  %v621 = vadd.f32 %v91, %v620
  %v622 = vpop.f32.mrb[0].mxu0
  %v623 = vpop.f32.mrb[0].mxu0
  %v624 = vadd.f32 %v91, %v623
  %v625 = vpop.f32.mrb[0].mxu0
  %626 = vmatprep.mubr.bf16.mxu0 0
  %627 = vmatmul.mubr.bf16.gmra.mrb[0].mxu0 %v345
  %v628 = vpop.f32.mrb[0].mxu0
  %v629 = vadd.f32 %v91, %v628
  %v630 = vpop.f32.mrb[0].mxu0
  %v631 = vpop.f32.mrb[0].mxu0
  %v632 = vadd.f32 %v91, %v631
  %v633 = vpop.f32.mrb[0].mxu0
  %634 = vmatprep.mubr.bf16.mxu0 0
  %635 = vmatmul.mubr.bf16.gmra.mrb[0].mxu0 %v348
  %v636 = vpop.f32.mrb[0].mxu0
  %v637 = vadd.f32 %v91, %v636
  %v638 = vpop.f32.mrb[0].mxu0
  %v639 = vpop.f32.mrb[0].mxu0
  %v640 = vadd.f32 %v91, %v639
  %v641 = vpop.f32.mrb[0].mxu0
  %642 = vdwg.mxu0
  %v643 = vmul.f32 %v389, 0.1
  %v644 = vmul.f32 %v392, 0.1
  %v645 = vmul.f32 %v397, 0.1
  %v646 = vmul.f32 %v400, 0.1
  %v647 = vmul.f32 %v405, 0.1
  %v648 = vmul.f32 %v408, 0.1
  %v649 = vmul.f32 %v413, 0.1
  %v650 = vmul.f32 %v416, 0.1
  %v651 = vmul.f32 %v421, 0.1
  %v652 = vmul.f32 %v424, 0.1
  %v653 = vmul.f32 %v429, 0.1
  %v654 = vmul.f32 %v432, 0.1
  %v655 = vmul.f32 %v437, 0.1
  %v656 = vmul.f32 %v440, 0.1
  %v657 = vmul.f32 %v445, 0.1
  %v658 = vmul.f32 %v448, 0.1
  %v659 = vmul.f32 %v453, 0.1
  %v660 = vmul.f32 %v456, 0.1
  %v661 = vmul.f32 %v461, 0.1
  %v662 = vmul.f32 %v464, 0.1
  %v663 = vmul.f32 %v469, 0.1
  %v664 = vmul.f32 %v472, 0.1
  %v665 = vmul.f32 %v477, 0.1
  %v666 = vmul.f32 %v480, 0.1
  %v667 = vmul.f32 %v485, 0.1
  %v668 = vmul.f32 %v488, 0.1
  %v669 = vmul.f32 %v493, 0.1
  %v670 = vmul.f32 %v496, 0.1
  %v671 = vmul.f32 %v501, 0.1
  %v672 = vmul.f32 %v504, 0.1
  %v673 = vmul.f32 %v509, 0.1
  %v674 = vmul.f32 %v512, 0.1
  %v675 = vmul.f32 %v517, 0.1
  %v676 = vmul.f32 %v520, 0.1
  %v677 = vmul.f32 %v525, 0.1
  %v678 = vmul.f32 %v528, 0.1
  %v679 = vmul.f32 %v533, 0.1
  %v680 = vmul.f32 %v536, 0.1
  %v681 = vmul.f32 %v541, 0.1
  %v682 = vmul.f32 %v544, 0.1
  %v683 = vmul.f32 %v549, 0.1
  %v684 = vmul.f32 %v552, 0.1
  %v685 = vmul.f32 %v557, 0.1
  %v686 = vmul.f32 %v560, 0.1
  %v687 = vmul.f32 %v565, 0.1
  %v688 = vmul.f32 %v568, 0.1
  %v689 = vmul.f32 %v573, 0.1
  %v690 = vmul.f32 %v576, 0.1
  %v691 = vmul.f32 %v581, 0.1
  %v692 = vmul.f32 %v584, 0.1
  %v693 = vmul.f32 %v589, 0.1
  %v694 = vmul.f32 %v592, 0.1
  %v695 = vmul.f32 %v597, 0.1
  %v696 = vmul.f32 %v600, 0.1
  %v697 = vmul.f32 %v605, 0.1
  %v698 = vmul.f32 %v608, 0.1
  %v699 = vmul.f32 %v613, 0.1
  %v700 = vmul.f32 %v616, 0.1
  %v701 = vmul.f32 %v621, 0.1
  %v702 = vmul.f32 %v624, 0.1
  %v703 = vmul.f32 %v629, 0.1
  %v704 = vmul.f32 %v632, 0.1
  %v705 = vmul.f32 %v637, 0.1
  %v706 = vmul.f32 %v640, 0.1
  %v707 = vmax.f32 %v389, %v643
  %v708 = vmax.f32 %v392, %v644
  %v709 = vmax.f32 %v397, %v645
  %v710 = vmax.f32 %v400, %v646
  %v711 = vmax.f32 %v405, %v647
  %v712 = vmax.f32 %v408, %v648
  %v713 = vmax.f32 %v413, %v649
  %v714 = vmax.f32 %v416, %v650
  %v715 = vmax.f32 %v421, %v651
  %v716 = vmax.f32 %v424, %v652
  %v717 = vmax.f32 %v429, %v653
  %v718 = vmax.f32 %v432, %v654
  %v719 = vmax.f32 %v437, %v655
  %v720 = vmax.f32 %v440, %v656
  %v721 = vmax.f32 %v445, %v657
  %v722 = vmax.f32 %v448, %v658
  %v723 = vmax.f32 %v453, %v659
  %v724 = vmax.f32 %v456, %v660
  %v725 = vmax.f32 %v461, %v661
  %v726 = vmax.f32 %v464, %v662
  %v727 = vmax.f32 %v469, %v663
  %v728 = vmax.f32 %v472, %v664
  %v729 = vmax.f32 %v477, %v665
  %v730 = vmax.f32 %v480, %v666
  %v731 = vmax.f32 %v485, %v667
  %v732 = vmax.f32 %v488, %v668
  %v733 = vmax.f32 %v493, %v669
  %v734 = vmax.f32 %v496, %v670
  %v735 = vmax.f32 %v501, %v671
  %v736 = vmax.f32 %v504, %v672
  %v737 = vmax.f32 %v509, %v673
  %v738 = vmax.f32 %v512, %v674
  %v739 = vmax.f32 %v517, %v675
  %v740 = vmax.f32 %v520, %v676
  %v741 = vmax.f32 %v525, %v677
  %v742 = vmax.f32 %v528, %v678
  %v743 = vmax.f32 %v533, %v679
  %v744 = vmax.f32 %v536, %v680
  %v745 = vmax.f32 %v541, %v681
  %v746 = vmax.f32 %v544, %v682
  %v747 = vmax.f32 %v549, %v683
  %v748 = vmax.f32 %v552, %v684
  %v749 = vmax.f32 %v557, %v685
  %v750 = vmax.f32 %v560, %v686
  %v751 = vmax.f32 %v565, %v687
  %v752 = vmax.f32 %v568, %v688
  %v753 = vmax.f32 %v573, %v689
  %v754 = vmax.f32 %v576, %v690
  %v755 = vmax.f32 %v581, %v691
  %v756 = vmax.f32 %v584, %v692
  %v757 = vmax.f32 %v589, %v693
  %v758 = vmax.f32 %v592, %v694
  %v759 = vmax.f32 %v597, %v695
  %v760 = vmax.f32 %v600, %v696
  %v761 = vmax.f32 %v605, %v697
  %v762 = vmax.f32 %v608, %v698
  %v763 = vmax.f32 %v613, %v699
  %v764 = vmax.f32 %v616, %v700
  %v765 = vmax.f32 %v621, %v701
  %v766 = vmax.f32 %v624, %v702
  %v767 = vmax.f32 %v629, %v703
  %v768 = vmax.f32 %v632, %v704
  %v769 = vmax.f32 %v637, %v705
  %v770 = vmax.f32 %v640, %v706
  %v771 = vpack.c.bf16 %v708, %v707
  %v772 = vpack.c.bf16 %v710, %v709
  %v773 = vpack.c.bf16 %v712, %v711
  %v774 = vpack.c.bf16 %v714, %v713
  %v775 = vpack.c.bf16 %v716, %v715
  %v776 = vpack.c.bf16 %v718, %v717
  %v777 = vpack.c.bf16 %v720, %v719
  %v778 = vpack.c.bf16 %v722, %v721
  %v779 = vpack.c.bf16 %v724, %v723
  %v780 = vpack.c.bf16 %v726, %v725
  %v781 = vpack.c.bf16 %v728, %v727
  %v782 = vpack.c.bf16 %v730, %v729
  %v783 = vpack.c.bf16 %v732, %v731
  %v784 = vpack.c.bf16 %v734, %v733
  %v785 = vpack.c.bf16 %v736, %v735
  %v786 = vpack.c.bf16 %v738, %v737
  %v787 = vpack.c.bf16 %v740, %v739
  %v788 = vpack.c.bf16 %v742, %v741
  %v789 = vpack.c.bf16 %v744, %v743
  %v790 = vpack.c.bf16 %v746, %v745
  %v791 = vpack.c.bf16 %v748, %v747
  %v792 = vpack.c.bf16 %v750, %v749
  %v793 = vpack.c.bf16 %v752, %v751
  %v794 = vpack.c.bf16 %v754, %v753
  %v795 = vpack.c.bf16 %v756, %v755
  %v796 = vpack.c.bf16 %v758, %v757
  %v797 = vpack.c.bf16 %v760, %v759
  %v798 = vpack.c.bf16 %v762, %v761
  %v799 = vpack.c.bf16 %v764, %v763
  %v800 = vpack.c.bf16 %v766, %v765
  %v801 = vpack.c.bf16 %v768, %v767
  %v802 = vpack.c.bf16 %v770, %v769
  %v803 = vld [vmem:[%s3] sm:$0x1]
  %v804 = vmax.f32 %v707, -1e+30
  %v805 = vmax.f32 %v708, -1e+30
  %v806 = vmax.f32 %v707, %v709
  %v807 = vmax.f32 %v708, %v710
  %v808 = vmax.f32 %v709, %v711
  %v809 = vmax.f32 %v710, %v712
  %v810 = vmax.f32 %v711, %v713
  %v811 = vmax.f32 %v712, %v714
  %v812 = vmax.f32 %v713, %v715
  %v813 = vmax.f32 %v714, %v716
  %v814 = vmax.f32 %v715, %v717
  %v815 = vmax.f32 %v716, %v718
  %v816 = vmax.f32 %v717, %v719
  %v817 = vmax.f32 %v718, %v720
  %v818 = vmax.f32 %v719, %v721
  %v819 = vmax.f32 %v720, %v722
  %v820 = vmax.f32 %v721, %v723
  %v821 = vmax.f32 %v722, %v724
  %v822 = vmax.f32 %v723, %v725
  %v823 = vmax.f32 %v724, %v726
  %v824 = vmax.f32 %v725, %v727
  %v825 = vmax.f32 %v726, %v728
  %v826 = vmax.f32 %v727, %v729
  %v827 = vmax.f32 %v728, %v730
  %v828 = vmax.f32 %v729, %v731
  %v829 = vmax.f32 %v730, %v732
  %v830 = vmax.f32 %v731, %v733
  %v831 = vmax.f32 %v732, %v734
  %v832 = vmax.f32 %v733, %v735
  %v833 = vmax.f32 %v734, %v736
  %v834 = vmax.f32 %v735, %v737
  %v835 = vmax.f32 %v736, %v738
  %v836 = vmax.f32 %v737, -1e+30
  %v837 = vmax.f32 %v738, -1e+30
  %v838 = vmax.f32 %v739, -1e+30
  %v839 = vmax.f32 %v740, -1e+30
  %v840 = vmax.f32 %v739, %v741
  %v841 = vmax.f32 %v740, %v742
  %v842 = vmax.f32 %v741, %v743
  %v843 = vmax.f32 %v742, %v744
  %v844 = vmax.f32 %v743, %v745
  %v845 = vmax.f32 %v744, %v746
  %v846 = vmax.f32 %v745, %v747
  %v847 = vmax.f32 %v746, %v748
  %v848 = vmax.f32 %v747, %v749
  %v849 = vmax.f32 %v748, %v750
  %v850 = vmax.f32 %v749, %v751
  %v851 = vmax.f32 %v750, %v752
  %v852 = vmax.f32 %v751, %v753
  %v853 = vmax.f32 %v752, %v754
  %v854 = vmax.f32 %v753, %v755
  %v855 = vmax.f32 %v754, %v756
  %v856 = vmax.f32 %v755, %v757
  %v857 = vmax.f32 %v756, %v758
  %v858 = vmax.f32 %v757, %v759
  %v859 = vmax.f32 %v758, %v760
  %v860 = vmax.f32 %v759, %v761
  %v861 = vmax.f32 %v760, %v762
  %v862 = vmax.f32 %v761, %v763
  %v863 = vmax.f32 %v762, %v764
  %v864 = vmax.f32 %v763, %v765
  %v865 = vmax.f32 %v764, %v766
  %v866 = vmax.f32 %v765, %v767
  %v867 = vmax.f32 %v766, %v768
  %v868 = vmax.f32 %v767, %v769
  %v869 = vmax.f32 %v768, %v770
  %v870 = vmax.f32 %v769, -1e+30
  %v871 = vmax.f32 %v770, -1e+30
  %v872 = vmax.f32 %v804, %v709
  %v873 = vmax.f32 %v805, %v710
  %v874 = vmax.f32 %v806, %v711
  %v875 = vmax.f32 %v807, %v712
  %v876 = vmax.f32 %v808, %v713
  %v877 = vmax.f32 %v809, %v714
  %v878 = vmax.f32 %v810, %v715
  %v879 = vmax.f32 %v811, %v716
  %v880 = vmax.f32 %v812, %v717
  %v881 = vmax.f32 %v813, %v718
  %v882 = vmax.f32 %v814, %v719
  %v883 = vmax.f32 %v815, %v720
  %v884 = vmax.f32 %v816, %v721
  %v885 = vmax.f32 %v817, %v722
  %v886 = vmax.f32 %v818, %v723
  %v887 = vmax.f32 %v819, %v724
  %v888 = vmax.f32 %v820, %v725
  %v889 = vmax.f32 %v821, %v726
  %v890 = vmax.f32 %v822, %v727
  %v891 = vmax.f32 %v823, %v728
  %v892 = vmax.f32 %v824, %v729
  %v893 = vmax.f32 %v825, %v730
  %v894 = vmax.f32 %v826, %v731
  %v895 = vmax.f32 %v827, %v732
  %v896 = vmax.f32 %v828, %v733
  %v897 = vmax.f32 %v829, %v734
  %v898 = vmax.f32 %v830, %v735
  %v899 = vmax.f32 %v831, %v736
  %v900 = vmax.f32 %v832, %v737
  %v901 = vmax.f32 %v833, %v738
  %v902 = vmax.f32 %v834, -1e+30
  %v903 = vmax.f32 %v835, -1e+30
  %v904 = vmax.f32 %v836, -1e+30
  %v905 = vmax.f32 %v837, -1e+30
  %v906 = vmax.f32 %v838, %v741
  %v907 = vmax.f32 %v839, %v742
  %v908 = vmax.f32 %v840, %v743
  %v909 = vmax.f32 %v841, %v744
  %v910 = vmax.f32 %v842, %v745
  %v911 = vmax.f32 %v843, %v746
  %v912 = vmax.f32 %v844, %v747
  %v913 = vmax.f32 %v845, %v748
  %v914 = vmax.f32 %v846, %v749
  %v915 = vmax.f32 %v847, %v750
  %v916 = vmax.f32 %v848, %v751
  %v917 = vmax.f32 %v849, %v752
  %v918 = vmax.f32 %v850, %v753
  %v919 = vmax.f32 %v851, %v754
  %v920 = vmax.f32 %v852, %v755
  %v921 = vmax.f32 %v853, %v756
  %v922 = vmax.f32 %v854, %v757
  %v923 = vmax.f32 %v855, %v758
  %v924 = vmax.f32 %v856, %v759
  %v925 = vmax.f32 %v857, %v760
  %v926 = vmax.f32 %v858, %v761
  %v927 = vmax.f32 %v859, %v762
  %v928 = vmax.f32 %v860, %v763
  %v929 = vmax.f32 %v861, %v764
  %v930 = vmax.f32 %v862, %v765
  %v931 = vmax.f32 %v863, %v766
  %v932 = vmax.f32 %v864, %v767
  %v933 = vmax.f32 %v865, %v768
  %v934 = vmax.f32 %v866, %v769
  %v935 = vmax.f32 %v867, %v770
  %v936 = vmax.f32 %v868, -1e+30
  %v937 = vmax.f32 %v869, -1e+30
  %v938 = vmax.f32 %v870, -1e+30
  %v939 = vmax.f32 %v871, -1e+30
  %v940 = vmax.f32 %v872, %v711
  %v941 = vmax.f32 %v873, %v712
  %v942 = vmax.f32 %v874, %v713
  %v943 = vmax.f32 %v875, %v714
  %v944 = vmax.f32 %v876, %v715
  %v945 = vmax.f32 %v877, %v716
  %v946 = vmax.f32 %v878, %v717
  %v947 = vmax.f32 %v879, %v718
  %v948 = vmax.f32 %v880, %v719
  %v949 = vmax.f32 %v881, %v720
  %v950 = vmax.f32 %v882, %v721
  %v951 = vmax.f32 %v883, %v722
  %v952 = vmax.f32 %v884, %v723
  %v953 = vmax.f32 %v885, %v724
  %v954 = vmax.f32 %v886, %v725
  %v955 = vmax.f32 %v887, %v726
  %v956 = vmax.f32 %v888, %v727
  %v957 = vmax.f32 %v889, %v728
  %v958 = vmax.f32 %v890, %v729
  %v959 = vmax.f32 %v891, %v730
  %v960 = vmax.f32 %v892, %v731
  %v961 = vmax.f32 %v893, %v732
  %v962 = vmax.f32 %v894, %v733
  %v963 = vmax.f32 %v895, %v734
  %v964 = vmax.f32 %v896, %v735
  %v965 = vmax.f32 %v897, %v736
  %v966 = vmax.f32 %v898, %v737
  %v967 = vmax.f32 %v899, %v738
  %v968 = vmax.f32 %v900, -1e+30
  %v969 = vmax.f32 %v901, -1e+30
  %v970 = vmax.f32 %v902, -1e+30
  %v971 = vmax.f32 %v903, -1e+30
  %v972 = vmax.f32 %v904, -1e+30
  %v973 = vmax.f32 %v905, -1e+30
  %v974 = vmax.f32 %v906, %v743
  %v975 = vmax.f32 %v907, %v744
  %v976 = vmax.f32 %v908, %v745
  %v977 = vmax.f32 %v909, %v746
  %v978 = vmax.f32 %v910, %v747
  %v979 = vmax.f32 %v911, %v748
  %v980 = vmax.f32 %v912, %v749
  %v981 = vmax.f32 %v913, %v750
  %v982 = vmax.f32 %v914, %v751
  %v983 = vmax.f32 %v915, %v752
  %v984 = vmax.f32 %v916, %v753
  %v985 = vmax.f32 %v917, %v754
  %v986 = vmax.f32 %v918, %v755
  %v987 = vmax.f32 %v919, %v756
  %v988 = vmax.f32 %v920, %v757
  %v989 = vmax.f32 %v921, %v758
  %v990 = vmax.f32 %v922, %v759
  %v991 = vmax.f32 %v923, %v760
  %v992 = vmax.f32 %v924, %v761
  %v993 = vmax.f32 %v925, %v762
  %v994 = vmax.f32 %v926, %v763
  %v995 = vmax.f32 %v927, %v764
  %v996 = vmax.f32 %v928, %v765
  %v997 = vmax.f32 %v929, %v766
  %v998 = vmax.f32 %v930, %v767
  %v999 = vmax.f32 %v931, %v768
  %v1000 = vmax.f32 %v932, %v769
  %v1001 = vmax.f32 %v933, %v770
  %v1002 = vmax.f32 %v934, -1e+30
  %v1003 = vmax.f32 %v935, -1e+30
  %v1004 = vmax.f32 %v936, -1e+30
  %v1005 = vmax.f32 %v937, -1e+30
  %v1006 = vmax.f32 %v938, -1e+30
  %v1007 = vmax.f32 %v939, -1e+30
  %v1008 = vmax.f32 %v940, %v713
  %v1009 = vmax.f32 %v941, %v714
  %v1010 = vmax.f32 %v942, %v715
  %v1011 = vmax.f32 %v943, %v716
  %v1012 = vmax.f32 %v944, %v717
  %v1013 = vmax.f32 %v945, %v718
  %v1014 = vmax.f32 %v946, %v719
  %v1015 = vmax.f32 %v947, %v720
  %v1016 = vmax.f32 %v948, %v721
  %v1017 = vmax.f32 %v949, %v722
  %v1018 = vmax.f32 %v950, %v723
  %v1019 = vmax.f32 %v951, %v724
  %v1020 = vmax.f32 %v952, %v725
  %v1021 = vmax.f32 %v953, %v726
  %v1022 = vmax.f32 %v954, %v727
  %v1023 = vmax.f32 %v955, %v728
  %v1024 = vmax.f32 %v956, %v729
  %v1025 = vmax.f32 %v957, %v730
  %v1026 = vmax.f32 %v958, %v731
  %v1027 = vmax.f32 %v959, %v732
  %v1028 = vmax.f32 %v960, %v733
  %v1029 = vmax.f32 %v961, %v734
  %v1030 = vmax.f32 %v962, %v735
  %v1031 = vmax.f32 %v963, %v736
  %v1032 = vmax.f32 %v964, %v737
  %v1033 = vmax.f32 %v965, %v738
  %v1034 = vmax.f32 %v966, -1e+30
  %v1035 = vmax.f32 %v967, -1e+30
  %v1036 = vmax.f32 %v968, -1e+30
  %v1037 = vmax.f32 %v969, -1e+30
  %v1038 = vmax.f32 %v970, -1e+30
  %v1039 = vmax.f32 %v971, -1e+30
  %v1040 = vmax.f32 %v972, -1e+30
  %v1041 = vmax.f32 %v973, -1e+30
  %v1042 = vmax.f32 %v974, %v745
  %v1043 = vmax.f32 %v975, %v746
  %v1044 = vmax.f32 %v976, %v747
  %v1045 = vmax.f32 %v977, %v748
  %v1046 = vmax.f32 %v978, %v749
  %v1047 = vmax.f32 %v979, %v750
  %v1048 = vmax.f32 %v980, %v751
  %v1049 = vmax.f32 %v981, %v752
  %v1050 = vmax.f32 %v982, %v753
  %v1051 = vmax.f32 %v983, %v754
  %v1052 = vmax.f32 %v984, %v755
  %v1053 = vmax.f32 %v985, %v756
  %v1054 = vmax.f32 %v986, %v757
  %v1055 = vmax.f32 %v987, %v758
  %v1056 = vmax.f32 %v988, %v759
  %v1057 = vmax.f32 %v989, %v760
  %v1058 = vmax.f32 %v990, %v761
  %v1059 = vmax.f32 %v991, %v762
  %v1060 = vmax.f32 %v992, %v763
  %v1061 = vmax.f32 %v993, %v764
  %v1062 = vmax.f32 %v994, %v765
  %v1063 = vmax.f32 %v995, %v766
  %v1064 = vmax.f32 %v996, %v767
  %v1065 = vmax.f32 %v997, %v768
  %v1066 = vmax.f32 %v998, %v769
  %v1067 = vmax.f32 %v999, %v770
  %v1068 = vmax.f32 %v1000, -1e+30
  %v1069 = vmax.f32 %v1001, -1e+30
  %v1070 = vmax.f32 %v1002, -1e+30
  %v1071 = vmax.f32 %v1003, -1e+30
  %v1072 = vmax.f32 %v1004, -1e+30
  %v1073 = vmax.f32 %v1005, -1e+30
  %v1074 = vmax.f32 %v1006, -1e+30
  %v1075 = vmax.f32 %v1007, -1e+30
  %vm1157 = vcmask 1046528
  %v1158 = vrot.slane -1e+30, 1
  %v1159 = vsel %vm1157, %v1158, %v1158
  %v1160 = vrot.slane %v804, 1
  %v1161 = vsel %vm1157, %v1158, %v1160
  %v1162 = vrot.slane %v805, 1
  %v1163 = vsel %vm1157, %v1160, %v1162
  %v1164 = vsel %vm1157, %v1162, %v1158
  %v1165 = vrot.slane %v872, 1
  %v1166 = vsel %vm1157, %v1158, %v1165
  %v1167 = vrot.slane %v873, 1
  %v1168 = vsel %vm1157, %v1165, %v1167
  %v1169 = vsel %vm1157, %v1167, %v1158
  %v1170 = vrot.slane %v940, 1
  %v1171 = vsel %vm1157, %v1158, %v1170
  %v1172 = vrot.slane %v941, 1
  %v1173 = vsel %vm1157, %v1170, %v1172
  %v1174 = vsel %vm1157, %v1172, %v1158
  %v1175 = vrot.slane %v1008, 1
  %v1176 = vsel %vm1157, %v1158, %v1175
  %v1177 = vrot.slane %v1009, 1
  %v1178 = vsel %vm1157, %v1175, %v1177
  %v1179 = vsel %vm1157, %v1177, %v1158
  %v1180 = vrot.slane %v1010, 1
  %v1181 = vsel %vm1157, %v1158, %v1180
  %v1182 = vrot.slane %v1011, 1
  %v1183 = vsel %vm1157, %v1180, %v1182
  %v1184 = vsel %vm1157, %v1182, %v1158
  %v1185 = vrot.slane %v1012, 1
  %v1186 = vsel %vm1157, %v1158, %v1185
  %v1187 = vrot.slane %v1013, 1
  %v1188 = vsel %vm1157, %v1185, %v1187
  %v1189 = vsel %vm1157, %v1187, %v1158
  %v1190 = vrot.slane %v1014, 1
  %v1191 = vsel %vm1157, %v1158, %v1190
  %v1192 = vrot.slane %v1015, 1
  %v1193 = vsel %vm1157, %v1190, %v1192
  %v1194 = vsel %vm1157, %v1192, %v1158
  %v1195 = vrot.slane %v1016, 1
  %v1196 = vsel %vm1157, %v1158, %v1195
  %v1197 = vrot.slane %v1017, 1
  %v1198 = vsel %vm1157, %v1195, %v1197
  %v1199 = vsel %vm1157, %v1197, %v1158
  %v1200 = vrot.slane %v1018, 1
  %v1201 = vsel %vm1157, %v1158, %v1200
  %v1202 = vrot.slane %v1019, 1
  %v1203 = vsel %vm1157, %v1200, %v1202
  %v1204 = vsel %vm1157, %v1202, %v1158
  %v1205 = vrot.slane %v1020, 1
  %v1206 = vsel %vm1157, %v1158, %v1205
  %v1207 = vrot.slane %v1021, 1
  %v1208 = vsel %vm1157, %v1205, %v1207
  %v1209 = vsel %vm1157, %v1207, %v1158
  %v1210 = vrot.slane %v1022, 1
  %v1211 = vsel %vm1157, %v1158, %v1210
  %v1212 = vrot.slane %v1023, 1
  %v1213 = vsel %vm1157, %v1210, %v1212
  %v1214 = vsel %vm1157, %v1212, %v1158
  %v1215 = vrot.slane %v1024, 1
  %v1216 = vsel %vm1157, %v1158, %v1215
  %v1217 = vrot.slane %v1025, 1
  %v1218 = vsel %vm1157, %v1215, %v1217
  %v1219 = vsel %vm1157, %v1217, %v1158
  %v1220 = vrot.slane %v1026, 1
  %v1221 = vsel %vm1157, %v1158, %v1220
  %v1222 = vrot.slane %v1027, 1
  %v1223 = vsel %vm1157, %v1220, %v1222
  %v1224 = vsel %vm1157, %v1222, %v1158
  %v1225 = vrot.slane %v1028, 1
  %v1226 = vsel %vm1157, %v1158, %v1225
  %v1227 = vrot.slane %v1029, 1
  %v1228 = vsel %vm1157, %v1225, %v1227
  %v1229 = vsel %vm1157, %v1227, %v1158
  %v1230 = vrot.slane %v1030, 1
  %v1231 = vsel %vm1157, %v1158, %v1230
  %v1232 = vrot.slane %v1031, 1
  %v1233 = vsel %vm1157, %v1230, %v1232
  %v1234 = vsel %vm1157, %v1232, %v1158
  %v1235 = vrot.slane %v1032, 1
  %v1236 = vsel %vm1157, %v1158, %v1235
  %v1237 = vrot.slane %v1033, 1
  %v1238 = vsel %vm1157, %v1235, %v1237
  %v1239 = vsel %vm1157, %v1237, %v1158
  %v1240 = vrot.slane %v1034, 1
  %v1241 = vsel %vm1157, %v1158, %v1240
  %v1242 = vrot.slane %v1035, 1
  %v1243 = vsel %vm1157, %v1240, %v1242
  %v1244 = vsel %vm1157, %v1242, %v1158
  %v1245 = vrot.slane %v1036, 1
  %v1246 = vsel %vm1157, %v1158, %v1245
  %v1247 = vrot.slane %v1037, 1
  %v1248 = vsel %vm1157, %v1245, %v1247
  %v1249 = vsel %vm1157, %v1247, %v1158
  %v1250 = vrot.slane %v1038, 1
  %v1251 = vsel %vm1157, %v1158, %v1250
  %v1252 = vrot.slane %v1039, 1
  %v1253 = vsel %vm1157, %v1250, %v1252
  %v1254 = vsel %vm1157, %v1252, %v1158
  %v1255 = vrot.slane %v1040, 1
  %v1256 = vsel %vm1157, %v1158, %v1255
  %v1257 = vrot.slane %v1041, 1
  %v1258 = vsel %vm1157, %v1255, %v1257
  %v1259 = vsel %vm1157, %v1257, %v1158
  %v1260 = vrot.slane %v838, 1
  %v1261 = vsel %vm1157, %v1158, %v1260
  %v1262 = vrot.slane %v839, 1
  %v1263 = vsel %vm1157, %v1260, %v1262
  %v1264 = vsel %vm1157, %v1262, %v1158
  %v1265 = vrot.slane %v906, 1
  %v1266 = vsel %vm1157, %v1158, %v1265
  %v1267 = vrot.slane %v907, 1
  %v1268 = vsel %vm1157, %v1265, %v1267
  %v1269 = vsel %vm1157, %v1267, %v1158
  %v1270 = vrot.slane %v974, 1
  %v1271 = vsel %vm1157, %v1158, %v1270
  %v1272 = vrot.slane %v975, 1
  %v1273 = vsel %vm1157, %v1270, %v1272
  %v1274 = vsel %vm1157, %v1272, %v1158
  %v1275 = vrot.slane %v1042, 1
  %v1276 = vsel %vm1157, %v1158, %v1275
  %v1277 = vrot.slane %v1043, 1
  %v1278 = vsel %vm1157, %v1275, %v1277
  %v1279 = vsel %vm1157, %v1277, %v1158
  %v1280 = vrot.slane %v1044, 1
  %v1281 = vsel %vm1157, %v1158, %v1280
  %v1282 = vrot.slane %v1045, 1
  %v1283 = vsel %vm1157, %v1280, %v1282
  %v1284 = vsel %vm1157, %v1282, %v1158
  %v1285 = vrot.slane %v1046, 1
  %v1286 = vsel %vm1157, %v1158, %v1285
  %v1287 = vrot.slane %v1047, 1
  %v1288 = vsel %vm1157, %v1285, %v1287
  %v1289 = vsel %vm1157, %v1287, %v1158
  %v1290 = vrot.slane %v1048, 1
  %v1291 = vsel %vm1157, %v1158, %v1290
  %v1292 = vrot.slane %v1049, 1
  %v1293 = vsel %vm1157, %v1290, %v1292
  %v1294 = vsel %vm1157, %v1292, %v1158
  %v1295 = vrot.slane %v1050, 1
  %v1296 = vsel %vm1157, %v1158, %v1295
  %v1297 = vrot.slane %v1051, 1
  %v1298 = vsel %vm1157, %v1295, %v1297
  %v1299 = vsel %vm1157, %v1297, %v1158
  %v1300 = vrot.slane %v1052, 1
  %v1301 = vsel %vm1157, %v1158, %v1300
  %v1302 = vrot.slane %v1053, 1
  %v1303 = vsel %vm1157, %v1300, %v1302
  %v1304 = vsel %vm1157, %v1302, %v1158
  %v1305 = vrot.slane %v1054, 1
  %v1306 = vsel %vm1157, %v1158, %v1305
  %v1307 = vrot.slane %v1055, 1
  %v1308 = vsel %vm1157, %v1305, %v1307
  %v1309 = vsel %vm1157, %v1307, %v1158
  %v1310 = vrot.slane %v1056, 1
  %v1311 = vsel %vm1157, %v1158, %v1310
  %v1312 = vrot.slane %v1057, 1
  %v1313 = vsel %vm1157, %v1310, %v1312
  %v1314 = vsel %vm1157, %v1312, %v1158
  %v1315 = vrot.slane %v1058, 1
  %v1316 = vsel %vm1157, %v1158, %v1315
  %v1317 = vrot.slane %v1059, 1
  %v1318 = vsel %vm1157, %v1315, %v1317
  %v1319 = vsel %vm1157, %v1317, %v1158
  %v1320 = vrot.slane %v1060, 1
  %v1321 = vsel %vm1157, %v1158, %v1320
  %v1322 = vrot.slane %v1061, 1
  %v1323 = vsel %vm1157, %v1320, %v1322
  %v1324 = vsel %vm1157, %v1322, %v1158
  %v1325 = vrot.slane %v1062, 1
  %v1326 = vsel %vm1157, %v1158, %v1325
  %v1327 = vrot.slane %v1063, 1
  %v1328 = vsel %vm1157, %v1325, %v1327
  %v1329 = vsel %vm1157, %v1327, %v1158
  %v1330 = vrot.slane %v1064, 1
  %v1331 = vsel %vm1157, %v1158, %v1330
  %v1332 = vrot.slane %v1065, 1
  %v1333 = vsel %vm1157, %v1330, %v1332
  %v1334 = vsel %vm1157, %v1332, %v1158
  %v1335 = vrot.slane %v1066, 1
  %v1336 = vsel %vm1157, %v1158, %v1335
  %v1337 = vrot.slane %v1067, 1
  %v1338 = vsel %vm1157, %v1335, %v1337
  %v1339 = vsel %vm1157, %v1337, %v1158
  %v1340 = vrot.slane %v1068, 1
  %v1341 = vsel %vm1157, %v1158, %v1340
  %v1342 = vrot.slane %v1069, 1
  %v1343 = vsel %vm1157, %v1340, %v1342
  %v1344 = vsel %vm1157, %v1342, %v1158
  %v1345 = vrot.slane %v1070, 1
  %v1346 = vsel %vm1157, %v1158, %v1345
  %v1347 = vrot.slane %v1071, 1
  %v1348 = vsel %vm1157, %v1345, %v1347
  %v1349 = vsel %vm1157, %v1347, %v1158
  %v1350 = vrot.slane %v1072, 1
  %v1351 = vsel %vm1157, %v1158, %v1350
  %v1352 = vrot.slane %v1073, 1
  %v1353 = vsel %vm1157, %v1350, %v1352
  %v1354 = vsel %vm1157, %v1352, %v1158
  %v1355 = vrot.slane %v1074, 1
  %v1356 = vsel %vm1157, %v1158, %v1355
  %v1357 = vrot.slane %v1075, 1
  %v1358 = vsel %vm1157, %v1355, %v1357
  %v1359 = vsel %vm1157, %v1357, %v1158
  %v1482 = vmax.f32 %v1159, -1e+30
  %v1483 = vmax.f32 %v1158, -1e+30
  %v1484 = vmax.f32 %v1161, -1e+30
  %v1485 = vmax.f32 %v804, %v1163
  %v1486 = vmax.f32 %v805, %v1164
  %v1487 = vmax.f32 %v1166, -1e+30
  %v1488 = vmax.f32 %v872, %v1168
  %v1489 = vmax.f32 %v873, %v1169
  %v1490 = vmax.f32 %v1171, -1e+30
  %v1491 = vmax.f32 %v940, %v1173
  %v1492 = vmax.f32 %v941, %v1174
  %v1493 = vmax.f32 %v1176, -1e+30
  %v1494 = vmax.f32 %v1008, %v1178
  %v1495 = vmax.f32 %v1009, %v1179
  %v1496 = vmax.f32 %v1181, -1e+30
  %v1497 = vmax.f32 %v1010, %v1183
  %v1498 = vmax.f32 %v1011, %v1184
  %v1499 = vmax.f32 %v1186, -1e+30
  %v1500 = vmax.f32 %v1012, %v1188
  %v1501 = vmax.f32 %v1013, %v1189
  %v1502 = vmax.f32 %v1191, -1e+30
  %v1503 = vmax.f32 %v1014, %v1193
  %v1504 = vmax.f32 %v1015, %v1194
  %v1505 = vmax.f32 %v1196, -1e+30
  %v1506 = vmax.f32 %v1016, %v1198
  %v1507 = vmax.f32 %v1017, %v1199
  %v1508 = vmax.f32 %v1201, -1e+30
  %v1509 = vmax.f32 %v1018, %v1203
  %v1510 = vmax.f32 %v1019, %v1204
  %v1511 = vmax.f32 %v1206, -1e+30
  %v1512 = vmax.f32 %v1020, %v1208
  %v1513 = vmax.f32 %v1021, %v1209
  %v1514 = vmax.f32 %v1211, -1e+30
  %v1515 = vmax.f32 %v1022, %v1213
  %v1516 = vmax.f32 %v1023, %v1214
  %v1517 = vmax.f32 %v1216, -1e+30
  %v1518 = vmax.f32 %v1024, %v1218
  %v1519 = vmax.f32 %v1025, %v1219
  %v1520 = vmax.f32 %v1221, -1e+30
  %v1521 = vmax.f32 %v1026, %v1223
  %v1522 = vmax.f32 %v1027, %v1224
  %v1523 = vmax.f32 %v1226, -1e+30
  %v1524 = vmax.f32 %v1028, %v1228
  %v1525 = vmax.f32 %v1029, %v1229
  %v1526 = vmax.f32 %v1231, -1e+30
  %v1527 = vmax.f32 %v1030, %v1233
  %v1528 = vmax.f32 %v1031, %v1234
  %v1529 = vmax.f32 %v1236, -1e+30
  %v1530 = vmax.f32 %v1032, %v1238
  %v1531 = vmax.f32 %v1033, %v1239
  %v1532 = vmax.f32 %v1241, -1e+30
  %v1533 = vmax.f32 %v1034, %v1243
  %v1534 = vmax.f32 %v1035, %v1244
  %v1535 = vmax.f32 %v1246, -1e+30
  %v1536 = vmax.f32 %v1036, %v1248
  %v1537 = vmax.f32 %v1037, %v1249
  %v1538 = vmax.f32 %v1251, -1e+30
  %v1539 = vmax.f32 %v1038, %v1253
  %v1540 = vmax.f32 %v1039, %v1254
  %v1541 = vmax.f32 %v1256, -1e+30
  %v1542 = vmax.f32 %v1040, %v1258
  %v1543 = vmax.f32 %v1041, %v1259
  %v1544 = vmax.f32 %v1261, -1e+30
  %v1545 = vmax.f32 %v838, %v1263
  %v1546 = vmax.f32 %v839, %v1264
  %v1547 = vmax.f32 %v1266, -1e+30
  %v1548 = vmax.f32 %v906, %v1268
  %v1549 = vmax.f32 %v907, %v1269
  %v1550 = vmax.f32 %v1271, -1e+30
  %v1551 = vmax.f32 %v974, %v1273
  %v1552 = vmax.f32 %v975, %v1274
  %v1553 = vmax.f32 %v1276, -1e+30
  %v1554 = vmax.f32 %v1042, %v1278
  %v1555 = vmax.f32 %v1043, %v1279
  %v1556 = vmax.f32 %v1281, -1e+30
  %v1557 = vmax.f32 %v1044, %v1283
  %v1558 = vmax.f32 %v1045, %v1284
  %v1559 = vmax.f32 %v1286, -1e+30
  %v1560 = vmax.f32 %v1046, %v1288
  %v1561 = vmax.f32 %v1047, %v1289
  %v1562 = vmax.f32 %v1291, -1e+30
  %v1563 = vmax.f32 %v1048, %v1293
  %v1564 = vmax.f32 %v1049, %v1294
  %v1565 = vmax.f32 %v1296, -1e+30
  %v1566 = vmax.f32 %v1050, %v1298
  %v1567 = vmax.f32 %v1051, %v1299
  %v1568 = vmax.f32 %v1301, -1e+30
  %v1569 = vmax.f32 %v1052, %v1303
  %v1570 = vmax.f32 %v1053, %v1304
  %v1571 = vmax.f32 %v1306, -1e+30
  %v1572 = vmax.f32 %v1054, %v1308
  %v1573 = vmax.f32 %v1055, %v1309
  %v1574 = vmax.f32 %v1311, -1e+30
  %v1575 = vmax.f32 %v1056, %v1313
  %v1576 = vmax.f32 %v1057, %v1314
  %v1577 = vmax.f32 %v1316, -1e+30
  %v1578 = vmax.f32 %v1058, %v1318
  %v1579 = vmax.f32 %v1059, %v1319
  %v1580 = vmax.f32 %v1321, -1e+30
  %v1581 = vmax.f32 %v1060, %v1323
  %v1582 = vmax.f32 %v1061, %v1324
  %v1583 = vmax.f32 %v1326, -1e+30
  %v1584 = vmax.f32 %v1062, %v1328
  %v1585 = vmax.f32 %v1063, %v1329
  %v1586 = vmax.f32 %v1331, -1e+30
  %v1587 = vmax.f32 %v1064, %v1333
  %v1588 = vmax.f32 %v1065, %v1334
  %v1589 = vmax.f32 %v1336, -1e+30
  %v1590 = vmax.f32 %v1066, %v1338
  %v1591 = vmax.f32 %v1067, %v1339
  %v1592 = vmax.f32 %v1341, -1e+30
  %v1593 = vmax.f32 %v1068, %v1343
  %v1594 = vmax.f32 %v1069, %v1344
  %v1595 = vmax.f32 %v1346, -1e+30
  %v1596 = vmax.f32 %v1070, %v1348
  %v1597 = vmax.f32 %v1071, %v1349
  %v1598 = vmax.f32 %v1351, -1e+30
  %v1599 = vmax.f32 %v1072, %v1353
  %v1600 = vmax.f32 %v1073, %v1354
  %v1601 = vmax.f32 %v1356, -1e+30
  %v1602 = vmax.f32 %v1074, %v1358
  %v1603 = vmax.f32 %v1075, %v1359
  %vm1604 = vcmask 1045504
  %v1605 = vrot.slane -1e+30, 2
  %v1606 = vsel %vm1604, %v1605, %v1605
  %v1607 = vrot.slane %v804, 2
  %v1608 = vsel %vm1604, %v1605, %v1607
  %v1609 = vrot.slane %v805, 2
  %v1610 = vsel %vm1604, %v1607, %v1609
  %v1611 = vsel %vm1604, %v1609, %v1605
  %v1612 = vrot.slane %v872, 2
  %v1613 = vsel %vm1604, %v1605, %v1612
  %v1614 = vrot.slane %v873, 2
  %v1615 = vsel %vm1604, %v1612, %v1614
  %v1616 = vsel %vm1604, %v1614, %v1605
  %v1617 = vrot.slane %v940, 2
  %v1618 = vsel %vm1604, %v1605, %v1617
  %v1619 = vrot.slane %v941, 2
  %v1620 = vsel %vm1604, %v1617, %v1619
  %v1621 = vsel %vm1604, %v1619, %v1605
  %v1622 = vrot.slane %v1008, 2
  %v1623 = vsel %vm1604, %v1605, %v1622
  %v1624 = vrot.slane %v1009, 2
  %v1625 = vsel %vm1604, %v1622, %v1624
  %v1626 = vsel %vm1604, %v1624, %v1605
  %v1627 = vrot.slane %v1010, 2
  %v1628 = vsel %vm1604, %v1605, %v1627
  %v1629 = vrot.slane %v1011, 2
  %v1630 = vsel %vm1604, %v1627, %v1629
  %v1631 = vsel %vm1604, %v1629, %v1605
  %v1632 = vrot.slane %v1012, 2
  %v1633 = vsel %vm1604, %v1605, %v1632
  %v1634 = vrot.slane %v1013, 2
  %v1635 = vsel %vm1604, %v1632, %v1634
  %v1636 = vsel %vm1604, %v1634, %v1605
  %v1637 = vrot.slane %v1014, 2
  %v1638 = vsel %vm1604, %v1605, %v1637
  %v1639 = vrot.slane %v1015, 2
  %v1640 = vsel %vm1604, %v1637, %v1639
  %v1641 = vsel %vm1604, %v1639, %v1605
  %v1642 = vrot.slane %v1016, 2
  %v1643 = vsel %vm1604, %v1605, %v1642
  %v1644 = vrot.slane %v1017, 2
  %v1645 = vsel %vm1604, %v1642, %v1644
  %v1646 = vsel %vm1604, %v1644, %v1605
  %v1647 = vrot.slane %v1018, 2
  %v1648 = vsel %vm1604, %v1605, %v1647
  %v1649 = vrot.slane %v1019, 2
  %v1650 = vsel %vm1604, %v1647, %v1649
  %v1651 = vsel %vm1604, %v1649, %v1605
  %v1652 = vrot.slane %v1020, 2
  %v1653 = vsel %vm1604, %v1605, %v1652
  %v1654 = vrot.slane %v1021, 2
  %v1655 = vsel %vm1604, %v1652, %v1654
  %v1656 = vsel %vm1604, %v1654, %v1605
  %v1657 = vrot.slane %v1022, 2
  %v1658 = vsel %vm1604, %v1605, %v1657
  %v1659 = vrot.slane %v1023, 2
  %v1660 = vsel %vm1604, %v1657, %v1659
  %v1661 = vsel %vm1604, %v1659, %v1605
  %v1662 = vrot.slane %v1024, 2
  %v1663 = vsel %vm1604, %v1605, %v1662
  %v1664 = vrot.slane %v1025, 2
  %v1665 = vsel %vm1604, %v1662, %v1664
  %v1666 = vsel %vm1604, %v1664, %v1605
  %v1667 = vrot.slane %v1026, 2
  %v1668 = vsel %vm1604, %v1605, %v1667
  %v1669 = vrot.slane %v1027, 2
  %v1670 = vsel %vm1604, %v1667, %v1669
  %v1671 = vsel %vm1604, %v1669, %v1605
  %v1672 = vrot.slane %v1028, 2
  %v1673 = vsel %vm1604, %v1605, %v1672
  %v1674 = vrot.slane %v1029, 2
  %v1675 = vsel %vm1604, %v1672, %v1674
  %v1676 = vsel %vm1604, %v1674, %v1605
  %v1677 = vrot.slane %v1030, 2
  %v1678 = vsel %vm1604, %v1605, %v1677
  %v1679 = vrot.slane %v1031, 2
  %v1680 = vsel %vm1604, %v1677, %v1679
  %v1681 = vsel %vm1604, %v1679, %v1605
  %v1682 = vrot.slane %v1032, 2
  %v1683 = vsel %vm1604, %v1605, %v1682
  %v1684 = vrot.slane %v1033, 2
  %v1685 = vsel %vm1604, %v1682, %v1684
  %v1686 = vsel %vm1604, %v1684, %v1605
  %v1687 = vrot.slane %v1034, 2
  %v1688 = vsel %vm1604, %v1605, %v1687
  %v1689 = vrot.slane %v1035, 2
  %v1690 = vsel %vm1604, %v1687, %v1689
  %v1691 = vsel %vm1604, %v1689, %v1605
  %v1692 = vrot.slane %v1036, 2
  %v1693 = vsel %vm1604, %v1605, %v1692
  %v1694 = vrot.slane %v1037, 2
  %v1695 = vsel %vm1604, %v1692, %v1694
  %v1696 = vsel %vm1604, %v1694, %v1605
  %v1697 = vrot.slane %v1038, 2
  %v1698 = vsel %vm1604, %v1605, %v1697
  %v1699 = vrot.slane %v1039, 2
  %v1700 = vsel %vm1604, %v1697, %v1699
  %v1701 = vsel %vm1604, %v1699, %v1605
  %v1702 = vrot.slane %v1040, 2
  %v1703 = vsel %vm1604, %v1605, %v1702
  %v1704 = vrot.slane %v1041, 2
  %v1705 = vsel %vm1604, %v1702, %v1704
  %v1706 = vsel %vm1604, %v1704, %v1605
  %v1707 = vrot.slane %v838, 2
  %v1708 = vsel %vm1604, %v1605, %v1707
  %v1709 = vrot.slane %v839, 2
  %v1710 = vsel %vm1604, %v1707, %v1709
  %v1711 = vsel %vm1604, %v1709, %v1605
  %v1712 = vrot.slane %v906, 2
  %v1713 = vsel %vm1604, %v1605, %v1712
  %v1714 = vrot.slane %v907, 2
  %v1715 = vsel %vm1604, %v1712, %v1714
  %v1716 = vsel %vm1604, %v1714, %v1605
  %v1717 = vrot.slane %v974, 2
  %v1718 = vsel %vm1604, %v1605, %v1717
  %v1719 = vrot.slane %v975, 2
  %v1720 = vsel %vm1604, %v1717, %v1719
  %v1721 = vsel %vm1604, %v1719, %v1605
  %v1722 = vrot.slane %v1042, 2
  %v1723 = vsel %vm1604, %v1605, %v1722
  %v1724 = vrot.slane %v1043, 2
  %v1725 = vsel %vm1604, %v1722, %v1724
  %v1726 = vsel %vm1604, %v1724, %v1605
  %v1727 = vrot.slane %v1044, 2
  %v1728 = vsel %vm1604, %v1605, %v1727
  %v1729 = vrot.slane %v1045, 2
  %v1730 = vsel %vm1604, %v1727, %v1729
  %v1731 = vsel %vm1604, %v1729, %v1605
  %v1732 = vrot.slane %v1046, 2
  %v1733 = vsel %vm1604, %v1605, %v1732
  %v1734 = vrot.slane %v1047, 2
  %v1735 = vsel %vm1604, %v1732, %v1734
  %v1736 = vsel %vm1604, %v1734, %v1605
  %v1737 = vrot.slane %v1048, 2
  %v1738 = vsel %vm1604, %v1605, %v1737
  %v1739 = vrot.slane %v1049, 2
  %v1740 = vsel %vm1604, %v1737, %v1739
  %v1741 = vsel %vm1604, %v1739, %v1605
  %v1742 = vrot.slane %v1050, 2
  %v1743 = vsel %vm1604, %v1605, %v1742
  %v1744 = vrot.slane %v1051, 2
  %v1745 = vsel %vm1604, %v1742, %v1744
  %v1746 = vsel %vm1604, %v1744, %v1605
  %v1747 = vrot.slane %v1052, 2
  %v1748 = vsel %vm1604, %v1605, %v1747
  %v1749 = vrot.slane %v1053, 2
  %v1750 = vsel %vm1604, %v1747, %v1749
  %v1751 = vsel %vm1604, %v1749, %v1605
  %v1752 = vrot.slane %v1054, 2
  %v1753 = vsel %vm1604, %v1605, %v1752
  %v1754 = vrot.slane %v1055, 2
  %v1755 = vsel %vm1604, %v1752, %v1754
  %v1756 = vsel %vm1604, %v1754, %v1605
  %v1757 = vrot.slane %v1056, 2
  %v1758 = vsel %vm1604, %v1605, %v1757
  %v1759 = vrot.slane %v1057, 2
  %v1760 = vsel %vm1604, %v1757, %v1759
  %v1761 = vsel %vm1604, %v1759, %v1605
  %v1762 = vrot.slane %v1058, 2
  %v1763 = vsel %vm1604, %v1605, %v1762
  %v1764 = vrot.slane %v1059, 2
  %v1765 = vsel %vm1604, %v1762, %v1764
  %v1766 = vsel %vm1604, %v1764, %v1605
  %v1767 = vrot.slane %v1060, 2
  %v1768 = vsel %vm1604, %v1605, %v1767
  %v1769 = vrot.slane %v1061, 2
  %v1770 = vsel %vm1604, %v1767, %v1769
  %v1771 = vsel %vm1604, %v1769, %v1605
  %v1772 = vrot.slane %v1062, 2
  %v1773 = vsel %vm1604, %v1605, %v1772
  %v1774 = vrot.slane %v1063, 2
  %v1775 = vsel %vm1604, %v1772, %v1774
  %v1776 = vsel %vm1604, %v1774, %v1605
  %v1777 = vrot.slane %v1064, 2
  %v1778 = vsel %vm1604, %v1605, %v1777
  %v1779 = vrot.slane %v1065, 2
  %v1780 = vsel %vm1604, %v1777, %v1779
  %v1781 = vsel %vm1604, %v1779, %v1605
  %v1782 = vrot.slane %v1066, 2
  %v1783 = vsel %vm1604, %v1605, %v1782
  %v1784 = vrot.slane %v1067, 2
  %v1785 = vsel %vm1604, %v1782, %v1784
  %v1786 = vsel %vm1604, %v1784, %v1605
  %v1787 = vrot.slane %v1068, 2
  %v1788 = vsel %vm1604, %v1605, %v1787
  %v1789 = vrot.slane %v1069, 2
  %v1790 = vsel %vm1604, %v1787, %v1789
  %v1791 = vsel %vm1604, %v1789, %v1605
  %v1792 = vrot.slane %v1070, 2
  %v1793 = vsel %vm1604, %v1605, %v1792
  %v1794 = vrot.slane %v1071, 2
  %v1795 = vsel %vm1604, %v1792, %v1794
  %v1796 = vsel %vm1604, %v1794, %v1605
  %v1797 = vrot.slane %v1072, 2
  %v1798 = vsel %vm1604, %v1605, %v1797
  %v1799 = vrot.slane %v1073, 2
  %v1800 = vsel %vm1604, %v1797, %v1799
  %v1801 = vsel %vm1604, %v1799, %v1605
  %v1802 = vrot.slane %v1074, 2
  %v1803 = vsel %vm1604, %v1605, %v1802
  %v1804 = vrot.slane %v1075, 2
  %v1805 = vsel %vm1604, %v1802, %v1804
  %v1806 = vsel %vm1604, %v1804, %v1605
  %v1929 = vmax.f32 %v1482, %v1606
  %v1930 = vmax.f32 %v1483, %v1605
  %v1931 = vmax.f32 %v1484, %v1608
  %v1932 = vmax.f32 %v1485, %v1610
  %v1933 = vmax.f32 %v1486, %v1611
  %v1934 = vmax.f32 %v1487, %v1613
  %v1935 = vmax.f32 %v1488, %v1615
  %v1936 = vmax.f32 %v1489, %v1616
  %v1937 = vmax.f32 %v1490, %v1618
  %v1938 = vmax.f32 %v1491, %v1620
  %v1939 = vmax.f32 %v1492, %v1621
  %v1940 = vmax.f32 %v1493, %v1623
  %v1941 = vmax.f32 %v1494, %v1625
  %v1942 = vmax.f32 %v1495, %v1626
  %v1943 = vmax.f32 %v1496, %v1628
  %v1944 = vmax.f32 %v1497, %v1630
  %v1945 = vmax.f32 %v1498, %v1631
  %v1946 = vmax.f32 %v1499, %v1633
  %v1947 = vmax.f32 %v1500, %v1635
  %v1948 = vmax.f32 %v1501, %v1636
  %v1949 = vmax.f32 %v1502, %v1638
  %v1950 = vmax.f32 %v1503, %v1640
  %v1951 = vmax.f32 %v1504, %v1641
  %v1952 = vmax.f32 %v1505, %v1643
  %v1953 = vmax.f32 %v1506, %v1645
  %v1954 = vmax.f32 %v1507, %v1646
  %v1955 = vmax.f32 %v1508, %v1648
  %v1956 = vmax.f32 %v1509, %v1650
  %v1957 = vmax.f32 %v1510, %v1651
  %v1958 = vmax.f32 %v1511, %v1653
  %v1959 = vmax.f32 %v1512, %v1655
  %v1960 = vmax.f32 %v1513, %v1656
  %v1961 = vmax.f32 %v1514, %v1658
  %v1962 = vmax.f32 %v1515, %v1660
  %v1963 = vmax.f32 %v1516, %v1661
  %v1964 = vmax.f32 %v1517, %v1663
  %v1965 = vmax.f32 %v1518, %v1665
  %v1966 = vmax.f32 %v1519, %v1666
  %v1967 = vmax.f32 %v1520, %v1668
  %v1968 = vmax.f32 %v1521, %v1670
  %v1969 = vmax.f32 %v1522, %v1671
  %v1970 = vmax.f32 %v1523, %v1673
  %v1971 = vmax.f32 %v1524, %v1675
  %v1972 = vmax.f32 %v1525, %v1676
  %v1973 = vmax.f32 %v1526, %v1678
  %v1974 = vmax.f32 %v1527, %v1680
  %v1975 = vmax.f32 %v1528, %v1681
  %v1976 = vmax.f32 %v1529, %v1683
  %v1977 = vmax.f32 %v1530, %v1685
  %v1978 = vmax.f32 %v1531, %v1686
  %v1979 = vmax.f32 %v1532, %v1688
  %v1980 = vmax.f32 %v1533, %v1690
  %v1981 = vmax.f32 %v1534, %v1691
  %v1982 = vmax.f32 %v1535, %v1693
  %v1983 = vmax.f32 %v1536, %v1695
  %v1984 = vmax.f32 %v1537, %v1696
  %v1985 = vmax.f32 %v1538, %v1698
  %v1986 = vmax.f32 %v1539, %v1700
  %v1987 = vmax.f32 %v1540, %v1701
  %v1988 = vmax.f32 %v1541, %v1703
  %v1989 = vmax.f32 %v1542, %v1705
  %v1990 = vmax.f32 %v1543, %v1706
  %v1991 = vmax.f32 %v1544, %v1708
  %v1992 = vmax.f32 %v1545, %v1710
  %v1993 = vmax.f32 %v1546, %v1711
  %v1994 = vmax.f32 %v1547, %v1713
  %v1995 = vmax.f32 %v1548, %v1715
  %v1996 = vmax.f32 %v1549, %v1716
  %v1997 = vmax.f32 %v1550, %v1718
  %v1998 = vmax.f32 %v1551, %v1720
  %v1999 = vmax.f32 %v1552, %v1721
  %v2000 = vmax.f32 %v1553, %v1723
  %v2001 = vmax.f32 %v1554, %v1725
  %v2002 = vmax.f32 %v1555, %v1726
  %v2003 = vmax.f32 %v1556, %v1728
  %v2004 = vmax.f32 %v1557, %v1730
  %v2005 = vmax.f32 %v1558, %v1731
  %v2006 = vmax.f32 %v1559, %v1733
  %v2007 = vmax.f32 %v1560, %v1735
  %v2008 = vmax.f32 %v1561, %v1736
  %v2009 = vmax.f32 %v1562, %v1738
  %v2010 = vmax.f32 %v1563, %v1740
  %v2011 = vmax.f32 %v1564, %v1741
  %v2012 = vmax.f32 %v1565, %v1743
  %v2013 = vmax.f32 %v1566, %v1745
  %v2014 = vmax.f32 %v1567, %v1746
  %v2015 = vmax.f32 %v1568, %v1748
  %v2016 = vmax.f32 %v1569, %v1750
  %v2017 = vmax.f32 %v1570, %v1751
  %v2018 = vmax.f32 %v1571, %v1753
  %v2019 = vmax.f32 %v1572, %v1755
  %v2020 = vmax.f32 %v1573, %v1756
  %v2021 = vmax.f32 %v1574, %v1758
  %v2022 = vmax.f32 %v1575, %v1760
  %v2023 = vmax.f32 %v1576, %v1761
  %v2024 = vmax.f32 %v1577, %v1763
  %v2025 = vmax.f32 %v1578, %v1765
  %v2026 = vmax.f32 %v1579, %v1766
  %v2027 = vmax.f32 %v1580, %v1768
  %v2028 = vmax.f32 %v1581, %v1770
  %v2029 = vmax.f32 %v1582, %v1771
  %v2030 = vmax.f32 %v1583, %v1773
  %v2031 = vmax.f32 %v1584, %v1775
  %v2032 = vmax.f32 %v1585, %v1776
  %v2033 = vmax.f32 %v1586, %v1778
  %v2034 = vmax.f32 %v1587, %v1780
  %v2035 = vmax.f32 %v1588, %v1781
  %v2036 = vmax.f32 %v1589, %v1783
  %v2037 = vmax.f32 %v1590, %v1785
  %v2038 = vmax.f32 %v1591, %v1786
  %v2039 = vmax.f32 %v1592, %v1788
  %v2040 = vmax.f32 %v1593, %v1790
  %v2041 = vmax.f32 %v1594, %v1791
  %v2042 = vmax.f32 %v1595, %v1793
  %v2043 = vmax.f32 %v1596, %v1795
  %v2044 = vmax.f32 %v1597, %v1796
  %v2045 = vmax.f32 %v1598, %v1798
  %v2046 = vmax.f32 %v1599, %v1800
  %v2047 = vmax.f32 %v1600, %v1801
  %v2048 = vmax.f32 %v1601, %v1803
  %v2049 = vmax.f32 %v1602, %v1805
  %v2050 = vmax.f32 %v1603, %v1806
  %vm2051 = vcmask 1044480
  %v2052 = vrot.slane -1e+30, 3
  %v2053 = vsel %vm2051, %v2052, %v2052
  %v2054 = vrot.slane %v804, 3
  %v2055 = vsel %vm2051, %v2052, %v2054
  %v2056 = vrot.slane %v805, 3
  %v2057 = vsel %vm2051, %v2054, %v2056
  %v2058 = vsel %vm2051, %v2056, %v2052
  %v2059 = vrot.slane %v872, 3
  %v2060 = vsel %vm2051, %v2052, %v2059
  %v2061 = vrot.slane %v873, 3
  %v2062 = vsel %vm2051, %v2059, %v2061
  %v2063 = vsel %vm2051, %v2061, %v2052
  %v2064 = vrot.slane %v940, 3
  %v2065 = vsel %vm2051, %v2052, %v2064
  %v2066 = vrot.slane %v941, 3
  %v2067 = vsel %vm2051, %v2064, %v2066
  %v2068 = vsel %vm2051, %v2066, %v2052
  %v2069 = vrot.slane %v1008, 3
  %v2070 = vsel %vm2051, %v2052, %v2069
  %v2071 = vrot.slane %v1009, 3
  %v2072 = vsel %vm2051, %v2069, %v2071
  %v2073 = vsel %vm2051, %v2071, %v2052
  %v2074 = vrot.slane %v1010, 3
  %v2075 = vsel %vm2051, %v2052, %v2074
  %v2076 = vrot.slane %v1011, 3
  %v2077 = vsel %vm2051, %v2074, %v2076
  %v2078 = vsel %vm2051, %v2076, %v2052
  %v2079 = vrot.slane %v1012, 3
  %v2080 = vsel %vm2051, %v2052, %v2079
  %v2081 = vrot.slane %v1013, 3
  %v2082 = vsel %vm2051, %v2079, %v2081
  %v2083 = vsel %vm2051, %v2081, %v2052
  %v2084 = vrot.slane %v1014, 3
  %v2085 = vsel %vm2051, %v2052, %v2084
  %v2086 = vrot.slane %v1015, 3
  %v2087 = vsel %vm2051, %v2084, %v2086
  %v2088 = vsel %vm2051, %v2086, %v2052
  %v2089 = vrot.slane %v1016, 3
  %v2090 = vsel %vm2051, %v2052, %v2089
  %v2091 = vrot.slane %v1017, 3
  %v2092 = vsel %vm2051, %v2089, %v2091
  %v2093 = vsel %vm2051, %v2091, %v2052
  %v2094 = vrot.slane %v1018, 3
  %v2095 = vsel %vm2051, %v2052, %v2094
  %v2096 = vrot.slane %v1019, 3
  %v2097 = vsel %vm2051, %v2094, %v2096
  %v2098 = vsel %vm2051, %v2096, %v2052
  %v2099 = vrot.slane %v1020, 3
  %v2100 = vsel %vm2051, %v2052, %v2099
  %v2101 = vrot.slane %v1021, 3
  %v2102 = vsel %vm2051, %v2099, %v2101
  %v2103 = vsel %vm2051, %v2101, %v2052
  %v2104 = vrot.slane %v1022, 3
  %v2105 = vsel %vm2051, %v2052, %v2104
  %v2106 = vrot.slane %v1023, 3
  %v2107 = vsel %vm2051, %v2104, %v2106
  %v2108 = vsel %vm2051, %v2106, %v2052
  %v2109 = vrot.slane %v1024, 3
  %v2110 = vsel %vm2051, %v2052, %v2109
  %v2111 = vrot.slane %v1025, 3
  %v2112 = vsel %vm2051, %v2109, %v2111
  %v2113 = vsel %vm2051, %v2111, %v2052
  %v2114 = vrot.slane %v1026, 3
  %v2115 = vsel %vm2051, %v2052, %v2114
  %v2116 = vrot.slane %v1027, 3
  %v2117 = vsel %vm2051, %v2114, %v2116
  %v2118 = vsel %vm2051, %v2116, %v2052
  %v2119 = vrot.slane %v1028, 3
  %v2120 = vsel %vm2051, %v2052, %v2119
  %v2121 = vrot.slane %v1029, 3
  %v2122 = vsel %vm2051, %v2119, %v2121
  %v2123 = vsel %vm2051, %v2121, %v2052
  %v2124 = vrot.slane %v1030, 3
  %v2125 = vsel %vm2051, %v2052, %v2124
  %v2126 = vrot.slane %v1031, 3
  %v2127 = vsel %vm2051, %v2124, %v2126
  %v2128 = vsel %vm2051, %v2126, %v2052
  %v2129 = vrot.slane %v1032, 3
  %v2130 = vsel %vm2051, %v2052, %v2129
  %v2131 = vrot.slane %v1033, 3
  %v2132 = vsel %vm2051, %v2129, %v2131
  %v2133 = vsel %vm2051, %v2131, %v2052
  %v2134 = vrot.slane %v1034, 3
  %v2135 = vsel %vm2051, %v2052, %v2134
  %v2136 = vrot.slane %v1035, 3
  %v2137 = vsel %vm2051, %v2134, %v2136
  %v2138 = vsel %vm2051, %v2136, %v2052
  %v2139 = vrot.slane %v1036, 3
  %v2140 = vsel %vm2051, %v2052, %v2139
  %v2141 = vrot.slane %v1037, 3
  %v2142 = vsel %vm2051, %v2139, %v2141
  %v2143 = vsel %vm2051, %v2141, %v2052
  %v2144 = vrot.slane %v1038, 3
  %v2145 = vsel %vm2051, %v2052, %v2144
  %v2146 = vrot.slane %v1039, 3
  %v2147 = vsel %vm2051, %v2144, %v2146
  %v2148 = vsel %vm2051, %v2146, %v2052
  %v2149 = vrot.slane %v1040, 3
  %v2150 = vsel %vm2051, %v2052, %v2149
  %v2151 = vrot.slane %v1041, 3
  %v2152 = vsel %vm2051, %v2149, %v2151
  %v2153 = vsel %vm2051, %v2151, %v2052
  %v2154 = vrot.slane %v838, 3
  %v2155 = vsel %vm2051, %v2052, %v2154
  %v2156 = vrot.slane %v839, 3
  %v2157 = vsel %vm2051, %v2154, %v2156
  %v2158 = vsel %vm2051, %v2156, %v2052
  %v2159 = vrot.slane %v906, 3
  %v2160 = vsel %vm2051, %v2052, %v2159
  %v2161 = vrot.slane %v907, 3
  %v2162 = vsel %vm2051, %v2159, %v2161
  %v2163 = vsel %vm2051, %v2161, %v2052
  %v2164 = vrot.slane %v974, 3
  %v2165 = vsel %vm2051, %v2052, %v2164
  %v2166 = vrot.slane %v975, 3
  %v2167 = vsel %vm2051, %v2164, %v2166
  %v2168 = vsel %vm2051, %v2166, %v2052
  %v2169 = vrot.slane %v1042, 3
  %v2170 = vsel %vm2051, %v2052, %v2169
  %v2171 = vrot.slane %v1043, 3
  %v2172 = vsel %vm2051, %v2169, %v2171
  %v2173 = vsel %vm2051, %v2171, %v2052
  %v2174 = vrot.slane %v1044, 3
  %v2175 = vsel %vm2051, %v2052, %v2174
  %v2176 = vrot.slane %v1045, 3
  %v2177 = vsel %vm2051, %v2174, %v2176
  %v2178 = vsel %vm2051, %v2176, %v2052
  %v2179 = vrot.slane %v1046, 3
  %v2180 = vsel %vm2051, %v2052, %v2179
  %v2181 = vrot.slane %v1047, 3
  %v2182 = vsel %vm2051, %v2179, %v2181
  %v2183 = vsel %vm2051, %v2181, %v2052
  %v2184 = vrot.slane %v1048, 3
  %v2185 = vsel %vm2051, %v2052, %v2184
  %v2186 = vrot.slane %v1049, 3
  %v2187 = vsel %vm2051, %v2184, %v2186
  %v2188 = vsel %vm2051, %v2186, %v2052
  %v2189 = vrot.slane %v1050, 3
  %v2190 = vsel %vm2051, %v2052, %v2189
  %v2191 = vrot.slane %v1051, 3
  %v2192 = vsel %vm2051, %v2189, %v2191
  %v2193 = vsel %vm2051, %v2191, %v2052
  %v2194 = vrot.slane %v1052, 3
  %v2195 = vsel %vm2051, %v2052, %v2194
  %v2196 = vrot.slane %v1053, 3
  %v2197 = vsel %vm2051, %v2194, %v2196
  %v2198 = vsel %vm2051, %v2196, %v2052
  %v2199 = vrot.slane %v1054, 3
  %v2200 = vsel %vm2051, %v2052, %v2199
  %v2201 = vrot.slane %v1055, 3
  %v2202 = vsel %vm2051, %v2199, %v2201
  %v2203 = vsel %vm2051, %v2201, %v2052
  %v2204 = vrot.slane %v1056, 3
  %v2205 = vsel %vm2051, %v2052, %v2204
  %v2206 = vrot.slane %v1057, 3
  %v2207 = vsel %vm2051, %v2204, %v2206
  %v2208 = vsel %vm2051, %v2206, %v2052
  %v2209 = vrot.slane %v1058, 3
  %v2210 = vsel %vm2051, %v2052, %v2209
  %v2211 = vrot.slane %v1059, 3
  %v2212 = vsel %vm2051, %v2209, %v2211
  %v2213 = vsel %vm2051, %v2211, %v2052
  %v2214 = vrot.slane %v1060, 3
  %v2215 = vsel %vm2051, %v2052, %v2214
  %v2216 = vrot.slane %v1061, 3
  %v2217 = vsel %vm2051, %v2214, %v2216
  %v2218 = vsel %vm2051, %v2216, %v2052
  %v2219 = vrot.slane %v1062, 3
  %v2220 = vsel %vm2051, %v2052, %v2219
  %v2221 = vrot.slane %v1063, 3
  %v2222 = vsel %vm2051, %v2219, %v2221
  %v2223 = vsel %vm2051, %v2221, %v2052
  %v2224 = vrot.slane %v1064, 3
  %v2225 = vsel %vm2051, %v2052, %v2224
  %v2226 = vrot.slane %v1065, 3
  %v2227 = vsel %vm2051, %v2224, %v2226
  %v2228 = vsel %vm2051, %v2226, %v2052
  %v2229 = vrot.slane %v1066, 3
  %v2230 = vsel %vm2051, %v2052, %v2229
  %v2231 = vrot.slane %v1067, 3
  %v2232 = vsel %vm2051, %v2229, %v2231
  %v2233 = vsel %vm2051, %v2231, %v2052
  %v2234 = vrot.slane %v1068, 3
  %v2235 = vsel %vm2051, %v2052, %v2234
  %v2236 = vrot.slane %v1069, 3
  %v2237 = vsel %vm2051, %v2234, %v2236
  %v2238 = vsel %vm2051, %v2236, %v2052
  %v2239 = vrot.slane %v1070, 3
  %v2240 = vsel %vm2051, %v2052, %v2239
  %v2241 = vrot.slane %v1071, 3
  %v2242 = vsel %vm2051, %v2239, %v2241
  %v2243 = vsel %vm2051, %v2241, %v2052
  %v2244 = vrot.slane %v1072, 3
  %v2245 = vsel %vm2051, %v2052, %v2244
  %v2246 = vrot.slane %v1073, 3
  %v2247 = vsel %vm2051, %v2244, %v2246
  %v2248 = vsel %vm2051, %v2246, %v2052
  %v2249 = vrot.slane %v1074, 3
  %v2250 = vsel %vm2051, %v2052, %v2249
  %v2251 = vrot.slane %v1075, 3
  %v2252 = vsel %vm2051, %v2249, %v2251
  %v2253 = vsel %vm2051, %v2251, %v2052
  %v2376 = vmax.f32 %v1929, %v2053
  %v2377 = vmax.f32 %v1930, %v2052
  %v2378 = vmax.f32 %v1931, %v2055
  %v2379 = vmax.f32 %v1932, %v2057
  %v2380 = vmax.f32 %v1933, %v2058
  %v2381 = vmax.f32 %v1934, %v2060
  %v2382 = vmax.f32 %v1935, %v2062
  %v2383 = vmax.f32 %v1936, %v2063
  %v2384 = vmax.f32 %v1937, %v2065
  %v2385 = vmax.f32 %v1938, %v2067
  %v2386 = vmax.f32 %v1939, %v2068
  %v2387 = vmax.f32 %v1940, %v2070
  %v2388 = vmax.f32 %v1941, %v2072
  %v2389 = vmax.f32 %v1942, %v2073
  %v2390 = vmax.f32 %v1943, %v2075
  %v2391 = vmax.f32 %v1944, %v2077
  %v2392 = vmax.f32 %v1945, %v2078
  %v2393 = vmax.f32 %v1946, %v2080
  %v2394 = vmax.f32 %v1947, %v2082
  %v2395 = vmax.f32 %v1948, %v2083
  %v2396 = vmax.f32 %v1949, %v2085
  %v2397 = vmax.f32 %v1950, %v2087
  %v2398 = vmax.f32 %v1951, %v2088
  %v2399 = vmax.f32 %v1952, %v2090
  %v2400 = vmax.f32 %v1953, %v2092
  %v2401 = vmax.f32 %v1954, %v2093
  %v2402 = vmax.f32 %v1955, %v2095
  %v2403 = vmax.f32 %v1956, %v2097
  %v2404 = vmax.f32 %v1957, %v2098
  %v2405 = vmax.f32 %v1958, %v2100
  %v2406 = vmax.f32 %v1959, %v2102
  %v2407 = vmax.f32 %v1960, %v2103
  %v2408 = vmax.f32 %v1961, %v2105
  %v2409 = vmax.f32 %v1962, %v2107
  %v2410 = vmax.f32 %v1963, %v2108
  %v2411 = vmax.f32 %v1964, %v2110
  %v2412 = vmax.f32 %v1965, %v2112
  %v2413 = vmax.f32 %v1966, %v2113
  %v2414 = vmax.f32 %v1967, %v2115
  %v2415 = vmax.f32 %v1968, %v2117
  %v2416 = vmax.f32 %v1969, %v2118
  %v2417 = vmax.f32 %v1970, %v2120
  %v2418 = vmax.f32 %v1971, %v2122
  %v2419 = vmax.f32 %v1972, %v2123
  %v2420 = vmax.f32 %v1973, %v2125
  %v2421 = vmax.f32 %v1974, %v2127
  %v2422 = vmax.f32 %v1975, %v2128
  %v2423 = vmax.f32 %v1976, %v2130
  %v2424 = vmax.f32 %v1977, %v2132
  %v2425 = vmax.f32 %v1978, %v2133
  %v2426 = vmax.f32 %v1979, %v2135
  %v2427 = vmax.f32 %v1980, %v2137
  %v2428 = vmax.f32 %v1981, %v2138
  %v2429 = vmax.f32 %v1982, %v2140
  %v2430 = vmax.f32 %v1983, %v2142
  %v2431 = vmax.f32 %v1984, %v2143
  %v2432 = vmax.f32 %v1985, %v2145
  %v2433 = vmax.f32 %v1986, %v2147
  %v2434 = vmax.f32 %v1987, %v2148
  %v2435 = vmax.f32 %v1988, %v2150
  %v2436 = vmax.f32 %v1989, %v2152
  %v2437 = vmax.f32 %v1990, %v2153
  %v2438 = vmax.f32 %v1991, %v2155
  %v2439 = vmax.f32 %v1992, %v2157
  %v2440 = vmax.f32 %v1993, %v2158
  %v2441 = vmax.f32 %v1994, %v2160
  %v2442 = vmax.f32 %v1995, %v2162
  %v2443 = vmax.f32 %v1996, %v2163
  %v2444 = vmax.f32 %v1997, %v2165
  %v2445 = vmax.f32 %v1998, %v2167
  %v2446 = vmax.f32 %v1999, %v2168
  %v2447 = vmax.f32 %v2000, %v2170
  %v2448 = vmax.f32 %v2001, %v2172
  %v2449 = vmax.f32 %v2002, %v2173
  %v2450 = vmax.f32 %v2003, %v2175
  %v2451 = vmax.f32 %v2004, %v2177
  %v2452 = vmax.f32 %v2005, %v2178
  %v2453 = vmax.f32 %v2006, %v2180
  %v2454 = vmax.f32 %v2007, %v2182
  %v2455 = vmax.f32 %v2008, %v2183
  %v2456 = vmax.f32 %v2009, %v2185
  %v2457 = vmax.f32 %v2010, %v2187
  %v2458 = vmax.f32 %v2011, %v2188
  %v2459 = vmax.f32 %v2012, %v2190
  %v2460 = vmax.f32 %v2013, %v2192
  %v2461 = vmax.f32 %v2014, %v2193
  %v2462 = vmax.f32 %v2015, %v2195
  %v2463 = vmax.f32 %v2016, %v2197
  %v2464 = vmax.f32 %v2017, %v2198
  %v2465 = vmax.f32 %v2018, %v2200
  %v2466 = vmax.f32 %v2019, %v2202
  %v2467 = vmax.f32 %v2020, %v2203
  %v2468 = vmax.f32 %v2021, %v2205
  %v2469 = vmax.f32 %v2022, %v2207
  %v2470 = vmax.f32 %v2023, %v2208
  %v2471 = vmax.f32 %v2024, %v2210
  %v2472 = vmax.f32 %v2025, %v2212
  %v2473 = vmax.f32 %v2026, %v2213
  %v2474 = vmax.f32 %v2027, %v2215
  %v2475 = vmax.f32 %v2028, %v2217
  %v2476 = vmax.f32 %v2029, %v2218
  %v2477 = vmax.f32 %v2030, %v2220
  %v2478 = vmax.f32 %v2031, %v2222
  %v2479 = vmax.f32 %v2032, %v2223
  %v2480 = vmax.f32 %v2033, %v2225
  %v2481 = vmax.f32 %v2034, %v2227
  %v2482 = vmax.f32 %v2035, %v2228
  %v2483 = vmax.f32 %v2036, %v2230
  %v2484 = vmax.f32 %v2037, %v2232
  %v2485 = vmax.f32 %v2038, %v2233
  %v2486 = vmax.f32 %v2039, %v2235
  %v2487 = vmax.f32 %v2040, %v2237
  %v2488 = vmax.f32 %v2041, %v2238
  %v2489 = vmax.f32 %v2042, %v2240
  %v2490 = vmax.f32 %v2043, %v2242
  %v2491 = vmax.f32 %v2044, %v2243
  %v2492 = vmax.f32 %v2045, %v2245
  %v2493 = vmax.f32 %v2046, %v2247
  %v2494 = vmax.f32 %v2047, %v2248
  %v2495 = vmax.f32 %v2048, %v2250
  %v2496 = vmax.f32 %v2049, %v2252
  %v2497 = vmax.f32 %v2050, %v2253
  %vm2498 = vcmask 1043456
  %v2499 = vrot.slane -1e+30, 4
  %v2500 = vsel %vm2498, %v2499, %v2499
  %v2501 = vrot.slane %v804, 4
  %v2502 = vsel %vm2498, %v2499, %v2501
  %v2503 = vrot.slane %v805, 4
  %v2504 = vsel %vm2498, %v2501, %v2503
  %v2505 = vsel %vm2498, %v2503, %v2499
  %v2506 = vrot.slane %v872, 4
  %v2507 = vsel %vm2498, %v2499, %v2506
  %v2508 = vrot.slane %v873, 4
  %v2509 = vsel %vm2498, %v2506, %v2508
  %v2510 = vsel %vm2498, %v2508, %v2499
  %v2511 = vrot.slane %v940, 4
  %v2512 = vsel %vm2498, %v2499, %v2511
  %v2513 = vrot.slane %v941, 4
  %v2514 = vsel %vm2498, %v2511, %v2513
  %v2515 = vsel %vm2498, %v2513, %v2499
  %v2516 = vrot.slane %v1008, 4
  %v2517 = vsel %vm2498, %v2499, %v2516
  %v2518 = vrot.slane %v1009, 4
  %v2519 = vsel %vm2498, %v2516, %v2518
  %v2520 = vsel %vm2498, %v2518, %v2499
  %v2521 = vrot.slane %v1010, 4
  %v2522 = vsel %vm2498, %v2499, %v2521
  %v2523 = vrot.slane %v1011, 4
  %v2524 = vsel %vm2498, %v2521, %v2523
  %v2525 = vsel %vm2498, %v2523, %v2499
  %v2526 = vrot.slane %v1012, 4
  %v2527 = vsel %vm2498, %v2499, %v2526
  %v2528 = vrot.slane %v1013, 4
  %v2529 = vsel %vm2498, %v2526, %v2528
  %v2530 = vsel %vm2498, %v2528, %v2499
  %v2531 = vrot.slane %v1014, 4
  %v2532 = vsel %vm2498, %v2499, %v2531
  %v2533 = vrot.slane %v1015, 4
  %v2534 = vsel %vm2498, %v2531, %v2533
  %v2535 = vsel %vm2498, %v2533, %v2499
  %v2536 = vrot.slane %v1016, 4
  %v2537 = vsel %vm2498, %v2499, %v2536
  %v2538 = vrot.slane %v1017, 4
  %v2539 = vsel %vm2498, %v2536, %v2538
  %v2540 = vsel %vm2498, %v2538, %v2499
  %v2541 = vrot.slane %v1018, 4
  %v2542 = vsel %vm2498, %v2499, %v2541
  %v2543 = vrot.slane %v1019, 4
  %v2544 = vsel %vm2498, %v2541, %v2543
  %v2545 = vsel %vm2498, %v2543, %v2499
  %v2546 = vrot.slane %v1020, 4
  %v2547 = vsel %vm2498, %v2499, %v2546
  %v2548 = vrot.slane %v1021, 4
  %v2549 = vsel %vm2498, %v2546, %v2548
  %v2550 = vsel %vm2498, %v2548, %v2499
  %v2551 = vrot.slane %v1022, 4
  %v2552 = vsel %vm2498, %v2499, %v2551
  %v2553 = vrot.slane %v1023, 4
  %v2554 = vsel %vm2498, %v2551, %v2553
  %v2555 = vsel %vm2498, %v2553, %v2499
  %v2556 = vrot.slane %v1024, 4
  %v2557 = vsel %vm2498, %v2499, %v2556
  %v2558 = vrot.slane %v1025, 4
  %v2559 = vsel %vm2498, %v2556, %v2558
  %v2560 = vsel %vm2498, %v2558, %v2499
  %v2561 = vrot.slane %v1026, 4
  %v2562 = vsel %vm2498, %v2499, %v2561
  %v2563 = vrot.slane %v1027, 4
  %v2564 = vsel %vm2498, %v2561, %v2563
  %v2565 = vsel %vm2498, %v2563, %v2499
  %v2566 = vrot.slane %v1028, 4
  %v2567 = vsel %vm2498, %v2499, %v2566
  %v2568 = vrot.slane %v1029, 4
  %v2569 = vsel %vm2498, %v2566, %v2568
  %v2570 = vsel %vm2498, %v2568, %v2499
  %v2571 = vrot.slane %v1030, 4
  %v2572 = vsel %vm2498, %v2499, %v2571
  %v2573 = vrot.slane %v1031, 4
  %v2574 = vsel %vm2498, %v2571, %v2573
  %v2575 = vsel %vm2498, %v2573, %v2499
  %v2576 = vrot.slane %v1032, 4
  %v2577 = vsel %vm2498, %v2499, %v2576
  %v2578 = vrot.slane %v1033, 4
  %v2579 = vsel %vm2498, %v2576, %v2578
  %v2580 = vsel %vm2498, %v2578, %v2499
  %v2581 = vrot.slane %v1034, 4
  %v2582 = vsel %vm2498, %v2499, %v2581
  %v2583 = vrot.slane %v1035, 4
  %v2584 = vsel %vm2498, %v2581, %v2583
  %v2585 = vsel %vm2498, %v2583, %v2499
  %v2586 = vrot.slane %v1036, 4
  %v2587 = vsel %vm2498, %v2499, %v2586
  %v2588 = vrot.slane %v1037, 4
  %v2589 = vsel %vm2498, %v2586, %v2588
  %v2590 = vsel %vm2498, %v2588, %v2499
  %v2591 = vrot.slane %v1038, 4
  %v2592 = vsel %vm2498, %v2499, %v2591
  %v2593 = vrot.slane %v1039, 4
  %v2594 = vsel %vm2498, %v2591, %v2593
  %v2595 = vsel %vm2498, %v2593, %v2499
  %v2596 = vrot.slane %v1040, 4
  %v2597 = vsel %vm2498, %v2499, %v2596
  %v2598 = vrot.slane %v1041, 4
  %v2599 = vsel %vm2498, %v2596, %v2598
  %v2600 = vsel %vm2498, %v2598, %v2499
  %v2601 = vrot.slane %v838, 4
  %v2602 = vsel %vm2498, %v2499, %v2601
  %v2603 = vrot.slane %v839, 4
  %v2604 = vsel %vm2498, %v2601, %v2603
  %v2605 = vsel %vm2498, %v2603, %v2499
  %v2606 = vrot.slane %v906, 4
  %v2607 = vsel %vm2498, %v2499, %v2606
  %v2608 = vrot.slane %v907, 4
  %v2609 = vsel %vm2498, %v2606, %v2608
  %v2610 = vsel %vm2498, %v2608, %v2499
  %v2611 = vrot.slane %v974, 4
  %v2612 = vsel %vm2498, %v2499, %v2611
  %v2613 = vrot.slane %v975, 4
  %v2614 = vsel %vm2498, %v2611, %v2613
  %v2615 = vsel %vm2498, %v2613, %v2499
  %v2616 = vrot.slane %v1042, 4
  %v2617 = vsel %vm2498, %v2499, %v2616
  %v2618 = vrot.slane %v1043, 4
  %v2619 = vsel %vm2498, %v2616, %v2618
  %v2620 = vsel %vm2498, %v2618, %v2499
  %v2621 = vrot.slane %v1044, 4
  %v2622 = vsel %vm2498, %v2499, %v2621
  %v2623 = vrot.slane %v1045, 4
  %v2624 = vsel %vm2498, %v2621, %v2623
  %v2625 = vsel %vm2498, %v2623, %v2499
  %v2626 = vrot.slane %v1046, 4
  %v2627 = vsel %vm2498, %v2499, %v2626
  %v2628 = vrot.slane %v1047, 4
  %v2629 = vsel %vm2498, %v2626, %v2628
  %v2630 = vsel %vm2498, %v2628, %v2499
  %v2631 = vrot.slane %v1048, 4
  %v2632 = vsel %vm2498, %v2499, %v2631
  %v2633 = vrot.slane %v1049, 4
  %v2634 = vsel %vm2498, %v2631, %v2633
  %v2635 = vsel %vm2498, %v2633, %v2499
  %v2636 = vrot.slane %v1050, 4
  %v2637 = vsel %vm2498, %v2499, %v2636
  %v2638 = vrot.slane %v1051, 4
  %v2639 = vsel %vm2498, %v2636, %v2638
  %v2640 = vsel %vm2498, %v2638, %v2499
  %v2641 = vrot.slane %v1052, 4
  %v2642 = vsel %vm2498, %v2499, %v2641
  %v2643 = vrot.slane %v1053, 4
  %v2644 = vsel %vm2498, %v2641, %v2643
  %v2645 = vsel %vm2498, %v2643, %v2499
  %v2646 = vrot.slane %v1054, 4
  %v2647 = vsel %vm2498, %v2499, %v2646
  %v2648 = vrot.slane %v1055, 4
  %v2649 = vsel %vm2498, %v2646, %v2648
  %v2650 = vsel %vm2498, %v2648, %v2499
  %v2651 = vrot.slane %v1056, 4
  %v2652 = vsel %vm2498, %v2499, %v2651
  %v2653 = vrot.slane %v1057, 4
  %v2654 = vsel %vm2498, %v2651, %v2653
  %v2655 = vsel %vm2498, %v2653, %v2499
  %v2656 = vrot.slane %v1058, 4
  %v2657 = vsel %vm2498, %v2499, %v2656
  %v2658 = vrot.slane %v1059, 4
  %v2659 = vsel %vm2498, %v2656, %v2658
  %v2660 = vsel %vm2498, %v2658, %v2499
  %v2661 = vrot.slane %v1060, 4
  %v2662 = vsel %vm2498, %v2499, %v2661
  %v2663 = vrot.slane %v1061, 4
  %v2664 = vsel %vm2498, %v2661, %v2663
  %v2665 = vsel %vm2498, %v2663, %v2499
  %v2666 = vrot.slane %v1062, 4
  %v2667 = vsel %vm2498, %v2499, %v2666
  %v2668 = vrot.slane %v1063, 4
  %v2669 = vsel %vm2498, %v2666, %v2668
  %v2670 = vsel %vm2498, %v2668, %v2499
  %v2671 = vrot.slane %v1064, 4
  %v2672 = vsel %vm2498, %v2499, %v2671
  %v2673 = vrot.slane %v1065, 4
  %v2674 = vsel %vm2498, %v2671, %v2673
  %v2675 = vsel %vm2498, %v2673, %v2499
  %v2676 = vrot.slane %v1066, 4
  %v2677 = vsel %vm2498, %v2499, %v2676
  %v2678 = vrot.slane %v1067, 4
  %v2679 = vsel %vm2498, %v2676, %v2678
  %v2680 = vsel %vm2498, %v2678, %v2499
  %v2681 = vrot.slane %v1068, 4
  %v2682 = vsel %vm2498, %v2499, %v2681
  %v2683 = vrot.slane %v1069, 4
  %v2684 = vsel %vm2498, %v2681, %v2683
  %v2685 = vsel %vm2498, %v2683, %v2499
  %v2686 = vrot.slane %v1070, 4
  %v2687 = vsel %vm2498, %v2499, %v2686
  %v2688 = vrot.slane %v1071, 4
  %v2689 = vsel %vm2498, %v2686, %v2688
  %v2690 = vsel %vm2498, %v2688, %v2499
  %v2691 = vrot.slane %v1072, 4
  %v2692 = vsel %vm2498, %v2499, %v2691
  %v2693 = vrot.slane %v1073, 4
  %v2694 = vsel %vm2498, %v2691, %v2693
  %v2695 = vsel %vm2498, %v2693, %v2499
  %v2696 = vrot.slane %v1074, 4
  %v2697 = vsel %vm2498, %v2499, %v2696
  %v2698 = vrot.slane %v1075, 4
  %v2699 = vsel %vm2498, %v2696, %v2698
  %v2700 = vsel %vm2498, %v2698, %v2499
  %v2823 = vmax.f32 %v2376, %v2500
  %v2824 = vmax.f32 %v2377, %v2499
  %v2825 = vmax.f32 %v2378, %v2502
  %v2826 = vmax.f32 %v2379, %v2504
  %v2827 = vmax.f32 %v2380, %v2505
  %v2828 = vmax.f32 %v2381, %v2507
  %v2829 = vmax.f32 %v2382, %v2509
  %v2830 = vmax.f32 %v2383, %v2510
  %v2831 = vmax.f32 %v2384, %v2512
  %v2832 = vmax.f32 %v2385, %v2514
  %v2833 = vmax.f32 %v2386, %v2515
  %v2834 = vmax.f32 %v2387, %v2517
  %v2835 = vmax.f32 %v2388, %v2519
  %v2836 = vmax.f32 %v2389, %v2520
  %v2837 = vmax.f32 %v2390, %v2522
  %v2838 = vmax.f32 %v2391, %v2524
  %v2839 = vmax.f32 %v2392, %v2525
  %v2840 = vmax.f32 %v2393, %v2527
  %v2841 = vmax.f32 %v2394, %v2529
  %v2842 = vmax.f32 %v2395, %v2530
  %v2843 = vmax.f32 %v2396, %v2532
  %v2844 = vmax.f32 %v2397, %v2534
  %v2845 = vmax.f32 %v2398, %v2535
  %v2846 = vmax.f32 %v2399, %v2537
  %v2847 = vmax.f32 %v2400, %v2539
  %v2848 = vmax.f32 %v2401, %v2540
  %v2849 = vmax.f32 %v2402, %v2542
  %v2850 = vmax.f32 %v2403, %v2544
  %v2851 = vmax.f32 %v2404, %v2545
  %v2852 = vmax.f32 %v2405, %v2547
  %v2853 = vmax.f32 %v2406, %v2549
  %v2854 = vmax.f32 %v2407, %v2550
  %v2855 = vmax.f32 %v2408, %v2552
  %v2856 = vmax.f32 %v2409, %v2554
  %v2857 = vmax.f32 %v2410, %v2555
  %v2858 = vmax.f32 %v2411, %v2557
  %v2859 = vmax.f32 %v2412, %v2559
  %v2860 = vmax.f32 %v2413, %v2560
  %v2861 = vmax.f32 %v2414, %v2562
  %v2862 = vmax.f32 %v2415, %v2564
  %v2863 = vmax.f32 %v2416, %v2565
  %v2864 = vmax.f32 %v2417, %v2567
  %v2865 = vmax.f32 %v2418, %v2569
  %v2866 = vmax.f32 %v2419, %v2570
  %v2867 = vmax.f32 %v2420, %v2572
  %v2868 = vmax.f32 %v2421, %v2574
  %v2869 = vmax.f32 %v2422, %v2575
  %v2870 = vmax.f32 %v2423, %v2577
  %v2871 = vmax.f32 %v2424, %v2579
  %v2872 = vmax.f32 %v2425, %v2580
  %v2873 = vmax.f32 %v2426, %v2582
  %v2874 = vmax.f32 %v2427, %v2584
  %v2875 = vmax.f32 %v2428, %v2585
  %v2876 = vmax.f32 %v2429, %v2587
  %v2877 = vmax.f32 %v2430, %v2589
  %v2878 = vmax.f32 %v2431, %v2590
  %v2879 = vmax.f32 %v2432, %v2592
  %v2880 = vmax.f32 %v2433, %v2594
  %v2881 = vmax.f32 %v2434, %v2595
  %v2882 = vmax.f32 %v2435, %v2597
  %v2883 = vmax.f32 %v2436, %v2599
  %v2884 = vmax.f32 %v2437, %v2600
  %v2885 = vmax.f32 %v2438, %v2602
  %v2886 = vmax.f32 %v2439, %v2604
  %v2887 = vmax.f32 %v2440, %v2605
  %v2888 = vmax.f32 %v2441, %v2607
  %v2889 = vmax.f32 %v2442, %v2609
  %v2890 = vmax.f32 %v2443, %v2610
  %v2891 = vmax.f32 %v2444, %v2612
  %v2892 = vmax.f32 %v2445, %v2614
  %v2893 = vmax.f32 %v2446, %v2615
  %v2894 = vmax.f32 %v2447, %v2617
  %v2895 = vmax.f32 %v2448, %v2619
  %v2896 = vmax.f32 %v2449, %v2620
  %v2897 = vmax.f32 %v2450, %v2622
  %v2898 = vmax.f32 %v2451, %v2624
  %v2899 = vmax.f32 %v2452, %v2625
  %v2900 = vmax.f32 %v2453, %v2627
  %v2901 = vmax.f32 %v2454, %v2629
  %v2902 = vmax.f32 %v2455, %v2630
  %v2903 = vmax.f32 %v2456, %v2632
  %v2904 = vmax.f32 %v2457, %v2634
  %v2905 = vmax.f32 %v2458, %v2635
  %v2906 = vmax.f32 %v2459, %v2637
  %v2907 = vmax.f32 %v2460, %v2639
  %v2908 = vmax.f32 %v2461, %v2640
  %v2909 = vmax.f32 %v2462, %v2642
  %v2910 = vmax.f32 %v2463, %v2644
  %v2911 = vmax.f32 %v2464, %v2645
  %v2912 = vmax.f32 %v2465, %v2647
  %v2913 = vmax.f32 %v2466, %v2649
  %v2914 = vmax.f32 %v2467, %v2650
  %v2915 = vmax.f32 %v2468, %v2652
  %v2916 = vmax.f32 %v2469, %v2654
  %v2917 = vmax.f32 %v2470, %v2655
  %v2918 = vmax.f32 %v2471, %v2657
  %v2919 = vmax.f32 %v2472, %v2659
  %v2920 = vmax.f32 %v2473, %v2660
  %v2921 = vmax.f32 %v2474, %v2662
  %v2922 = vmax.f32 %v2475, %v2664
  %v2923 = vmax.f32 %v2476, %v2665
  %v2924 = vmax.f32 %v2477, %v2667
  %v2925 = vmax.f32 %v2478, %v2669
  %v2926 = vmax.f32 %v2479, %v2670
  %v2927 = vmax.f32 %v2480, %v2672
  %v2928 = vmax.f32 %v2481, %v2674
  %v2929 = vmax.f32 %v2482, %v2675
  %v2930 = vmax.f32 %v2483, %v2677
  %v2931 = vmax.f32 %v2484, %v2679
  %v2932 = vmax.f32 %v2485, %v2680
  %v2933 = vmax.f32 %v2486, %v2682
  %v2934 = vmax.f32 %v2487, %v2684
  %v2935 = vmax.f32 %v2488, %v2685
  %v2936 = vmax.f32 %v2489, %v2687
  %v2937 = vmax.f32 %v2490, %v2689
  %v2938 = vmax.f32 %v2491, %v2690
  %v2939 = vmax.f32 %v2492, %v2692
  %v2940 = vmax.f32 %v2493, %v2694
  %v2941 = vmax.f32 %v2494, %v2695
  %v2942 = vmax.f32 %v2495, %v2697
  %v2943 = vmax.f32 %v2496, %v2699
  %v2944 = vmax.f32 %v2497, %v2700
  %v3041 = vrot.slane %v2831, 6
  %v3042 = vrot.slane %v2832, 6
  %v3043 = vsel %vm350, %v3041, %v3042
  %v3044 = vrot.slane %v2833, 6
  %v3045 = vsel %vm350, %v3042, %v3044
  %v3046 = vrot.slane %v2834, 6
  %v3047 = vrot.slane %v2835, 6
  %v3048 = vsel %vm350, %v3046, %v3047
  %v3049 = vrot.slane %v2836, 6
  %v3050 = vsel %vm350, %v3047, %v3049
  %v3051 = vrot.slane %v2837, 6
  %v3052 = vrot.slane %v2838, 6
  %v3053 = vsel %vm350, %v3051, %v3052
  %v3054 = vrot.slane %v2839, 6
  %v3055 = vsel %vm350, %v3052, %v3054
  %v3056 = vrot.slane %v2840, 6
  %v3057 = vrot.slane %v2841, 6
  %v3058 = vsel %vm350, %v3056, %v3057
  %v3059 = vrot.slane %v2842, 6
  %v3060 = vsel %vm350, %v3057, %v3059
  %v3061 = vrot.slane %v2843, 6
  %v3062 = vrot.slane %v2844, 6
  %v3063 = vsel %vm350, %v3061, %v3062
  %v3064 = vrot.slane %v2845, 6
  %v3065 = vsel %vm350, %v3062, %v3064
  %v3066 = vrot.slane %v2846, 6
  %v3067 = vrot.slane %v2847, 6
  %v3068 = vsel %vm350, %v3066, %v3067
  %v3069 = vrot.slane %v2848, 6
  %v3070 = vsel %vm350, %v3067, %v3069
  %v3071 = vrot.slane %v2849, 6
  %v3072 = vrot.slane %v2850, 6
  %v3073 = vsel %vm350, %v3071, %v3072
  %v3074 = vrot.slane %v2851, 6
  %v3075 = vsel %vm350, %v3072, %v3074
  %v3076 = vrot.slane %v2852, 6
  %v3077 = vrot.slane %v2853, 6
  %v3078 = vsel %vm350, %v3076, %v3077
  %v3079 = vrot.slane %v2854, 6
  %v3080 = vsel %vm350, %v3077, %v3079
  %v3081 = vrot.slane %v2855, 6
  %v3082 = vrot.slane %v2856, 6
  %v3083 = vsel %vm350, %v3081, %v3082
  %v3084 = vrot.slane %v2857, 6
  %v3085 = vsel %vm350, %v3082, %v3084
  %v3086 = vrot.slane %v2858, 6
  %v3087 = vrot.slane %v2859, 6
  %v3088 = vsel %vm350, %v3086, %v3087
  %v3089 = vrot.slane %v2860, 6
  %v3090 = vsel %vm350, %v3087, %v3089
  %v3091 = vrot.slane %v2861, 6
  %v3092 = vrot.slane %v2862, 6
  %v3093 = vsel %vm350, %v3091, %v3092
  %v3094 = vrot.slane %v2863, 6
  %v3095 = vsel %vm350, %v3092, %v3094
  %v3096 = vrot.slane %v2864, 6
  %v3097 = vrot.slane %v2865, 6
  %v3098 = vsel %vm350, %v3096, %v3097
  %v3099 = vrot.slane %v2866, 6
  %v3100 = vsel %vm350, %v3097, %v3099
  %v3101 = vrot.slane %v2867, 6
  %v3102 = vrot.slane %v2868, 6
  %v3103 = vsel %vm350, %v3101, %v3102
  %v3104 = vrot.slane %v2869, 6
  %v3105 = vsel %vm350, %v3102, %v3104
  %v3106 = vrot.slane %v2870, 6
  %v3107 = vrot.slane %v2871, 6
  %v3108 = vsel %vm350, %v3106, %v3107
  %v3109 = vrot.slane %v2872, 6
  %v3110 = vsel %vm350, %v3107, %v3109
  %v3111 = vrot.slane %v2873, 6
  %v3112 = vrot.slane %v2874, 6
  %v3113 = vsel %vm350, %v3111, %v3112
  %v3114 = vrot.slane %v2875, 6
  %v3115 = vsel %vm350, %v3112, %v3114
  %v3116 = vrot.slane %v2876, 6
  %v3117 = vrot.slane %v2877, 6
  %v3118 = vsel %vm350, %v3116, %v3117
  %v3119 = vrot.slane %v2878, 6
  %v3120 = vsel %vm350, %v3117, %v3119
  %v3121 = vrot.slane %v2891, 6
  %v3122 = vrot.slane %v2892, 6
  %v3123 = vsel %vm350, %v3121, %v3122
  %v3124 = vrot.slane %v2893, 6
  %v3125 = vsel %vm350, %v3122, %v3124
  %v3126 = vrot.slane %v2894, 6
  %v3127 = vrot.slane %v2895, 6
  %v3128 = vsel %vm350, %v3126, %v3127
  %v3129 = vrot.slane %v2896, 6
  %v3130 = vsel %vm350, %v3127, %v3129
  %v3131 = vrot.slane %v2897, 6
  %v3132 = vrot.slane %v2898, 6
  %v3133 = vsel %vm350, %v3131, %v3132
  %v3134 = vrot.slane %v2899, 6
  %v3135 = vsel %vm350, %v3132, %v3134
  %v3136 = vrot.slane %v2900, 6
  %v3137 = vrot.slane %v2901, 6
  %v3138 = vsel %vm350, %v3136, %v3137
  %v3139 = vrot.slane %v2902, 6
  %v3140 = vsel %vm350, %v3137, %v3139
  %v3141 = vrot.slane %v2903, 6
  %v3142 = vrot.slane %v2904, 6
  %v3143 = vsel %vm350, %v3141, %v3142
  %v3144 = vrot.slane %v2905, 6
  %v3145 = vsel %vm350, %v3142, %v3144
  %v3146 = vrot.slane %v2906, 6
  %v3147 = vrot.slane %v2907, 6
  %v3148 = vsel %vm350, %v3146, %v3147
  %v3149 = vrot.slane %v2908, 6
  %v3150 = vsel %vm350, %v3147, %v3149
  %v3151 = vrot.slane %v2909, 6
  %v3152 = vrot.slane %v2910, 6
  %v3153 = vsel %vm350, %v3151, %v3152
  %v3154 = vrot.slane %v2911, 6
  %v3155 = vsel %vm350, %v3152, %v3154
  %v3156 = vrot.slane %v2912, 6
  %v3157 = vrot.slane %v2913, 6
  %v3158 = vsel %vm350, %v3156, %v3157
  %v3159 = vrot.slane %v2914, 6
  %v3160 = vsel %vm350, %v3157, %v3159
  %v3161 = vrot.slane %v2915, 6
  %v3162 = vrot.slane %v2916, 6
  %v3163 = vsel %vm350, %v3161, %v3162
  %v3164 = vrot.slane %v2917, 6
  %v3165 = vsel %vm350, %v3162, %v3164
  %v3166 = vrot.slane %v2918, 6
  %v3167 = vrot.slane %v2919, 6
  %v3168 = vsel %vm350, %v3166, %v3167
  %v3169 = vrot.slane %v2920, 6
  %v3170 = vsel %vm350, %v3167, %v3169
  %v3171 = vrot.slane %v2921, 6
  %v3172 = vrot.slane %v2922, 6
  %v3173 = vsel %vm350, %v3171, %v3172
  %v3174 = vrot.slane %v2923, 6
  %v3175 = vsel %vm350, %v3172, %v3174
  %v3176 = vrot.slane %v2924, 6
  %v3177 = vrot.slane %v2925, 6
  %v3178 = vsel %vm350, %v3176, %v3177
  %v3179 = vrot.slane %v2926, 6
  %v3180 = vsel %vm350, %v3177, %v3179
  %v3181 = vrot.slane %v2927, 6
  %v3182 = vrot.slane %v2928, 6
  %v3183 = vsel %vm350, %v3181, %v3182
  %v3184 = vrot.slane %v2929, 6
  %v3185 = vsel %vm350, %v3182, %v3184
  %v3186 = vrot.slane %v2930, 6
  %v3187 = vrot.slane %v2931, 6
  %v3188 = vsel %vm350, %v3186, %v3187
  %v3189 = vrot.slane %v2932, 6
  %v3190 = vsel %vm350, %v3187, %v3189
  %v3191 = vrot.slane %v2933, 6
  %v3192 = vrot.slane %v2934, 6
  %v3193 = vsel %vm350, %v3191, %v3192
  %v3194 = vrot.slane %v2935, 6
  %v3195 = vsel %vm350, %v3192, %v3194
  %v3196 = vrot.slane %v2936, 6
  %v3197 = vrot.slane %v2937, 6
  %v3198 = vsel %vm350, %v3196, %v3197
  %v3199 = vrot.slane %v2938, 6
  %v3200 = vsel %vm350, %v3197, %v3199
  %v3265 = vpack.c.bf16 %v3045, %v3043
  %v3266 = vpack.c.bf16 %v3050, %v3048
  %v3267 = vpack.c.bf16 %v3055, %v3053
  %v3268 = vpack.c.bf16 %v3060, %v3058
  %v3269 = vpack.c.bf16 %v3065, %v3063
  %v3270 = vpack.c.bf16 %v3070, %v3068
  %v3271 = vpack.c.bf16 %v3075, %v3073
  %v3272 = vpack.c.bf16 %v3080, %v3078
  %v3273 = vpack.c.bf16 %v3085, %v3083
  %v3274 = vpack.c.bf16 %v3090, %v3088
  %v3275 = vpack.c.bf16 %v3095, %v3093
  %v3276 = vpack.c.bf16 %v3100, %v3098
  %v3277 = vpack.c.bf16 %v3105, %v3103
  %v3278 = vpack.c.bf16 %v3110, %v3108
  %v3279 = vpack.c.bf16 %v3115, %v3113
  %v3280 = vpack.c.bf16 %v3120, %v3118
  %v3281 = vpack.c.bf16 %v3125, %v3123
  %v3282 = vpack.c.bf16 %v3130, %v3128
  %v3283 = vpack.c.bf16 %v3135, %v3133
  %v3284 = vpack.c.bf16 %v3140, %v3138
  %v3285 = vpack.c.bf16 %v3145, %v3143
  %v3286 = vpack.c.bf16 %v3150, %v3148
  %v3287 = vpack.c.bf16 %v3155, %v3153
  %v3288 = vpack.c.bf16 %v3160, %v3158
  %v3289 = vpack.c.bf16 %v3165, %v3163
  %v3290 = vpack.c.bf16 %v3170, %v3168
  %v3291 = vpack.c.bf16 %v3175, %v3173
  %v3292 = vpack.c.bf16 %v3180, %v3178
  %v3293 = vpack.c.bf16 %v3185, %v3183
  %v3294 = vpack.c.bf16 %v3190, %v3188
  %v3295 = vpack.c.bf16 %v3195, %v3193
  %v3296 = vpack.c.bf16 %v3200, %v3198
  %s3297 = scalar_lea.vmem %s3, 1
  %v3298 = vld [vmem:[%s3297] sm:$0x1]
  %vm3299 = vcmask 15360
  %v3301 = vsel %vm3299, %v3265, 0
  %v3304 = vsel %vm3299, %v3266, 0
  %v3307 = vsel %vm3299, %v3267, 0
  %v3310 = vsel %vm3299, %v3268, 0
  %v3313 = vsel %vm3299, %v3269, 0
  %v3316 = vsel %vm3299, %v3270, 0
  %v3319 = vsel %vm3299, %v3271, 0
  %v3322 = vsel %vm3299, %v3272, 0
  %v3325 = vsel %vm3299, %v3273, 0
  %v3328 = vsel %vm3299, %v3274, 0
  %v3331 = vsel %vm3299, %v3275, 0
  %v3334 = vsel %vm3299, %v3276, 0
  %v3337 = vsel %vm3299, %v3277, 0
  %v3340 = vsel %vm3299, %v3278, 0
  %v3343 = vsel %vm3299, %v3279, 0
  %v3346 = vsel %vm3299, %v3280, 0
  %v3349 = vsel %vm3299, %v3281, 0
  %v3352 = vsel %vm3299, %v3282, 0
  %v3355 = vsel %vm3299, %v3283, 0
  %v3358 = vsel %vm3299, %v3284, 0
  %v3361 = vsel %vm3299, %v3285, 0
  %v3364 = vsel %vm3299, %v3286, 0
  %v3367 = vsel %vm3299, %v3287, 0
  %v3370 = vsel %vm3299, %v3288, 0
  %v3373 = vsel %vm3299, %v3289, 0
  %v3376 = vsel %vm3299, %v3290, 0
  %v3379 = vsel %vm3299, %v3291, 0
  %v3382 = vsel %vm3299, %v3292, 0
  %v3385 = vsel %vm3299, %v3293, 0
  %v3388 = vsel %vm3299, %v3294, 0
  %v3391 = vsel %vm3299, %v3295, 0
  %v3394 = vsel %vm3299, %v3296, 0
  %vm3396 = vcmask 1040384
  %v3398 = vsel %vm3396, %v3298, 0
  %3400 = vmatprep.subr.bf16.mxu0 0
  %3401 = vmatpush1.bf16.msra.mxu0 %v3398
  %3402 = vmatprep.subr.bf16.mxu0 0
  %3403 = vmatpush1.bf16.msra.mxu0 0
  %3404 = vmatprep.subr.bf16.mxu0 0
  %3405 = vmatpush1.bf16.msra.mxu0 0
  %3406 = vmatprep.subr.bf16.mxu0 0
  %3407 = vmatpush1.bf16.msra.mxu0 0
  %3408 = vmatprep.subr.bf16.mxu0 0
  %3409 = vmatpush1.bf16.msra.mxu0 0
  %3410 = vmatprep.subr.bf16.mxu0 0
  %3411 = vmatpush1.bf16.msra.mxu0 0
  %3412 = vmatprep.subr.bf16.mxu0 0
  %3413 = vmatpush1.bf16.msra.mxu0 0
  %3414 = vmatprep.subr.bf16.mxu0 0
  %3415 = vmatpush1.bf16.msra.mxu0 0
  %3416 = vmatprep.subr.bf16.mxu0 0
  %3417 = vmatpush1.bf16.msra.mxu0 0
  %3418 = vmatprep.subr.bf16.mxu0 0
  %3419 = vmatpush1.bf16.msra.mxu0 0
  %3420 = vmatprep.subr.bf16.mxu0 0
  %3421 = vmatpush1.bf16.msra.mxu0 0
  %3422 = vmatprep.subr.bf16.mxu0 0
  %3423 = vmatpush1.bf16.msra.mxu0 0
  %3424 = vmatprep.subr.bf16.mxu0 0
  %3425 = vmatpush1.bf16.msra.mxu0 0
  %3426 = vmatprep.subr.bf16.mxu0 0
  %3427 = vmatpush1.bf16.msra.mxu0 0
  %3428 = vmatprep.subr.bf16.mxu0 0
  %3429 = vmatpush1.bf16.msra.mxu0 0
  %3430 = vmatprep.subr.bf16.mxu0 0
  %3431 = vmatpush1.bf16.msra.mxu0 0
  %3432 = vmatprep.mubr.bf16.mxu0 0
  %3433 = vmatmul.mubr.bf16.gmra.mrb[0].mxu0 %v3301
  %v3434 = vpop.f32.mrb[0].mxu0
  %v3435 = vadd.f32 0.0, %v3434
  %v3436 = vpop.f32.mrb[0].mxu0
  %v3437 = vpop.f32.mrb[0].mxu0
  %v3438 = vadd.f32 0.0, %v3437
  %v3439 = vpop.f32.mrb[0].mxu0
  %3440 = vmatprep.mubr.bf16.mxu0 0
  %3441 = vmatmul.mubr.bf16.gmra.mrb[0].mxu0 %v3304
  %v3442 = vpop.f32.mrb[0].mxu0
  %v3443 = vadd.f32 0.0, %v3442
  %v3444 = vpop.f32.mrb[0].mxu0
  %v3445 = vpop.f32.mrb[0].mxu0
  %v3446 = vadd.f32 0.0, %v3445
  %v3447 = vpop.f32.mrb[0].mxu0
  %3448 = vmatprep.mubr.bf16.mxu0 0
  %3449 = vmatmul.mubr.bf16.gmra.mrb[0].mxu0 %v3307
  %v3450 = vpop.f32.mrb[0].mxu0
  %v3451 = vadd.f32 0.0, %v3450
  %v3452 = vpop.f32.mrb[0].mxu0
  %v3453 = vpop.f32.mrb[0].mxu0
  %v3454 = vadd.f32 0.0, %v3453
  %v3455 = vpop.f32.mrb[0].mxu0
  %3456 = vmatprep.mubr.bf16.mxu0 0
  %3457 = vmatmul.mubr.bf16.gmra.mrb[0].mxu0 %v3310
  %v3458 = vpop.f32.mrb[0].mxu0
  %v3459 = vadd.f32 0.0, %v3458
  %v3460 = vpop.f32.mrb[0].mxu0
  %v3461 = vpop.f32.mrb[0].mxu0
  %v3462 = vadd.f32 0.0, %v3461
  %v3463 = vpop.f32.mrb[0].mxu0
  %3464 = vmatprep.mubr.bf16.mxu0 0
  %3465 = vmatmul.mubr.bf16.gmra.mrb[0].mxu0 %v3313
  %v3466 = vpop.f32.mrb[0].mxu0
  %v3467 = vadd.f32 0.0, %v3466
  %v3468 = vpop.f32.mrb[0].mxu0
  %v3469 = vpop.f32.mrb[0].mxu0
  %v3470 = vadd.f32 0.0, %v3469
  %v3471 = vpop.f32.mrb[0].mxu0
  %3472 = vmatprep.mubr.bf16.mxu0 0
  %3473 = vmatmul.mubr.bf16.gmra.mrb[0].mxu0 %v3316
  %v3474 = vpop.f32.mrb[0].mxu0
  %v3475 = vadd.f32 0.0, %v3474
  %v3476 = vpop.f32.mrb[0].mxu0
  %v3477 = vpop.f32.mrb[0].mxu0
  %v3478 = vadd.f32 0.0, %v3477
  %v3479 = vpop.f32.mrb[0].mxu0
  %3480 = vmatprep.mubr.bf16.mxu0 0
  %3481 = vmatmul.mubr.bf16.gmra.mrb[0].mxu0 %v3319
  %v3482 = vpop.f32.mrb[0].mxu0
  %v3483 = vadd.f32 0.0, %v3482
  %v3484 = vpop.f32.mrb[0].mxu0
  %v3485 = vpop.f32.mrb[0].mxu0
  %v3486 = vadd.f32 0.0, %v3485
  %v3487 = vpop.f32.mrb[0].mxu0
  %3488 = vmatprep.mubr.bf16.mxu0 0
  %3489 = vmatmul.mubr.bf16.gmra.mrb[0].mxu0 %v3322
  %v3490 = vpop.f32.mrb[0].mxu0
  %v3491 = vadd.f32 0.0, %v3490
  %v3492 = vpop.f32.mrb[0].mxu0
  %v3493 = vpop.f32.mrb[0].mxu0
  %v3494 = vadd.f32 0.0, %v3493
  %v3495 = vpop.f32.mrb[0].mxu0
  %3496 = vmatprep.mubr.bf16.mxu0 0
  %3497 = vmatmul.mubr.bf16.gmra.mrb[0].mxu0 %v3325
  %v3498 = vpop.f32.mrb[0].mxu0
  %v3499 = vadd.f32 0.0, %v3498
  %v3500 = vpop.f32.mrb[0].mxu0
  %v3501 = vpop.f32.mrb[0].mxu0
  %v3502 = vadd.f32 0.0, %v3501
  %v3503 = vpop.f32.mrb[0].mxu0
  %3504 = vmatprep.mubr.bf16.mxu0 0
  %3505 = vmatmul.mubr.bf16.gmra.mrb[0].mxu0 %v3328
  %v3506 = vpop.f32.mrb[0].mxu0
  %v3507 = vadd.f32 0.0, %v3506
  %v3508 = vpop.f32.mrb[0].mxu0
  %v3509 = vpop.f32.mrb[0].mxu0
  %v3510 = vadd.f32 0.0, %v3509
  %v3511 = vpop.f32.mrb[0].mxu0
  %3512 = vmatprep.mubr.bf16.mxu0 0
  %3513 = vmatmul.mubr.bf16.gmra.mrb[0].mxu0 %v3331
  %v3514 = vpop.f32.mrb[0].mxu0
  %v3515 = vadd.f32 0.0, %v3514
  %v3516 = vpop.f32.mrb[0].mxu0
  %v3517 = vpop.f32.mrb[0].mxu0
  %v3518 = vadd.f32 0.0, %v3517
  %v3519 = vpop.f32.mrb[0].mxu0
  %3520 = vmatprep.mubr.bf16.mxu0 0
  %3521 = vmatmul.mubr.bf16.gmra.mrb[0].mxu0 %v3334
  %v3522 = vpop.f32.mrb[0].mxu0
  %v3523 = vadd.f32 0.0, %v3522
  %v3524 = vpop.f32.mrb[0].mxu0
  %v3525 = vpop.f32.mrb[0].mxu0
  %v3526 = vadd.f32 0.0, %v3525
  %v3527 = vpop.f32.mrb[0].mxu0
  %3528 = vmatprep.mubr.bf16.mxu0 0
  %3529 = vmatmul.mubr.bf16.gmra.mrb[0].mxu0 %v3337
  %v3530 = vpop.f32.mrb[0].mxu0
  %v3531 = vadd.f32 0.0, %v3530
  %v3532 = vpop.f32.mrb[0].mxu0
  %v3533 = vpop.f32.mrb[0].mxu0
  %v3534 = vadd.f32 0.0, %v3533
  %v3535 = vpop.f32.mrb[0].mxu0
  %3536 = vmatprep.mubr.bf16.mxu0 0
  %3537 = vmatmul.mubr.bf16.gmra.mrb[0].mxu0 %v3340
  %v3538 = vpop.f32.mrb[0].mxu0
  %v3539 = vadd.f32 0.0, %v3538
  %v3540 = vpop.f32.mrb[0].mxu0
  %v3541 = vpop.f32.mrb[0].mxu0
  %v3542 = vadd.f32 0.0, %v3541
  %v3543 = vpop.f32.mrb[0].mxu0
  %3544 = vmatprep.mubr.bf16.mxu0 0
  %3545 = vmatmul.mubr.bf16.gmra.mrb[0].mxu0 %v3343
  %v3546 = vpop.f32.mrb[0].mxu0
  %v3547 = vadd.f32 0.0, %v3546
  %v3548 = vpop.f32.mrb[0].mxu0
  %v3549 = vpop.f32.mrb[0].mxu0
  %v3550 = vadd.f32 0.0, %v3549
  %v3551 = vpop.f32.mrb[0].mxu0
  %3552 = vmatprep.mubr.bf16.mxu0 0
  %3553 = vmatmul.mubr.bf16.gmra.mrb[0].mxu0 %v3346
  %v3554 = vpop.f32.mrb[0].mxu0
  %v3555 = vadd.f32 0.0, %v3554
  %v3556 = vpop.f32.mrb[0].mxu0
  %v3557 = vpop.f32.mrb[0].mxu0
  %v3558 = vadd.f32 0.0, %v3557
  %v3559 = vpop.f32.mrb[0].mxu0
  %3560 = vmatprep.mubr.bf16.mxu0 0
  %3561 = vmatmul.mubr.bf16.gmra.mrb[0].mxu0 %v3349
  %v3562 = vpop.f32.mrb[0].mxu0
  %v3563 = vadd.f32 0.0, %v3562
  %v3564 = vpop.f32.mrb[0].mxu0
  %v3565 = vpop.f32.mrb[0].mxu0
  %v3566 = vadd.f32 0.0, %v3565
  %v3567 = vpop.f32.mrb[0].mxu0
  %3568 = vmatprep.mubr.bf16.mxu0 0
  %3569 = vmatmul.mubr.bf16.gmra.mrb[0].mxu0 %v3352
  %v3570 = vpop.f32.mrb[0].mxu0
  %v3571 = vadd.f32 0.0, %v3570
  %v3572 = vpop.f32.mrb[0].mxu0
  %v3573 = vpop.f32.mrb[0].mxu0
  %v3574 = vadd.f32 0.0, %v3573
  %v3575 = vpop.f32.mrb[0].mxu0
  %3576 = vmatprep.mubr.bf16.mxu0 0
  %3577 = vmatmul.mubr.bf16.gmra.mrb[0].mxu0 %v3355
  %v3578 = vpop.f32.mrb[0].mxu0
  %v3579 = vadd.f32 0.0, %v3578
  %v3580 = vpop.f32.mrb[0].mxu0
  %v3581 = vpop.f32.mrb[0].mxu0
  %v3582 = vadd.f32 0.0, %v3581
  %v3583 = vpop.f32.mrb[0].mxu0
  %3584 = vmatprep.mubr.bf16.mxu0 0
  %3585 = vmatmul.mubr.bf16.gmra.mrb[0].mxu0 %v3358
  %v3586 = vpop.f32.mrb[0].mxu0
  %v3587 = vadd.f32 0.0, %v3586
  %v3588 = vpop.f32.mrb[0].mxu0
  %v3589 = vpop.f32.mrb[0].mxu0
  %v3590 = vadd.f32 0.0, %v3589
  %v3591 = vpop.f32.mrb[0].mxu0
  %3592 = vmatprep.mubr.bf16.mxu0 0
  %3593 = vmatmul.mubr.bf16.gmra.mrb[0].mxu0 %v3361
  %v3594 = vpop.f32.mrb[0].mxu0
  %v3595 = vadd.f32 0.0, %v3594
  %v3596 = vpop.f32.mrb[0].mxu0
  %v3597 = vpop.f32.mrb[0].mxu0
  %v3598 = vadd.f32 0.0, %v3597
  %v3599 = vpop.f32.mrb[0].mxu0
  %3600 = vmatprep.mubr.bf16.mxu0 0
  %3601 = vmatmul.mubr.bf16.gmra.mrb[0].mxu0 %v3364
  %v3602 = vpop.f32.mrb[0].mxu0
  %v3603 = vadd.f32 0.0, %v3602
  %v3604 = vpop.f32.mrb[0].mxu0
  %v3605 = vpop.f32.mrb[0].mxu0
  %v3606 = vadd.f32 0.0, %v3605
  %v3607 = vpop.f32.mrb[0].mxu0
  %3608 = vmatprep.mubr.bf16.mxu0 0
  %3609 = vmatmul.mubr.bf16.gmra.mrb[0].mxu0 %v3367
  %v3610 = vpop.f32.mrb[0].mxu0
  %v3611 = vadd.f32 0.0, %v3610
  %v3612 = vpop.f32.mrb[0].mxu0
  %v3613 = vpop.f32.mrb[0].mxu0
  %v3614 = vadd.f32 0.0, %v3613
  %v3615 = vpop.f32.mrb[0].mxu0
  %3616 = vmatprep.mubr.bf16.mxu0 0
  %3617 = vmatmul.mubr.bf16.gmra.mrb[0].mxu0 %v3370
  %v3618 = vpop.f32.mrb[0].mxu0
  %v3619 = vadd.f32 0.0, %v3618
  %v3620 = vpop.f32.mrb[0].mxu0
  %v3621 = vpop.f32.mrb[0].mxu0
  %v3622 = vadd.f32 0.0, %v3621
  %v3623 = vpop.f32.mrb[0].mxu0
  %3624 = vmatprep.mubr.bf16.mxu0 0
  %3625 = vmatmul.mubr.bf16.gmra.mrb[0].mxu0 %v3373
  %v3626 = vpop.f32.mrb[0].mxu0
  %v3627 = vadd.f32 0.0, %v3626
  %v3628 = vpop.f32.mrb[0].mxu0
  %v3629 = vpop.f32.mrb[0].mxu0
  %v3630 = vadd.f32 0.0, %v3629
  %v3631 = vpop.f32.mrb[0].mxu0
  %3632 = vmatprep.mubr.bf16.mxu0 0
  %3633 = vmatmul.mubr.bf16.gmra.mrb[0].mxu0 %v3376
  %v3634 = vpop.f32.mrb[0].mxu0
  %v3635 = vadd.f32 0.0, %v3634
  %v3636 = vpop.f32.mrb[0].mxu0
  %v3637 = vpop.f32.mrb[0].mxu0
  %v3638 = vadd.f32 0.0, %v3637
  %v3639 = vpop.f32.mrb[0].mxu0
  %3640 = vmatprep.mubr.bf16.mxu0 0
  %3641 = vmatmul.mubr.bf16.gmra.mrb[0].mxu0 %v3379
  %v3642 = vpop.f32.mrb[0].mxu0
  %v3643 = vadd.f32 0.0, %v3642
  %v3644 = vpop.f32.mrb[0].mxu0
  %v3645 = vpop.f32.mrb[0].mxu0
  %v3646 = vadd.f32 0.0, %v3645
  %v3647 = vpop.f32.mrb[0].mxu0
  %3648 = vmatprep.mubr.bf16.mxu0 0
  %3649 = vmatmul.mubr.bf16.gmra.mrb[0].mxu0 %v3382
  %v3650 = vpop.f32.mrb[0].mxu0
  %v3651 = vadd.f32 0.0, %v3650
  %v3652 = vpop.f32.mrb[0].mxu0
  %v3653 = vpop.f32.mrb[0].mxu0
  %v3654 = vadd.f32 0.0, %v3653
  %v3655 = vpop.f32.mrb[0].mxu0
  %3656 = vmatprep.mubr.bf16.mxu0 0
  %3657 = vmatmul.mubr.bf16.gmra.mrb[0].mxu0 %v3385
  %v3658 = vpop.f32.mrb[0].mxu0
  %v3659 = vadd.f32 0.0, %v3658
  %v3660 = vpop.f32.mrb[0].mxu0
  %v3661 = vpop.f32.mrb[0].mxu0
  %v3662 = vadd.f32 0.0, %v3661
  %v3663 = vpop.f32.mrb[0].mxu0
  %3664 = vmatprep.mubr.bf16.mxu0 0
  %3665 = vmatmul.mubr.bf16.gmra.mrb[0].mxu0 %v3388
  %v3666 = vpop.f32.mrb[0].mxu0
  %v3667 = vadd.f32 0.0, %v3666
  %v3668 = vpop.f32.mrb[0].mxu0
  %v3669 = vpop.f32.mrb[0].mxu0
  %v3670 = vadd.f32 0.0, %v3669
  %v3671 = vpop.f32.mrb[0].mxu0
  %3672 = vmatprep.mubr.bf16.mxu0 0
  %3673 = vmatmul.mubr.bf16.gmra.mrb[0].mxu0 %v3391
  %v3674 = vpop.f32.mrb[0].mxu0
  %v3675 = vadd.f32 0.0, %v3674
  %v3676 = vpop.f32.mrb[0].mxu0
  %v3677 = vpop.f32.mrb[0].mxu0
  %v3678 = vadd.f32 0.0, %v3677
  %v3679 = vpop.f32.mrb[0].mxu0
  %3680 = vmatprep.mubr.bf16.mxu0 0
  %3681 = vmatmul.mubr.bf16.gmra.mrb[0].mxu0 %v3394
  %v3682 = vpop.f32.mrb[0].mxu0
  %v3683 = vadd.f32 0.0, %v3682
  %v3684 = vpop.f32.mrb[0].mxu0
  %v3685 = vpop.f32.mrb[0].mxu0
  %v3686 = vadd.f32 0.0, %v3685
  %v3687 = vpop.f32.mrb[0].mxu0
  %3688 = vdwg.mxu0
  %v3690 = vsel %vm3299, %v771, 0
  %v3693 = vsel %vm3299, %v772, 0
  %v3696 = vsel %vm3299, %v773, 0
  %v3699 = vsel %vm3299, %v774, 0
  %v3702 = vsel %vm3299, %v775, 0
  %v3705 = vsel %vm3299, %v776, 0
  %v3708 = vsel %vm3299, %v777, 0
  %v3711 = vsel %vm3299, %v778, 0
  %v3714 = vsel %vm3299, %v779, 0
  %v3717 = vsel %vm3299, %v780, 0
  %v3720 = vsel %vm3299, %v781, 0
  %v3723 = vsel %vm3299, %v782, 0
  %v3726 = vsel %vm3299, %v783, 0
  %v3729 = vsel %vm3299, %v784, 0
  %v3732 = vsel %vm3299, %v785, 0
  %v3735 = vsel %vm3299, %v786, 0
  %v3738 = vsel %vm3299, %v787, 0
  %v3741 = vsel %vm3299, %v788, 0
  %v3744 = vsel %vm3299, %v789, 0
  %v3747 = vsel %vm3299, %v790, 0
  %v3750 = vsel %vm3299, %v791, 0
  %v3753 = vsel %vm3299, %v792, 0
  %v3756 = vsel %vm3299, %v793, 0
  %v3759 = vsel %vm3299, %v794, 0
  %v3762 = vsel %vm3299, %v795, 0
  %v3765 = vsel %vm3299, %v796, 0
  %v3768 = vsel %vm3299, %v797, 0
  %v3771 = vsel %vm3299, %v798, 0
  %v3774 = vsel %vm3299, %v799, 0
  %v3777 = vsel %vm3299, %v800, 0
  %v3780 = vsel %vm3299, %v801, 0
  %v3783 = vsel %vm3299, %v802, 0
  %v3786 = vsel %vm3396, %v803, 0
  %3788 = vmatprep.subr.bf16.mxu0 0
  %3789 = vmatpush1.bf16.msra.mxu0 %v3786
  %3790 = vmatprep.subr.bf16.mxu0 0
  %3791 = vmatpush1.bf16.msra.mxu0 0
  %3792 = vmatprep.subr.bf16.mxu0 0
  %3793 = vmatpush1.bf16.msra.mxu0 0
  %3794 = vmatprep.subr.bf16.mxu0 0
  %3795 = vmatpush1.bf16.msra.mxu0 0
  %3796 = vmatprep.subr.bf16.mxu0 0
  %3797 = vmatpush1.bf16.msra.mxu0 0
  %3798 = vmatprep.subr.bf16.mxu0 0
  %3799 = vmatpush1.bf16.msra.mxu0 0
  %3800 = vmatprep.subr.bf16.mxu0 0
  %3801 = vmatpush1.bf16.msra.mxu0 0
  %3802 = vmatprep.subr.bf16.mxu0 0
  %3803 = vmatpush1.bf16.msra.mxu0 0
  %3804 = vmatprep.subr.bf16.mxu0 0
  %3805 = vmatpush1.bf16.msra.mxu0 0
  %3806 = vmatprep.subr.bf16.mxu0 0
  %3807 = vmatpush1.bf16.msra.mxu0 0
  %3808 = vmatprep.subr.bf16.mxu0 0
  %3809 = vmatpush1.bf16.msra.mxu0 0
  %3810 = vmatprep.subr.bf16.mxu0 0
  %3811 = vmatpush1.bf16.msra.mxu0 0
  %3812 = vmatprep.subr.bf16.mxu0 0
  %3813 = vmatpush1.bf16.msra.mxu0 0
  %3814 = vmatprep.subr.bf16.mxu0 0
  %3815 = vmatpush1.bf16.msra.mxu0 0
  %3816 = vmatprep.subr.bf16.mxu0 0
  %3817 = vmatpush1.bf16.msra.mxu0 0
  %3818 = vmatprep.subr.bf16.mxu0 0
  %3819 = vmatpush1.bf16.msra.mxu0 0
  %3820 = vmatprep.mubr.bf16.mxu0 0
  %3821 = vmatmul.mubr.bf16.gmra.mrb[0].mxu0 %v3690
  %v3822 = vpop.f32.mrb[0].mxu0
  %v3823 = vadd.f32 %v3435, %v3822
  %v3824 = vpop.f32.mrb[0].mxu0
  %v3825 = vpop.f32.mrb[0].mxu0
  %v3826 = vadd.f32 %v3438, %v3825
  %v3827 = vpop.f32.mrb[0].mxu0
  %3828 = vmatprep.mubr.bf16.mxu0 0
  %3829 = vmatmul.mubr.bf16.gmra.mrb[0].mxu0 %v3693
  %v3830 = vpop.f32.mrb[0].mxu0
  %v3831 = vadd.f32 %v3443, %v3830
  %v3832 = vpop.f32.mrb[0].mxu0
  %v3833 = vpop.f32.mrb[0].mxu0
  %v3834 = vadd.f32 %v3446, %v3833
  %v3835 = vpop.f32.mrb[0].mxu0
  %3836 = vmatprep.mubr.bf16.mxu0 0
  %3837 = vmatmul.mubr.bf16.gmra.mrb[0].mxu0 %v3696
  %v3838 = vpop.f32.mrb[0].mxu0
  %v3839 = vadd.f32 %v3451, %v3838
  %v3840 = vpop.f32.mrb[0].mxu0
  %v3841 = vpop.f32.mrb[0].mxu0
  %v3842 = vadd.f32 %v3454, %v3841
  %v3843 = vpop.f32.mrb[0].mxu0
  %3844 = vmatprep.mubr.bf16.mxu0 0
  %3845 = vmatmul.mubr.bf16.gmra.mrb[0].mxu0 %v3699
  %v3846 = vpop.f32.mrb[0].mxu0
  %v3847 = vadd.f32 %v3459, %v3846
  %v3848 = vpop.f32.mrb[0].mxu0
  %v3849 = vpop.f32.mrb[0].mxu0
  %v3850 = vadd.f32 %v3462, %v3849
  %v3851 = vpop.f32.mrb[0].mxu0
  %3852 = vmatprep.mubr.bf16.mxu0 0
  %3853 = vmatmul.mubr.bf16.gmra.mrb[0].mxu0 %v3702
  %v3854 = vpop.f32.mrb[0].mxu0
  %v3855 = vadd.f32 %v3467, %v3854
  %v3856 = vpop.f32.mrb[0].mxu0
  %v3857 = vpop.f32.mrb[0].mxu0
  %v3858 = vadd.f32 %v3470, %v3857
  %v3859 = vpop.f32.mrb[0].mxu0
  %3860 = vmatprep.mubr.bf16.mxu0 0
  %3861 = vmatmul.mubr.bf16.gmra.mrb[0].mxu0 %v3705
  %v3862 = vpop.f32.mrb[0].mxu0
  %v3863 = vadd.f32 %v3475, %v3862
  %v3864 = vpop.f32.mrb[0].mxu0
  %v3865 = vpop.f32.mrb[0].mxu0
  %v3866 = vadd.f32 %v3478, %v3865
  %v3867 = vpop.f32.mrb[0].mxu0
  %3868 = vmatprep.mubr.bf16.mxu0 0
  %3869 = vmatmul.mubr.bf16.gmra.mrb[0].mxu0 %v3708
  %v3870 = vpop.f32.mrb[0].mxu0
  %v3871 = vadd.f32 %v3483, %v3870
  %v3872 = vpop.f32.mrb[0].mxu0
  %v3873 = vpop.f32.mrb[0].mxu0
  %v3874 = vadd.f32 %v3486, %v3873
  %v3875 = vpop.f32.mrb[0].mxu0
  %3876 = vmatprep.mubr.bf16.mxu0 0
  %3877 = vmatmul.mubr.bf16.gmra.mrb[0].mxu0 %v3711
  %v3878 = vpop.f32.mrb[0].mxu0
  %v3879 = vadd.f32 %v3491, %v3878
  %v3880 = vpop.f32.mrb[0].mxu0
  %v3881 = vpop.f32.mrb[0].mxu0
  %v3882 = vadd.f32 %v3494, %v3881
  %v3883 = vpop.f32.mrb[0].mxu0
  %3884 = vmatprep.mubr.bf16.mxu0 0
  %3885 = vmatmul.mubr.bf16.gmra.mrb[0].mxu0 %v3714
  %v3886 = vpop.f32.mrb[0].mxu0
  %v3887 = vadd.f32 %v3499, %v3886
  %v3888 = vpop.f32.mrb[0].mxu0
  %v3889 = vpop.f32.mrb[0].mxu0
  %v3890 = vadd.f32 %v3502, %v3889
  %v3891 = vpop.f32.mrb[0].mxu0
  %3892 = vmatprep.mubr.bf16.mxu0 0
  %3893 = vmatmul.mubr.bf16.gmra.mrb[0].mxu0 %v3717
  %v3894 = vpop.f32.mrb[0].mxu0
  %v3895 = vadd.f32 %v3507, %v3894
  %v3896 = vpop.f32.mrb[0].mxu0
  %v3897 = vpop.f32.mrb[0].mxu0
  %v3898 = vadd.f32 %v3510, %v3897
  %v3899 = vpop.f32.mrb[0].mxu0
  %3900 = vmatprep.mubr.bf16.mxu0 0
  %3901 = vmatmul.mubr.bf16.gmra.mrb[0].mxu0 %v3720
  %v3902 = vpop.f32.mrb[0].mxu0
  %v3903 = vadd.f32 %v3515, %v3902
  %v3904 = vpop.f32.mrb[0].mxu0
  %v3905 = vpop.f32.mrb[0].mxu0
  %v3906 = vadd.f32 %v3518, %v3905
  %v3907 = vpop.f32.mrb[0].mxu0
  %3908 = vmatprep.mubr.bf16.mxu0 0
  %3909 = vmatmul.mubr.bf16.gmra.mrb[0].mxu0 %v3723
  %v3910 = vpop.f32.mrb[0].mxu0
  %v3911 = vadd.f32 %v3523, %v3910
  %v3912 = vpop.f32.mrb[0].mxu0
  %v3913 = vpop.f32.mrb[0].mxu0
  %v3914 = vadd.f32 %v3526, %v3913
  %v3915 = vpop.f32.mrb[0].mxu0
  %3916 = vmatprep.mubr.bf16.mxu0 0
  %3917 = vmatmul.mubr.bf16.gmra.mrb[0].mxu0 %v3726
  %v3918 = vpop.f32.mrb[0].mxu0
  %v3919 = vadd.f32 %v3531, %v3918
  %v3920 = vpop.f32.mrb[0].mxu0
  %v3921 = vpop.f32.mrb[0].mxu0
  %v3922 = vadd.f32 %v3534, %v3921
  %v3923 = vpop.f32.mrb[0].mxu0
  %3924 = vmatprep.mubr.bf16.mxu0 0
  %3925 = vmatmul.mubr.bf16.gmra.mrb[0].mxu0 %v3729
  %v3926 = vpop.f32.mrb[0].mxu0
  %v3927 = vadd.f32 %v3539, %v3926
  %v3928 = vpop.f32.mrb[0].mxu0
  %v3929 = vpop.f32.mrb[0].mxu0
  %v3930 = vadd.f32 %v3542, %v3929
  %v3931 = vpop.f32.mrb[0].mxu0
  %3932 = vmatprep.mubr.bf16.mxu0 0
  %3933 = vmatmul.mubr.bf16.gmra.mrb[0].mxu0 %v3732
  %v3934 = vpop.f32.mrb[0].mxu0
  %v3935 = vadd.f32 %v3547, %v3934
  %v3936 = vpop.f32.mrb[0].mxu0
  %v3937 = vpop.f32.mrb[0].mxu0
  %v3938 = vadd.f32 %v3550, %v3937
  %v3939 = vpop.f32.mrb[0].mxu0
  %3940 = vmatprep.mubr.bf16.mxu0 0
  %3941 = vmatmul.mubr.bf16.gmra.mrb[0].mxu0 %v3735
  %v3942 = vpop.f32.mrb[0].mxu0
  %v3943 = vadd.f32 %v3555, %v3942
  %v3944 = vpop.f32.mrb[0].mxu0
  %v3945 = vpop.f32.mrb[0].mxu0
  %v3946 = vadd.f32 %v3558, %v3945
  %v3947 = vpop.f32.mrb[0].mxu0
  %3948 = vmatprep.mubr.bf16.mxu0 0
  %3949 = vmatmul.mubr.bf16.gmra.mrb[0].mxu0 %v3738
  %v3950 = vpop.f32.mrb[0].mxu0
  %v3951 = vadd.f32 %v3563, %v3950
  %v3952 = vpop.f32.mrb[0].mxu0
  %v3953 = vpop.f32.mrb[0].mxu0
  %v3954 = vadd.f32 %v3566, %v3953
  %v3955 = vpop.f32.mrb[0].mxu0
  %3956 = vmatprep.mubr.bf16.mxu0 0
  %3957 = vmatmul.mubr.bf16.gmra.mrb[0].mxu0 %v3741
  %v3958 = vpop.f32.mrb[0].mxu0
  %v3959 = vadd.f32 %v3571, %v3958
  %v3960 = vpop.f32.mrb[0].mxu0
  %v3961 = vpop.f32.mrb[0].mxu0
  %v3962 = vadd.f32 %v3574, %v3961
  %v3963 = vpop.f32.mrb[0].mxu0
  %3964 = vmatprep.mubr.bf16.mxu0 0
  %3965 = vmatmul.mubr.bf16.gmra.mrb[0].mxu0 %v3744
  %v3966 = vpop.f32.mrb[0].mxu0
  %v3967 = vadd.f32 %v3579, %v3966
  %v3968 = vpop.f32.mrb[0].mxu0
  %v3969 = vpop.f32.mrb[0].mxu0
  %v3970 = vadd.f32 %v3582, %v3969
  %v3971 = vpop.f32.mrb[0].mxu0
  %3972 = vmatprep.mubr.bf16.mxu0 0
  %3973 = vmatmul.mubr.bf16.gmra.mrb[0].mxu0 %v3747
  %v3974 = vpop.f32.mrb[0].mxu0
  %v3975 = vadd.f32 %v3587, %v3974
  %v3976 = vpop.f32.mrb[0].mxu0
  %v3977 = vpop.f32.mrb[0].mxu0
  %v3978 = vadd.f32 %v3590, %v3977
  %v3979 = vpop.f32.mrb[0].mxu0
  %3980 = vmatprep.mubr.bf16.mxu0 0
  %3981 = vmatmul.mubr.bf16.gmra.mrb[0].mxu0 %v3750
  %v3982 = vpop.f32.mrb[0].mxu0
  %v3983 = vadd.f32 %v3595, %v3982
  %v3984 = vpop.f32.mrb[0].mxu0
  %v3985 = vpop.f32.mrb[0].mxu0
  %v3986 = vadd.f32 %v3598, %v3985
  %v3987 = vpop.f32.mrb[0].mxu0
  %3988 = vmatprep.mubr.bf16.mxu0 0
  %3989 = vmatmul.mubr.bf16.gmra.mrb[0].mxu0 %v3753
  %v3990 = vpop.f32.mrb[0].mxu0
  %v3991 = vadd.f32 %v3603, %v3990
  %v3992 = vpop.f32.mrb[0].mxu0
  %v3993 = vpop.f32.mrb[0].mxu0
  %v3994 = vadd.f32 %v3606, %v3993
  %v3995 = vpop.f32.mrb[0].mxu0
  %3996 = vmatprep.mubr.bf16.mxu0 0
  %3997 = vmatmul.mubr.bf16.gmra.mrb[0].mxu0 %v3756
  %v3998 = vpop.f32.mrb[0].mxu0
  %v3999 = vadd.f32 %v3611, %v3998
  %v4000 = vpop.f32.mrb[0].mxu0
  %v4001 = vpop.f32.mrb[0].mxu0
  %v4002 = vadd.f32 %v3614, %v4001
  %v4003 = vpop.f32.mrb[0].mxu0
  %4004 = vmatprep.mubr.bf16.mxu0 0
  %4005 = vmatmul.mubr.bf16.gmra.mrb[0].mxu0 %v3759
  %v4006 = vpop.f32.mrb[0].mxu0
  %v4007 = vadd.f32 %v3619, %v4006
  %v4008 = vpop.f32.mrb[0].mxu0
  %v4009 = vpop.f32.mrb[0].mxu0
  %v4010 = vadd.f32 %v3622, %v4009
  %v4011 = vpop.f32.mrb[0].mxu0
  %4012 = vmatprep.mubr.bf16.mxu0 0
  %4013 = vmatmul.mubr.bf16.gmra.mrb[0].mxu0 %v3762
  %v4014 = vpop.f32.mrb[0].mxu0
  %v4015 = vadd.f32 %v3627, %v4014
  %v4016 = vpop.f32.mrb[0].mxu0
  %v4017 = vpop.f32.mrb[0].mxu0
  %v4018 = vadd.f32 %v3630, %v4017
  %v4019 = vpop.f32.mrb[0].mxu0
  %4020 = vmatprep.mubr.bf16.mxu0 0
  %4021 = vmatmul.mubr.bf16.gmra.mrb[0].mxu0 %v3765
  %v4022 = vpop.f32.mrb[0].mxu0
  %v4023 = vadd.f32 %v3635, %v4022
  %v4024 = vpop.f32.mrb[0].mxu0
  %v4025 = vpop.f32.mrb[0].mxu0
  %v4026 = vadd.f32 %v3638, %v4025
  %v4027 = vpop.f32.mrb[0].mxu0
  %4028 = vmatprep.mubr.bf16.mxu0 0
  %4029 = vmatmul.mubr.bf16.gmra.mrb[0].mxu0 %v3768
  %v4030 = vpop.f32.mrb[0].mxu0
  %v4031 = vadd.f32 %v3643, %v4030
  %v4032 = vpop.f32.mrb[0].mxu0
  %v4033 = vpop.f32.mrb[0].mxu0
  %v4034 = vadd.f32 %v3646, %v4033
  %v4035 = vpop.f32.mrb[0].mxu0
  %4036 = vmatprep.mubr.bf16.mxu0 0
  %4037 = vmatmul.mubr.bf16.gmra.mrb[0].mxu0 %v3771
  %v4038 = vpop.f32.mrb[0].mxu0
  %v4039 = vadd.f32 %v3651, %v4038
  %v4040 = vpop.f32.mrb[0].mxu0
  %v4041 = vpop.f32.mrb[0].mxu0
  %v4042 = vadd.f32 %v3654, %v4041
  %v4043 = vpop.f32.mrb[0].mxu0
  %4044 = vmatprep.mubr.bf16.mxu0 0
  %4045 = vmatmul.mubr.bf16.gmra.mrb[0].mxu0 %v3774
  %v4046 = vpop.f32.mrb[0].mxu0
  %v4047 = vadd.f32 %v3659, %v4046
  %v4048 = vpop.f32.mrb[0].mxu0
  %v4049 = vpop.f32.mrb[0].mxu0
  %v4050 = vadd.f32 %v3662, %v4049
  %v4051 = vpop.f32.mrb[0].mxu0
  %4052 = vmatprep.mubr.bf16.mxu0 0
  %4053 = vmatmul.mubr.bf16.gmra.mrb[0].mxu0 %v3777
  %v4054 = vpop.f32.mrb[0].mxu0
  %v4055 = vadd.f32 %v3667, %v4054
  %v4056 = vpop.f32.mrb[0].mxu0
  %v4057 = vpop.f32.mrb[0].mxu0
  %v4058 = vadd.f32 %v3670, %v4057
  %v4059 = vpop.f32.mrb[0].mxu0
  %4060 = vmatprep.mubr.bf16.mxu0 0
  %4061 = vmatmul.mubr.bf16.gmra.mrb[0].mxu0 %v3780
  %v4062 = vpop.f32.mrb[0].mxu0
  %v4063 = vadd.f32 %v3675, %v4062
  %v4064 = vpop.f32.mrb[0].mxu0
  %v4065 = vpop.f32.mrb[0].mxu0
  %v4066 = vadd.f32 %v3678, %v4065
  %v4067 = vpop.f32.mrb[0].mxu0
  %4068 = vmatprep.mubr.bf16.mxu0 0
  %4069 = vmatmul.mubr.bf16.gmra.mrb[0].mxu0 %v3783
  %v4070 = vpop.f32.mrb[0].mxu0
  %v4071 = vadd.f32 %v3683, %v4070
  %v4072 = vpop.f32.mrb[0].mxu0
  %v4073 = vpop.f32.mrb[0].mxu0
  %v4074 = vadd.f32 %v3686, %v4073
  %v4075 = vpop.f32.mrb[0].mxu0
  %4076 = vdwg.mxu0
  %v4077 = vmax.f32 %v2823, %v2825
  %v4078 = vmax.f32 %v2823, %v2826
  %v4079 = vmax.f32 %v2823, %v2827
  %v4080 = vmax.f32 %v2825, %v2828
  %v4081 = vmax.f32 %v2826, %v2829
  %v4082 = vmax.f32 %v2827, %v2830
  %v4083 = vmax.f32 %v2828, %v2831
  %v4084 = vmax.f32 %v2829, %v2832
  %v4085 = vmax.f32 %v2830, %v2833
  %v4086 = vmax.f32 %v2831, %v2834
  %v4087 = vmax.f32 %v2832, %v2835
  %v4088 = vmax.f32 %v2833, %v2836
  %v4089 = vmax.f32 %v2834, %v2837
  %v4090 = vmax.f32 %v2835, %v2838
  %v4091 = vmax.f32 %v2836, %v2839
  %v4092 = vmax.f32 %v2837, %v2840
  %v4093 = vmax.f32 %v2838, %v2841
  %v4094 = vmax.f32 %v2839, %v2842
  %v4095 = vmax.f32 %v2840, %v2843
  %v4096 = vmax.f32 %v2841, %v2844
  %v4097 = vmax.f32 %v2842, %v2845
  %v4098 = vmax.f32 %v2843, %v2846
  %v4099 = vmax.f32 %v2844, %v2847
  %v4100 = vmax.f32 %v2845, %v2848
  %v4101 = vmax.f32 %v2846, %v2849
  %v4102 = vmax.f32 %v2847, %v2850
  %v4103 = vmax.f32 %v2848, %v2851
  %v4104 = vmax.f32 %v2849, %v2852
  %v4105 = vmax.f32 %v2850, %v2853
  %v4106 = vmax.f32 %v2851, %v2854
  %v4107 = vmax.f32 %v2852, %v2855
  %v4108 = vmax.f32 %v2853, %v2856
  %v4109 = vmax.f32 %v2854, %v2857
  %v4110 = vmax.f32 %v2855, %v2858
  %v4111 = vmax.f32 %v2856, %v2859
  %v4112 = vmax.f32 %v2857, %v2860
  %v4113 = vmax.f32 %v2858, %v2861
  %v4114 = vmax.f32 %v2859, %v2862
  %v4115 = vmax.f32 %v2860, %v2863
  %v4116 = vmax.f32 %v2861, %v2864
  %v4117 = vmax.f32 %v2862, %v2865
  %v4118 = vmax.f32 %v2863, %v2866
  %v4119 = vmax.f32 %v2864, %v2867
  %v4120 = vmax.f32 %v2865, %v2868
  %v4121 = vmax.f32 %v2866, %v2869
  %v4122 = vmax.f32 %v2867, %v2870
  %v4123 = vmax.f32 %v2868, %v2871
  %v4124 = vmax.f32 %v2869, %v2872
  %v4125 = vmax.f32 %v2870, %v2873
  %v4126 = vmax.f32 %v2871, %v2874
  %v4127 = vmax.f32 %v2872, %v2875
  %v4128 = vmax.f32 %v2873, %v2876
  %v4129 = vmax.f32 %v2874, %v2877
  %v4130 = vmax.f32 %v2875, %v2878
  %v4131 = vmax.f32 %v2876, %v2879
  %v4132 = vmax.f32 %v2877, %v2880
  %v4133 = vmax.f32 %v2878, %v2881
  %v4134 = vmax.f32 %v2823, %v2885
  %v4135 = vmax.f32 %v2823, %v2886
  %v4136 = vmax.f32 %v2823, %v2887
  %v4137 = vmax.f32 %v2885, %v2888
  %v4138 = vmax.f32 %v2886, %v2889
  %v4139 = vmax.f32 %v2887, %v2890
  %v4140 = vmax.f32 %v2888, %v2891
  %v4141 = vmax.f32 %v2889, %v2892
  %v4142 = vmax.f32 %v2890, %v2893
  %v4143 = vmax.f32 %v2891, %v2894
  %v4144 = vmax.f32 %v2892, %v2895
  %v4145 = vmax.f32 %v2893, %v2896
  %v4146 = vmax.f32 %v2894, %v2897
  %v4147 = vmax.f32 %v2895, %v2898
  %v4148 = vmax.f32 %v2896, %v2899
  %v4149 = vmax.f32 %v2897, %v2900
  %v4150 = vmax.f32 %v2898, %v2901
  %v4151 = vmax.f32 %v2899, %v2902
  %v4152 = vmax.f32 %v2900, %v2903
  %v4153 = vmax.f32 %v2901, %v2904
  %v4154 = vmax.f32 %v2902, %v2905
  %v4155 = vmax.f32 %v2903, %v2906
  %v4156 = vmax.f32 %v2904, %v2907
  %v4157 = vmax.f32 %v2905, %v2908
  %v4158 = vmax.f32 %v2906, %v2909
  %v4159 = vmax.f32 %v2907, %v2910
  %v4160 = vmax.f32 %v2908, %v2911
  %v4161 = vmax.f32 %v2909, %v2912
  %v4162 = vmax.f32 %v2910, %v2913
  %v4163 = vmax.f32 %v2911, %v2914
  %v4164 = vmax.f32 %v2912, %v2915
  %v4165 = vmax.f32 %v2913, %v2916
  %v4166 = vmax.f32 %v2914, %v2917
  %v4167 = vmax.f32 %v2915, %v2918
  %v4168 = vmax.f32 %v2916, %v2919
  %v4169 = vmax.f32 %v2917, %v2920
  %v4170 = vmax.f32 %v2918, %v2921
  %v4171 = vmax.f32 %v2919, %v2922
  %v4172 = vmax.f32 %v2920, %v2923
  %v4173 = vmax.f32 %v2921, %v2924
  %v4174 = vmax.f32 %v2922, %v2925
  %v4175 = vmax.f32 %v2923, %v2926
  %v4176 = vmax.f32 %v2924, %v2927
  %v4177 = vmax.f32 %v2925, %v2928
  %v4178 = vmax.f32 %v2926, %v2929
  %v4179 = vmax.f32 %v2927, %v2930
  %v4180 = vmax.f32 %v2928, %v2931
  %v4181 = vmax.f32 %v2929, %v2932
  %v4182 = vmax.f32 %v2930, %v2933
  %v4183 = vmax.f32 %v2931, %v2934
  %v4184 = vmax.f32 %v2932, %v2935
  %v4185 = vmax.f32 %v2933, %v2936
  %v4186 = vmax.f32 %v2934, %v2937
  %v4187 = vmax.f32 %v2935, %v2938
  %v4188 = vmax.f32 %v2936, %v2939
  %v4189 = vmax.f32 %v2937, %v2940
  %v4190 = vmax.f32 %v2938, %v2941
  %v4191 = vmax.f32 %v2824, %v2824
  %v4192 = vmax.f32 %v4077, %v2828
  %v4193 = vmax.f32 %v4078, %v2829
  %v4194 = vmax.f32 %v4079, %v2830
  %v4195 = vmax.f32 %v4080, %v2831
  %v4196 = vmax.f32 %v4081, %v2832
  %v4197 = vmax.f32 %v4082, %v2833
  %v4198 = vmax.f32 %v4083, %v2834
  %v4199 = vmax.f32 %v4084, %v2835
  %v4200 = vmax.f32 %v4085, %v2836
  %v4201 = vmax.f32 %v4086, %v2837
  %v4202 = vmax.f32 %v4087, %v2838
  %v4203 = vmax.f32 %v4088, %v2839
  %v4204 = vmax.f32 %v4089, %v2840
  %v4205 = vmax.f32 %v4090, %v2841
  %v4206 = vmax.f32 %v4091, %v2842
  %v4207 = vmax.f32 %v4092, %v2843
  %v4208 = vmax.f32 %v4093, %v2844
  %v4209 = vmax.f32 %v4094, %v2845
  %v4210 = vmax.f32 %v4095, %v2846
  %v4211 = vmax.f32 %v4096, %v2847
  %v4212 = vmax.f32 %v4097, %v2848
  %v4213 = vmax.f32 %v4098, %v2849
  %v4214 = vmax.f32 %v4099, %v2850
  %v4215 = vmax.f32 %v4100, %v2851
  %v4216 = vmax.f32 %v4101, %v2852
  %v4217 = vmax.f32 %v4102, %v2853
  %v4218 = vmax.f32 %v4103, %v2854
  %v4219 = vmax.f32 %v4104, %v2855
  %v4220 = vmax.f32 %v4105, %v2856
  %v4221 = vmax.f32 %v4106, %v2857
  %v4222 = vmax.f32 %v4107, %v2858
  %v4223 = vmax.f32 %v4108, %v2859
  %v4224 = vmax.f32 %v4109, %v2860
  %v4225 = vmax.f32 %v4110, %v2861
  %v4226 = vmax.f32 %v4111, %v2862
  %v4227 = vmax.f32 %v4112, %v2863
  %v4228 = vmax.f32 %v4113, %v2864
  %v4229 = vmax.f32 %v4114, %v2865
  %v4230 = vmax.f32 %v4115, %v2866
  %v4231 = vmax.f32 %v4116, %v2867
  %v4232 = vmax.f32 %v4117, %v2868
  %v4233 = vmax.f32 %v4118, %v2869
  %v4234 = vmax.f32 %v4119, %v2870
  %v4235 = vmax.f32 %v4120, %v2871
  %v4236 = vmax.f32 %v4121, %v2872
  %v4237 = vmax.f32 %v4122, %v2873
  %v4238 = vmax.f32 %v4123, %v2874
  %v4239 = vmax.f32 %v4124, %v2875
  %v4240 = vmax.f32 %v4125, %v2876
  %v4241 = vmax.f32 %v4126, %v2877
  %v4242 = vmax.f32 %v4127, %v2878
  %v4243 = vmax.f32 %v4128, %v2879
  %v4244 = vmax.f32 %v4129, %v2880
  %v4245 = vmax.f32 %v4130, %v2881
  %v4246 = vmax.f32 %v4131, %v2882
  %v4247 = vmax.f32 %v4132, %v2883
  %v4248 = vmax.f32 %v4133, %v2884
  %v4249 = vmax.f32 %v4134, %v2888
  %v4250 = vmax.f32 %v4135, %v2889
  %v4251 = vmax.f32 %v4136, %v2890
  %v4252 = vmax.f32 %v4137, %v2891
  %v4253 = vmax.f32 %v4138, %v2892
  %v4254 = vmax.f32 %v4139, %v2893
  %v4255 = vmax.f32 %v4140, %v2894
  %v4256 = vmax.f32 %v4141, %v2895
  %v4257 = vmax.f32 %v4142, %v2896
  %v4258 = vmax.f32 %v4143, %v2897
  %v4259 = vmax.f32 %v4144, %v2898
  %v4260 = vmax.f32 %v4145, %v2899
  %v4261 = vmax.f32 %v4146, %v2900
  %v4262 = vmax.f32 %v4147, %v2901
  %v4263 = vmax.f32 %v4148, %v2902
  %v4264 = vmax.f32 %v4149, %v2903
  %v4265 = vmax.f32 %v4150, %v2904
  %v4266 = vmax.f32 %v4151, %v2905
  %v4267 = vmax.f32 %v4152, %v2906
  %v4268 = vmax.f32 %v4153, %v2907
  %v4269 = vmax.f32 %v4154, %v2908
  %v4270 = vmax.f32 %v4155, %v2909
  %v4271 = vmax.f32 %v4156, %v2910
  %v4272 = vmax.f32 %v4157, %v2911
  %v4273 = vmax.f32 %v4158, %v2912
  %v4274 = vmax.f32 %v4159, %v2913
  %v4275 = vmax.f32 %v4160, %v2914
  %v4276 = vmax.f32 %v4161, %v2915
  %v4277 = vmax.f32 %v4162, %v2916
  %v4278 = vmax.f32 %v4163, %v2917
  %v4279 = vmax.f32 %v4164, %v2918
  %v4280 = vmax.f32 %v4165, %v2919
  %v4281 = vmax.f32 %v4166, %v2920
  %v4282 = vmax.f32 %v4167, %v2921
  %v4283 = vmax.f32 %v4168, %v2922
  %v4284 = vmax.f32 %v4169, %v2923
  %v4285 = vmax.f32 %v4170, %v2924
  %v4286 = vmax.f32 %v4171, %v2925
  %v4287 = vmax.f32 %v4172, %v2926
  %v4288 = vmax.f32 %v4173, %v2927
  %v4289 = vmax.f32 %v4174, %v2928
  %v4290 = vmax.f32 %v4175, %v2929
  %v4291 = vmax.f32 %v4176, %v2930
  %v4292 = vmax.f32 %v4177, %v2931
  %v4293 = vmax.f32 %v4178, %v2932
  %v4294 = vmax.f32 %v4179, %v2933
  %v4295 = vmax.f32 %v4180, %v2934
  %v4296 = vmax.f32 %v4181, %v2935
  %v4297 = vmax.f32 %v4182, %v2936
  %v4298 = vmax.f32 %v4183, %v2937
  %v4299 = vmax.f32 %v4184, %v2938
  %v4300 = vmax.f32 %v4185, %v2939
  %v4301 = vmax.f32 %v4186, %v2940
  %v4302 = vmax.f32 %v4187, %v2941
  %v4303 = vmax.f32 %v4188, %v2942
  %v4304 = vmax.f32 %v4189, %v2943
  %v4305 = vmax.f32 %v4190, %v2944
  %v4306 = vmax.f32 %v4191, %v2824
  %v4307 = vmax.f32 %v4192, %v2831
  %v4308 = vmax.f32 %v4193, %v2832
  %v4309 = vmax.f32 %v4194, %v2833
  %v4310 = vmax.f32 %v4195, %v2834
  %v4311 = vmax.f32 %v4196, %v2835
  %v4312 = vmax.f32 %v4197, %v2836
  %v4313 = vmax.f32 %v4198, %v2837
  %v4314 = vmax.f32 %v4199, %v2838
  %v4315 = vmax.f32 %v4200, %v2839
  %v4316 = vmax.f32 %v4201, %v2840
  %v4317 = vmax.f32 %v4202, %v2841
  %v4318 = vmax.f32 %v4203, %v2842
  %v4319 = vmax.f32 %v4204, %v2843
  %v4320 = vmax.f32 %v4205, %v2844
  %v4321 = vmax.f32 %v4206, %v2845
  %v4322 = vmax.f32 %v4207, %v2846
  %v4323 = vmax.f32 %v4208, %v2847
  %v4324 = vmax.f32 %v4209, %v2848
  %v4325 = vmax.f32 %v4210, %v2849
  %v4326 = vmax.f32 %v4211, %v2850
  %v4327 = vmax.f32 %v4212, %v2851
  %v4328 = vmax.f32 %v4213, %v2852
  %v4329 = vmax.f32 %v4214, %v2853
  %v4330 = vmax.f32 %v4215, %v2854
  %v4331 = vmax.f32 %v4216, %v2855
  %v4332 = vmax.f32 %v4217, %v2856
  %v4333 = vmax.f32 %v4218, %v2857
  %v4334 = vmax.f32 %v4219, %v2858
  %v4335 = vmax.f32 %v4220, %v2859
  %v4336 = vmax.f32 %v4221, %v2860
  %v4337 = vmax.f32 %v4222, %v2861
  %v4338 = vmax.f32 %v4223, %v2862
  %v4339 = vmax.f32 %v4224, %v2863
  %v4340 = vmax.f32 %v4225, %v2864
  %v4341 = vmax.f32 %v4226, %v2865
  %v4342 = vmax.f32 %v4227, %v2866
  %v4343 = vmax.f32 %v4228, %v2867
  %v4344 = vmax.f32 %v4229, %v2868
  %v4345 = vmax.f32 %v4230, %v2869
  %v4346 = vmax.f32 %v4231, %v2870
  %v4347 = vmax.f32 %v4232, %v2871
  %v4348 = vmax.f32 %v4233, %v2872
  %v4349 = vmax.f32 %v4234, %v2873
  %v4350 = vmax.f32 %v4235, %v2874
  %v4351 = vmax.f32 %v4236, %v2875
  %v4352 = vmax.f32 %v4237, %v2876
  %v4353 = vmax.f32 %v4238, %v2877
  %v4354 = vmax.f32 %v4239, %v2878
  %v4355 = vmax.f32 %v4240, %v2879
  %v4356 = vmax.f32 %v4241, %v2880
  %v4357 = vmax.f32 %v4242, %v2881
  %v4358 = vmax.f32 %v4243, %v2882
  %v4359 = vmax.f32 %v4244, %v2883
  %v4360 = vmax.f32 %v4245, %v2884
  %v4361 = vmax.f32 %v4246, %v2823
  %v4362 = vmax.f32 %v4247, %v2823
  %v4363 = vmax.f32 %v4248, %v2823
  %v4364 = vmax.f32 %v4249, %v2891
  %v4365 = vmax.f32 %v4250, %v2892
  %v4366 = vmax.f32 %v4251, %v2893
  %v4367 = vmax.f32 %v4252, %v2894
  %v4368 = vmax.f32 %v4253, %v2895
  %v4369 = vmax.f32 %v4254, %v2896
  %v4370 = vmax.f32 %v4255, %v2897
  %v4371 = vmax.f32 %v4256, %v2898
  %v4372 = vmax.f32 %v4257, %v2899
  %v4373 = vmax.f32 %v4258, %v2900
  %v4374 = vmax.f32 %v4259, %v2901
  %v4375 = vmax.f32 %v4260, %v2902
  %v4376 = vmax.f32 %v4261, %v2903
  %v4377 = vmax.f32 %v4262, %v2904
  %v4378 = vmax.f32 %v4263, %v2905
  %v4379 = vmax.f32 %v4264, %v2906
  %v4380 = vmax.f32 %v4265, %v2907
  %v4381 = vmax.f32 %v4266, %v2908
  %v4382 = vmax.f32 %v4267, %v2909
  %v4383 = vmax.f32 %v4268, %v2910
  %v4384 = vmax.f32 %v4269, %v2911
  %v4385 = vmax.f32 %v4270, %v2912
  %v4386 = vmax.f32 %v4271, %v2913
  %v4387 = vmax.f32 %v4272, %v2914
  %v4388 = vmax.f32 %v4273, %v2915
  %v4389 = vmax.f32 %v4274, %v2916
  %v4390 = vmax.f32 %v4275, %v2917
  %v4391 = vmax.f32 %v4276, %v2918
  %v4392 = vmax.f32 %v4277, %v2919
  %v4393 = vmax.f32 %v4278, %v2920
  %v4394 = vmax.f32 %v4279, %v2921
  %v4395 = vmax.f32 %v4280, %v2922
  %v4396 = vmax.f32 %v4281, %v2923
  %v4397 = vmax.f32 %v4282, %v2924
  %v4398 = vmax.f32 %v4283, %v2925
  %v4399 = vmax.f32 %v4284, %v2926
  %v4400 = vmax.f32 %v4285, %v2927
  %v4401 = vmax.f32 %v4286, %v2928
  %v4402 = vmax.f32 %v4287, %v2929
  %v4403 = vmax.f32 %v4288, %v2930
  %v4404 = vmax.f32 %v4289, %v2931
  %v4405 = vmax.f32 %v4290, %v2932
  %v4406 = vmax.f32 %v4291, %v2933
  %v4407 = vmax.f32 %v4292, %v2934
  %v4408 = vmax.f32 %v4293, %v2935
  %v4409 = vmax.f32 %v4294, %v2936
  %v4410 = vmax.f32 %v4295, %v2937
  %v4411 = vmax.f32 %v4296, %v2938
  %v4412 = vmax.f32 %v4297, %v2939
  %v4413 = vmax.f32 %v4298, %v2940
  %v4414 = vmax.f32 %v4299, %v2941
  %v4415 = vmax.f32 %v4300, %v2942
  %v4416 = vmax.f32 %v4301, %v2943
  %v4417 = vmax.f32 %v4302, %v2944
  %v4418 = vmax.f32 %v4303, %v2823
  %v4419 = vmax.f32 %v4304, %v2823
  %v4420 = vmax.f32 %v4305, %v2823
  %v4421 = vmax.f32 %v4306, %v2824
  %v4422 = vmax.f32 %v4307, %v2834
  %v4423 = vmax.f32 %v4308, %v2835
  %v4424 = vmax.f32 %v4309, %v2836
  %v4425 = vmax.f32 %v4310, %v2837
  %v4426 = vmax.f32 %v4311, %v2838
  %v4427 = vmax.f32 %v4312, %v2839
  %v4428 = vmax.f32 %v4313, %v2840
  %v4429 = vmax.f32 %v4314, %v2841
  %v4430 = vmax.f32 %v4315, %v2842
  %v4431 = vmax.f32 %v4316, %v2843
  %v4432 = vmax.f32 %v4317, %v2844
  %v4433 = vmax.f32 %v4318, %v2845
  %v4434 = vmax.f32 %v4319, %v2846
  %v4435 = vmax.f32 %v4320, %v2847
  %v4436 = vmax.f32 %v4321, %v2848
  %v4437 = vmax.f32 %v4322, %v2849
  %v4438 = vmax.f32 %v4323, %v2850
  %v4439 = vmax.f32 %v4324, %v2851
  %v4440 = vmax.f32 %v4325, %v2852
  %v4441 = vmax.f32 %v4326, %v2853
  %v4442 = vmax.f32 %v4327, %v2854
  %v4443 = vmax.f32 %v4328, %v2855
  %v4444 = vmax.f32 %v4329, %v2856
  %v4445 = vmax.f32 %v4330, %v2857
  %v4446 = vmax.f32 %v4331, %v2858
  %v4447 = vmax.f32 %v4332, %v2859
  %v4448 = vmax.f32 %v4333, %v2860
  %v4449 = vmax.f32 %v4334, %v2861
  %v4450 = vmax.f32 %v4335, %v2862
  %v4451 = vmax.f32 %v4336, %v2863
  %v4452 = vmax.f32 %v4337, %v2864
  %v4453 = vmax.f32 %v4338, %v2865
  %v4454 = vmax.f32 %v4339, %v2866
  %v4455 = vmax.f32 %v4340, %v2867
  %v4456 = vmax.f32 %v4341, %v2868
  %v4457 = vmax.f32 %v4342, %v2869
  %v4458 = vmax.f32 %v4343, %v2870
  %v4459 = vmax.f32 %v4344, %v2871
  %v4460 = vmax.f32 %v4345, %v2872
  %v4461 = vmax.f32 %v4346, %v2873
  %v4462 = vmax.f32 %v4347, %v2874
  %v4463 = vmax.f32 %v4348, %v2875
  %v4464 = vmax.f32 %v4349, %v2876
  %v4465 = vmax.f32 %v4350, %v2877
  %v4466 = vmax.f32 %v4351, %v2878
  %v4467 = vmax.f32 %v4352, %v2879
  %v4468 = vmax.f32 %v4353, %v2880
  %v4469 = vmax.f32 %v4354, %v2881
  %v4470 = vmax.f32 %v4355, %v2882
  %v4471 = vmax.f32 %v4356, %v2883
  %v4472 = vmax.f32 %v4357, %v2884
  %v4473 = vmax.f32 %v4358, %v2823
  %v4474 = vmax.f32 %v4359, %v2823
  %v4475 = vmax.f32 %v4360, %v2823
  %v4476 = vmax.f32 %v4361, %v2823
  %v4477 = vmax.f32 %v4362, %v2823
  %v4478 = vmax.f32 %v4363, %v2823
  %v4479 = vmax.f32 %v4364, %v2894
  %v4480 = vmax.f32 %v4365, %v2895
  %v4481 = vmax.f32 %v4366, %v2896
  %v4482 = vmax.f32 %v4367, %v2897
  %v4483 = vmax.f32 %v4368, %v2898
  %v4484 = vmax.f32 %v4369, %v2899
  %v4485 = vmax.f32 %v4370, %v2900
  %v4486 = vmax.f32 %v4371, %v2901
  %v4487 = vmax.f32 %v4372, %v2902
  %v4488 = vmax.f32 %v4373, %v2903
  %v4489 = vmax.f32 %v4374, %v2904
  %v4490 = vmax.f32 %v4375, %v2905
  %v4491 = vmax.f32 %v4376, %v2906
  %v4492 = vmax.f32 %v4377, %v2907
  %v4493 = vmax.f32 %v4378, %v2908
  %v4494 = vmax.f32 %v4379, %v2909
  %v4495 = vmax.f32 %v4380, %v2910
  %v4496 = vmax.f32 %v4381, %v2911
  %v4497 = vmax.f32 %v4382, %v2912
  %v4498 = vmax.f32 %v4383, %v2913
  %v4499 = vmax.f32 %v4384, %v2914
  %v4500 = vmax.f32 %v4385, %v2915
  %v4501 = vmax.f32 %v4386, %v2916
  %v4502 = vmax.f32 %v4387, %v2917
  %v4503 = vmax.f32 %v4388, %v2918
  %v4504 = vmax.f32 %v4389, %v2919
  %v4505 = vmax.f32 %v4390, %v2920
  %v4506 = vmax.f32 %v4391, %v2921
  %v4507 = vmax.f32 %v4392, %v2922
  %v4508 = vmax.f32 %v4393, %v2923
  %v4509 = vmax.f32 %v4394, %v2924
  %v4510 = vmax.f32 %v4395, %v2925
  %v4511 = vmax.f32 %v4396, %v2926
  %v4512 = vmax.f32 %v4397, %v2927
  %v4513 = vmax.f32 %v4398, %v2928
  %v4514 = vmax.f32 %v4399, %v2929
  %v4515 = vmax.f32 %v4400, %v2930
  %v4516 = vmax.f32 %v4401, %v2931
  %v4517 = vmax.f32 %v4402, %v2932
  %v4518 = vmax.f32 %v4403, %v2933
  %v4519 = vmax.f32 %v4404, %v2934
  %v4520 = vmax.f32 %v4405, %v2935
  %v4521 = vmax.f32 %v4406, %v2936
  %v4522 = vmax.f32 %v4407, %v2937
  %v4523 = vmax.f32 %v4408, %v2938
  %v4524 = vmax.f32 %v4409, %v2939
  %v4525 = vmax.f32 %v4410, %v2940
  %v4526 = vmax.f32 %v4411, %v2941
  %v4527 = vmax.f32 %v4412, %v2942
  %v4528 = vmax.f32 %v4413, %v2943
  %v4529 = vmax.f32 %v4414, %v2944
  %v4530 = vmax.f32 %v4415, %v2823
  %v4531 = vmax.f32 %v4416, %v2823
  %v4532 = vmax.f32 %v4417, %v2823
  %v4533 = vmax.f32 %v4418, %v2823
  %v4534 = vmax.f32 %v4419, %v2823
  %v4535 = vmax.f32 %v4420, %v2823
  %v4657 = vrot.slane %v4307, 1
  %v4658 = vrot.slane %v4308, 1
  %v4659 = vsel %vm1157, %v4657, %v4658
  %v4660 = vrot.slane %v4309, 1
  %v4661 = vsel %vm1157, %v4658, %v4660
  %v4662 = vrot.slane %v4421, 1
  %v4663 = vsel %vm1157, %v4660, %v4662
  %v4664 = vrot.slane %v4422, 1
  %v4665 = vrot.slane %v4423, 1
  %v4666 = vsel %vm1157, %v4664, %v4665
  %v4667 = vrot.slane %v4424, 1
  %v4668 = vsel %vm1157, %v4665, %v4667
  %v4669 = vsel %vm1157, %v4667, %v4662
  %v4670 = vrot.slane %v4425, 1
  %v4671 = vrot.slane %v4426, 1
  %v4672 = vsel %vm1157, %v4670, %v4671
  %v4673 = vrot.slane %v4427, 1
  %v4674 = vsel %vm1157, %v4671, %v4673
  %v4675 = vsel %vm1157, %v4673, %v4662
  %v4676 = vrot.slane %v4428, 1
  %v4677 = vrot.slane %v4429, 1
  %v4678 = vsel %vm1157, %v4676, %v4677
  %v4679 = vrot.slane %v4430, 1
  %v4680 = vsel %vm1157, %v4677, %v4679
  %v4681 = vsel %vm1157, %v4679, %v4662
  %v4682 = vrot.slane %v4431, 1
  %v4683 = vrot.slane %v4432, 1
  %v4684 = vsel %vm1157, %v4682, %v4683
  %v4685 = vrot.slane %v4433, 1
  %v4686 = vsel %vm1157, %v4683, %v4685
  %v4687 = vsel %vm1157, %v4685, %v4662
  %v4688 = vrot.slane %v4434, 1
  %v4689 = vrot.slane %v4435, 1
  %v4690 = vsel %vm1157, %v4688, %v4689
  %v4691 = vrot.slane %v4436, 1
  %v4692 = vsel %vm1157, %v4689, %v4691
  %v4693 = vsel %vm1157, %v4691, %v4662
  %v4694 = vrot.slane %v4437, 1
  %v4695 = vrot.slane %v4438, 1
  %v4696 = vsel %vm1157, %v4694, %v4695
  %v4697 = vrot.slane %v4439, 1
  %v4698 = vsel %vm1157, %v4695, %v4697
  %v4699 = vsel %vm1157, %v4697, %v4662
  %v4700 = vrot.slane %v4440, 1
  %v4701 = vrot.slane %v4441, 1
  %v4702 = vsel %vm1157, %v4700, %v4701
  %v4703 = vrot.slane %v4442, 1
  %v4704 = vsel %vm1157, %v4701, %v4703
  %v4705 = vsel %vm1157, %v4703, %v4662
  %v4706 = vrot.slane %v4443, 1
  %v4707 = vrot.slane %v4444, 1
  %v4708 = vsel %vm1157, %v4706, %v4707
  %v4709 = vrot.slane %v4445, 1
  %v4710 = vsel %vm1157, %v4707, %v4709
  %v4711 = vsel %vm1157, %v4709, %v4662
  %v4712 = vrot.slane %v4446, 1
  %v4713 = vrot.slane %v4447, 1
  %v4714 = vsel %vm1157, %v4712, %v4713
  %v4715 = vrot.slane %v4448, 1
  %v4716 = vsel %vm1157, %v4713, %v4715
  %v4717 = vsel %vm1157, %v4715, %v4662
  %v4718 = vrot.slane %v4449, 1
  %v4719 = vrot.slane %v4450, 1
  %v4720 = vsel %vm1157, %v4718, %v4719
  %v4721 = vrot.slane %v4451, 1
  %v4722 = vsel %vm1157, %v4719, %v4721
  %v4723 = vsel %vm1157, %v4721, %v4662
  %v4724 = vrot.slane %v4452, 1
  %v4725 = vrot.slane %v4453, 1
  %v4726 = vsel %vm1157, %v4724, %v4725
  %v4727 = vrot.slane %v4454, 1
  %v4728 = vsel %vm1157, %v4725, %v4727
  %v4729 = vsel %vm1157, %v4727, %v4662
  %v4730 = vrot.slane %v4455, 1
  %v4731 = vrot.slane %v4456, 1
  %v4732 = vsel %vm1157, %v4730, %v4731
  %v4733 = vrot.slane %v4457, 1
  %v4734 = vsel %vm1157, %v4731, %v4733
  %v4735 = vsel %vm1157, %v4733, %v4662
  %v4736 = vrot.slane %v4458, 1
  %v4737 = vrot.slane %v4459, 1
  %v4738 = vsel %vm1157, %v4736, %v4737
  %v4739 = vrot.slane %v4460, 1
  %v4740 = vsel %vm1157, %v4737, %v4739
  %v4741 = vsel %vm1157, %v4739, %v4662
  %v4742 = vrot.slane %v4461, 1
  %v4743 = vrot.slane %v4462, 1
  %v4744 = vsel %vm1157, %v4742, %v4743
  %v4745 = vrot.slane %v4463, 1
  %v4746 = vsel %vm1157, %v4743, %v4745
  %v4747 = vsel %vm1157, %v4745, %v4662
  %v4748 = vrot.slane %v4464, 1
  %v4749 = vrot.slane %v4465, 1
  %v4750 = vsel %vm1157, %v4748, %v4749
  %v4751 = vrot.slane %v4466, 1
  %v4752 = vsel %vm1157, %v4749, %v4751
  %v4753 = vsel %vm1157, %v4751, %v4662
  %v4754 = vrot.slane %v4467, 1
  %v4755 = vrot.slane %v4468, 1
  %v4756 = vsel %vm1157, %v4754, %v4755
  %v4757 = vrot.slane %v4469, 1
  %v4758 = vsel %vm1157, %v4755, %v4757
  %v4759 = vsel %vm1157, %v4757, %v4662
  %v4760 = vrot.slane %v4470, 1
  %v4761 = vrot.slane %v4471, 1
  %v4762 = vsel %vm1157, %v4760, %v4761
  %v4763 = vrot.slane %v4472, 1
  %v4764 = vsel %vm1157, %v4761, %v4763
  %v4765 = vsel %vm1157, %v4763, %v4662
  %v4766 = vrot.slane %v4473, 1
  %v4767 = vrot.slane %v4474, 1
  %v4768 = vsel %vm1157, %v4766, %v4767
  %v4769 = vrot.slane %v4475, 1
  %v4770 = vsel %vm1157, %v4767, %v4769
  %v4771 = vsel %vm1157, %v4769, %v4662
  %v4772 = vrot.slane %v4476, 1
  %v4773 = vrot.slane %v4477, 1
  %v4774 = vsel %vm1157, %v4772, %v4773
  %v4775 = vrot.slane %v4478, 1
  %v4776 = vsel %vm1157, %v4773, %v4775
  %v4777 = vsel %vm1157, %v4775, %v4662
  %v4778 = vrot.slane %v4364, 1
  %v4779 = vrot.slane %v4365, 1
  %v4780 = vsel %vm1157, %v4778, %v4779
  %v4781 = vrot.slane %v4366, 1
  %v4782 = vsel %vm1157, %v4779, %v4781
  %v4783 = vsel %vm1157, %v4781, %v4662
  %v4784 = vrot.slane %v4479, 1
  %v4785 = vrot.slane %v4480, 1
  %v4786 = vsel %vm1157, %v4784, %v4785
  %v4787 = vrot.slane %v4481, 1
  %v4788 = vsel %vm1157, %v4785, %v4787
  %v4789 = vsel %vm1157, %v4787, %v4662
  %v4790 = vrot.slane %v4482, 1
  %v4791 = vrot.slane %v4483, 1
  %v4792 = vsel %vm1157, %v4790, %v4791
  %v4793 = vrot.slane %v4484, 1
  %v4794 = vsel %vm1157, %v4791, %v4793
  %v4795 = vsel %vm1157, %v4793, %v4662
  %v4796 = vrot.slane %v4485, 1
  %v4797 = vrot.slane %v4486, 1
  %v4798 = vsel %vm1157, %v4796, %v4797
  %v4799 = vrot.slane %v4487, 1
  %v4800 = vsel %vm1157, %v4797, %v4799
  %v4801 = vsel %vm1157, %v4799, %v4662
  %v4802 = vrot.slane %v4488, 1
  %v4803 = vrot.slane %v4489, 1
  %v4804 = vsel %vm1157, %v4802, %v4803
  %v4805 = vrot.slane %v4490, 1
  %v4806 = vsel %vm1157, %v4803, %v4805
  %v4807 = vsel %vm1157, %v4805, %v4662
  %v4808 = vrot.slane %v4491, 1
  %v4809 = vrot.slane %v4492, 1
  %v4810 = vsel %vm1157, %v4808, %v4809
  %v4811 = vrot.slane %v4493, 1
  %v4812 = vsel %vm1157, %v4809, %v4811
  %v4813 = vsel %vm1157, %v4811, %v4662
  %v4814 = vrot.slane %v4494, 1
  %v4815 = vrot.slane %v4495, 1
  %v4816 = vsel %vm1157, %v4814, %v4815
  %v4817 = vrot.slane %v4496, 1
  %v4818 = vsel %vm1157, %v4815, %v4817
  %v4819 = vsel %vm1157, %v4817, %v4662
  %v4820 = vrot.slane %v4497, 1
  %v4821 = vrot.slane %v4498, 1
  %v4822 = vsel %vm1157, %v4820, %v4821
  %v4823 = vrot.slane %v4499, 1
  %v4824 = vsel %vm1157, %v4821, %v4823
  %v4825 = vsel %vm1157, %v4823, %v4662
  %v4826 = vrot.slane %v4500, 1
  %v4827 = vrot.slane %v4501, 1
  %v4828 = vsel %vm1157, %v4826, %v4827
  %v4829 = vrot.slane %v4502, 1
  %v4830 = vsel %vm1157, %v4827, %v4829
  %v4831 = vsel %vm1157, %v4829, %v4662
  %v4832 = vrot.slane %v4503, 1
  %v4833 = vrot.slane %v4504, 1
  %v4834 = vsel %vm1157, %v4832, %v4833
  %v4835 = vrot.slane %v4505, 1
  %v4836 = vsel %vm1157, %v4833, %v4835
  %v4837 = vsel %vm1157, %v4835, %v4662
  %v4838 = vrot.slane %v4506, 1
  %v4839 = vrot.slane %v4507, 1
  %v4840 = vsel %vm1157, %v4838, %v4839
  %v4841 = vrot.slane %v4508, 1
  %v4842 = vsel %vm1157, %v4839, %v4841
  %v4843 = vsel %vm1157, %v4841, %v4662
  %v4844 = vrot.slane %v4509, 1
  %v4845 = vrot.slane %v4510, 1
  %v4846 = vsel %vm1157, %v4844, %v4845
  %v4847 = vrot.slane %v4511, 1
  %v4848 = vsel %vm1157, %v4845, %v4847
  %v4849 = vsel %vm1157, %v4847, %v4662
  %v4850 = vrot.slane %v4512, 1
  %v4851 = vrot.slane %v4513, 1
  %v4852 = vsel %vm1157, %v4850, %v4851
  %v4853 = vrot.slane %v4514, 1
  %v4854 = vsel %vm1157, %v4851, %v4853
  %v4855 = vsel %vm1157, %v4853, %v4662
  %v4856 = vrot.slane %v4515, 1
  %v4857 = vrot.slane %v4516, 1
  %v4858 = vsel %vm1157, %v4856, %v4857
  %v4859 = vrot.slane %v4517, 1
  %v4860 = vsel %vm1157, %v4857, %v4859
  %v4861 = vsel %vm1157, %v4859, %v4662
  %v4862 = vrot.slane %v4518, 1
  %v4863 = vrot.slane %v4519, 1
  %v4864 = vsel %vm1157, %v4862, %v4863
  %v4865 = vrot.slane %v4520, 1
  %v4866 = vsel %vm1157, %v4863, %v4865
  %v4867 = vsel %vm1157, %v4865, %v4662
  %v4868 = vrot.slane %v4521, 1
  %v4869 = vrot.slane %v4522, 1
  %v4870 = vsel %vm1157, %v4868, %v4869
  %v4871 = vrot.slane %v4523, 1
  %v4872 = vsel %vm1157, %v4869, %v4871
  %v4873 = vsel %vm1157, %v4871, %v4662
  %v4874 = vrot.slane %v4524, 1
  %v4875 = vrot.slane %v4525, 1
  %v4876 = vsel %vm1157, %v4874, %v4875
  %v4877 = vrot.slane %v4526, 1
  %v4878 = vsel %vm1157, %v4875, %v4877
  %v4879 = vsel %vm1157, %v4877, %v4662
  %v4880 = vrot.slane %v4527, 1
  %v4881 = vrot.slane %v4528, 1
  %v4882 = vsel %vm1157, %v4880, %v4881
  %v4883 = vrot.slane %v4529, 1
  %v4884 = vsel %vm1157, %v4881, %v4883
  %v4885 = vsel %vm1157, %v4883, %v4662
  %v4886 = vrot.slane %v4530, 1
  %v4887 = vrot.slane %v4531, 1
  %v4888 = vsel %vm1157, %v4886, %v4887
  %v4889 = vrot.slane %v4532, 1
  %v4890 = vsel %vm1157, %v4887, %v4889
  %v4891 = vsel %vm1157, %v4889, %v4662
  %v4892 = vrot.slane %v4533, 1
  %v4893 = vrot.slane %v4534, 1
  %v4894 = vsel %vm1157, %v4892, %v4893
  %v4895 = vrot.slane %v4535, 1
  %v4896 = vsel %vm1157, %v4893, %v4895
  %v4897 = vsel %vm1157, %v4895, %v4662
  %v5018 = vmax.f32 %v4307, %v4659
  %v5019 = vmax.f32 %v4308, %v4661
  %v5020 = vmax.f32 %v4309, %v4663
  %v5021 = vmax.f32 %v4422, %v4666
  %v5022 = vmax.f32 %v4423, %v4668
  %v5023 = vmax.f32 %v4424, %v4669
  %v5024 = vmax.f32 %v4425, %v4672
  %v5025 = vmax.f32 %v4426, %v4674
  %v5026 = vmax.f32 %v4427, %v4675
  %v5027 = vmax.f32 %v4428, %v4678
  %v5028 = vmax.f32 %v4429, %v4680
  %v5029 = vmax.f32 %v4430, %v4681
  %v5030 = vmax.f32 %v4431, %v4684
  %v5031 = vmax.f32 %v4432, %v4686
  %v5032 = vmax.f32 %v4433, %v4687
  %v5033 = vmax.f32 %v4434, %v4690
  %v5034 = vmax.f32 %v4435, %v4692
  %v5035 = vmax.f32 %v4436, %v4693
  %v5036 = vmax.f32 %v4437, %v4696
  %v5037 = vmax.f32 %v4438, %v4698
  %v5038 = vmax.f32 %v4439, %v4699
  %v5039 = vmax.f32 %v4440, %v4702
  %v5040 = vmax.f32 %v4441, %v4704
  %v5041 = vmax.f32 %v4442, %v4705
  %v5042 = vmax.f32 %v4443, %v4708
  %v5043 = vmax.f32 %v4444, %v4710
  %v5044 = vmax.f32 %v4445, %v4711
  %v5045 = vmax.f32 %v4446, %v4714
  %v5046 = vmax.f32 %v4447, %v4716
  %v5047 = vmax.f32 %v4448, %v4717
  %v5048 = vmax.f32 %v4449, %v4720
  %v5049 = vmax.f32 %v4450, %v4722
  %v5050 = vmax.f32 %v4451, %v4723
  %v5051 = vmax.f32 %v4452, %v4726
  %v5052 = vmax.f32 %v4453, %v4728
  %v5053 = vmax.f32 %v4454, %v4729
  %v5054 = vmax.f32 %v4455, %v4732
  %v5055 = vmax.f32 %v4456, %v4734
  %v5056 = vmax.f32 %v4457, %v4735
  %v5057 = vmax.f32 %v4458, %v4738
  %v5058 = vmax.f32 %v4459, %v4740
  %v5059 = vmax.f32 %v4460, %v4741
  %v5060 = vmax.f32 %v4461, %v4744
  %v5061 = vmax.f32 %v4462, %v4746
  %v5062 = vmax.f32 %v4463, %v4747
  %v5063 = vmax.f32 %v4464, %v4750
  %v5064 = vmax.f32 %v4465, %v4752
  %v5065 = vmax.f32 %v4466, %v4753
  %v5066 = vmax.f32 %v4467, %v4756
  %v5067 = vmax.f32 %v4468, %v4758
  %v5068 = vmax.f32 %v4469, %v4759
  %v5069 = vmax.f32 %v4470, %v4762
  %v5070 = vmax.f32 %v4471, %v4764
  %v5071 = vmax.f32 %v4472, %v4765
  %v5072 = vmax.f32 %v4473, %v4768
  %v5073 = vmax.f32 %v4474, %v4770
  %v5074 = vmax.f32 %v4475, %v4771
  %v5075 = vmax.f32 %v4476, %v4774
  %v5076 = vmax.f32 %v4477, %v4776
  %v5077 = vmax.f32 %v4478, %v4777
  %v5078 = vmax.f32 %v4364, %v4780
  %v5079 = vmax.f32 %v4365, %v4782
  %v5080 = vmax.f32 %v4366, %v4783
  %v5081 = vmax.f32 %v4479, %v4786
  %v5082 = vmax.f32 %v4480, %v4788
  %v5083 = vmax.f32 %v4481, %v4789
  %v5084 = vmax.f32 %v4482, %v4792
  %v5085 = vmax.f32 %v4483, %v4794
  %v5086 = vmax.f32 %v4484, %v4795
  %v5087 = vmax.f32 %v4485, %v4798
  %v5088 = vmax.f32 %v4486, %v4800
  %v5089 = vmax.f32 %v4487, %v4801
  %v5090 = vmax.f32 %v4488, %v4804
  %v5091 = vmax.f32 %v4489, %v4806
  %v5092 = vmax.f32 %v4490, %v4807
  %v5093 = vmax.f32 %v4491, %v4810
  %v5094 = vmax.f32 %v4492, %v4812
  %v5095 = vmax.f32 %v4493, %v4813
  %v5096 = vmax.f32 %v4494, %v4816
  %v5097 = vmax.f32 %v4495, %v4818
  %v5098 = vmax.f32 %v4496, %v4819
  %v5099 = vmax.f32 %v4497, %v4822
  %v5100 = vmax.f32 %v4498, %v4824
  %v5101 = vmax.f32 %v4499, %v4825
  %v5102 = vmax.f32 %v4500, %v4828
  %v5103 = vmax.f32 %v4501, %v4830
  %v5104 = vmax.f32 %v4502, %v4831
  %v5105 = vmax.f32 %v4503, %v4834
  %v5106 = vmax.f32 %v4504, %v4836
  %v5107 = vmax.f32 %v4505, %v4837
  %v5108 = vmax.f32 %v4506, %v4840
  %v5109 = vmax.f32 %v4507, %v4842
  %v5110 = vmax.f32 %v4508, %v4843
  %v5111 = vmax.f32 %v4509, %v4846
  %v5112 = vmax.f32 %v4510, %v4848
  %v5113 = vmax.f32 %v4511, %v4849
  %v5114 = vmax.f32 %v4512, %v4852
  %v5115 = vmax.f32 %v4513, %v4854
  %v5116 = vmax.f32 %v4514, %v4855
  %v5117 = vmax.f32 %v4515, %v4858
  %v5118 = vmax.f32 %v4516, %v4860
  %v5119 = vmax.f32 %v4517, %v4861
  %v5120 = vmax.f32 %v4518, %v4864
  %v5121 = vmax.f32 %v4519, %v4866
  %v5122 = vmax.f32 %v4520, %v4867
  %v5123 = vmax.f32 %v4521, %v4870
  %v5124 = vmax.f32 %v4522, %v4872
  %v5125 = vmax.f32 %v4523, %v4873
  %v5126 = vmax.f32 %v4524, %v4876
  %v5127 = vmax.f32 %v4525, %v4878
  %v5128 = vmax.f32 %v4526, %v4879
  %v5129 = vmax.f32 %v4527, %v4882
  %v5130 = vmax.f32 %v4528, %v4884
  %v5131 = vmax.f32 %v4529, %v4885
  %v5132 = vmax.f32 %v4530, %v4888
  %v5133 = vmax.f32 %v4531, %v4890
  %v5134 = vmax.f32 %v4532, %v4891
  %v5135 = vmax.f32 %v4533, %v4894
  %v5136 = vmax.f32 %v4534, %v4896
  %v5137 = vmax.f32 %v4535, %v4897
  %v5138 = vrot.slane %v4307, 2
  %v5139 = vrot.slane %v4308, 2
  %v5140 = vsel %vm1604, %v5138, %v5139
  %v5141 = vrot.slane %v4309, 2
  %v5142 = vsel %vm1604, %v5139, %v5141
  %v5143 = vrot.slane %v4421, 2
  %v5144 = vsel %vm1604, %v5141, %v5143
  %v5145 = vrot.slane %v4422, 2
  %v5146 = vrot.slane %v4423, 2
  %v5147 = vsel %vm1604, %v5145, %v5146
  %v5148 = vrot.slane %v4424, 2
  %v5149 = vsel %vm1604, %v5146, %v5148
  %v5150 = vsel %vm1604, %v5148, %v5143
  %v5151 = vrot.slane %v4425, 2
  %v5152 = vrot.slane %v4426, 2
  %v5153 = vsel %vm1604, %v5151, %v5152
  %v5154 = vrot.slane %v4427, 2
  %v5155 = vsel %vm1604, %v5152, %v5154
  %v5156 = vsel %vm1604, %v5154, %v5143
  %v5157 = vrot.slane %v4428, 2
  %v5158 = vrot.slane %v4429, 2
  %v5159 = vsel %vm1604, %v5157, %v5158
  %v5160 = vrot.slane %v4430, 2
  %v5161 = vsel %vm1604, %v5158, %v5160
  %v5162 = vsel %vm1604, %v5160, %v5143
  %v5163 = vrot.slane %v4431, 2
  %v5164 = vrot.slane %v4432, 2
  %v5165 = vsel %vm1604, %v5163, %v5164
  %v5166 = vrot.slane %v4433, 2
  %v5167 = vsel %vm1604, %v5164, %v5166
  %v5168 = vsel %vm1604, %v5166, %v5143
  %v5169 = vrot.slane %v4434, 2
  %v5170 = vrot.slane %v4435, 2
  %v5171 = vsel %vm1604, %v5169, %v5170
  %v5172 = vrot.slane %v4436, 2
  %v5173 = vsel %vm1604, %v5170, %v5172
  %v5174 = vsel %vm1604, %v5172, %v5143
  %v5175 = vrot.slane %v4437, 2
  %v5176 = vrot.slane %v4438, 2
  %v5177 = vsel %vm1604, %v5175, %v5176
  %v5178 = vrot.slane %v4439, 2
  %v5179 = vsel %vm1604, %v5176, %v5178
  %v5180 = vsel %vm1604, %v5178, %v5143
  %v5181 = vrot.slane %v4440, 2
  %v5182 = vrot.slane %v4441, 2
  %v5183 = vsel %vm1604, %v5181, %v5182
  %v5184 = vrot.slane %v4442, 2
  %v5185 = vsel %vm1604, %v5182, %v5184
  %v5186 = vsel %vm1604, %v5184, %v5143
  %v5187 = vrot.slane %v4443, 2
  %v5188 = vrot.slane %v4444, 2
  %v5189 = vsel %vm1604, %v5187, %v5188
  %v5190 = vrot.slane %v4445, 2
  %v5191 = vsel %vm1604, %v5188, %v5190
  %v5192 = vsel %vm1604, %v5190, %v5143
  %v5193 = vrot.slane %v4446, 2
  %v5194 = vrot.slane %v4447, 2
  %v5195 = vsel %vm1604, %v5193, %v5194
  %v5196 = vrot.slane %v4448, 2
  %v5197 = vsel %vm1604, %v5194, %v5196
  %v5198 = vsel %vm1604, %v5196, %v5143
  %v5199 = vrot.slane %v4449, 2
  %v5200 = vrot.slane %v4450, 2
  %v5201 = vsel %vm1604, %v5199, %v5200
  %v5202 = vrot.slane %v4451, 2
  %v5203 = vsel %vm1604, %v5200, %v5202
  %v5204 = vsel %vm1604, %v5202, %v5143
  %v5205 = vrot.slane %v4452, 2
  %v5206 = vrot.slane %v4453, 2
  %v5207 = vsel %vm1604, %v5205, %v5206
  %v5208 = vrot.slane %v4454, 2
  %v5209 = vsel %vm1604, %v5206, %v5208
  %v5210 = vsel %vm1604, %v5208, %v5143
  %v5211 = vrot.slane %v4455, 2
  %v5212 = vrot.slane %v4456, 2
  %v5213 = vsel %vm1604, %v5211, %v5212
  %v5214 = vrot.slane %v4457, 2
  %v5215 = vsel %vm1604, %v5212, %v5214
  %v5216 = vsel %vm1604, %v5214, %v5143
  %v5217 = vrot.slane %v4458, 2
  %v5218 = vrot.slane %v4459, 2
  %v5219 = vsel %vm1604, %v5217, %v5218
  %v5220 = vrot.slane %v4460, 2
  %v5221 = vsel %vm1604, %v5218, %v5220
  %v5222 = vsel %vm1604, %v5220, %v5143
  %v5223 = vrot.slane %v4461, 2
  %v5224 = vrot.slane %v4462, 2
  %v5225 = vsel %vm1604, %v5223, %v5224
  %v5226 = vrot.slane %v4463, 2
  %v5227 = vsel %vm1604, %v5224, %v5226
  %v5228 = vsel %vm1604, %v5226, %v5143
  %v5229 = vrot.slane %v4464, 2
  %v5230 = vrot.slane %v4465, 2
  %v5231 = vsel %vm1604, %v5229, %v5230
  %v5232 = vrot.slane %v4466, 2
  %v5233 = vsel %vm1604, %v5230, %v5232
  %v5234 = vsel %vm1604, %v5232, %v5143
  %v5235 = vrot.slane %v4467, 2
  %v5236 = vrot.slane %v4468, 2
  %v5237 = vsel %vm1604, %v5235, %v5236
  %v5238 = vrot.slane %v4469, 2
  %v5239 = vsel %vm1604, %v5236, %v5238
  %v5240 = vsel %vm1604, %v5238, %v5143
  %v5241 = vrot.slane %v4470, 2
  %v5242 = vrot.slane %v4471, 2
  %v5243 = vsel %vm1604, %v5241, %v5242
  %v5244 = vrot.slane %v4472, 2
  %v5245 = vsel %vm1604, %v5242, %v5244
  %v5246 = vsel %vm1604, %v5244, %v5143
  %v5247 = vrot.slane %v4473, 2
  %v5248 = vrot.slane %v4474, 2
  %v5249 = vsel %vm1604, %v5247, %v5248
  %v5250 = vrot.slane %v4475, 2
  %v5251 = vsel %vm1604, %v5248, %v5250
  %v5252 = vsel %vm1604, %v5250, %v5143
  %v5253 = vrot.slane %v4476, 2
  %v5254 = vrot.slane %v4477, 2
  %v5255 = vsel %vm1604, %v5253, %v5254
  %v5256 = vrot.slane %v4478, 2
  %v5257 = vsel %vm1604, %v5254, %v5256
  %v5258 = vsel %vm1604, %v5256, %v5143
  %v5259 = vrot.slane %v4364, 2
  %v5260 = vrot.slane %v4365, 2
  %v5261 = vsel %vm1604, %v5259, %v5260
  %v5262 = vrot.slane %v4366, 2
  %v5263 = vsel %vm1604, %v5260, %v5262
  %v5264 = vsel %vm1604, %v5262, %v5143
  %v5265 = vrot.slane %v4479, 2
  %v5266 = vrot.slane %v4480, 2
  %v5267 = vsel %vm1604, %v5265, %v5266
  %v5268 = vrot.slane %v4481, 2
  %v5269 = vsel %vm1604, %v5266, %v5268
  %v5270 = vsel %vm1604, %v5268, %v5143
  %v5271 = vrot.slane %v4482, 2
  %v5272 = vrot.slane %v4483, 2
  %v5273 = vsel %vm1604, %v5271, %v5272
  %v5274 = vrot.slane %v4484, 2
  %v5275 = vsel %vm1604, %v5272, %v5274
  %v5276 = vsel %vm1604, %v5274, %v5143
  %v5277 = vrot.slane %v4485, 2
  %v5278 = vrot.slane %v4486, 2
  %v5279 = vsel %vm1604, %v5277, %v5278
  %v5280 = vrot.slane %v4487, 2
  %v5281 = vsel %vm1604, %v5278, %v5280
  %v5282 = vsel %vm1604, %v5280, %v5143
  %v5283 = vrot.slane %v4488, 2
  %v5284 = vrot.slane %v4489, 2
  %v5285 = vsel %vm1604, %v5283, %v5284
  %v5286 = vrot.slane %v4490, 2
  %v5287 = vsel %vm1604, %v5284, %v5286
  %v5288 = vsel %vm1604, %v5286, %v5143
  %v5289 = vrot.slane %v4491, 2
  %v5290 = vrot.slane %v4492, 2
  %v5291 = vsel %vm1604, %v5289, %v5290
  %v5292 = vrot.slane %v4493, 2
  %v5293 = vsel %vm1604, %v5290, %v5292
  %v5294 = vsel %vm1604, %v5292, %v5143
  %v5295 = vrot.slane %v4494, 2
  %v5296 = vrot.slane %v4495, 2
  %v5297 = vsel %vm1604, %v5295, %v5296
  %v5298 = vrot.slane %v4496, 2
  %v5299 = vsel %vm1604, %v5296, %v5298
  %v5300 = vsel %vm1604, %v5298, %v5143
  %v5301 = vrot.slane %v4497, 2
  %v5302 = vrot.slane %v4498, 2
  %v5303 = vsel %vm1604, %v5301, %v5302
  %v5304 = vrot.slane %v4499, 2
  %v5305 = vsel %vm1604, %v5302, %v5304
  %v5306 = vsel %vm1604, %v5304, %v5143
  %v5307 = vrot.slane %v4500, 2
  %v5308 = vrot.slane %v4501, 2
  %v5309 = vsel %vm1604, %v5307, %v5308
  %v5310 = vrot.slane %v4502, 2
  %v5311 = vsel %vm1604, %v5308, %v5310
  %v5312 = vsel %vm1604, %v5310, %v5143
  %v5313 = vrot.slane %v4503, 2
  %v5314 = vrot.slane %v4504, 2
  %v5315 = vsel %vm1604, %v5313, %v5314
  %v5316 = vrot.slane %v4505, 2
  %v5317 = vsel %vm1604, %v5314, %v5316
  %v5318 = vsel %vm1604, %v5316, %v5143
  %v5319 = vrot.slane %v4506, 2
  %v5320 = vrot.slane %v4507, 2
  %v5321 = vsel %vm1604, %v5319, %v5320
  %v5322 = vrot.slane %v4508, 2
  %v5323 = vsel %vm1604, %v5320, %v5322
  %v5324 = vsel %vm1604, %v5322, %v5143
  %v5325 = vrot.slane %v4509, 2
  %v5326 = vrot.slane %v4510, 2
  %v5327 = vsel %vm1604, %v5325, %v5326
  %v5328 = vrot.slane %v4511, 2
  %v5329 = vsel %vm1604, %v5326, %v5328
  %v5330 = vsel %vm1604, %v5328, %v5143
  %v5331 = vrot.slane %v4512, 2
  %v5332 = vrot.slane %v4513, 2
  %v5333 = vsel %vm1604, %v5331, %v5332
  %v5334 = vrot.slane %v4514, 2
  %v5335 = vsel %vm1604, %v5332, %v5334
  %v5336 = vsel %vm1604, %v5334, %v5143
  %v5337 = vrot.slane %v4515, 2
  %v5338 = vrot.slane %v4516, 2
  %v5339 = vsel %vm1604, %v5337, %v5338
  %v5340 = vrot.slane %v4517, 2
  %v5341 = vsel %vm1604, %v5338, %v5340
  %v5342 = vsel %vm1604, %v5340, %v5143
  %v5343 = vrot.slane %v4518, 2
  %v5344 = vrot.slane %v4519, 2
  %v5345 = vsel %vm1604, %v5343, %v5344
  %v5346 = vrot.slane %v4520, 2
  %v5347 = vsel %vm1604, %v5344, %v5346
  %v5348 = vsel %vm1604, %v5346, %v5143
  %v5349 = vrot.slane %v4521, 2
  %v5350 = vrot.slane %v4522, 2
  %v5351 = vsel %vm1604, %v5349, %v5350
  %v5352 = vrot.slane %v4523, 2
  %v5353 = vsel %vm1604, %v5350, %v5352
  %v5354 = vsel %vm1604, %v5352, %v5143
  %v5355 = vrot.slane %v4524, 2
  %v5356 = vrot.slane %v4525, 2
  %v5357 = vsel %vm1604, %v5355, %v5356
  %v5358 = vrot.slane %v4526, 2
  %v5359 = vsel %vm1604, %v5356, %v5358
  %v5360 = vsel %vm1604, %v5358, %v5143
  %v5361 = vrot.slane %v4527, 2
  %v5362 = vrot.slane %v4528, 2
  %v5363 = vsel %vm1604, %v5361, %v5362
  %v5364 = vrot.slane %v4529, 2
  %v5365 = vsel %vm1604, %v5362, %v5364
  %v5366 = vsel %vm1604, %v5364, %v5143
  %v5367 = vrot.slane %v4530, 2
  %v5368 = vrot.slane %v4531, 2
  %v5369 = vsel %vm1604, %v5367, %v5368
  %v5370 = vrot.slane %v4532, 2
  %v5371 = vsel %vm1604, %v5368, %v5370
  %v5372 = vsel %vm1604, %v5370, %v5143
  %v5373 = vrot.slane %v4533, 2
  %v5374 = vrot.slane %v4534, 2
  %v5375 = vsel %vm1604, %v5373, %v5374
  %v5376 = vrot.slane %v4535, 2
  %v5377 = vsel %vm1604, %v5374, %v5376
  %v5378 = vsel %vm1604, %v5376, %v5143
  %v5499 = vmax.f32 %v5018, %v5140
  %v5500 = vmax.f32 %v5019, %v5142
  %v5501 = vmax.f32 %v5020, %v5144
  %v5502 = vmax.f32 %v5021, %v5147
  %v5503 = vmax.f32 %v5022, %v5149
  %v5504 = vmax.f32 %v5023, %v5150
  %v5505 = vmax.f32 %v5024, %v5153
  %v5506 = vmax.f32 %v5025, %v5155
  %v5507 = vmax.f32 %v5026, %v5156
  %v5508 = vmax.f32 %v5027, %v5159
  %v5509 = vmax.f32 %v5028, %v5161
  %v5510 = vmax.f32 %v5029, %v5162
  %v5511 = vmax.f32 %v5030, %v5165
  %v5512 = vmax.f32 %v5031, %v5167
  %v5513 = vmax.f32 %v5032, %v5168
  %v5514 = vmax.f32 %v5033, %v5171
  %v5515 = vmax.f32 %v5034, %v5173
  %v5516 = vmax.f32 %v5035, %v5174
  %v5517 = vmax.f32 %v5036, %v5177
  %v5518 = vmax.f32 %v5037, %v5179
  %v5519 = vmax.f32 %v5038, %v5180
  %v5520 = vmax.f32 %v5039, %v5183
  %v5521 = vmax.f32 %v5040, %v5185
  %v5522 = vmax.f32 %v5041, %v5186
  %v5523 = vmax.f32 %v5042, %v5189
  %v5524 = vmax.f32 %v5043, %v5191
  %v5525 = vmax.f32 %v5044, %v5192
  %v5526 = vmax.f32 %v5045, %v5195
  %v5527 = vmax.f32 %v5046, %v5197
  %v5528 = vmax.f32 %v5047, %v5198
  %v5529 = vmax.f32 %v5048, %v5201
  %v5530 = vmax.f32 %v5049, %v5203
  %v5531 = vmax.f32 %v5050, %v5204
  %v5532 = vmax.f32 %v5051, %v5207
  %v5533 = vmax.f32 %v5052, %v5209
  %v5534 = vmax.f32 %v5053, %v5210
  %v5535 = vmax.f32 %v5054, %v5213
  %v5536 = vmax.f32 %v5055, %v5215
  %v5537 = vmax.f32 %v5056, %v5216
  %v5538 = vmax.f32 %v5057, %v5219
  %v5539 = vmax.f32 %v5058, %v5221
  %v5540 = vmax.f32 %v5059, %v5222
  %v5541 = vmax.f32 %v5060, %v5225
  %v5542 = vmax.f32 %v5061, %v5227
  %v5543 = vmax.f32 %v5062, %v5228
  %v5544 = vmax.f32 %v5063, %v5231
  %v5545 = vmax.f32 %v5064, %v5233
  %v5546 = vmax.f32 %v5065, %v5234
  %v5547 = vmax.f32 %v5066, %v5237
  %v5548 = vmax.f32 %v5067, %v5239
  %v5549 = vmax.f32 %v5068, %v5240
  %v5550 = vmax.f32 %v5069, %v5243
  %v5551 = vmax.f32 %v5070, %v5245
  %v5552 = vmax.f32 %v5071, %v5246
  %v5553 = vmax.f32 %v5072, %v5249
  %v5554 = vmax.f32 %v5073, %v5251
  %v5555 = vmax.f32 %v5074, %v5252
  %v5556 = vmax.f32 %v5075, %v5255
  %v5557 = vmax.f32 %v5076, %v5257
  %v5558 = vmax.f32 %v5077, %v5258
  %v5559 = vmax.f32 %v5078, %v5261
  %v5560 = vmax.f32 %v5079, %v5263
  %v5561 = vmax.f32 %v5080, %v5264
  %v5562 = vmax.f32 %v5081, %v5267
  %v5563 = vmax.f32 %v5082, %v5269
  %v5564 = vmax.f32 %v5083, %v5270
  %v5565 = vmax.f32 %v5084, %v5273
  %v5566 = vmax.f32 %v5085, %v5275
  %v5567 = vmax.f32 %v5086, %v5276
  %v5568 = vmax.f32 %v5087, %v5279
  %v5569 = vmax.f32 %v5088, %v5281
  %v5570 = vmax.f32 %v5089, %v5282
  %v5571 = vmax.f32 %v5090, %v5285
  %v5572 = vmax.f32 %v5091, %v5287
  %v5573 = vmax.f32 %v5092, %v5288
  %v5574 = vmax.f32 %v5093, %v5291
  %v5575 = vmax.f32 %v5094, %v5293
  %v5576 = vmax.f32 %v5095, %v5294
  %v5577 = vmax.f32 %v5096, %v5297
  %v5578 = vmax.f32 %v5097, %v5299
  %v5579 = vmax.f32 %v5098, %v5300
  %v5580 = vmax.f32 %v5099, %v5303
  %v5581 = vmax.f32 %v5100, %v5305
  %v5582 = vmax.f32 %v5101, %v5306
  %v5583 = vmax.f32 %v5102, %v5309
  %v5584 = vmax.f32 %v5103, %v5311
  %v5585 = vmax.f32 %v5104, %v5312
  %v5586 = vmax.f32 %v5105, %v5315
  %v5587 = vmax.f32 %v5106, %v5317
  %v5588 = vmax.f32 %v5107, %v5318
  %v5589 = vmax.f32 %v5108, %v5321
  %v5590 = vmax.f32 %v5109, %v5323
  %v5591 = vmax.f32 %v5110, %v5324
  %v5592 = vmax.f32 %v5111, %v5327
  %v5593 = vmax.f32 %v5112, %v5329
  %v5594 = vmax.f32 %v5113, %v5330
  %v5595 = vmax.f32 %v5114, %v5333
  %v5596 = vmax.f32 %v5115, %v5335
  %v5597 = vmax.f32 %v5116, %v5336
  %v5598 = vmax.f32 %v5117, %v5339
  %v5599 = vmax.f32 %v5118, %v5341
  %v5600 = vmax.f32 %v5119, %v5342
  %v5601 = vmax.f32 %v5120, %v5345
  %v5602 = vmax.f32 %v5121, %v5347
  %v5603 = vmax.f32 %v5122, %v5348
  %v5604 = vmax.f32 %v5123, %v5351
  %v5605 = vmax.f32 %v5124, %v5353
  %v5606 = vmax.f32 %v5125, %v5354
  %v5607 = vmax.f32 %v5126, %v5357
  %v5608 = vmax.f32 %v5127, %v5359
  %v5609 = vmax.f32 %v5128, %v5360
  %v5610 = vmax.f32 %v5129, %v5363
  %v5611 = vmax.f32 %v5130, %v5365
  %v5612 = vmax.f32 %v5131, %v5366
  %v5613 = vmax.f32 %v5132, %v5369
  %v5614 = vmax.f32 %v5133, %v5371
  %v5615 = vmax.f32 %v5134, %v5372
  %v5616 = vmax.f32 %v5135, %v5375
  %v5617 = vmax.f32 %v5136, %v5377
  %v5618 = vmax.f32 %v5137, %v5378
  %v5619 = vrot.slane %v4307, 3
  %v5620 = vrot.slane %v4308, 3
  %v5621 = vsel %vm2051, %v5619, %v5620
  %v5622 = vrot.slane %v4309, 3
  %v5623 = vsel %vm2051, %v5620, %v5622
  %v5624 = vrot.slane %v4421, 3
  %v5625 = vsel %vm2051, %v5622, %v5624
  %v5626 = vrot.slane %v4422, 3
  %v5627 = vrot.slane %v4423, 3
  %v5628 = vsel %vm2051, %v5626, %v5627
  %v5629 = vrot.slane %v4424, 3
  %v5630 = vsel %vm2051, %v5627, %v5629
  %v5631 = vsel %vm2051, %v5629, %v5624
  %v5632 = vrot.slane %v4425, 3
  %v5633 = vrot.slane %v4426, 3
  %v5634 = vsel %vm2051, %v5632, %v5633
  %v5635 = vrot.slane %v4427, 3
  %v5636 = vsel %vm2051, %v5633, %v5635
  %v5637 = vsel %vm2051, %v5635, %v5624
  %v5638 = vrot.slane %v4428, 3
  %v5639 = vrot.slane %v4429, 3
  %v5640 = vsel %vm2051, %v5638, %v5639
  %v5641 = vrot.slane %v4430, 3
  %v5642 = vsel %vm2051, %v5639, %v5641
  %v5643 = vsel %vm2051, %v5641, %v5624
  %v5644 = vrot.slane %v4431, 3
  %v5645 = vrot.slane %v4432, 3
  %v5646 = vsel %vm2051, %v5644, %v5645
  %v5647 = vrot.slane %v4433, 3
  %v5648 = vsel %vm2051, %v5645, %v5647
  %v5649 = vsel %vm2051, %v5647, %v5624
  %v5650 = vrot.slane %v4434, 3
  %v5651 = vrot.slane %v4435, 3
  %v5652 = vsel %vm2051, %v5650, %v5651
  %v5653 = vrot.slane %v4436, 3
  %v5654 = vsel %vm2051, %v5651, %v5653
  %v5655 = vsel %vm2051, %v5653, %v5624
  %v5656 = vrot.slane %v4437, 3
  %v5657 = vrot.slane %v4438, 3
  %v5658 = vsel %vm2051, %v5656, %v5657
  %v5659 = vrot.slane %v4439, 3
  %v5660 = vsel %vm2051, %v5657, %v5659
  %v5661 = vsel %vm2051, %v5659, %v5624
  %v5662 = vrot.slane %v4440, 3
  %v5663 = vrot.slane %v4441, 3
  %v5664 = vsel %vm2051, %v5662, %v5663
  %v5665 = vrot.slane %v4442, 3
  %v5666 = vsel %vm2051, %v5663, %v5665
  %v5667 = vsel %vm2051, %v5665, %v5624
  %v5668 = vrot.slane %v4443, 3
  %v5669 = vrot.slane %v4444, 3
  %v5670 = vsel %vm2051, %v5668, %v5669
  %v5671 = vrot.slane %v4445, 3
  %v5672 = vsel %vm2051, %v5669, %v5671
  %v5673 = vsel %vm2051, %v5671, %v5624
  %v5674 = vrot.slane %v4446, 3
  %v5675 = vrot.slane %v4447, 3
  %v5676 = vsel %vm2051, %v5674, %v5675
  %v5677 = vrot.slane %v4448, 3
  %v5678 = vsel %vm2051, %v5675, %v5677
  %v5679 = vsel %vm2051, %v5677, %v5624
  %v5680 = vrot.slane %v4449, 3
  %v5681 = vrot.slane %v4450, 3
  %v5682 = vsel %vm2051, %v5680, %v5681
  %v5683 = vrot.slane %v4451, 3
  %v5684 = vsel %vm2051, %v5681, %v5683
  %v5685 = vsel %vm2051, %v5683, %v5624
  %v5686 = vrot.slane %v4452, 3
  %v5687 = vrot.slane %v4453, 3
  %v5688 = vsel %vm2051, %v5686, %v5687
  %v5689 = vrot.slane %v4454, 3
  %v5690 = vsel %vm2051, %v5687, %v5689
  %v5691 = vsel %vm2051, %v5689, %v5624
  %v5692 = vrot.slane %v4455, 3
  %v5693 = vrot.slane %v4456, 3
  %v5694 = vsel %vm2051, %v5692, %v5693
  %v5695 = vrot.slane %v4457, 3
  %v5696 = vsel %vm2051, %v5693, %v5695
  %v5697 = vsel %vm2051, %v5695, %v5624
  %v5698 = vrot.slane %v4458, 3
  %v5699 = vrot.slane %v4459, 3
  %v5700 = vsel %vm2051, %v5698, %v5699
  %v5701 = vrot.slane %v4460, 3
  %v5702 = vsel %vm2051, %v5699, %v5701
  %v5703 = vsel %vm2051, %v5701, %v5624
  %v5704 = vrot.slane %v4461, 3
  %v5705 = vrot.slane %v4462, 3
  %v5706 = vsel %vm2051, %v5704, %v5705
  %v5707 = vrot.slane %v4463, 3
  %v5708 = vsel %vm2051, %v5705, %v5707
  %v5709 = vsel %vm2051, %v5707, %v5624
  %v5710 = vrot.slane %v4464, 3
  %v5711 = vrot.slane %v4465, 3
  %v5712 = vsel %vm2051, %v5710, %v5711
  %v5713 = vrot.slane %v4466, 3
  %v5714 = vsel %vm2051, %v5711, %v5713
  %v5715 = vsel %vm2051, %v5713, %v5624
  %v5716 = vrot.slane %v4467, 3
  %v5717 = vrot.slane %v4468, 3
  %v5718 = vsel %vm2051, %v5716, %v5717
  %v5719 = vrot.slane %v4469, 3
  %v5720 = vsel %vm2051, %v5717, %v5719
  %v5721 = vsel %vm2051, %v5719, %v5624
  %v5722 = vrot.slane %v4470, 3
  %v5723 = vrot.slane %v4471, 3
  %v5724 = vsel %vm2051, %v5722, %v5723
  %v5725 = vrot.slane %v4472, 3
  %v5726 = vsel %vm2051, %v5723, %v5725
  %v5727 = vsel %vm2051, %v5725, %v5624
  %v5728 = vrot.slane %v4473, 3
  %v5729 = vrot.slane %v4474, 3
  %v5730 = vsel %vm2051, %v5728, %v5729
  %v5731 = vrot.slane %v4475, 3
  %v5732 = vsel %vm2051, %v5729, %v5731
  %v5733 = vsel %vm2051, %v5731, %v5624
  %v5734 = vrot.slane %v4476, 3
  %v5735 = vrot.slane %v4477, 3
  %v5736 = vsel %vm2051, %v5734, %v5735
  %v5737 = vrot.slane %v4478, 3
  %v5738 = vsel %vm2051, %v5735, %v5737
  %v5739 = vsel %vm2051, %v5737, %v5624
  %v5740 = vrot.slane %v4364, 3
  %v5741 = vrot.slane %v4365, 3
  %v5742 = vsel %vm2051, %v5740, %v5741
  %v5743 = vrot.slane %v4366, 3
  %v5744 = vsel %vm2051, %v5741, %v5743
  %v5745 = vsel %vm2051, %v5743, %v5624
  %v5746 = vrot.slane %v4479, 3
  %v5747 = vrot.slane %v4480, 3
  %v5748 = vsel %vm2051, %v5746, %v5747
  %v5749 = vrot.slane %v4481, 3
  %v5750 = vsel %vm2051, %v5747, %v5749
  %v5751 = vsel %vm2051, %v5749, %v5624
  %v5752 = vrot.slane %v4482, 3
  %v5753 = vrot.slane %v4483, 3
  %v5754 = vsel %vm2051, %v5752, %v5753
  %v5755 = vrot.slane %v4484, 3
  %v5756 = vsel %vm2051, %v5753, %v5755
  %v5757 = vsel %vm2051, %v5755, %v5624
  %v5758 = vrot.slane %v4485, 3
  %v5759 = vrot.slane %v4486, 3
  %v5760 = vsel %vm2051, %v5758, %v5759
  %v5761 = vrot.slane %v4487, 3
  %v5762 = vsel %vm2051, %v5759, %v5761
  %v5763 = vsel %vm2051, %v5761, %v5624
  %v5764 = vrot.slane %v4488, 3
  %v5765 = vrot.slane %v4489, 3
  %v5766 = vsel %vm2051, %v5764, %v5765
  %v5767 = vrot.slane %v4490, 3
  %v5768 = vsel %vm2051, %v5765, %v5767
  %v5769 = vsel %vm2051, %v5767, %v5624
  %v5770 = vrot.slane %v4491, 3
  %v5771 = vrot.slane %v4492, 3
  %v5772 = vsel %vm2051, %v5770, %v5771
  %v5773 = vrot.slane %v4493, 3
  %v5774 = vsel %vm2051, %v5771, %v5773
  %v5775 = vsel %vm2051, %v5773, %v5624
  %v5776 = vrot.slane %v4494, 3
  %v5777 = vrot.slane %v4495, 3
  %v5778 = vsel %vm2051, %v5776, %v5777
  %v5779 = vrot.slane %v4496, 3
  %v5780 = vsel %vm2051, %v5777, %v5779
  %v5781 = vsel %vm2051, %v5779, %v5624
  %v5782 = vrot.slane %v4497, 3
  %v5783 = vrot.slane %v4498, 3
  %v5784 = vsel %vm2051, %v5782, %v5783
  %v5785 = vrot.slane %v4499, 3
  %v5786 = vsel %vm2051, %v5783, %v5785
  %v5787 = vsel %vm2051, %v5785, %v5624
  %v5788 = vrot.slane %v4500, 3
  %v5789 = vrot.slane %v4501, 3
  %v5790 = vsel %vm2051, %v5788, %v5789
  %v5791 = vrot.slane %v4502, 3
  %v5792 = vsel %vm2051, %v5789, %v5791
  %v5793 = vsel %vm2051, %v5791, %v5624
  %v5794 = vrot.slane %v4503, 3
  %v5795 = vrot.slane %v4504, 3
  %v5796 = vsel %vm2051, %v5794, %v5795
  %v5797 = vrot.slane %v4505, 3
  %v5798 = vsel %vm2051, %v5795, %v5797
  %v5799 = vsel %vm2051, %v5797, %v5624
  %v5800 = vrot.slane %v4506, 3
  %v5801 = vrot.slane %v4507, 3
  %v5802 = vsel %vm2051, %v5800, %v5801
  %v5803 = vrot.slane %v4508, 3
  %v5804 = vsel %vm2051, %v5801, %v5803
  %v5805 = vsel %vm2051, %v5803, %v5624
  %v5806 = vrot.slane %v4509, 3
  %v5807 = vrot.slane %v4510, 3
  %v5808 = vsel %vm2051, %v5806, %v5807
  %v5809 = vrot.slane %v4511, 3
  %v5810 = vsel %vm2051, %v5807, %v5809
  %v5811 = vsel %vm2051, %v5809, %v5624
  %v5812 = vrot.slane %v4512, 3
  %v5813 = vrot.slane %v4513, 3
  %v5814 = vsel %vm2051, %v5812, %v5813
  %v5815 = vrot.slane %v4514, 3
  %v5816 = vsel %vm2051, %v5813, %v5815
  %v5817 = vsel %vm2051, %v5815, %v5624
  %v5818 = vrot.slane %v4515, 3
  %v5819 = vrot.slane %v4516, 3
  %v5820 = vsel %vm2051, %v5818, %v5819
  %v5821 = vrot.slane %v4517, 3
  %v5822 = vsel %vm2051, %v5819, %v5821
  %v5823 = vsel %vm2051, %v5821, %v5624
  %v5824 = vrot.slane %v4518, 3
  %v5825 = vrot.slane %v4519, 3
  %v5826 = vsel %vm2051, %v5824, %v5825
  %v5827 = vrot.slane %v4520, 3
  %v5828 = vsel %vm2051, %v5825, %v5827
  %v5829 = vsel %vm2051, %v5827, %v5624
  %v5830 = vrot.slane %v4521, 3
  %v5831 = vrot.slane %v4522, 3
  %v5832 = vsel %vm2051, %v5830, %v5831
  %v5833 = vrot.slane %v4523, 3
  %v5834 = vsel %vm2051, %v5831, %v5833
  %v5835 = vsel %vm2051, %v5833, %v5624
  %v5836 = vrot.slane %v4524, 3
  %v5837 = vrot.slane %v4525, 3
  %v5838 = vsel %vm2051, %v5836, %v5837
  %v5839 = vrot.slane %v4526, 3
  %v5840 = vsel %vm2051, %v5837, %v5839
  %v5841 = vsel %vm2051, %v5839, %v5624
  %v5842 = vrot.slane %v4527, 3
  %v5843 = vrot.slane %v4528, 3
  %v5844 = vsel %vm2051, %v5842, %v5843
  %v5845 = vrot.slane %v4529, 3
  %v5846 = vsel %vm2051, %v5843, %v5845
  %v5847 = vsel %vm2051, %v5845, %v5624
  %v5848 = vrot.slane %v4530, 3
  %v5849 = vrot.slane %v4531, 3
  %v5850 = vsel %vm2051, %v5848, %v5849
  %v5851 = vrot.slane %v4532, 3
  %v5852 = vsel %vm2051, %v5849, %v5851
  %v5853 = vsel %vm2051, %v5851, %v5624
  %v5854 = vrot.slane %v4533, 3
  %v5855 = vrot.slane %v4534, 3
  %v5856 = vsel %vm2051, %v5854, %v5855
  %v5857 = vrot.slane %v4535, 3
  %v5858 = vsel %vm2051, %v5855, %v5857
  %v5859 = vsel %vm2051, %v5857, %v5624
  %v5980 = vmax.f32 %v5499, %v5621
  %v5981 = vmax.f32 %v5500, %v5623
  %v5982 = vmax.f32 %v5501, %v5625
  %v5983 = vmax.f32 %v5502, %v5628
  %v5984 = vmax.f32 %v5503, %v5630
  %v5985 = vmax.f32 %v5504, %v5631
  %v5986 = vmax.f32 %v5505, %v5634
  %v5987 = vmax.f32 %v5506, %v5636
  %v5988 = vmax.f32 %v5507, %v5637
  %v5989 = vmax.f32 %v5508, %v5640
  %v5990 = vmax.f32 %v5509, %v5642
  %v5991 = vmax.f32 %v5510, %v5643
  %v5992 = vmax.f32 %v5511, %v5646
  %v5993 = vmax.f32 %v5512, %v5648
  %v5994 = vmax.f32 %v5513, %v5649
  %v5995 = vmax.f32 %v5514, %v5652
  %v5996 = vmax.f32 %v5515, %v5654
  %v5997 = vmax.f32 %v5516, %v5655
  %v5998 = vmax.f32 %v5517, %v5658
  %v5999 = vmax.f32 %v5518, %v5660
  %v6000 = vmax.f32 %v5519, %v5661
  %v6001 = vmax.f32 %v5520, %v5664
  %v6002 = vmax.f32 %v5521, %v5666
  %v6003 = vmax.f32 %v5522, %v5667
  %v6004 = vmax.f32 %v5523, %v5670
  %v6005 = vmax.f32 %v5524, %v5672
  %v6006 = vmax.f32 %v5525, %v5673
  %v6007 = vmax.f32 %v5526, %v5676
  %v6008 = vmax.f32 %v5527, %v5678
  %v6009 = vmax.f32 %v5528, %v5679
  %v6010 = vmax.f32 %v5529, %v5682
  %v6011 = vmax.f32 %v5530, %v5684
  %v6012 = vmax.f32 %v5531, %v5685
  %v6013 = vmax.f32 %v5532, %v5688
  %v6014 = vmax.f32 %v5533, %v5690
  %v6015 = vmax.f32 %v5534, %v5691
  %v6016 = vmax.f32 %v5535, %v5694
  %v6017 = vmax.f32 %v5536, %v5696
  %v6018 = vmax.f32 %v5537, %v5697
  %v6019 = vmax.f32 %v5538, %v5700
  %v6020 = vmax.f32 %v5539, %v5702
  %v6021 = vmax.f32 %v5540, %v5703
  %v6022 = vmax.f32 %v5541, %v5706
  %v6023 = vmax.f32 %v5542, %v5708
  %v6024 = vmax.f32 %v5543, %v5709
  %v6025 = vmax.f32 %v5544, %v5712
  %v6026 = vmax.f32 %v5545, %v5714
  %v6027 = vmax.f32 %v5546, %v5715
  %v6028 = vmax.f32 %v5547, %v5718
  %v6029 = vmax.f32 %v5548, %v5720
  %v6030 = vmax.f32 %v5549, %v5721
  %v6031 = vmax.f32 %v5550, %v5724
  %v6032 = vmax.f32 %v5551, %v5726
  %v6033 = vmax.f32 %v5552, %v5727
  %v6034 = vmax.f32 %v5553, %v5730
  %v6035 = vmax.f32 %v5554, %v5732
  %v6036 = vmax.f32 %v5555, %v5733
  %v6037 = vmax.f32 %v5556, %v5736
  %v6038 = vmax.f32 %v5557, %v5738
  %v6039 = vmax.f32 %v5558, %v5739
  %v6040 = vmax.f32 %v5559, %v5742
  %v6041 = vmax.f32 %v5560, %v5744
  %v6042 = vmax.f32 %v5561, %v5745
  %v6043 = vmax.f32 %v5562, %v5748
  %v6044 = vmax.f32 %v5563, %v5750
  %v6045 = vmax.f32 %v5564, %v5751
  %v6046 = vmax.f32 %v5565, %v5754
  %v6047 = vmax.f32 %v5566, %v5756
  %v6048 = vmax.f32 %v5567, %v5757
  %v6049 = vmax.f32 %v5568, %v5760
  %v6050 = vmax.f32 %v5569, %v5762
  %v6051 = vmax.f32 %v5570, %v5763
  %v6052 = vmax.f32 %v5571, %v5766
  %v6053 = vmax.f32 %v5572, %v5768
  %v6054 = vmax.f32 %v5573, %v5769
  %v6055 = vmax.f32 %v5574, %v5772
  %v6056 = vmax.f32 %v5575, %v5774
  %v6057 = vmax.f32 %v5576, %v5775
  %v6058 = vmax.f32 %v5577, %v5778
  %v6059 = vmax.f32 %v5578, %v5780
  %v6060 = vmax.f32 %v5579, %v5781
  %v6061 = vmax.f32 %v5580, %v5784
  %v6062 = vmax.f32 %v5581, %v5786
  %v6063 = vmax.f32 %v5582, %v5787
  %v6064 = vmax.f32 %v5583, %v5790
  %v6065 = vmax.f32 %v5584, %v5792
  %v6066 = vmax.f32 %v5585, %v5793
  %v6067 = vmax.f32 %v5586, %v5796
  %v6068 = vmax.f32 %v5587, %v5798
  %v6069 = vmax.f32 %v5588, %v5799
  %v6070 = vmax.f32 %v5589, %v5802
  %v6071 = vmax.f32 %v5590, %v5804
  %v6072 = vmax.f32 %v5591, %v5805
  %v6073 = vmax.f32 %v5592, %v5808
  %v6074 = vmax.f32 %v5593, %v5810
  %v6075 = vmax.f32 %v5594, %v5811
  %v6076 = vmax.f32 %v5595, %v5814
  %v6077 = vmax.f32 %v5596, %v5816
  %v6078 = vmax.f32 %v5597, %v5817
  %v6079 = vmax.f32 %v5598, %v5820
  %v6080 = vmax.f32 %v5599, %v5822
  %v6081 = vmax.f32 %v5600, %v5823
  %v6082 = vmax.f32 %v5601, %v5826
  %v6083 = vmax.f32 %v5602, %v5828
  %v6084 = vmax.f32 %v5603, %v5829
  %v6085 = vmax.f32 %v5604, %v5832
  %v6086 = vmax.f32 %v5605, %v5834
  %v6087 = vmax.f32 %v5606, %v5835
  %v6088 = vmax.f32 %v5607, %v5838
  %v6089 = vmax.f32 %v5608, %v5840
  %v6090 = vmax.f32 %v5609, %v5841
  %v6091 = vmax.f32 %v5610, %v5844
  %v6092 = vmax.f32 %v5611, %v5846
  %v6093 = vmax.f32 %v5612, %v5847
  %v6094 = vmax.f32 %v5613, %v5850
  %v6095 = vmax.f32 %v5614, %v5852
  %v6096 = vmax.f32 %v5615, %v5853
  %v6097 = vmax.f32 %v5616, %v5856
  %v6098 = vmax.f32 %v5617, %v5858
  %v6099 = vmax.f32 %v5618, %v5859
  %v6100 = vrot.slane %v4307, 4
  %v6101 = vrot.slane %v4308, 4
  %v6102 = vsel %vm2498, %v6100, %v6101
  %v6103 = vrot.slane %v4309, 4
  %v6104 = vsel %vm2498, %v6101, %v6103
  %v6105 = vrot.slane %v4421, 4
  %v6106 = vsel %vm2498, %v6103, %v6105
  %v6107 = vrot.slane %v4422, 4
  %v6108 = vrot.slane %v4423, 4
  %v6109 = vsel %vm2498, %v6107, %v6108
  %v6110 = vrot.slane %v4424, 4
  %v6111 = vsel %vm2498, %v6108, %v6110
  %v6112 = vsel %vm2498, %v6110, %v6105
  %v6113 = vrot.slane %v4425, 4
  %v6114 = vrot.slane %v4426, 4
  %v6115 = vsel %vm2498, %v6113, %v6114
  %v6116 = vrot.slane %v4427, 4
  %v6117 = vsel %vm2498, %v6114, %v6116
  %v6118 = vsel %vm2498, %v6116, %v6105
  %v6119 = vrot.slane %v4428, 4
  %v6120 = vrot.slane %v4429, 4
  %v6121 = vsel %vm2498, %v6119, %v6120
  %v6122 = vrot.slane %v4430, 4
  %v6123 = vsel %vm2498, %v6120, %v6122
  %v6124 = vsel %vm2498, %v6122, %v6105
  %v6125 = vrot.slane %v4431, 4
  %v6126 = vrot.slane %v4432, 4
  %v6127 = vsel %vm2498, %v6125, %v6126
  %v6128 = vrot.slane %v4433, 4
  %v6129 = vsel %vm2498, %v6126, %v6128
  %v6130 = vsel %vm2498, %v6128, %v6105
  %v6131 = vrot.slane %v4434, 4
  %v6132 = vrot.slane %v4435, 4
  %v6133 = vsel %vm2498, %v6131, %v6132
  %v6134 = vrot.slane %v4436, 4
  %v6135 = vsel %vm2498, %v6132, %v6134
  %v6136 = vsel %vm2498, %v6134, %v6105
  %v6137 = vrot.slane %v4437, 4
  %v6138 = vrot.slane %v4438, 4
  %v6139 = vsel %vm2498, %v6137, %v6138
  %v6140 = vrot.slane %v4439, 4
  %v6141 = vsel %vm2498, %v6138, %v6140
  %v6142 = vsel %vm2498, %v6140, %v6105
  %v6143 = vrot.slane %v4440, 4
  %v6144 = vrot.slane %v4441, 4
  %v6145 = vsel %vm2498, %v6143, %v6144
  %v6146 = vrot.slane %v4442, 4
  %v6147 = vsel %vm2498, %v6144, %v6146
  %v6148 = vsel %vm2498, %v6146, %v6105
  %v6149 = vrot.slane %v4443, 4
  %v6150 = vrot.slane %v4444, 4
  %v6151 = vsel %vm2498, %v6149, %v6150
  %v6152 = vrot.slane %v4445, 4
  %v6153 = vsel %vm2498, %v6150, %v6152
  %v6154 = vsel %vm2498, %v6152, %v6105
  %v6155 = vrot.slane %v4446, 4
  %v6156 = vrot.slane %v4447, 4
  %v6157 = vsel %vm2498, %v6155, %v6156
  %v6158 = vrot.slane %v4448, 4
  %v6159 = vsel %vm2498, %v6156, %v6158
  %v6160 = vsel %vm2498, %v6158, %v6105
  %v6161 = vrot.slane %v4449, 4
  %v6162 = vrot.slane %v4450, 4
  %v6163 = vsel %vm2498, %v6161, %v6162
  %v6164 = vrot.slane %v4451, 4
  %v6165 = vsel %vm2498, %v6162, %v6164
  %v6166 = vsel %vm2498, %v6164, %v6105
  %v6167 = vrot.slane %v4452, 4
  %v6168 = vrot.slane %v4453, 4
  %v6169 = vsel %vm2498, %v6167, %v6168
  %v6170 = vrot.slane %v4454, 4
  %v6171 = vsel %vm2498, %v6168, %v6170
  %v6172 = vsel %vm2498, %v6170, %v6105
  %v6173 = vrot.slane %v4455, 4
  %v6174 = vrot.slane %v4456, 4
  %v6175 = vsel %vm2498, %v6173, %v6174
  %v6176 = vrot.slane %v4457, 4
  %v6177 = vsel %vm2498, %v6174, %v6176
  %v6178 = vsel %vm2498, %v6176, %v6105
  %v6179 = vrot.slane %v4458, 4
  %v6180 = vrot.slane %v4459, 4
  %v6181 = vsel %vm2498, %v6179, %v6180
  %v6182 = vrot.slane %v4460, 4
  %v6183 = vsel %vm2498, %v6180, %v6182
  %v6184 = vsel %vm2498, %v6182, %v6105
  %v6185 = vrot.slane %v4461, 4
  %v6186 = vrot.slane %v4462, 4
  %v6187 = vsel %vm2498, %v6185, %v6186
  %v6188 = vrot.slane %v4463, 4
  %v6189 = vsel %vm2498, %v6186, %v6188
  %v6190 = vsel %vm2498, %v6188, %v6105
  %v6191 = vrot.slane %v4464, 4
  %v6192 = vrot.slane %v4465, 4
  %v6193 = vsel %vm2498, %v6191, %v6192
  %v6194 = vrot.slane %v4466, 4
  %v6195 = vsel %vm2498, %v6192, %v6194
  %v6196 = vsel %vm2498, %v6194, %v6105
  %v6197 = vrot.slane %v4467, 4
  %v6198 = vrot.slane %v4468, 4
  %v6199 = vsel %vm2498, %v6197, %v6198
  %v6200 = vrot.slane %v4469, 4
  %v6201 = vsel %vm2498, %v6198, %v6200
  %v6202 = vsel %vm2498, %v6200, %v6105
  %v6203 = vrot.slane %v4470, 4
  %v6204 = vrot.slane %v4471, 4
  %v6205 = vsel %vm2498, %v6203, %v6204
  %v6206 = vrot.slane %v4472, 4
  %v6207 = vsel %vm2498, %v6204, %v6206
  %v6208 = vsel %vm2498, %v6206, %v6105
  %v6209 = vrot.slane %v4473, 4
  %v6210 = vrot.slane %v4474, 4
  %v6211 = vsel %vm2498, %v6209, %v6210
  %v6212 = vrot.slane %v4475, 4
  %v6213 = vsel %vm2498, %v6210, %v6212
  %v6214 = vsel %vm2498, %v6212, %v6105
  %v6215 = vrot.slane %v4476, 4
  %v6216 = vrot.slane %v4477, 4
  %v6217 = vsel %vm2498, %v6215, %v6216
  %v6218 = vrot.slane %v4478, 4
  %v6219 = vsel %vm2498, %v6216, %v6218
  %v6220 = vsel %vm2498, %v6218, %v6105
  %v6221 = vrot.slane %v4364, 4
  %v6222 = vrot.slane %v4365, 4
  %v6223 = vsel %vm2498, %v6221, %v6222
  %v6224 = vrot.slane %v4366, 4
  %v6225 = vsel %vm2498, %v6222, %v6224
  %v6226 = vsel %vm2498, %v6224, %v6105
  %v6227 = vrot.slane %v4479, 4
  %v6228 = vrot.slane %v4480, 4
  %v6229 = vsel %vm2498, %v6227, %v6228
  %v6230 = vrot.slane %v4481, 4
  %v6231 = vsel %vm2498, %v6228, %v6230
  %v6232 = vsel %vm2498, %v6230, %v6105
  %v6233 = vrot.slane %v4482, 4
  %v6234 = vrot.slane %v4483, 4
  %v6235 = vsel %vm2498, %v6233, %v6234
  %v6236 = vrot.slane %v4484, 4
  %v6237 = vsel %vm2498, %v6234, %v6236
  %v6238 = vsel %vm2498, %v6236, %v6105
  %v6239 = vrot.slane %v4485, 4
  %v6240 = vrot.slane %v4486, 4
  %v6241 = vsel %vm2498, %v6239, %v6240
  %v6242 = vrot.slane %v4487, 4
  %v6243 = vsel %vm2498, %v6240, %v6242
  %v6244 = vsel %vm2498, %v6242, %v6105
  %v6245 = vrot.slane %v4488, 4
  %v6246 = vrot.slane %v4489, 4
  %v6247 = vsel %vm2498, %v6245, %v6246
  %v6248 = vrot.slane %v4490, 4
  %v6249 = vsel %vm2498, %v6246, %v6248
  %v6250 = vsel %vm2498, %v6248, %v6105
  %v6251 = vrot.slane %v4491, 4
  %v6252 = vrot.slane %v4492, 4
  %v6253 = vsel %vm2498, %v6251, %v6252
  %v6254 = vrot.slane %v4493, 4
  %v6255 = vsel %vm2498, %v6252, %v6254
  %v6256 = vsel %vm2498, %v6254, %v6105
  %v6257 = vrot.slane %v4494, 4
  %v6258 = vrot.slane %v4495, 4
  %v6259 = vsel %vm2498, %v6257, %v6258
  %v6260 = vrot.slane %v4496, 4
  %v6261 = vsel %vm2498, %v6258, %v6260
  %v6262 = vsel %vm2498, %v6260, %v6105
  %v6263 = vrot.slane %v4497, 4
  %v6264 = vrot.slane %v4498, 4
  %v6265 = vsel %vm2498, %v6263, %v6264
  %v6266 = vrot.slane %v4499, 4
  %v6267 = vsel %vm2498, %v6264, %v6266
  %v6268 = vsel %vm2498, %v6266, %v6105
  %v6269 = vrot.slane %v4500, 4
  %v6270 = vrot.slane %v4501, 4
  %v6271 = vsel %vm2498, %v6269, %v6270
  %v6272 = vrot.slane %v4502, 4
  %v6273 = vsel %vm2498, %v6270, %v6272
  %v6274 = vsel %vm2498, %v6272, %v6105
  %v6275 = vrot.slane %v4503, 4
  %v6276 = vrot.slane %v4504, 4
  %v6277 = vsel %vm2498, %v6275, %v6276
  %v6278 = vrot.slane %v4505, 4
  %v6279 = vsel %vm2498, %v6276, %v6278
  %v6280 = vsel %vm2498, %v6278, %v6105
  %v6281 = vrot.slane %v4506, 4
  %v6282 = vrot.slane %v4507, 4
  %v6283 = vsel %vm2498, %v6281, %v6282
  %v6284 = vrot.slane %v4508, 4
  %v6285 = vsel %vm2498, %v6282, %v6284
  %v6286 = vsel %vm2498, %v6284, %v6105
  %v6287 = vrot.slane %v4509, 4
  %v6288 = vrot.slane %v4510, 4
  %v6289 = vsel %vm2498, %v6287, %v6288
  %v6290 = vrot.slane %v4511, 4
  %v6291 = vsel %vm2498, %v6288, %v6290
  %v6292 = vsel %vm2498, %v6290, %v6105
  %v6293 = vrot.slane %v4512, 4
  %v6294 = vrot.slane %v4513, 4
  %v6295 = vsel %vm2498, %v6293, %v6294
  %v6296 = vrot.slane %v4514, 4
  %v6297 = vsel %vm2498, %v6294, %v6296
  %v6298 = vsel %vm2498, %v6296, %v6105
  %v6299 = vrot.slane %v4515, 4
  %v6300 = vrot.slane %v4516, 4
  %v6301 = vsel %vm2498, %v6299, %v6300
  %v6302 = vrot.slane %v4517, 4
  %v6303 = vsel %vm2498, %v6300, %v6302
  %v6304 = vsel %vm2498, %v6302, %v6105
  %v6305 = vrot.slane %v4518, 4
  %v6306 = vrot.slane %v4519, 4
  %v6307 = vsel %vm2498, %v6305, %v6306
  %v6308 = vrot.slane %v4520, 4
  %v6309 = vsel %vm2498, %v6306, %v6308
  %v6310 = vsel %vm2498, %v6308, %v6105
  %v6311 = vrot.slane %v4521, 4
  %v6312 = vrot.slane %v4522, 4
  %v6313 = vsel %vm2498, %v6311, %v6312
  %v6314 = vrot.slane %v4523, 4
  %v6315 = vsel %vm2498, %v6312, %v6314
  %v6316 = vsel %vm2498, %v6314, %v6105
  %v6317 = vrot.slane %v4524, 4
  %v6318 = vrot.slane %v4525, 4
  %v6319 = vsel %vm2498, %v6317, %v6318
  %v6320 = vrot.slane %v4526, 4
  %v6321 = vsel %vm2498, %v6318, %v6320
  %v6322 = vsel %vm2498, %v6320, %v6105
  %v6323 = vrot.slane %v4527, 4
  %v6324 = vrot.slane %v4528, 4
  %v6325 = vsel %vm2498, %v6323, %v6324
  %v6326 = vrot.slane %v4529, 4
  %v6327 = vsel %vm2498, %v6324, %v6326
  %v6328 = vsel %vm2498, %v6326, %v6105
  %v6329 = vrot.slane %v4530, 4
  %v6330 = vrot.slane %v4531, 4
  %v6331 = vsel %vm2498, %v6329, %v6330
  %v6332 = vrot.slane %v4532, 4
  %v6333 = vsel %vm2498, %v6330, %v6332
  %v6334 = vsel %vm2498, %v6332, %v6105
  %v6335 = vrot.slane %v4533, 4
  %v6336 = vrot.slane %v4534, 4
  %v6337 = vsel %vm2498, %v6335, %v6336
  %v6338 = vrot.slane %v4535, 4
  %v6339 = vsel %vm2498, %v6336, %v6338
  %v6340 = vsel %vm2498, %v6338, %v6105
  %v6461 = vmax.f32 %v5980, %v6102
  %v6462 = vmax.f32 %v5981, %v6104
  %v6463 = vmax.f32 %v5982, %v6106
  %v6464 = vmax.f32 %v5983, %v6109
  %v6465 = vmax.f32 %v5984, %v6111
  %v6466 = vmax.f32 %v5985, %v6112
  %v6467 = vmax.f32 %v5986, %v6115
  %v6468 = vmax.f32 %v5987, %v6117
  %v6469 = vmax.f32 %v5988, %v6118
  %v6470 = vmax.f32 %v5989, %v6121
  %v6471 = vmax.f32 %v5990, %v6123
  %v6472 = vmax.f32 %v5991, %v6124
  %v6473 = vmax.f32 %v5992, %v6127
  %v6474 = vmax.f32 %v5993, %v6129
  %v6475 = vmax.f32 %v5994, %v6130
  %v6476 = vmax.f32 %v5995, %v6133
  %v6477 = vmax.f32 %v5996, %v6135
  %v6478 = vmax.f32 %v5997, %v6136
  %v6479 = vmax.f32 %v5998, %v6139
  %v6480 = vmax.f32 %v5999, %v6141
  %v6481 = vmax.f32 %v6000, %v6142
  %v6482 = vmax.f32 %v6001, %v6145
  %v6483 = vmax.f32 %v6002, %v6147
  %v6484 = vmax.f32 %v6003, %v6148
  %v6485 = vmax.f32 %v6004, %v6151
  %v6486 = vmax.f32 %v6005, %v6153
  %v6487 = vmax.f32 %v6006, %v6154
  %v6488 = vmax.f32 %v6007, %v6157
  %v6489 = vmax.f32 %v6008, %v6159
  %v6490 = vmax.f32 %v6009, %v6160
  %v6491 = vmax.f32 %v6010, %v6163
  %v6492 = vmax.f32 %v6011, %v6165
  %v6493 = vmax.f32 %v6012, %v6166
  %v6494 = vmax.f32 %v6013, %v6169
  %v6495 = vmax.f32 %v6014, %v6171
  %v6496 = vmax.f32 %v6015, %v6172
  %v6497 = vmax.f32 %v6016, %v6175
  %v6498 = vmax.f32 %v6017, %v6177
  %v6499 = vmax.f32 %v6018, %v6178
  %v6500 = vmax.f32 %v6019, %v6181
  %v6501 = vmax.f32 %v6020, %v6183
  %v6502 = vmax.f32 %v6021, %v6184
  %v6503 = vmax.f32 %v6022, %v6187
  %v6504 = vmax.f32 %v6023, %v6189
  %v6505 = vmax.f32 %v6024, %v6190
  %v6506 = vmax.f32 %v6025, %v6193
  %v6507 = vmax.f32 %v6026, %v6195
  %v6508 = vmax.f32 %v6027, %v6196
  %v6509 = vmax.f32 %v6028, %v6199
  %v6510 = vmax.f32 %v6029, %v6201
  %v6511 = vmax.f32 %v6030, %v6202
  %v6512 = vmax.f32 %v6031, %v6205
  %v6513 = vmax.f32 %v6032, %v6207
  %v6514 = vmax.f32 %v6033, %v6208
  %v6515 = vmax.f32 %v6034, %v6211
  %v6516 = vmax.f32 %v6035, %v6213
  %v6517 = vmax.f32 %v6036, %v6214
  %v6518 = vmax.f32 %v6037, %v6217
  %v6519 = vmax.f32 %v6038, %v6219
  %v6520 = vmax.f32 %v6039, %v6220
  %v6521 = vmax.f32 %v6040, %v6223
  %v6522 = vmax.f32 %v6041, %v6225
  %v6523 = vmax.f32 %v6042, %v6226
  %v6524 = vmax.f32 %v6043, %v6229
  %v6525 = vmax.f32 %v6044, %v6231
  %v6526 = vmax.f32 %v6045, %v6232
  %v6527 = vmax.f32 %v6046, %v6235
  %v6528 = vmax.f32 %v6047, %v6237
  %v6529 = vmax.f32 %v6048, %v6238
  %v6530 = vmax.f32 %v6049, %v6241
  %v6531 = vmax.f32 %v6050, %v6243
  %v6532 = vmax.f32 %v6051, %v6244
  %v6533 = vmax.f32 %v6052, %v6247
  %v6534 = vmax.f32 %v6053, %v6249
  %v6535 = vmax.f32 %v6054, %v6250
  %v6536 = vmax.f32 %v6055, %v6253
  %v6537 = vmax.f32 %v6056, %v6255
  %v6538 = vmax.f32 %v6057, %v6256
  %v6539 = vmax.f32 %v6058, %v6259
  %v6540 = vmax.f32 %v6059, %v6261
  %v6541 = vmax.f32 %v6060, %v6262
  %v6542 = vmax.f32 %v6061, %v6265
  %v6543 = vmax.f32 %v6062, %v6267
  %v6544 = vmax.f32 %v6063, %v6268
  %v6545 = vmax.f32 %v6064, %v6271
  %v6546 = vmax.f32 %v6065, %v6273
  %v6547 = vmax.f32 %v6066, %v6274
  %v6548 = vmax.f32 %v6067, %v6277
  %v6549 = vmax.f32 %v6068, %v6279
  %v6550 = vmax.f32 %v6069, %v6280
  %v6551 = vmax.f32 %v6070, %v6283
  %v6552 = vmax.f32 %v6071, %v6285
  %v6553 = vmax.f32 %v6072, %v6286
  %v6554 = vmax.f32 %v6073, %v6289
  %v6555 = vmax.f32 %v6074, %v6291
  %v6556 = vmax.f32 %v6075, %v6292
  %v6557 = vmax.f32 %v6076, %v6295
  %v6558 = vmax.f32 %v6077, %v6297
  %v6559 = vmax.f32 %v6078, %v6298
  %v6560 = vmax.f32 %v6079, %v6301
  %v6561 = vmax.f32 %v6080, %v6303
  %v6562 = vmax.f32 %v6081, %v6304
  %v6563 = vmax.f32 %v6082, %v6307
  %v6564 = vmax.f32 %v6083, %v6309
  %v6565 = vmax.f32 %v6084, %v6310
  %v6566 = vmax.f32 %v6085, %v6313
  %v6567 = vmax.f32 %v6086, %v6315
  %v6568 = vmax.f32 %v6087, %v6316
  %v6569 = vmax.f32 %v6088, %v6319
  %v6570 = vmax.f32 %v6089, %v6321
  %v6571 = vmax.f32 %v6090, %v6322
  %v6572 = vmax.f32 %v6091, %v6325
  %v6573 = vmax.f32 %v6092, %v6327
  %v6574 = vmax.f32 %v6093, %v6328
  %v6575 = vmax.f32 %v6094, %v6331
  %v6576 = vmax.f32 %v6095, %v6333
  %v6577 = vmax.f32 %v6096, %v6334
  %v6578 = vmax.f32 %v6097, %v6337
  %v6579 = vmax.f32 %v6098, %v6339
  %v6580 = vmax.f32 %v6099, %v6340
  %v6677 = vrot.slane %v6467, 4
  %v6678 = vrot.slane %v6468, 4
  %v6679 = vsel %vm2498, %v6677, %v6678
  %v6680 = vrot.slane %v6469, 4
  %v6681 = vsel %vm2498, %v6678, %v6680
  %v6682 = vrot.slane %v6470, 4
  %v6683 = vrot.slane %v6471, 4
  %v6684 = vsel %vm2498, %v6682, %v6683
  %v6685 = vrot.slane %v6472, 4
  %v6686 = vsel %vm2498, %v6683, %v6685
  %v6687 = vrot.slane %v6473, 4
  %v6688 = vrot.slane %v6474, 4
  %v6689 = vsel %vm2498, %v6687, %v6688
  %v6690 = vrot.slane %v6475, 4
  %v6691 = vsel %vm2498, %v6688, %v6690
  %v6692 = vrot.slane %v6476, 4
  %v6693 = vrot.slane %v6477, 4
  %v6694 = vsel %vm2498, %v6692, %v6693
  %v6695 = vrot.slane %v6478, 4
  %v6696 = vsel %vm2498, %v6693, %v6695
  %v6697 = vrot.slane %v6479, 4
  %v6698 = vrot.slane %v6480, 4
  %v6699 = vsel %vm2498, %v6697, %v6698
  %v6700 = vrot.slane %v6481, 4
  %v6701 = vsel %vm2498, %v6698, %v6700
  %v6702 = vrot.slane %v6482, 4
  %v6703 = vrot.slane %v6483, 4
  %v6704 = vsel %vm2498, %v6702, %v6703
  %v6705 = vrot.slane %v6484, 4
  %v6706 = vsel %vm2498, %v6703, %v6705
  %v6707 = vrot.slane %v6485, 4
  %v6708 = vrot.slane %v6486, 4
  %v6709 = vsel %vm2498, %v6707, %v6708
  %v6710 = vrot.slane %v6487, 4
  %v6711 = vsel %vm2498, %v6708, %v6710
  %v6712 = vrot.slane %v6488, 4
  %v6713 = vrot.slane %v6489, 4
  %v6714 = vsel %vm2498, %v6712, %v6713
  %v6715 = vrot.slane %v6490, 4
  %v6716 = vsel %vm2498, %v6713, %v6715
  %v6717 = vrot.slane %v6491, 4
  %v6718 = vrot.slane %v6492, 4
  %v6719 = vsel %vm2498, %v6717, %v6718
  %v6720 = vrot.slane %v6493, 4
  %v6721 = vsel %vm2498, %v6718, %v6720
  %v6722 = vrot.slane %v6494, 4
  %v6723 = vrot.slane %v6495, 4
  %v6724 = vsel %vm2498, %v6722, %v6723
  %v6725 = vrot.slane %v6496, 4
  %v6726 = vsel %vm2498, %v6723, %v6725
  %v6727 = vrot.slane %v6497, 4
  %v6728 = vrot.slane %v6498, 4
  %v6729 = vsel %vm2498, %v6727, %v6728
  %v6730 = vrot.slane %v6499, 4
  %v6731 = vsel %vm2498, %v6728, %v6730
  %v6732 = vrot.slane %v6500, 4
  %v6733 = vrot.slane %v6501, 4
  %v6734 = vsel %vm2498, %v6732, %v6733
  %v6735 = vrot.slane %v6502, 4
  %v6736 = vsel %vm2498, %v6733, %v6735
  %v6737 = vrot.slane %v6503, 4
  %v6738 = vrot.slane %v6504, 4
  %v6739 = vsel %vm2498, %v6737, %v6738
  %v6740 = vrot.slane %v6505, 4
  %v6741 = vsel %vm2498, %v6738, %v6740
  %v6742 = vrot.slane %v6506, 4
  %v6743 = vrot.slane %v6507, 4
  %v6744 = vsel %vm2498, %v6742, %v6743
  %v6745 = vrot.slane %v6508, 4
  %v6746 = vsel %vm2498, %v6743, %v6745
  %v6747 = vrot.slane %v6509, 4
  %v6748 = vrot.slane %v6510, 4
  %v6749 = vsel %vm2498, %v6747, %v6748
  %v6750 = vrot.slane %v6511, 4
  %v6751 = vsel %vm2498, %v6748, %v6750
  %v6752 = vrot.slane %v6512, 4
  %v6753 = vrot.slane %v6513, 4
  %v6754 = vsel %vm2498, %v6752, %v6753
  %v6755 = vrot.slane %v6514, 4
  %v6756 = vsel %vm2498, %v6753, %v6755
  %v6757 = vrot.slane %v6527, 4
  %v6758 = vrot.slane %v6528, 4
  %v6759 = vsel %vm2498, %v6757, %v6758
  %v6760 = vrot.slane %v6529, 4
  %v6761 = vsel %vm2498, %v6758, %v6760
  %v6762 = vrot.slane %v6530, 4
  %v6763 = vrot.slane %v6531, 4
  %v6764 = vsel %vm2498, %v6762, %v6763
  %v6765 = vrot.slane %v6532, 4
  %v6766 = vsel %vm2498, %v6763, %v6765
  %v6767 = vrot.slane %v6533, 4
  %v6768 = vrot.slane %v6534, 4
  %v6769 = vsel %vm2498, %v6767, %v6768
  %v6770 = vrot.slane %v6535, 4
  %v6771 = vsel %vm2498, %v6768, %v6770
  %v6772 = vrot.slane %v6536, 4
  %v6773 = vrot.slane %v6537, 4
  %v6774 = vsel %vm2498, %v6772, %v6773
  %v6775 = vrot.slane %v6538, 4
  %v6776 = vsel %vm2498, %v6773, %v6775
  %v6777 = vrot.slane %v6539, 4
  %v6778 = vrot.slane %v6540, 4
  %v6779 = vsel %vm2498, %v6777, %v6778
  %v6780 = vrot.slane %v6541, 4
  %v6781 = vsel %vm2498, %v6778, %v6780
  %v6782 = vrot.slane %v6542, 4
  %v6783 = vrot.slane %v6543, 4
  %v6784 = vsel %vm2498, %v6782, %v6783
  %v6785 = vrot.slane %v6544, 4
  %v6786 = vsel %vm2498, %v6783, %v6785
  %v6787 = vrot.slane %v6545, 4
  %v6788 = vrot.slane %v6546, 4
  %v6789 = vsel %vm2498, %v6787, %v6788
  %v6790 = vrot.slane %v6547, 4
  %v6791 = vsel %vm2498, %v6788, %v6790
  %v6792 = vrot.slane %v6548, 4
  %v6793 = vrot.slane %v6549, 4
  %v6794 = vsel %vm2498, %v6792, %v6793
  %v6795 = vrot.slane %v6550, 4
  %v6796 = vsel %vm2498, %v6793, %v6795
  %v6797 = vrot.slane %v6551, 4
  %v6798 = vrot.slane %v6552, 4
  %v6799 = vsel %vm2498, %v6797, %v6798
  %v6800 = vrot.slane %v6553, 4
  %v6801 = vsel %vm2498, %v6798, %v6800
  %v6802 = vrot.slane %v6554, 4
  %v6803 = vrot.slane %v6555, 4
  %v6804 = vsel %vm2498, %v6802, %v6803
  %v6805 = vrot.slane %v6556, 4
  %v6806 = vsel %vm2498, %v6803, %v6805
  %v6807 = vrot.slane %v6557, 4
  %v6808 = vrot.slane %v6558, 4
  %v6809 = vsel %vm2498, %v6807, %v6808
  %v6810 = vrot.slane %v6559, 4
  %v6811 = vsel %vm2498, %v6808, %v6810
  %v6812 = vrot.slane %v6560, 4
  %v6813 = vrot.slane %v6561, 4
  %v6814 = vsel %vm2498, %v6812, %v6813
  %v6815 = vrot.slane %v6562, 4
  %v6816 = vsel %vm2498, %v6813, %v6815
  %v6817 = vrot.slane %v6563, 4
  %v6818 = vrot.slane %v6564, 4
  %v6819 = vsel %vm2498, %v6817, %v6818
  %v6820 = vrot.slane %v6565, 4
  %v6821 = vsel %vm2498, %v6818, %v6820
  %v6822 = vrot.slane %v6566, 4
  %v6823 = vrot.slane %v6567, 4
  %v6824 = vsel %vm2498, %v6822, %v6823
  %v6825 = vrot.slane %v6568, 4
  %v6826 = vsel %vm2498, %v6823, %v6825
  %v6827 = vrot.slane %v6569, 4
  %v6828 = vrot.slane %v6570, 4
  %v6829 = vsel %vm2498, %v6827, %v6828
  %v6830 = vrot.slane %v6571, 4
  %v6831 = vsel %vm2498, %v6828, %v6830
  %v6832 = vrot.slane %v6572, 4
  %v6833 = vrot.slane %v6573, 4
  %v6834 = vsel %vm2498, %v6832, %v6833
  %v6835 = vrot.slane %v6574, 4
  %v6836 = vsel %vm2498, %v6833, %v6835
  %v6901 = vpack.c.bf16 %v6681, %v6679
  %v6902 = vpack.c.bf16 %v6686, %v6684
  %v6903 = vpack.c.bf16 %v6691, %v6689
  %v6904 = vpack.c.bf16 %v6696, %v6694
  %v6905 = vpack.c.bf16 %v6701, %v6699
  %v6906 = vpack.c.bf16 %v6706, %v6704
  %v6907 = vpack.c.bf16 %v6711, %v6709
  %v6908 = vpack.c.bf16 %v6716, %v6714
  %v6909 = vpack.c.bf16 %v6721, %v6719
  %v6910 = vpack.c.bf16 %v6726, %v6724
  %v6911 = vpack.c.bf16 %v6731, %v6729
  %v6912 = vpack.c.bf16 %v6736, %v6734
  %v6913 = vpack.c.bf16 %v6741, %v6739
  %v6914 = vpack.c.bf16 %v6746, %v6744
  %v6915 = vpack.c.bf16 %v6751, %v6749
  %v6916 = vpack.c.bf16 %v6756, %v6754
  %v6917 = vpack.c.bf16 %v6761, %v6759
  %v6918 = vpack.c.bf16 %v6766, %v6764
  %v6919 = vpack.c.bf16 %v6771, %v6769
  %v6920 = vpack.c.bf16 %v6776, %v6774
  %v6921 = vpack.c.bf16 %v6781, %v6779
  %v6922 = vpack.c.bf16 %v6786, %v6784
  %v6923 = vpack.c.bf16 %v6791, %v6789
  %v6924 = vpack.c.bf16 %v6796, %v6794
  %v6925 = vpack.c.bf16 %v6801, %v6799
  %v6926 = vpack.c.bf16 %v6806, %v6804
  %v6927 = vpack.c.bf16 %v6811, %v6809
  %v6928 = vpack.c.bf16 %v6816, %v6814
  %v6929 = vpack.c.bf16 %v6821, %v6819
  %v6930 = vpack.c.bf16 %v6826, %v6824
  %v6931 = vpack.c.bf16 %v6831, %v6829
  %v6932 = vpack.c.bf16 %v6836, %v6834
  %s6933 = scalar_lea.vmem %s3, 2
  %v6934 = vld [vmem:[%s6933] sm:$0x1]
  %v6936 = vsel %vm3299, %v6901, 0
  %v6939 = vsel %vm3299, %v6902, 0
  %v6942 = vsel %vm3299, %v6903, 0
  %v6945 = vsel %vm3299, %v6904, 0
  %v6948 = vsel %vm3299, %v6905, 0
  %v6951 = vsel %vm3299, %v6906, 0
  %v6954 = vsel %vm3299, %v6907, 0
  %v6957 = vsel %vm3299, %v6908, 0
  %v6960 = vsel %vm3299, %v6909, 0
  %v6963 = vsel %vm3299, %v6910, 0
  %v6966 = vsel %vm3299, %v6911, 0
  %v6969 = vsel %vm3299, %v6912, 0
  %v6972 = vsel %vm3299, %v6913, 0
  %v6975 = vsel %vm3299, %v6914, 0
  %v6978 = vsel %vm3299, %v6915, 0
  %v6981 = vsel %vm3299, %v6916, 0
  %v6984 = vsel %vm3299, %v6917, 0
  %v6987 = vsel %vm3299, %v6918, 0
  %v6990 = vsel %vm3299, %v6919, 0
  %v6993 = vsel %vm3299, %v6920, 0
  %v6996 = vsel %vm3299, %v6921, 0
  %v6999 = vsel %vm3299, %v6922, 0
  %v7002 = vsel %vm3299, %v6923, 0
  %v7005 = vsel %vm3299, %v6924, 0
  %v7008 = vsel %vm3299, %v6925, 0
  %v7011 = vsel %vm3299, %v6926, 0
  %v7014 = vsel %vm3299, %v6927, 0
  %v7017 = vsel %vm3299, %v6928, 0
  %v7020 = vsel %vm3299, %v6929, 0
  %v7023 = vsel %vm3299, %v6930, 0
  %v7026 = vsel %vm3299, %v6931, 0
  %v7029 = vsel %vm3299, %v6932, 0
  %v7032 = vsel %vm3396, %v6934, 0
  %7034 = vmatprep.subr.bf16.mxu0 0
  %7035 = vmatpush1.bf16.msra.mxu0 %v7032
  %7036 = vmatprep.subr.bf16.mxu0 0
  %7037 = vmatpush1.bf16.msra.mxu0 0
  %7038 = vmatprep.subr.bf16.mxu0 0
  %7039 = vmatpush1.bf16.msra.mxu0 0
  %7040 = vmatprep.subr.bf16.mxu0 0
  %7041 = vmatpush1.bf16.msra.mxu0 0
  %7042 = vmatprep.subr.bf16.mxu0 0
  %7043 = vmatpush1.bf16.msra.mxu0 0
  %7044 = vmatprep.subr.bf16.mxu0 0
  %7045 = vmatpush1.bf16.msra.mxu0 0
  %7046 = vmatprep.subr.bf16.mxu0 0
  %7047 = vmatpush1.bf16.msra.mxu0 0
  %7048 = vmatprep.subr.bf16.mxu0 0
  %7049 = vmatpush1.bf16.msra.mxu0 0
  %7050 = vmatprep.subr.bf16.mxu0 0
  %7051 = vmatpush1.bf16.msra.mxu0 0
  %7052 = vmatprep.subr.bf16.mxu0 0
  %7053 = vmatpush1.bf16.msra.mxu0 0
  %7054 = vmatprep.subr.bf16.mxu0 0
  %7055 = vmatpush1.bf16.msra.mxu0 0
  %7056 = vmatprep.subr.bf16.mxu0 0
  %7057 = vmatpush1.bf16.msra.mxu0 0
  %7058 = vmatprep.subr.bf16.mxu0 0
  %7059 = vmatpush1.bf16.msra.mxu0 0
  %7060 = vmatprep.subr.bf16.mxu0 0
  %7061 = vmatpush1.bf16.msra.mxu0 0
  %7062 = vmatprep.subr.bf16.mxu0 0
  %7063 = vmatpush1.bf16.msra.mxu0 0
  %7064 = vmatprep.subr.bf16.mxu0 0
  %7065 = vmatpush1.bf16.msra.mxu0 0
  %7066 = vmatprep.mubr.bf16.mxu0 0
  %7067 = vmatmul.mubr.bf16.gmra.mrb[0].mxu0 %v6936
  %v7068 = vpop.f32.mrb[0].mxu0
  %v7069 = vadd.f32 0.0, %v7068
  %v7070 = vpop.f32.mrb[0].mxu0
  %v7071 = vpop.f32.mrb[0].mxu0
  %v7072 = vadd.f32 0.0, %v7071
  %v7073 = vpop.f32.mrb[0].mxu0
  %7074 = vmatprep.mubr.bf16.mxu0 0
  %7075 = vmatmul.mubr.bf16.gmra.mrb[0].mxu0 %v6939
  %v7076 = vpop.f32.mrb[0].mxu0
  %v7077 = vadd.f32 0.0, %v7076
  %v7078 = vpop.f32.mrb[0].mxu0
  %v7079 = vpop.f32.mrb[0].mxu0
  %v7080 = vadd.f32 0.0, %v7079
  %v7081 = vpop.f32.mrb[0].mxu0
  %7082 = vmatprep.mubr.bf16.mxu0 0
  %7083 = vmatmul.mubr.bf16.gmra.mrb[0].mxu0 %v6942
  %v7084 = vpop.f32.mrb[0].mxu0
  %v7085 = vadd.f32 0.0, %v7084
  %v7086 = vpop.f32.mrb[0].mxu0
  %v7087 = vpop.f32.mrb[0].mxu0
  %v7088 = vadd.f32 0.0, %v7087
  %v7089 = vpop.f32.mrb[0].mxu0
  %7090 = vmatprep.mubr.bf16.mxu0 0
  %7091 = vmatmul.mubr.bf16.gmra.mrb[0].mxu0 %v6945
  %v7092 = vpop.f32.mrb[0].mxu0
  %v7093 = vadd.f32 0.0, %v7092
  %v7094 = vpop.f32.mrb[0].mxu0
  %v7095 = vpop.f32.mrb[0].mxu0
  %v7096 = vadd.f32 0.0, %v7095
  %v7097 = vpop.f32.mrb[0].mxu0
  %7098 = vmatprep.mubr.bf16.mxu0 0
  %7099 = vmatmul.mubr.bf16.gmra.mrb[0].mxu0 %v6948
  %v7100 = vpop.f32.mrb[0].mxu0
  %v7101 = vadd.f32 0.0, %v7100
  %v7102 = vpop.f32.mrb[0].mxu0
  %v7103 = vpop.f32.mrb[0].mxu0
  %v7104 = vadd.f32 0.0, %v7103
  %v7105 = vpop.f32.mrb[0].mxu0
  %7106 = vmatprep.mubr.bf16.mxu0 0
  %7107 = vmatmul.mubr.bf16.gmra.mrb[0].mxu0 %v6951
  %v7108 = vpop.f32.mrb[0].mxu0
  %v7109 = vadd.f32 0.0, %v7108
  %v7110 = vpop.f32.mrb[0].mxu0
  %v7111 = vpop.f32.mrb[0].mxu0
  %v7112 = vadd.f32 0.0, %v7111
  %v7113 = vpop.f32.mrb[0].mxu0
  %7114 = vmatprep.mubr.bf16.mxu0 0
  %7115 = vmatmul.mubr.bf16.gmra.mrb[0].mxu0 %v6954
  %v7116 = vpop.f32.mrb[0].mxu0
  %v7117 = vadd.f32 0.0, %v7116
  %v7118 = vpop.f32.mrb[0].mxu0
  %v7119 = vpop.f32.mrb[0].mxu0
  %v7120 = vadd.f32 0.0, %v7119
  %v7121 = vpop.f32.mrb[0].mxu0
  %7122 = vmatprep.mubr.bf16.mxu0 0
  %7123 = vmatmul.mubr.bf16.gmra.mrb[0].mxu0 %v6957
  %v7124 = vpop.f32.mrb[0].mxu0
  %v7125 = vadd.f32 0.0, %v7124
  %v7126 = vpop.f32.mrb[0].mxu0
  %v7127 = vpop.f32.mrb[0].mxu0
  %v7128 = vadd.f32 0.0, %v7127
  %v7129 = vpop.f32.mrb[0].mxu0
  %7130 = vmatprep.mubr.bf16.mxu0 0
  %7131 = vmatmul.mubr.bf16.gmra.mrb[0].mxu0 %v6960
  %v7132 = vpop.f32.mrb[0].mxu0
  %v7133 = vadd.f32 0.0, %v7132
  %v7134 = vpop.f32.mrb[0].mxu0
  %v7135 = vpop.f32.mrb[0].mxu0
  %v7136 = vadd.f32 0.0, %v7135
  %v7137 = vpop.f32.mrb[0].mxu0
  %7138 = vmatprep.mubr.bf16.mxu0 0
  %7139 = vmatmul.mubr.bf16.gmra.mrb[0].mxu0 %v6963
  %v7140 = vpop.f32.mrb[0].mxu0
  %v7141 = vadd.f32 0.0, %v7140
  %v7142 = vpop.f32.mrb[0].mxu0
  %v7143 = vpop.f32.mrb[0].mxu0
  %v7144 = vadd.f32 0.0, %v7143
  %v7145 = vpop.f32.mrb[0].mxu0
  %7146 = vmatprep.mubr.bf16.mxu0 0
  %7147 = vmatmul.mubr.bf16.gmra.mrb[0].mxu0 %v6966
  %v7148 = vpop.f32.mrb[0].mxu0
  %v7149 = vadd.f32 0.0, %v7148
  %v7150 = vpop.f32.mrb[0].mxu0
  %v7151 = vpop.f32.mrb[0].mxu0
  %v7152 = vadd.f32 0.0, %v7151
  %v7153 = vpop.f32.mrb[0].mxu0
  %7154 = vmatprep.mubr.bf16.mxu0 0
  %7155 = vmatmul.mubr.bf16.gmra.mrb[0].mxu0 %v6969
  %v7156 = vpop.f32.mrb[0].mxu0
  %v7157 = vadd.f32 0.0, %v7156
  %v7158 = vpop.f32.mrb[0].mxu0
  %v7159 = vpop.f32.mrb[0].mxu0
  %v7160 = vadd.f32 0.0, %v7159
  %v7161 = vpop.f32.mrb[0].mxu0
  %7162 = vmatprep.mubr.bf16.mxu0 0
  %7163 = vmatmul.mubr.bf16.gmra.mrb[0].mxu0 %v6972
  %v7164 = vpop.f32.mrb[0].mxu0
  %v7165 = vadd.f32 0.0, %v7164
  %v7166 = vpop.f32.mrb[0].mxu0
  %v7167 = vpop.f32.mrb[0].mxu0
  %v7168 = vadd.f32 0.0, %v7167
  %v7169 = vpop.f32.mrb[0].mxu0
  %7170 = vmatprep.mubr.bf16.mxu0 0
  %7171 = vmatmul.mubr.bf16.gmra.mrb[0].mxu0 %v6975
  %v7172 = vpop.f32.mrb[0].mxu0
  %v7173 = vadd.f32 0.0, %v7172
  %v7174 = vpop.f32.mrb[0].mxu0
  %v7175 = vpop.f32.mrb[0].mxu0
  %v7176 = vadd.f32 0.0, %v7175
  %v7177 = vpop.f32.mrb[0].mxu0
  %7178 = vmatprep.mubr.bf16.mxu0 0
  %7179 = vmatmul.mubr.bf16.gmra.mrb[0].mxu0 %v6978
  %v7180 = vpop.f32.mrb[0].mxu0
  %v7181 = vadd.f32 0.0, %v7180
  %v7182 = vpop.f32.mrb[0].mxu0
  %v7183 = vpop.f32.mrb[0].mxu0
  %v7184 = vadd.f32 0.0, %v7183
  %v7185 = vpop.f32.mrb[0].mxu0
  %7186 = vmatprep.mubr.bf16.mxu0 0
  %7187 = vmatmul.mubr.bf16.gmra.mrb[0].mxu0 %v6981
  %v7188 = vpop.f32.mrb[0].mxu0
  %v7189 = vadd.f32 0.0, %v7188
  %v7190 = vpop.f32.mrb[0].mxu0
  %v7191 = vpop.f32.mrb[0].mxu0
  %v7192 = vadd.f32 0.0, %v7191
  %v7193 = vpop.f32.mrb[0].mxu0
  %7194 = vmatprep.mubr.bf16.mxu0 0
  %7195 = vmatmul.mubr.bf16.gmra.mrb[0].mxu0 %v6984
  %v7196 = vpop.f32.mrb[0].mxu0
  %v7197 = vadd.f32 0.0, %v7196
  %v7198 = vpop.f32.mrb[0].mxu0
  %v7199 = vpop.f32.mrb[0].mxu0
  %v7200 = vadd.f32 0.0, %v7199
  %v7201 = vpop.f32.mrb[0].mxu0
  %7202 = vmatprep.mubr.bf16.mxu0 0
  %7203 = vmatmul.mubr.bf16.gmra.mrb[0].mxu0 %v6987
  %v7204 = vpop.f32.mrb[0].mxu0
  %v7205 = vadd.f32 0.0, %v7204
  %v7206 = vpop.f32.mrb[0].mxu0
  %v7207 = vpop.f32.mrb[0].mxu0
  %v7208 = vadd.f32 0.0, %v7207
  %v7209 = vpop.f32.mrb[0].mxu0
  %7210 = vmatprep.mubr.bf16.mxu0 0
  %7211 = vmatmul.mubr.bf16.gmra.mrb[0].mxu0 %v6990
  %v7212 = vpop.f32.mrb[0].mxu0
  %v7213 = vadd.f32 0.0, %v7212
  %v7214 = vpop.f32.mrb[0].mxu0
  %v7215 = vpop.f32.mrb[0].mxu0
  %v7216 = vadd.f32 0.0, %v7215
  %v7217 = vpop.f32.mrb[0].mxu0
  %7218 = vmatprep.mubr.bf16.mxu0 0
  %7219 = vmatmul.mubr.bf16.gmra.mrb[0].mxu0 %v6993
  %v7220 = vpop.f32.mrb[0].mxu0
  %v7221 = vadd.f32 0.0, %v7220
  %v7222 = vpop.f32.mrb[0].mxu0
  %v7223 = vpop.f32.mrb[0].mxu0
  %v7224 = vadd.f32 0.0, %v7223
  %v7225 = vpop.f32.mrb[0].mxu0
  %7226 = vmatprep.mubr.bf16.mxu0 0
  %7227 = vmatmul.mubr.bf16.gmra.mrb[0].mxu0 %v6996
  %v7228 = vpop.f32.mrb[0].mxu0
  %v7229 = vadd.f32 0.0, %v7228
  %v7230 = vpop.f32.mrb[0].mxu0
  %v7231 = vpop.f32.mrb[0].mxu0
  %v7232 = vadd.f32 0.0, %v7231
  %v7233 = vpop.f32.mrb[0].mxu0
  %7234 = vmatprep.mubr.bf16.mxu0 0
  %7235 = vmatmul.mubr.bf16.gmra.mrb[0].mxu0 %v6999
  %v7236 = vpop.f32.mrb[0].mxu0
  %v7237 = vadd.f32 0.0, %v7236
  %v7238 = vpop.f32.mrb[0].mxu0
  %v7239 = vpop.f32.mrb[0].mxu0
  %v7240 = vadd.f32 0.0, %v7239
  %v7241 = vpop.f32.mrb[0].mxu0
  %7242 = vmatprep.mubr.bf16.mxu0 0
  %7243 = vmatmul.mubr.bf16.gmra.mrb[0].mxu0 %v7002
  %v7244 = vpop.f32.mrb[0].mxu0
  %v7245 = vadd.f32 0.0, %v7244
  %v7246 = vpop.f32.mrb[0].mxu0
  %v7247 = vpop.f32.mrb[0].mxu0
  %v7248 = vadd.f32 0.0, %v7247
  %v7249 = vpop.f32.mrb[0].mxu0
  %7250 = vmatprep.mubr.bf16.mxu0 0
  %7251 = vmatmul.mubr.bf16.gmra.mrb[0].mxu0 %v7005
  %v7252 = vpop.f32.mrb[0].mxu0
  %v7253 = vadd.f32 0.0, %v7252
  %v7254 = vpop.f32.mrb[0].mxu0
  %v7255 = vpop.f32.mrb[0].mxu0
  %v7256 = vadd.f32 0.0, %v7255
  %v7257 = vpop.f32.mrb[0].mxu0
  %7258 = vmatprep.mubr.bf16.mxu0 0
  %7259 = vmatmul.mubr.bf16.gmra.mrb[0].mxu0 %v7008
  %v7260 = vpop.f32.mrb[0].mxu0
  %v7261 = vadd.f32 0.0, %v7260
  %v7262 = vpop.f32.mrb[0].mxu0
  %v7263 = vpop.f32.mrb[0].mxu0
  %v7264 = vadd.f32 0.0, %v7263
  %v7265 = vpop.f32.mrb[0].mxu0
  %7266 = vmatprep.mubr.bf16.mxu0 0
  %7267 = vmatmul.mubr.bf16.gmra.mrb[0].mxu0 %v7011
  %v7268 = vpop.f32.mrb[0].mxu0
  %v7269 = vadd.f32 0.0, %v7268
  %v7270 = vpop.f32.mrb[0].mxu0
  %v7271 = vpop.f32.mrb[0].mxu0
  %v7272 = vadd.f32 0.0, %v7271
  %v7273 = vpop.f32.mrb[0].mxu0
  %7274 = vmatprep.mubr.bf16.mxu0 0
  %7275 = vmatmul.mubr.bf16.gmra.mrb[0].mxu0 %v7014
  %v7276 = vpop.f32.mrb[0].mxu0
  %v7277 = vadd.f32 0.0, %v7276
  %v7278 = vpop.f32.mrb[0].mxu0
  %v7279 = vpop.f32.mrb[0].mxu0
  %v7280 = vadd.f32 0.0, %v7279
  %v7281 = vpop.f32.mrb[0].mxu0
  %7282 = vmatprep.mubr.bf16.mxu0 0
  %7283 = vmatmul.mubr.bf16.gmra.mrb[0].mxu0 %v7017
  %v7284 = vpop.f32.mrb[0].mxu0
  %v7285 = vadd.f32 0.0, %v7284
  %v7286 = vpop.f32.mrb[0].mxu0
  %v7287 = vpop.f32.mrb[0].mxu0
  %v7288 = vadd.f32 0.0, %v7287
  %v7289 = vpop.f32.mrb[0].mxu0
  %7290 = vmatprep.mubr.bf16.mxu0 0
  %7291 = vmatmul.mubr.bf16.gmra.mrb[0].mxu0 %v7020
  %v7292 = vpop.f32.mrb[0].mxu0
  %v7293 = vadd.f32 0.0, %v7292
  %v7294 = vpop.f32.mrb[0].mxu0
  %v7295 = vpop.f32.mrb[0].mxu0
  %v7296 = vadd.f32 0.0, %v7295
  %v7297 = vpop.f32.mrb[0].mxu0
  %7298 = vmatprep.mubr.bf16.mxu0 0
  %7299 = vmatmul.mubr.bf16.gmra.mrb[0].mxu0 %v7023
  %v7300 = vpop.f32.mrb[0].mxu0
  %v7301 = vadd.f32 0.0, %v7300
  %v7302 = vpop.f32.mrb[0].mxu0
  %v7303 = vpop.f32.mrb[0].mxu0
  %v7304 = vadd.f32 0.0, %v7303
  %v7305 = vpop.f32.mrb[0].mxu0
  %7306 = vmatprep.mubr.bf16.mxu0 0
  %7307 = vmatmul.mubr.bf16.gmra.mrb[0].mxu0 %v7026
  %v7308 = vpop.f32.mrb[0].mxu0
  %v7309 = vadd.f32 0.0, %v7308
  %v7310 = vpop.f32.mrb[0].mxu0
  %v7311 = vpop.f32.mrb[0].mxu0
  %v7312 = vadd.f32 0.0, %v7311
  %v7313 = vpop.f32.mrb[0].mxu0
  %7314 = vmatprep.mubr.bf16.mxu0 0
  %7315 = vmatmul.mubr.bf16.gmra.mrb[0].mxu0 %v7029
  %v7316 = vpop.f32.mrb[0].mxu0
  %v7317 = vadd.f32 0.0, %v7316
  %v7318 = vpop.f32.mrb[0].mxu0
  %v7319 = vpop.f32.mrb[0].mxu0
  %v7320 = vadd.f32 0.0, %v7319
  %v7321 = vpop.f32.mrb[0].mxu0
  %7322 = vdwg.mxu0
  %v7323 = vadd.f32 %v3823, %v7069
  %v7324 = vadd.f32 %v3826, %v7072
  %v7325 = vadd.f32 %v3831, %v7077
  %v7326 = vadd.f32 %v3834, %v7080
  %v7327 = vadd.f32 %v3839, %v7085
  %v7328 = vadd.f32 %v3842, %v7088
  %v7329 = vadd.f32 %v3847, %v7093
  %v7330 = vadd.f32 %v3850, %v7096
  %v7331 = vadd.f32 %v3855, %v7101
  %v7332 = vadd.f32 %v3858, %v7104
  %v7333 = vadd.f32 %v3863, %v7109
  %v7334 = vadd.f32 %v3866, %v7112
  %v7335 = vadd.f32 %v3871, %v7117
  %v7336 = vadd.f32 %v3874, %v7120
  %v7337 = vadd.f32 %v3879, %v7125
  %v7338 = vadd.f32 %v3882, %v7128
  %v7339 = vadd.f32 %v3887, %v7133
  %v7340 = vadd.f32 %v3890, %v7136
  %v7341 = vadd.f32 %v3895, %v7141
  %v7342 = vadd.f32 %v3898, %v7144
  %v7343 = vadd.f32 %v3903, %v7149
  %v7344 = vadd.f32 %v3906, %v7152
  %v7345 = vadd.f32 %v3911, %v7157
  %v7346 = vadd.f32 %v3914, %v7160
  %v7347 = vadd.f32 %v3919, %v7165
  %v7348 = vadd.f32 %v3922, %v7168
  %v7349 = vadd.f32 %v3927, %v7173
  %v7350 = vadd.f32 %v3930, %v7176
  %v7351 = vadd.f32 %v3935, %v7181
  %v7352 = vadd.f32 %v3938, %v7184
  %v7353 = vadd.f32 %v3943, %v7189
  %v7354 = vadd.f32 %v3946, %v7192
  %v7355 = vadd.f32 %v3951, %v7197
  %v7356 = vadd.f32 %v3954, %v7200
  %v7357 = vadd.f32 %v3959, %v7205
  %v7358 = vadd.f32 %v3962, %v7208
  %v7359 = vadd.f32 %v3967, %v7213
  %v7360 = vadd.f32 %v3970, %v7216
  %v7361 = vadd.f32 %v3975, %v7221
  %v7362 = vadd.f32 %v3978, %v7224
  %v7363 = vadd.f32 %v3983, %v7229
  %v7364 = vadd.f32 %v3986, %v7232
  %v7365 = vadd.f32 %v3991, %v7237
  %v7366 = vadd.f32 %v3994, %v7240
  %v7367 = vadd.f32 %v3999, %v7245
  %v7368 = vadd.f32 %v4002, %v7248
  %v7369 = vadd.f32 %v4007, %v7253
  %v7370 = vadd.f32 %v4010, %v7256
  %v7371 = vadd.f32 %v4015, %v7261
  %v7372 = vadd.f32 %v4018, %v7264
  %v7373 = vadd.f32 %v4023, %v7269
  %v7374 = vadd.f32 %v4026, %v7272
  %v7375 = vadd.f32 %v4031, %v7277
  %v7376 = vadd.f32 %v4034, %v7280
  %v7377 = vadd.f32 %v4039, %v7285
  %v7378 = vadd.f32 %v4042, %v7288
  %v7379 = vadd.f32 %v4047, %v7293
  %v7380 = vadd.f32 %v4050, %v7296
  %v7381 = vadd.f32 %v4055, %v7301
  %v7382 = vadd.f32 %v4058, %v7304
  %v7383 = vadd.f32 %v4063, %v7309
  %v7384 = vadd.f32 %v4066, %v7312
  %v7385 = vadd.f32 %v4071, %v7317
  %v7386 = vadd.f32 %v4074, %v7320
  %v7387 = vmax.f32 %v6461, %v6464
  %v7388 = vmax.f32 %v6462, %v6465
  %v7389 = vmax.f32 %v6463, %v6466
  %v7390 = vmax.f32 %v6464, %v6467
  %v7391 = vmax.f32 %v6465, %v6468
  %v7392 = vmax.f32 %v6466, %v6469
  %v7393 = vmax.f32 %v6467, %v6470
  %v7394 = vmax.f32 %v6468, %v6471
  %v7395 = vmax.f32 %v6469, %v6472
  %v7396 = vmax.f32 %v6470, %v6473
  %v7397 = vmax.f32 %v6471, %v6474
  %v7398 = vmax.f32 %v6472, %v6475
  %v7399 = vmax.f32 %v6473, %v6476
  %v7400 = vmax.f32 %v6474, %v6477
  %v7401 = vmax.f32 %v6475, %v6478
  %v7402 = vmax.f32 %v6476, %v6479
  %v7403 = vmax.f32 %v6477, %v6480
  %v7404 = vmax.f32 %v6478, %v6481
  %v7405 = vmax.f32 %v6479, %v6482
  %v7406 = vmax.f32 %v6480, %v6483
  %v7407 = vmax.f32 %v6481, %v6484
  %v7408 = vmax.f32 %v6482, %v6485
  %v7409 = vmax.f32 %v6483, %v6486
  %v7410 = vmax.f32 %v6484, %v6487
  %v7411 = vmax.f32 %v6485, %v6488
  %v7412 = vmax.f32 %v6486, %v6489
  %v7413 = vmax.f32 %v6487, %v6490
  %v7414 = vmax.f32 %v6488, %v6491
  %v7415 = vmax.f32 %v6489, %v6492
  %v7416 = vmax.f32 %v6490, %v6493
  %v7417 = vmax.f32 %v6491, %v6494
  %v7418 = vmax.f32 %v6492, %v6495
  %v7419 = vmax.f32 %v6493, %v6496
  %v7420 = vmax.f32 %v6494, %v6497
  %v7421 = vmax.f32 %v6495, %v6498
  %v7422 = vmax.f32 %v6496, %v6499
  %v7423 = vmax.f32 %v6497, %v6500
  %v7424 = vmax.f32 %v6498, %v6501
  %v7425 = vmax.f32 %v6499, %v6502
  %v7426 = vmax.f32 %v6500, %v6503
  %v7427 = vmax.f32 %v6501, %v6504
  %v7428 = vmax.f32 %v6502, %v6505
  %v7429 = vmax.f32 %v6503, %v6506
  %v7430 = vmax.f32 %v6504, %v6507
  %v7431 = vmax.f32 %v6505, %v6508
  %v7432 = vmax.f32 %v6506, %v6509
  %v7433 = vmax.f32 %v6507, %v6510
  %v7434 = vmax.f32 %v6508, %v6511
  %v7435 = vmax.f32 %v6521, %v6524
  %v7436 = vmax.f32 %v6522, %v6525
  %v7437 = vmax.f32 %v6523, %v6526
  %v7438 = vmax.f32 %v6524, %v6527
  %v7439 = vmax.f32 %v6525, %v6528
  %v7440 = vmax.f32 %v6526, %v6529
  %v7441 = vmax.f32 %v6527, %v6530
  %v7442 = vmax.f32 %v6528, %v6531
  %v7443 = vmax.f32 %v6529, %v6532
  %v7444 = vmax.f32 %v6530, %v6533
  %v7445 = vmax.f32 %v6531, %v6534
  %v7446 = vmax.f32 %v6532, %v6535
  %v7447 = vmax.f32 %v6533, %v6536
  %v7448 = vmax.f32 %v6534, %v6537
  %v7449 = vmax.f32 %v6535, %v6538
  %v7450 = vmax.f32 %v6536, %v6539
  %v7451 = vmax.f32 %v6537, %v6540
  %v7452 = vmax.f32 %v6538, %v6541
  %v7453 = vmax.f32 %v6539, %v6542
  %v7454 = vmax.f32 %v6540, %v6543
  %v7455 = vmax.f32 %v6541, %v6544
  %v7456 = vmax.f32 %v6542, %v6545
  %v7457 = vmax.f32 %v6543, %v6546
  %v7458 = vmax.f32 %v6544, %v6547
  %v7459 = vmax.f32 %v6545, %v6548
  %v7460 = vmax.f32 %v6546, %v6549
  %v7461 = vmax.f32 %v6547, %v6550
  %v7462 = vmax.f32 %v6548, %v6551
  %v7463 = vmax.f32 %v6549, %v6552
  %v7464 = vmax.f32 %v6550, %v6553
  %v7465 = vmax.f32 %v6551, %v6554
  %v7466 = vmax.f32 %v6552, %v6555
  %v7467 = vmax.f32 %v6553, %v6556
  %v7468 = vmax.f32 %v6554, %v6557
  %v7469 = vmax.f32 %v6555, %v6558
  %v7470 = vmax.f32 %v6556, %v6559
  %v7471 = vmax.f32 %v6557, %v6560
  %v7472 = vmax.f32 %v6558, %v6561
  %v7473 = vmax.f32 %v6559, %v6562
  %v7474 = vmax.f32 %v6560, %v6563
  %v7475 = vmax.f32 %v6561, %v6564
  %v7476 = vmax.f32 %v6562, %v6565
  %v7477 = vmax.f32 %v6563, %v6566
  %v7478 = vmax.f32 %v6564, %v6567
  %v7479 = vmax.f32 %v6565, %v6568
  %v7480 = vmax.f32 %v6566, %v6569
  %v7481 = vmax.f32 %v6567, %v6570
  %v7482 = vmax.f32 %v6568, %v6571
  %v7483 = vmax.f32 %v7387, %v6467
  %v7484 = vmax.f32 %v7388, %v6468
  %v7485 = vmax.f32 %v7389, %v6469
  %v7486 = vmax.f32 %v7390, %v6470
  %v7487 = vmax.f32 %v7391, %v6471
  %v7488 = vmax.f32 %v7392, %v6472
  %v7489 = vmax.f32 %v7393, %v6473
  %v7490 = vmax.f32 %v7394, %v6474
  %v7491 = vmax.f32 %v7395, %v6475
  %v7492 = vmax.f32 %v7396, %v6476
  %v7493 = vmax.f32 %v7397, %v6477
  %v7494 = vmax.f32 %v7398, %v6478
  %v7495 = vmax.f32 %v7399, %v6479
  %v7496 = vmax.f32 %v7400, %v6480
  %v7497 = vmax.f32 %v7401, %v6481
  %v7498 = vmax.f32 %v7402, %v6482
  %v7499 = vmax.f32 %v7403, %v6483
  %v7500 = vmax.f32 %v7404, %v6484
  %v7501 = vmax.f32 %v7405, %v6485
  %v7502 = vmax.f32 %v7406, %v6486
  %v7503 = vmax.f32 %v7407, %v6487
  %v7504 = vmax.f32 %v7408, %v6488
  %v7505 = vmax.f32 %v7409, %v6489
  %v7506 = vmax.f32 %v7410, %v6490
  %v7507 = vmax.f32 %v7411, %v6491
  %v7508 = vmax.f32 %v7412, %v6492
  %v7509 = vmax.f32 %v7413, %v6493
  %v7510 = vmax.f32 %v7414, %v6494
  %v7511 = vmax.f32 %v7415, %v6495
  %v7512 = vmax.f32 %v7416, %v6496
  %v7513 = vmax.f32 %v7417, %v6497
  %v7514 = vmax.f32 %v7418, %v6498
  %v7515 = vmax.f32 %v7419, %v6499
  %v7516 = vmax.f32 %v7420, %v6500
  %v7517 = vmax.f32 %v7421, %v6501
  %v7518 = vmax.f32 %v7422, %v6502
  %v7519 = vmax.f32 %v7423, %v6503
  %v7520 = vmax.f32 %v7424, %v6504
  %v7521 = vmax.f32 %v7425, %v6505
  %v7522 = vmax.f32 %v7426, %v6506
  %v7523 = vmax.f32 %v7427, %v6507
  %v7524 = vmax.f32 %v7428, %v6508
  %v7525 = vmax.f32 %v7429, %v6509
  %v7526 = vmax.f32 %v7430, %v6510
  %v7527 = vmax.f32 %v7431, %v6511
  %v7528 = vmax.f32 %v7432, %v6512
  %v7529 = vmax.f32 %v7433, %v6513
  %v7530 = vmax.f32 %v7434, %v6514
  %v7531 = vmax.f32 %v7435, %v6527
  %v7532 = vmax.f32 %v7436, %v6528
  %v7533 = vmax.f32 %v7437, %v6529
  %v7534 = vmax.f32 %v7438, %v6530
  %v7535 = vmax.f32 %v7439, %v6531
  %v7536 = vmax.f32 %v7440, %v6532
  %v7537 = vmax.f32 %v7441, %v6533
  %v7538 = vmax.f32 %v7442, %v6534
  %v7539 = vmax.f32 %v7443, %v6535
  %v7540 = vmax.f32 %v7444, %v6536
  %v7541 = vmax.f32 %v7445, %v6537
  %v7542 = vmax.f32 %v7446, %v6538
  %v7543 = vmax.f32 %v7447, %v6539
  %v7544 = vmax.f32 %v7448, %v6540
  %v7545 = vmax.f32 %v7449, %v6541
  %v7546 = vmax.f32 %v7450, %v6542
  %v7547 = vmax.f32 %v7451, %v6543
  %v7548 = vmax.f32 %v7452, %v6544
  %v7549 = vmax.f32 %v7453, %v6545
  %v7550 = vmax.f32 %v7454, %v6546
  %v7551 = vmax.f32 %v7455, %v6547
  %v7552 = vmax.f32 %v7456, %v6548
  %v7553 = vmax.f32 %v7457, %v6549
  %v7554 = vmax.f32 %v7458, %v6550
  %v7555 = vmax.f32 %v7459, %v6551
  %v7556 = vmax.f32 %v7460, %v6552
  %v7557 = vmax.f32 %v7461, %v6553
  %v7558 = vmax.f32 %v7462, %v6554
  %v7559 = vmax.f32 %v7463, %v6555
  %v7560 = vmax.f32 %v7464, %v6556
  %v7561 = vmax.f32 %v7465, %v6557
  %v7562 = vmax.f32 %v7466, %v6558
  %v7563 = vmax.f32 %v7467, %v6559
  %v7564 = vmax.f32 %v7468, %v6560
  %v7565 = vmax.f32 %v7469, %v6561
  %v7566 = vmax.f32 %v7470, %v6562
  %v7567 = vmax.f32 %v7471, %v6563
  %v7568 = vmax.f32 %v7472, %v6564
  %v7569 = vmax.f32 %v7473, %v6565
  %v7570 = vmax.f32 %v7474, %v6566
  %v7571 = vmax.f32 %v7475, %v6567
  %v7572 = vmax.f32 %v7476, %v6568
  %v7573 = vmax.f32 %v7477, %v6569
  %v7574 = vmax.f32 %v7478, %v6570
  %v7575 = vmax.f32 %v7479, %v6571
  %v7576 = vmax.f32 %v7480, %v6572
  %v7577 = vmax.f32 %v7481, %v6573
  %v7578 = vmax.f32 %v7482, %v6574
  %v7579 = vmax.f32 %v7483, %v6470
  %v7580 = vmax.f32 %v7484, %v6471
  %v7581 = vmax.f32 %v7485, %v6472
  %v7582 = vmax.f32 %v7486, %v6473
  %v7583 = vmax.f32 %v7487, %v6474
  %v7584 = vmax.f32 %v7488, %v6475
  %v7585 = vmax.f32 %v7489, %v6476
  %v7586 = vmax.f32 %v7490, %v6477
  %v7587 = vmax.f32 %v7491, %v6478
  %v7588 = vmax.f32 %v7492, %v6479
  %v7589 = vmax.f32 %v7493, %v6480
  %v7590 = vmax.f32 %v7494, %v6481
  %v7591 = vmax.f32 %v7495, %v6482
  %v7592 = vmax.f32 %v7496, %v6483
  %v7593 = vmax.f32 %v7497, %v6484
  %v7594 = vmax.f32 %v7498, %v6485
  %v7595 = vmax.f32 %v7499, %v6486
  %v7596 = vmax.f32 %v7500, %v6487
  %v7597 = vmax.f32 %v7501, %v6488
  %v7598 = vmax.f32 %v7502, %v6489
  %v7599 = vmax.f32 %v7503, %v6490
  %v7600 = vmax.f32 %v7504, %v6491
  %v7601 = vmax.f32 %v7505, %v6492
  %v7602 = vmax.f32 %v7506, %v6493
  %v7603 = vmax.f32 %v7507, %v6494
  %v7604 = vmax.f32 %v7508, %v6495
  %v7605 = vmax.f32 %v7509, %v6496
  %v7606 = vmax.f32 %v7510, %v6497
  %v7607 = vmax.f32 %v7511, %v6498
  %v7608 = vmax.f32 %v7512, %v6499
  %v7609 = vmax.f32 %v7513, %v6500
  %v7610 = vmax.f32 %v7514, %v6501
  %v7611 = vmax.f32 %v7515, %v6502
  %v7612 = vmax.f32 %v7516, %v6503
  %v7613 = vmax.f32 %v7517, %v6504
  %v7614 = vmax.f32 %v7518, %v6505
  %v7615 = vmax.f32 %v7519, %v6506
  %v7616 = vmax.f32 %v7520, %v6507
  %v7617 = vmax.f32 %v7521, %v6508
  %v7618 = vmax.f32 %v7522, %v6509
  %v7619 = vmax.f32 %v7523, %v6510
  %v7620 = vmax.f32 %v7524, %v6511
  %v7621 = vmax.f32 %v7525, %v6512
  %v7622 = vmax.f32 %v7526, %v6513
  %v7623 = vmax.f32 %v7527, %v6514
  %v7624 = vmax.f32 %v7528, %v6515
  %v7625 = vmax.f32 %v7529, %v6516
  %v7626 = vmax.f32 %v7530, %v6517
  %v7627 = vmax.f32 %v7531, %v6530
  %v7628 = vmax.f32 %v7532, %v6531
  %v7629 = vmax.f32 %v7533, %v6532
  %v7630 = vmax.f32 %v7534, %v6533
  %v7631 = vmax.f32 %v7535, %v6534
  %v7632 = vmax.f32 %v7536, %v6535
  %v7633 = vmax.f32 %v7537, %v6536
  %v7634 = vmax.f32 %v7538, %v6537
  %v7635 = vmax.f32 %v7539, %v6538
  %v7636 = vmax.f32 %v7540, %v6539
  %v7637 = vmax.f32 %v7541, %v6540
  %v7638 = vmax.f32 %v7542, %v6541
  %v7639 = vmax.f32 %v7543, %v6542
  %v7640 = vmax.f32 %v7544, %v6543
  %v7641 = vmax.f32 %v7545, %v6544
  %v7642 = vmax.f32 %v7546, %v6545
  %v7643 = vmax.f32 %v7547, %v6546
  %v7644 = vmax.f32 %v7548, %v6547
  %v7645 = vmax.f32 %v7549, %v6548
  %v7646 = vmax.f32 %v7550, %v6549
  %v7647 = vmax.f32 %v7551, %v6550
  %v7648 = vmax.f32 %v7552, %v6551
  %v7649 = vmax.f32 %v7553, %v6552
  %v7650 = vmax.f32 %v7554, %v6553
  %v7651 = vmax.f32 %v7555, %v6554
  %v7652 = vmax.f32 %v7556, %v6555
  %v7653 = vmax.f32 %v7557, %v6556
  %v7654 = vmax.f32 %v7558, %v6557
  %v7655 = vmax.f32 %v7559, %v6558
  %v7656 = vmax.f32 %v7560, %v6559
  %v7657 = vmax.f32 %v7561, %v6560
  %v7658 = vmax.f32 %v7562, %v6561
  %v7659 = vmax.f32 %v7563, %v6562
  %v7660 = vmax.f32 %v7564, %v6563
  %v7661 = vmax.f32 %v7565, %v6564
  %v7662 = vmax.f32 %v7566, %v6565
  %v7663 = vmax.f32 %v7567, %v6566
  %v7664 = vmax.f32 %v7568, %v6567
  %v7665 = vmax.f32 %v7569, %v6568
  %v7666 = vmax.f32 %v7570, %v6569
  %v7667 = vmax.f32 %v7571, %v6570
  %v7668 = vmax.f32 %v7572, %v6571
  %v7669 = vmax.f32 %v7573, %v6572
  %v7670 = vmax.f32 %v7574, %v6573
  %v7671 = vmax.f32 %v7575, %v6574
  %v7672 = vmax.f32 %v7576, %v6575
  %v7673 = vmax.f32 %v7577, %v6576
  %v7674 = vmax.f32 %v7578, %v6577
  %v7675 = vmax.f32 %v7579, %v6473
  %v7676 = vmax.f32 %v7580, %v6474
  %v7677 = vmax.f32 %v7581, %v6475
  %v7678 = vmax.f32 %v7582, %v6476
  %v7679 = vmax.f32 %v7583, %v6477
  %v7680 = vmax.f32 %v7584, %v6478
  %v7681 = vmax.f32 %v7585, %v6479
  %v7682 = vmax.f32 %v7586, %v6480
  %v7683 = vmax.f32 %v7587, %v6481
  %v7684 = vmax.f32 %v7588, %v6482
  %v7685 = vmax.f32 %v7589, %v6483
  %v7686 = vmax.f32 %v7590, %v6484
  %v7687 = vmax.f32 %v7591, %v6485
  %v7688 = vmax.f32 %v7592, %v6486
  %v7689 = vmax.f32 %v7593, %v6487
  %v7690 = vmax.f32 %v7594, %v6488
  %v7691 = vmax.f32 %v7595, %v6489
  %v7692 = vmax.f32 %v7596, %v6490
  %v7693 = vmax.f32 %v7597, %v6491
  %v7694 = vmax.f32 %v7598, %v6492
  %v7695 = vmax.f32 %v7599, %v6493
  %v7696 = vmax.f32 %v7600, %v6494
  %v7697 = vmax.f32 %v7601, %v6495
  %v7698 = vmax.f32 %v7602, %v6496
  %v7699 = vmax.f32 %v7603, %v6497
  %v7700 = vmax.f32 %v7604, %v6498
  %v7701 = vmax.f32 %v7605, %v6499
  %v7702 = vmax.f32 %v7606, %v6500
  %v7703 = vmax.f32 %v7607, %v6501
  %v7704 = vmax.f32 %v7608, %v6502
  %v7705 = vmax.f32 %v7609, %v6503
  %v7706 = vmax.f32 %v7610, %v6504
  %v7707 = vmax.f32 %v7611, %v6505
  %v7708 = vmax.f32 %v7612, %v6506
  %v7709 = vmax.f32 %v7613, %v6507
  %v7710 = vmax.f32 %v7614, %v6508
  %v7711 = vmax.f32 %v7615, %v6509
  %v7712 = vmax.f32 %v7616, %v6510
  %v7713 = vmax.f32 %v7617, %v6511
  %v7714 = vmax.f32 %v7618, %v6512
  %v7715 = vmax.f32 %v7619, %v6513
  %v7716 = vmax.f32 %v7620, %v6514
  %v7717 = vmax.f32 %v7621, %v6515
  %v7718 = vmax.f32 %v7622, %v6516
  %v7719 = vmax.f32 %v7623, %v6517
  %v7720 = vmax.f32 %v7624, %v6518
  %v7721 = vmax.f32 %v7625, %v6519
  %v7722 = vmax.f32 %v7626, %v6520
  %v7723 = vmax.f32 %v7627, %v6533
  %v7724 = vmax.f32 %v7628, %v6534
  %v7725 = vmax.f32 %v7629, %v6535
  %v7726 = vmax.f32 %v7630, %v6536
  %v7727 = vmax.f32 %v7631, %v6537
  %v7728 = vmax.f32 %v7632, %v6538
  %v7729 = vmax.f32 %v7633, %v6539
  %v7730 = vmax.f32 %v7634, %v6540
  %v7731 = vmax.f32 %v7635, %v6541
  %v7732 = vmax.f32 %v7636, %v6542
  %v7733 = vmax.f32 %v7637, %v6543
  %v7734 = vmax.f32 %v7638, %v6544
  %v7735 = vmax.f32 %v7639, %v6545
  %v7736 = vmax.f32 %v7640, %v6546
  %v7737 = vmax.f32 %v7641, %v6547
  %v7738 = vmax.f32 %v7642, %v6548
  %v7739 = vmax.f32 %v7643, %v6549
  %v7740 = vmax.f32 %v7644, %v6550
  %v7741 = vmax.f32 %v7645, %v6551
  %v7742 = vmax.f32 %v7646, %v6552
  %v7743 = vmax.f32 %v7647, %v6553
  %v7744 = vmax.f32 %v7648, %v6554
  %v7745 = vmax.f32 %v7649, %v6555
  %v7746 = vmax.f32 %v7650, %v6556
  %v7747 = vmax.f32 %v7651, %v6557
  %v7748 = vmax.f32 %v7652, %v6558
  %v7749 = vmax.f32 %v7653, %v6559
  %v7750 = vmax.f32 %v7654, %v6560
  %v7751 = vmax.f32 %v7655, %v6561
  %v7752 = vmax.f32 %v7656, %v6562
  %v7753 = vmax.f32 %v7657, %v6563
  %v7754 = vmax.f32 %v7658, %v6564
  %v7755 = vmax.f32 %v7659, %v6565
  %v7756 = vmax.f32 %v7660, %v6566
  %v7757 = vmax.f32 %v7661, %v6567
  %v7758 = vmax.f32 %v7662, %v6568
  %v7759 = vmax.f32 %v7663, %v6569
  %v7760 = vmax.f32 %v7664, %v6570
  %v7761 = vmax.f32 %v7665, %v6571
  %v7762 = vmax.f32 %v7666, %v6572
  %v7763 = vmax.f32 %v7667, %v6573
  %v7764 = vmax.f32 %v7668, %v6574
  %v7765 = vmax.f32 %v7669, %v6575
  %v7766 = vmax.f32 %v7670, %v6576
  %v7767 = vmax.f32 %v7671, %v6577
  %v7768 = vmax.f32 %v7672, %v6578
  %v7769 = vmax.f32 %v7673, %v6579
  %v7770 = vmax.f32 %v7674, %v6580
  %v7867 = vrot.slane %v7675, 1
  %v7868 = vrot.slane %v7676, 1
  %v7869 = vsel %vm1157, %v7867, %v7868
  %v7870 = vrot.slane %v7677, 1
  %v7871 = vsel %vm1157, %v7868, %v7870
  %v7872 = vrot.slane %v7678, 1
  %v7873 = vrot.slane %v7679, 1
  %v7874 = vsel %vm1157, %v7872, %v7873
  %v7875 = vrot.slane %v7680, 1
  %v7876 = vsel %vm1157, %v7873, %v7875
  %v7877 = vrot.slane %v7681, 1
  %v7878 = vrot.slane %v7682, 1
  %v7879 = vsel %vm1157, %v7877, %v7878
  %v7880 = vrot.slane %v7683, 1
  %v7881 = vsel %vm1157, %v7878, %v7880
  %v7882 = vrot.slane %v7684, 1
  %v7883 = vrot.slane %v7685, 1
  %v7884 = vsel %vm1157, %v7882, %v7883
  %v7885 = vrot.slane %v7686, 1
  %v7886 = vsel %vm1157, %v7883, %v7885
  %v7887 = vrot.slane %v7687, 1
  %v7888 = vrot.slane %v7688, 1
  %v7889 = vsel %vm1157, %v7887, %v7888
  %v7890 = vrot.slane %v7689, 1
  %v7891 = vsel %vm1157, %v7888, %v7890
  %v7892 = vrot.slane %v7690, 1
  %v7893 = vrot.slane %v7691, 1
  %v7894 = vsel %vm1157, %v7892, %v7893
  %v7895 = vrot.slane %v7692, 1
  %v7896 = vsel %vm1157, %v7893, %v7895
  %v7897 = vrot.slane %v7693, 1
  %v7898 = vrot.slane %v7694, 1
  %v7899 = vsel %vm1157, %v7897, %v7898
  %v7900 = vrot.slane %v7695, 1
  %v7901 = vsel %vm1157, %v7898, %v7900
  %v7902 = vrot.slane %v7696, 1
  %v7903 = vrot.slane %v7697, 1
  %v7904 = vsel %vm1157, %v7902, %v7903
  %v7905 = vrot.slane %v7698, 1
  %v7906 = vsel %vm1157, %v7903, %v7905
  %v7907 = vrot.slane %v7699, 1
  %v7908 = vrot.slane %v7700, 1
  %v7909 = vsel %vm1157, %v7907, %v7908
  %v7910 = vrot.slane %v7701, 1
  %v7911 = vsel %vm1157, %v7908, %v7910
  %v7912 = vrot.slane %v7702, 1
  %v7913 = vrot.slane %v7703, 1
  %v7914 = vsel %vm1157, %v7912, %v7913
  %v7915 = vrot.slane %v7704, 1
  %v7916 = vsel %vm1157, %v7913, %v7915
  %v7917 = vrot.slane %v7705, 1
  %v7918 = vrot.slane %v7706, 1
  %v7919 = vsel %vm1157, %v7917, %v7918
  %v7920 = vrot.slane %v7707, 1
  %v7921 = vsel %vm1157, %v7918, %v7920
  %v7922 = vrot.slane %v7708, 1
  %v7923 = vrot.slane %v7709, 1
  %v7924 = vsel %vm1157, %v7922, %v7923
  %v7925 = vrot.slane %v7710, 1
  %v7926 = vsel %vm1157, %v7923, %v7925
  %v7927 = vrot.slane %v7711, 1
  %v7928 = vrot.slane %v7712, 1
  %v7929 = vsel %vm1157, %v7927, %v7928
  %v7930 = vrot.slane %v7713, 1
  %v7931 = vsel %vm1157, %v7928, %v7930
  %v7932 = vrot.slane %v7714, 1
  %v7933 = vrot.slane %v7715, 1
  %v7934 = vsel %vm1157, %v7932, %v7933
  %v7935 = vrot.slane %v7716, 1
  %v7936 = vsel %vm1157, %v7933, %v7935
  %v7937 = vrot.slane %v7717, 1
  %v7938 = vrot.slane %v7718, 1
  %v7939 = vsel %vm1157, %v7937, %v7938
  %v7940 = vrot.slane %v7719, 1
  %v7941 = vsel %vm1157, %v7938, %v7940
  %v7942 = vrot.slane %v7720, 1
  %v7943 = vrot.slane %v7721, 1
  %v7944 = vsel %vm1157, %v7942, %v7943
  %v7945 = vrot.slane %v7722, 1
  %v7946 = vsel %vm1157, %v7943, %v7945
  %v7947 = vrot.slane %v7723, 1
  %v7948 = vrot.slane %v7724, 1
  %v7949 = vsel %vm1157, %v7947, %v7948
  %v7950 = vrot.slane %v7725, 1
  %v7951 = vsel %vm1157, %v7948, %v7950
  %v7952 = vrot.slane %v7726, 1
  %v7953 = vrot.slane %v7727, 1
  %v7954 = vsel %vm1157, %v7952, %v7953
  %v7955 = vrot.slane %v7728, 1
  %v7956 = vsel %vm1157, %v7953, %v7955
  %v7957 = vrot.slane %v7729, 1
  %v7958 = vrot.slane %v7730, 1
  %v7959 = vsel %vm1157, %v7957, %v7958
  %v7960 = vrot.slane %v7731, 1
  %v7961 = vsel %vm1157, %v7958, %v7960
  %v7962 = vrot.slane %v7732, 1
  %v7963 = vrot.slane %v7733, 1
  %v7964 = vsel %vm1157, %v7962, %v7963
  %v7965 = vrot.slane %v7734, 1
  %v7966 = vsel %vm1157, %v7963, %v7965
  %v7967 = vrot.slane %v7735, 1
  %v7968 = vrot.slane %v7736, 1
  %v7969 = vsel %vm1157, %v7967, %v7968
  %v7970 = vrot.slane %v7737, 1
  %v7971 = vsel %vm1157, %v7968, %v7970
  %v7972 = vrot.slane %v7738, 1
  %v7973 = vrot.slane %v7739, 1
  %v7974 = vsel %vm1157, %v7972, %v7973
  %v7975 = vrot.slane %v7740, 1
  %v7976 = vsel %vm1157, %v7973, %v7975
  %v7977 = vrot.slane %v7741, 1
  %v7978 = vrot.slane %v7742, 1
  %v7979 = vsel %vm1157, %v7977, %v7978
  %v7980 = vrot.slane %v7743, 1
  %v7981 = vsel %vm1157, %v7978, %v7980
  %v7982 = vrot.slane %v7744, 1
  %v7983 = vrot.slane %v7745, 1
  %v7984 = vsel %vm1157, %v7982, %v7983
  %v7985 = vrot.slane %v7746, 1
  %v7986 = vsel %vm1157, %v7983, %v7985
  %v7987 = vrot.slane %v7747, 1
  %v7988 = vrot.slane %v7748, 1
  %v7989 = vsel %vm1157, %v7987, %v7988
  %v7990 = vrot.slane %v7749, 1
  %v7991 = vsel %vm1157, %v7988, %v7990
  %v7992 = vrot.slane %v7750, 1
  %v7993 = vrot.slane %v7751, 1
  %v7994 = vsel %vm1157, %v7992, %v7993
  %v7995 = vrot.slane %v7752, 1
  %v7996 = vsel %vm1157, %v7993, %v7995
  %v7997 = vrot.slane %v7753, 1
  %v7998 = vrot.slane %v7754, 1
  %v7999 = vsel %vm1157, %v7997, %v7998
  %v8000 = vrot.slane %v7755, 1
  %v8001 = vsel %vm1157, %v7998, %v8000
  %v8002 = vrot.slane %v7756, 1
  %v8003 = vrot.slane %v7757, 1
  %v8004 = vsel %vm1157, %v8002, %v8003
  %v8005 = vrot.slane %v7758, 1
  %v8006 = vsel %vm1157, %v8003, %v8005
  %v8007 = vrot.slane %v7759, 1
  %v8008 = vrot.slane %v7760, 1
  %v8009 = vsel %vm1157, %v8007, %v8008
  %v8010 = vrot.slane %v7761, 1
  %v8011 = vsel %vm1157, %v8008, %v8010
  %v8012 = vrot.slane %v7762, 1
  %v8013 = vrot.slane %v7763, 1
  %v8014 = vsel %vm1157, %v8012, %v8013
  %v8015 = vrot.slane %v7764, 1
  %v8016 = vsel %vm1157, %v8013, %v8015
  %v8017 = vrot.slane %v7765, 1
  %v8018 = vrot.slane %v7766, 1
  %v8019 = vsel %vm1157, %v8017, %v8018
  %v8020 = vrot.slane %v7767, 1
  %v8021 = vsel %vm1157, %v8018, %v8020
  %v8022 = vrot.slane %v7768, 1
  %v8023 = vrot.slane %v7769, 1
  %v8024 = vsel %vm1157, %v8022, %v8023
  %v8025 = vrot.slane %v7770, 1
  %v8026 = vsel %vm1157, %v8023, %v8025
  %v8123 = vmax.f32 %v7675, %v7869
  %v8124 = vmax.f32 %v7676, %v7871
  %v8125 = vmax.f32 %v7677, %v7870
  %v8126 = vmax.f32 %v7678, %v7874
  %v8127 = vmax.f32 %v7679, %v7876
  %v8128 = vmax.f32 %v7680, %v7875
  %v8129 = vmax.f32 %v7681, %v7879
  %v8130 = vmax.f32 %v7682, %v7881
  %v8131 = vmax.f32 %v7683, %v7880
  %v8132 = vmax.f32 %v7684, %v7884
  %v8133 = vmax.f32 %v7685, %v7886
  %v8134 = vmax.f32 %v7686, %v7885
  %v8135 = vmax.f32 %v7687, %v7889
  %v8136 = vmax.f32 %v7688, %v7891
  %v8137 = vmax.f32 %v7689, %v7890
  %v8138 = vmax.f32 %v7690, %v7894
  %v8139 = vmax.f32 %v7691, %v7896
  %v8140 = vmax.f32 %v7692, %v7895
  %v8141 = vmax.f32 %v7693, %v7899
  %v8142 = vmax.f32 %v7694, %v7901
  %v8143 = vmax.f32 %v7695, %v7900
  %v8144 = vmax.f32 %v7696, %v7904
  %v8145 = vmax.f32 %v7697, %v7906
  %v8146 = vmax.f32 %v7698, %v7905
  %v8147 = vmax.f32 %v7699, %v7909
  %v8148 = vmax.f32 %v7700, %v7911
  %v8149 = vmax.f32 %v7701, %v7910
  %v8150 = vmax.f32 %v7702, %v7914
  %v8151 = vmax.f32 %v7703, %v7916
  %v8152 = vmax.f32 %v7704, %v7915
  %v8153 = vmax.f32 %v7705, %v7919
  %v8154 = vmax.f32 %v7706, %v7921
  %v8155 = vmax.f32 %v7707, %v7920
  %v8156 = vmax.f32 %v7708, %v7924
  %v8157 = vmax.f32 %v7709, %v7926
  %v8158 = vmax.f32 %v7710, %v7925
  %v8159 = vmax.f32 %v7711, %v7929
  %v8160 = vmax.f32 %v7712, %v7931
  %v8161 = vmax.f32 %v7713, %v7930
  %v8162 = vmax.f32 %v7714, %v7934
  %v8163 = vmax.f32 %v7715, %v7936
  %v8164 = vmax.f32 %v7716, %v7935
  %v8165 = vmax.f32 %v7717, %v7939
  %v8166 = vmax.f32 %v7718, %v7941
  %v8167 = vmax.f32 %v7719, %v7940
  %v8168 = vmax.f32 %v7720, %v7944
  %v8169 = vmax.f32 %v7721, %v7946
  %v8170 = vmax.f32 %v7722, %v7945
  %v8171 = vmax.f32 %v7723, %v7949
  %v8172 = vmax.f32 %v7724, %v7951
  %v8173 = vmax.f32 %v7725, %v7950
  %v8174 = vmax.f32 %v7726, %v7954
  %v8175 = vmax.f32 %v7727, %v7956
  %v8176 = vmax.f32 %v7728, %v7955
  %v8177 = vmax.f32 %v7729, %v7959
  %v8178 = vmax.f32 %v7730, %v7961
  %v8179 = vmax.f32 %v7731, %v7960
  %v8180 = vmax.f32 %v7732, %v7964
  %v8181 = vmax.f32 %v7733, %v7966
  %v8182 = vmax.f32 %v7734, %v7965
  %v8183 = vmax.f32 %v7735, %v7969
  %v8184 = vmax.f32 %v7736, %v7971
  %v8185 = vmax.f32 %v7737, %v7970
  %v8186 = vmax.f32 %v7738, %v7974
  %v8187 = vmax.f32 %v7739, %v7976
  %v8188 = vmax.f32 %v7740, %v7975
  %v8189 = vmax.f32 %v7741, %v7979
  %v8190 = vmax.f32 %v7742, %v7981
  %v8191 = vmax.f32 %v7743, %v7980
  %v8192 = vmax.f32 %v7744, %v7984
  %v8193 = vmax.f32 %v7745, %v7986
  %v8194 = vmax.f32 %v7746, %v7985
  %v8195 = vmax.f32 %v7747, %v7989
  %v8196 = vmax.f32 %v7748, %v7991
  %v8197 = vmax.f32 %v7749, %v7990
  %v8198 = vmax.f32 %v7750, %v7994
  %v8199 = vmax.f32 %v7751, %v7996
  %v8200 = vmax.f32 %v7752, %v7995
  %v8201 = vmax.f32 %v7753, %v7999
  %v8202 = vmax.f32 %v7754, %v8001
  %v8203 = vmax.f32 %v7755, %v8000
  %v8204 = vmax.f32 %v7756, %v8004
  %v8205 = vmax.f32 %v7757, %v8006
  %v8206 = vmax.f32 %v7758, %v8005
  %v8207 = vmax.f32 %v7759, %v8009
  %v8208 = vmax.f32 %v7760, %v8011
  %v8209 = vmax.f32 %v7761, %v8010
  %v8210 = vmax.f32 %v7762, %v8014
  %v8211 = vmax.f32 %v7763, %v8016
  %v8212 = vmax.f32 %v7764, %v8015
  %v8213 = vmax.f32 %v7765, %v8019
  %v8214 = vmax.f32 %v7766, %v8021
  %v8215 = vmax.f32 %v7767, %v8020
  %v8216 = vmax.f32 %v7768, %v8024
  %v8217 = vmax.f32 %v7769, %v8026
  %v8218 = vmax.f32 %v7770, %v8025
  %v8219 = vrot.slane %v7675, 2
  %v8220 = vrot.slane %v7676, 2
  %v8221 = vsel %vm1604, %v8219, %v8220
  %v8222 = vrot.slane %v7677, 2
  %v8223 = vsel %vm1604, %v8220, %v8222
  %v8224 = vrot.slane %v7678, 2
  %v8225 = vrot.slane %v7679, 2
  %v8226 = vsel %vm1604, %v8224, %v8225
  %v8227 = vrot.slane %v7680, 2
  %v8228 = vsel %vm1604, %v8225, %v8227
  %v8229 = vrot.slane %v7681, 2
  %v8230 = vrot.slane %v7682, 2
  %v8231 = vsel %vm1604, %v8229, %v8230
  %v8232 = vrot.slane %v7683, 2
  %v8233 = vsel %vm1604, %v8230, %v8232
  %v8234 = vrot.slane %v7684, 2
  %v8235 = vrot.slane %v7685, 2
  %v8236 = vsel %vm1604, %v8234, %v8235
  %v8237 = vrot.slane %v7686, 2
  %v8238 = vsel %vm1604, %v8235, %v8237
  %v8239 = vrot.slane %v7687, 2
  %v8240 = vrot.slane %v7688, 2
  %v8241 = vsel %vm1604, %v8239, %v8240
  %v8242 = vrot.slane %v7689, 2
  %v8243 = vsel %vm1604, %v8240, %v8242
  %v8244 = vrot.slane %v7690, 2
  %v8245 = vrot.slane %v7691, 2
  %v8246 = vsel %vm1604, %v8244, %v8245
  %v8247 = vrot.slane %v7692, 2
  %v8248 = vsel %vm1604, %v8245, %v8247
  %v8249 = vrot.slane %v7693, 2
  %v8250 = vrot.slane %v7694, 2
  %v8251 = vsel %vm1604, %v8249, %v8250
  %v8252 = vrot.slane %v7695, 2
  %v8253 = vsel %vm1604, %v8250, %v8252
  %v8254 = vrot.slane %v7696, 2
  %v8255 = vrot.slane %v7697, 2
  %v8256 = vsel %vm1604, %v8254, %v8255
  %v8257 = vrot.slane %v7698, 2
  %v8258 = vsel %vm1604, %v8255, %v8257
  %v8259 = vrot.slane %v7699, 2
  %v8260 = vrot.slane %v7700, 2
  %v8261 = vsel %vm1604, %v8259, %v8260
  %v8262 = vrot.slane %v7701, 2
  %v8263 = vsel %vm1604, %v8260, %v8262
  %v8264 = vrot.slane %v7702, 2
  %v8265 = vrot.slane %v7703, 2
  %v8266 = vsel %vm1604, %v8264, %v8265
  %v8267 = vrot.slane %v7704, 2
  %v8268 = vsel %vm1604, %v8265, %v8267
  %v8269 = vrot.slane %v7705, 2
  %v8270 = vrot.slane %v7706, 2
  %v8271 = vsel %vm1604, %v8269, %v8270
  %v8272 = vrot.slane %v7707, 2
  %v8273 = vsel %vm1604, %v8270, %v8272
  %v8274 = vrot.slane %v7708, 2
  %v8275 = vrot.slane %v7709, 2
  %v8276 = vsel %vm1604, %v8274, %v8275
  %v8277 = vrot.slane %v7710, 2
  %v8278 = vsel %vm1604, %v8275, %v8277
  %v8279 = vrot.slane %v7711, 2
  %v8280 = vrot.slane %v7712, 2
  %v8281 = vsel %vm1604, %v8279, %v8280
  %v8282 = vrot.slane %v7713, 2
  %v8283 = vsel %vm1604, %v8280, %v8282
  %v8284 = vrot.slane %v7714, 2
  %v8285 = vrot.slane %v7715, 2
  %v8286 = vsel %vm1604, %v8284, %v8285
  %v8287 = vrot.slane %v7716, 2
  %v8288 = vsel %vm1604, %v8285, %v8287
  %v8289 = vrot.slane %v7717, 2
  %v8290 = vrot.slane %v7718, 2
  %v8291 = vsel %vm1604, %v8289, %v8290
  %v8292 = vrot.slane %v7719, 2
  %v8293 = vsel %vm1604, %v8290, %v8292
  %v8294 = vrot.slane %v7720, 2
  %v8295 = vrot.slane %v7721, 2
  %v8296 = vsel %vm1604, %v8294, %v8295
  %v8297 = vrot.slane %v7722, 2
  %v8298 = vsel %vm1604, %v8295, %v8297
  %v8299 = vrot.slane %v7723, 2
  %v8300 = vrot.slane %v7724, 2
  %v8301 = vsel %vm1604, %v8299, %v8300
  %v8302 = vrot.slane %v7725, 2
  %v8303 = vsel %vm1604, %v8300, %v8302
  %v8304 = vrot.slane %v7726, 2
  %v8305 = vrot.slane %v7727, 2
  %v8306 = vsel %vm1604, %v8304, %v8305
  %v8307 = vrot.slane %v7728, 2
  %v8308 = vsel %vm1604, %v8305, %v8307
  %v8309 = vrot.slane %v7729, 2
  %v8310 = vrot.slane %v7730, 2
  %v8311 = vsel %vm1604, %v8309, %v8310
  %v8312 = vrot.slane %v7731, 2
  %v8313 = vsel %vm1604, %v8310, %v8312
  %v8314 = vrot.slane %v7732, 2
  %v8315 = vrot.slane %v7733, 2
  %v8316 = vsel %vm1604, %v8314, %v8315
  %v8317 = vrot.slane %v7734, 2
  %v8318 = vsel %vm1604, %v8315, %v8317
  %v8319 = vrot.slane %v7735, 2
  %v8320 = vrot.slane %v7736, 2
  %v8321 = vsel %vm1604, %v8319, %v8320
  %v8322 = vrot.slane %v7737, 2
  %v8323 = vsel %vm1604, %v8320, %v8322
  %v8324 = vrot.slane %v7738, 2
  %v8325 = vrot.slane %v7739, 2
  %v8326 = vsel %vm1604, %v8324, %v8325
  %v8327 = vrot.slane %v7740, 2
  %v8328 = vsel %vm1604, %v8325, %v8327
  %v8329 = vrot.slane %v7741, 2
  %v8330 = vrot.slane %v7742, 2
  %v8331 = vsel %vm1604, %v8329, %v8330
  %v8332 = vrot.slane %v7743, 2
  %v8333 = vsel %vm1604, %v8330, %v8332
  %v8334 = vrot.slane %v7744, 2
  %v8335 = vrot.slane %v7745, 2
  %v8336 = vsel %vm1604, %v8334, %v8335
  %v8337 = vrot.slane %v7746, 2
  %v8338 = vsel %vm1604, %v8335, %v8337
  %v8339 = vrot.slane %v7747, 2
  %v8340 = vrot.slane %v7748, 2
  %v8341 = vsel %vm1604, %v8339, %v8340
  %v8342 = vrot.slane %v7749, 2
  %v8343 = vsel %vm1604, %v8340, %v8342
  %v8344 = vrot.slane %v7750, 2
  %v8345 = vrot.slane %v7751, 2
  %v8346 = vsel %vm1604, %v8344, %v8345
  %v8347 = vrot.slane %v7752, 2
  %v8348 = vsel %vm1604, %v8345, %v8347
  %v8349 = vrot.slane %v7753, 2
  %v8350 = vrot.slane %v7754, 2
  %v8351 = vsel %vm1604, %v8349, %v8350
  %v8352 = vrot.slane %v7755, 2
  %v8353 = vsel %vm1604, %v8350, %v8352
  %v8354 = vrot.slane %v7756, 2
  %v8355 = vrot.slane %v7757, 2
  %v8356 = vsel %vm1604, %v8354, %v8355
  %v8357 = vrot.slane %v7758, 2
  %v8358 = vsel %vm1604, %v8355, %v8357
  %v8359 = vrot.slane %v7759, 2
  %v8360 = vrot.slane %v7760, 2
  %v8361 = vsel %vm1604, %v8359, %v8360
  %v8362 = vrot.slane %v7761, 2
  %v8363 = vsel %vm1604, %v8360, %v8362
  %v8364 = vrot.slane %v7762, 2
  %v8365 = vrot.slane %v7763, 2
  %v8366 = vsel %vm1604, %v8364, %v8365
  %v8367 = vrot.slane %v7764, 2
  %v8368 = vsel %vm1604, %v8365, %v8367
  %v8369 = vrot.slane %v7765, 2
  %v8370 = vrot.slane %v7766, 2
  %v8371 = vsel %vm1604, %v8369, %v8370
  %v8372 = vrot.slane %v7767, 2
  %v8373 = vsel %vm1604, %v8370, %v8372
  %v8374 = vrot.slane %v7768, 2
  %v8375 = vrot.slane %v7769, 2
  %v8376 = vsel %vm1604, %v8374, %v8375
  %v8377 = vrot.slane %v7770, 2
  %v8378 = vsel %vm1604, %v8375, %v8377
  %v8475 = vmax.f32 %v8123, %v8221
  %v8476 = vmax.f32 %v8124, %v8223
  %v8477 = vmax.f32 %v8125, %v8222
  %v8478 = vmax.f32 %v8126, %v8226
  %v8479 = vmax.f32 %v8127, %v8228
  %v8480 = vmax.f32 %v8128, %v8227
  %v8481 = vmax.f32 %v8129, %v8231
  %v8482 = vmax.f32 %v8130, %v8233
  %v8483 = vmax.f32 %v8131, %v8232
  %v8484 = vmax.f32 %v8132, %v8236
  %v8485 = vmax.f32 %v8133, %v8238
  %v8486 = vmax.f32 %v8134, %v8237
  %v8487 = vmax.f32 %v8135, %v8241
  %v8488 = vmax.f32 %v8136, %v8243
  %v8489 = vmax.f32 %v8137, %v8242
  %v8490 = vmax.f32 %v8138, %v8246
  %v8491 = vmax.f32 %v8139, %v8248
  %v8492 = vmax.f32 %v8140, %v8247
  %v8493 = vmax.f32 %v8141, %v8251
  %v8494 = vmax.f32 %v8142, %v8253
  %v8495 = vmax.f32 %v8143, %v8252
  %v8496 = vmax.f32 %v8144, %v8256
  %v8497 = vmax.f32 %v8145, %v8258
  %v8498 = vmax.f32 %v8146, %v8257
  %v8499 = vmax.f32 %v8147, %v8261
  %v8500 = vmax.f32 %v8148, %v8263
  %v8501 = vmax.f32 %v8149, %v8262
  %v8502 = vmax.f32 %v8150, %v8266
  %v8503 = vmax.f32 %v8151, %v8268
  %v8504 = vmax.f32 %v8152, %v8267
  %v8505 = vmax.f32 %v8153, %v8271
  %v8506 = vmax.f32 %v8154, %v8273
  %v8507 = vmax.f32 %v8155, %v8272
  %v8508 = vmax.f32 %v8156, %v8276
  %v8509 = vmax.f32 %v8157, %v8278
  %v8510 = vmax.f32 %v8158, %v8277
  %v8511 = vmax.f32 %v8159, %v8281
  %v8512 = vmax.f32 %v8160, %v8283
  %v8513 = vmax.f32 %v8161, %v8282
  %v8514 = vmax.f32 %v8162, %v8286
  %v8515 = vmax.f32 %v8163, %v8288
  %v8516 = vmax.f32 %v8164, %v8287
  %v8517 = vmax.f32 %v8165, %v8291
  %v8518 = vmax.f32 %v8166, %v8293
  %v8519 = vmax.f32 %v8167, %v8292
  %v8520 = vmax.f32 %v8168, %v8296
  %v8521 = vmax.f32 %v8169, %v8298
  %v8522 = vmax.f32 %v8170, %v8297
  %v8523 = vmax.f32 %v8171, %v8301
  %v8524 = vmax.f32 %v8172, %v8303
  %v8525 = vmax.f32 %v8173, %v8302
  %v8526 = vmax.f32 %v8174, %v8306
  %v8527 = vmax.f32 %v8175, %v8308
  %v8528 = vmax.f32 %v8176, %v8307
  %v8529 = vmax.f32 %v8177, %v8311
  %v8530 = vmax.f32 %v8178, %v8313
  %v8531 = vmax.f32 %v8179, %v8312
  %v8532 = vmax.f32 %v8180, %v8316
  %v8533 = vmax.f32 %v8181, %v8318
  %v8534 = vmax.f32 %v8182, %v8317
  %v8535 = vmax.f32 %v8183, %v8321
  %v8536 = vmax.f32 %v8184, %v8323
  %v8537 = vmax.f32 %v8185, %v8322
  %v8538 = vmax.f32 %v8186, %v8326
  %v8539 = vmax.f32 %v8187, %v8328
  %v8540 = vmax.f32 %v8188, %v8327
  %v8541 = vmax.f32 %v8189, %v8331
  %v8542 = vmax.f32 %v8190, %v8333
  %v8543 = vmax.f32 %v8191, %v8332
  %v8544 = vmax.f32 %v8192, %v8336
  %v8545 = vmax.f32 %v8193, %v8338
  %v8546 = vmax.f32 %v8194, %v8337
  %v8547 = vmax.f32 %v8195, %v8341
  %v8548 = vmax.f32 %v8196, %v8343
  %v8549 = vmax.f32 %v8197, %v8342
  %v8550 = vmax.f32 %v8198, %v8346
  %v8551 = vmax.f32 %v8199, %v8348
  %v8552 = vmax.f32 %v8200, %v8347
  %v8553 = vmax.f32 %v8201, %v8351
  %v8554 = vmax.f32 %v8202, %v8353
  %v8555 = vmax.f32 %v8203, %v8352
  %v8556 = vmax.f32 %v8204, %v8356
  %v8557 = vmax.f32 %v8205, %v8358
  %v8558 = vmax.f32 %v8206, %v8357
  %v8559 = vmax.f32 %v8207, %v8361
  %v8560 = vmax.f32 %v8208, %v8363
  %v8561 = vmax.f32 %v8209, %v8362
  %v8562 = vmax.f32 %v8210, %v8366
  %v8563 = vmax.f32 %v8211, %v8368
  %v8564 = vmax.f32 %v8212, %v8367
  %v8565 = vmax.f32 %v8213, %v8371
  %v8566 = vmax.f32 %v8214, %v8373
  %v8567 = vmax.f32 %v8215, %v8372
  %v8568 = vmax.f32 %v8216, %v8376
  %v8569 = vmax.f32 %v8217, %v8378
  %v8570 = vmax.f32 %v8218, %v8377
  %v8571 = vrot.slane %v7675, 3
  %v8572 = vrot.slane %v7676, 3
  %v8573 = vsel %vm2051, %v8571, %v8572
  %v8574 = vrot.slane %v7677, 3
  %v8575 = vsel %vm2051, %v8572, %v8574
  %v8576 = vrot.slane %v7678, 3
  %v8577 = vrot.slane %v7679, 3
  %v8578 = vsel %vm2051, %v8576, %v8577
  %v8579 = vrot.slane %v7680, 3
  %v8580 = vsel %vm2051, %v8577, %v8579
  %v8581 = vrot.slane %v7681, 3
  %v8582 = vrot.slane %v7682, 3
  %v8583 = vsel %vm2051, %v8581, %v8582
  %v8584 = vrot.slane %v7683, 3
  %v8585 = vsel %vm2051, %v8582, %v8584
  %v8586 = vrot.slane %v7684, 3
  %v8587 = vrot.slane %v7685, 3
  %v8588 = vsel %vm2051, %v8586, %v8587
  %v8589 = vrot.slane %v7686, 3
  %v8590 = vsel %vm2051, %v8587, %v8589
  %v8591 = vrot.slane %v7687, 3
  %v8592 = vrot.slane %v7688, 3
  %v8593 = vsel %vm2051, %v8591, %v8592
  %v8594 = vrot.slane %v7689, 3
  %v8595 = vsel %vm2051, %v8592, %v8594
  %v8596 = vrot.slane %v7690, 3
  %v8597 = vrot.slane %v7691, 3
  %v8598 = vsel %vm2051, %v8596, %v8597
  %v8599 = vrot.slane %v7692, 3
  %v8600 = vsel %vm2051, %v8597, %v8599
  %v8601 = vrot.slane %v7693, 3
  %v8602 = vrot.slane %v7694, 3
  %v8603 = vsel %vm2051, %v8601, %v8602
  %v8604 = vrot.slane %v7695, 3
  %v8605 = vsel %vm2051, %v8602, %v8604
  %v8606 = vrot.slane %v7696, 3
  %v8607 = vrot.slane %v7697, 3
  %v8608 = vsel %vm2051, %v8606, %v8607
  %v8609 = vrot.slane %v7698, 3
  %v8610 = vsel %vm2051, %v8607, %v8609
  %v8611 = vrot.slane %v7699, 3
  %v8612 = vrot.slane %v7700, 3
  %v8613 = vsel %vm2051, %v8611, %v8612
  %v8614 = vrot.slane %v7701, 3
  %v8615 = vsel %vm2051, %v8612, %v8614
  %v8616 = vrot.slane %v7702, 3
  %v8617 = vrot.slane %v7703, 3
  %v8618 = vsel %vm2051, %v8616, %v8617
  %v8619 = vrot.slane %v7704, 3
  %v8620 = vsel %vm2051, %v8617, %v8619
  %v8621 = vrot.slane %v7705, 3
  %v8622 = vrot.slane %v7706, 3
  %v8623 = vsel %vm2051, %v8621, %v8622
  %v8624 = vrot.slane %v7707, 3
  %v8625 = vsel %vm2051, %v8622, %v8624
  %v8626 = vrot.slane %v7708, 3
  %v8627 = vrot.slane %v7709, 3
  %v8628 = vsel %vm2051, %v8626, %v8627
  %v8629 = vrot.slane %v7710, 3
  %v8630 = vsel %vm2051, %v8627, %v8629
  %v8631 = vrot.slane %v7711, 3
  %v8632 = vrot.slane %v7712, 3
  %v8633 = vsel %vm2051, %v8631, %v8632
  %v8634 = vrot.slane %v7713, 3
  %v8635 = vsel %vm2051, %v8632, %v8634
  %v8636 = vrot.slane %v7714, 3
  %v8637 = vrot.slane %v7715, 3
  %v8638 = vsel %vm2051, %v8636, %v8637
  %v8639 = vrot.slane %v7716, 3
  %v8640 = vsel %vm2051, %v8637, %v8639
  %v8641 = vrot.slane %v7717, 3
  %v8642 = vrot.slane %v7718, 3
  %v8643 = vsel %vm2051, %v8641, %v8642
  %v8644 = vrot.slane %v7719, 3
  %v8645 = vsel %vm2051, %v8642, %v8644
  %v8646 = vrot.slane %v7720, 3
  %v8647 = vrot.slane %v7721, 3
  %v8648 = vsel %vm2051, %v8646, %v8647
  %v8649 = vrot.slane %v7722, 3
  %v8650 = vsel %vm2051, %v8647, %v8649
  %v8651 = vrot.slane %v7723, 3
  %v8652 = vrot.slane %v7724, 3
  %v8653 = vsel %vm2051, %v8651, %v8652
  %v8654 = vrot.slane %v7725, 3
  %v8655 = vsel %vm2051, %v8652, %v8654
  %v8656 = vrot.slane %v7726, 3
  %v8657 = vrot.slane %v7727, 3
  %v8658 = vsel %vm2051, %v8656, %v8657
  %v8659 = vrot.slane %v7728, 3
  %v8660 = vsel %vm2051, %v8657, %v8659
  %v8661 = vrot.slane %v7729, 3
  %v8662 = vrot.slane %v7730, 3
  %v8663 = vsel %vm2051, %v8661, %v8662
  %v8664 = vrot.slane %v7731, 3
  %v8665 = vsel %vm2051, %v8662, %v8664
  %v8666 = vrot.slane %v7732, 3
  %v8667 = vrot.slane %v7733, 3
  %v8668 = vsel %vm2051, %v8666, %v8667
  %v8669 = vrot.slane %v7734, 3
  %v8670 = vsel %vm2051, %v8667, %v8669
  %v8671 = vrot.slane %v7735, 3
  %v8672 = vrot.slane %v7736, 3
  %v8673 = vsel %vm2051, %v8671, %v8672
  %v8674 = vrot.slane %v7737, 3
  %v8675 = vsel %vm2051, %v8672, %v8674
  %v8676 = vrot.slane %v7738, 3
  %v8677 = vrot.slane %v7739, 3
  %v8678 = vsel %vm2051, %v8676, %v8677
  %v8679 = vrot.slane %v7740, 3
  %v8680 = vsel %vm2051, %v8677, %v8679
  %v8681 = vrot.slane %v7741, 3
  %v8682 = vrot.slane %v7742, 3
  %v8683 = vsel %vm2051, %v8681, %v8682
  %v8684 = vrot.slane %v7743, 3
  %v8685 = vsel %vm2051, %v8682, %v8684
  %v8686 = vrot.slane %v7744, 3
  %v8687 = vrot.slane %v7745, 3
  %v8688 = vsel %vm2051, %v8686, %v8687
  %v8689 = vrot.slane %v7746, 3
  %v8690 = vsel %vm2051, %v8687, %v8689
  %v8691 = vrot.slane %v7747, 3
  %v8692 = vrot.slane %v7748, 3
  %v8693 = vsel %vm2051, %v8691, %v8692
  %v8694 = vrot.slane %v7749, 3
  %v8695 = vsel %vm2051, %v8692, %v8694
  %v8696 = vrot.slane %v7750, 3
  %v8697 = vrot.slane %v7751, 3
  %v8698 = vsel %vm2051, %v8696, %v8697
  %v8699 = vrot.slane %v7752, 3
  %v8700 = vsel %vm2051, %v8697, %v8699
  %v8701 = vrot.slane %v7753, 3
  %v8702 = vrot.slane %v7754, 3
  %v8703 = vsel %vm2051, %v8701, %v8702
  %v8704 = vrot.slane %v7755, 3
  %v8705 = vsel %vm2051, %v8702, %v8704
  %v8706 = vrot.slane %v7756, 3
  %v8707 = vrot.slane %v7757, 3
  %v8708 = vsel %vm2051, %v8706, %v8707
  %v8709 = vrot.slane %v7758, 3
  %v8710 = vsel %vm2051, %v8707, %v8709
  %v8711 = vrot.slane %v7759, 3
  %v8712 = vrot.slane %v7760, 3
  %v8713 = vsel %vm2051, %v8711, %v8712
  %v8714 = vrot.slane %v7761, 3
  %v8715 = vsel %vm2051, %v8712, %v8714
  %v8716 = vrot.slane %v7762, 3
  %v8717 = vrot.slane %v7763, 3
  %v8718 = vsel %vm2051, %v8716, %v8717
  %v8719 = vrot.slane %v7764, 3
  %v8720 = vsel %vm2051, %v8717, %v8719
  %v8721 = vrot.slane %v7765, 3
  %v8722 = vrot.slane %v7766, 3
  %v8723 = vsel %vm2051, %v8721, %v8722
  %v8724 = vrot.slane %v7767, 3
  %v8725 = vsel %vm2051, %v8722, %v8724
  %v8726 = vrot.slane %v7768, 3
  %v8727 = vrot.slane %v7769, 3
  %v8728 = vsel %vm2051, %v8726, %v8727
  %v8729 = vrot.slane %v7770, 3
  %v8730 = vsel %vm2051, %v8727, %v8729
  %v8827 = vmax.f32 %v8475, %v8573
  %v8828 = vmax.f32 %v8476, %v8575
  %v8829 = vmax.f32 %v8477, %v8574
  %v8830 = vmax.f32 %v8478, %v8578
  %v8831 = vmax.f32 %v8479, %v8580
  %v8832 = vmax.f32 %v8480, %v8579
  %v8833 = vmax.f32 %v8481, %v8583
  %v8834 = vmax.f32 %v8482, %v8585
  %v8835 = vmax.f32 %v8483, %v8584
  %v8836 = vmax.f32 %v8484, %v8588
  %v8837 = vmax.f32 %v8485, %v8590
  %v8838 = vmax.f32 %v8486, %v8589
  %v8839 = vmax.f32 %v8487, %v8593
  %v8840 = vmax.f32 %v8488, %v8595
  %v8841 = vmax.f32 %v8489, %v8594
  %v8842 = vmax.f32 %v8490, %v8598
  %v8843 = vmax.f32 %v8491, %v8600
  %v8844 = vmax.f32 %v8492, %v8599
  %v8845 = vmax.f32 %v8493, %v8603
  %v8846 = vmax.f32 %v8494, %v8605
  %v8847 = vmax.f32 %v8495, %v8604
  %v8848 = vmax.f32 %v8496, %v8608
  %v8849 = vmax.f32 %v8497, %v8610
  %v8850 = vmax.f32 %v8498, %v8609
  %v8851 = vmax.f32 %v8499, %v8613
  %v8852 = vmax.f32 %v8500, %v8615
  %v8853 = vmax.f32 %v8501, %v8614
  %v8854 = vmax.f32 %v8502, %v8618
  %v8855 = vmax.f32 %v8503, %v8620
  %v8856 = vmax.f32 %v8504, %v8619
  %v8857 = vmax.f32 %v8505, %v8623
  %v8858 = vmax.f32 %v8506, %v8625
  %v8859 = vmax.f32 %v8507, %v8624
  %v8860 = vmax.f32 %v8508, %v8628
  %v8861 = vmax.f32 %v8509, %v8630
  %v8862 = vmax.f32 %v8510, %v8629
  %v8863 = vmax.f32 %v8511, %v8633
  %v8864 = vmax.f32 %v8512, %v8635
  %v8865 = vmax.f32 %v8513, %v8634
  %v8866 = vmax.f32 %v8514, %v8638
  %v8867 = vmax.f32 %v8515, %v8640
  %v8868 = vmax.f32 %v8516, %v8639
  %v8869 = vmax.f32 %v8517, %v8643
  %v8870 = vmax.f32 %v8518, %v8645
  %v8871 = vmax.f32 %v8519, %v8644
  %v8872 = vmax.f32 %v8520, %v8648
  %v8873 = vmax.f32 %v8521, %v8650
  %v8874 = vmax.f32 %v8522, %v8649
  %v8875 = vmax.f32 %v8523, %v8653
  %v8876 = vmax.f32 %v8524, %v8655
  %v8877 = vmax.f32 %v8525, %v8654
  %v8878 = vmax.f32 %v8526, %v8658
  %v8879 = vmax.f32 %v8527, %v8660
  %v8880 = vmax.f32 %v8528, %v8659
  %v8881 = vmax.f32 %v8529, %v8663
  %v8882 = vmax.f32 %v8530, %v8665
  %v8883 = vmax.f32 %v8531, %v8664
  %v8884 = vmax.f32 %v8532, %v8668
  %v8885 = vmax.f32 %v8533, %v8670
  %v8886 = vmax.f32 %v8534, %v8669
  %v8887 = vmax.f32 %v8535, %v8673
  %v8888 = vmax.f32 %v8536, %v8675
  %v8889 = vmax.f32 %v8537, %v8674
  %v8890 = vmax.f32 %v8538, %v8678
  %v8891 = vmax.f32 %v8539, %v8680
  %v8892 = vmax.f32 %v8540, %v8679
  %v8893 = vmax.f32 %v8541, %v8683
  %v8894 = vmax.f32 %v8542, %v8685
  %v8895 = vmax.f32 %v8543, %v8684
  %v8896 = vmax.f32 %v8544, %v8688
  %v8897 = vmax.f32 %v8545, %v8690
  %v8898 = vmax.f32 %v8546, %v8689
  %v8899 = vmax.f32 %v8547, %v8693
  %v8900 = vmax.f32 %v8548, %v8695
  %v8901 = vmax.f32 %v8549, %v8694
  %v8902 = vmax.f32 %v8550, %v8698
  %v8903 = vmax.f32 %v8551, %v8700
  %v8904 = vmax.f32 %v8552, %v8699
  %v8905 = vmax.f32 %v8553, %v8703
  %v8906 = vmax.f32 %v8554, %v8705
  %v8907 = vmax.f32 %v8555, %v8704
  %v8908 = vmax.f32 %v8556, %v8708
  %v8909 = vmax.f32 %v8557, %v8710
  %v8910 = vmax.f32 %v8558, %v8709
  %v8911 = vmax.f32 %v8559, %v8713
  %v8912 = vmax.f32 %v8560, %v8715
  %v8913 = vmax.f32 %v8561, %v8714
  %v8914 = vmax.f32 %v8562, %v8718
  %v8915 = vmax.f32 %v8563, %v8720
  %v8916 = vmax.f32 %v8564, %v8719
  %v8917 = vmax.f32 %v8565, %v8723
  %v8918 = vmax.f32 %v8566, %v8725
  %v8919 = vmax.f32 %v8567, %v8724
  %v8920 = vmax.f32 %v8568, %v8728
  %v8921 = vmax.f32 %v8569, %v8730
  %v8922 = vmax.f32 %v8570, %v8729
  %v8923 = vrot.slane %v7675, 4
  %v8924 = vrot.slane %v7676, 4
  %v8925 = vsel %vm2498, %v8923, %v8924
  %v8926 = vrot.slane %v7677, 4
  %v8927 = vsel %vm2498, %v8924, %v8926
  %v8928 = vrot.slane %v7678, 4
  %v8929 = vrot.slane %v7679, 4
  %v8930 = vsel %vm2498, %v8928, %v8929
  %v8931 = vrot.slane %v7680, 4
  %v8932 = vsel %vm2498, %v8929, %v8931
  %v8933 = vrot.slane %v7681, 4
  %v8934 = vrot.slane %v7682, 4
  %v8935 = vsel %vm2498, %v8933, %v8934
  %v8936 = vrot.slane %v7683, 4
  %v8937 = vsel %vm2498, %v8934, %v8936
  %v8938 = vrot.slane %v7684, 4
  %v8939 = vrot.slane %v7685, 4
  %v8940 = vsel %vm2498, %v8938, %v8939
  %v8941 = vrot.slane %v7686, 4
  %v8942 = vsel %vm2498, %v8939, %v8941
  %v8943 = vrot.slane %v7687, 4
  %v8944 = vrot.slane %v7688, 4
  %v8945 = vsel %vm2498, %v8943, %v8944
  %v8946 = vrot.slane %v7689, 4
  %v8947 = vsel %vm2498, %v8944, %v8946
  %v8948 = vrot.slane %v7690, 4
  %v8949 = vrot.slane %v7691, 4
  %v8950 = vsel %vm2498, %v8948, %v8949
  %v8951 = vrot.slane %v7692, 4
  %v8952 = vsel %vm2498, %v8949, %v8951
  %v8953 = vrot.slane %v7693, 4
  %v8954 = vrot.slane %v7694, 4
  %v8955 = vsel %vm2498, %v8953, %v8954
  %v8956 = vrot.slane %v7695, 4
  %v8957 = vsel %vm2498, %v8954, %v8956
  %v8958 = vrot.slane %v7696, 4
  %v8959 = vrot.slane %v7697, 4
  %v8960 = vsel %vm2498, %v8958, %v8959
  %v8961 = vrot.slane %v7698, 4
  %v8962 = vsel %vm2498, %v8959, %v8961
  %v8963 = vrot.slane %v7699, 4
  %v8964 = vrot.slane %v7700, 4
  %v8965 = vsel %vm2498, %v8963, %v8964
  %v8966 = vrot.slane %v7701, 4
  %v8967 = vsel %vm2498, %v8964, %v8966
  %v8968 = vrot.slane %v7702, 4
  %v8969 = vrot.slane %v7703, 4
  %v8970 = vsel %vm2498, %v8968, %v8969
  %v8971 = vrot.slane %v7704, 4
  %v8972 = vsel %vm2498, %v8969, %v8971
  %v8973 = vrot.slane %v7705, 4
  %v8974 = vrot.slane %v7706, 4
  %v8975 = vsel %vm2498, %v8973, %v8974
  %v8976 = vrot.slane %v7707, 4
  %v8977 = vsel %vm2498, %v8974, %v8976
  %v8978 = vrot.slane %v7708, 4
  %v8979 = vrot.slane %v7709, 4
  %v8980 = vsel %vm2498, %v8978, %v8979
  %v8981 = vrot.slane %v7710, 4
  %v8982 = vsel %vm2498, %v8979, %v8981
  %v8983 = vrot.slane %v7711, 4
  %v8984 = vrot.slane %v7712, 4
  %v8985 = vsel %vm2498, %v8983, %v8984
  %v8986 = vrot.slane %v7713, 4
  %v8987 = vsel %vm2498, %v8984, %v8986
  %v8988 = vrot.slane %v7714, 4
  %v8989 = vrot.slane %v7715, 4
  %v8990 = vsel %vm2498, %v8988, %v8989
  %v8991 = vrot.slane %v7716, 4
  %v8992 = vsel %vm2498, %v8989, %v8991
  %v8993 = vrot.slane %v7717, 4
  %v8994 = vrot.slane %v7718, 4
  %v8995 = vsel %vm2498, %v8993, %v8994
  %v8996 = vrot.slane %v7719, 4
  %v8997 = vsel %vm2498, %v8994, %v8996
  %v8998 = vrot.slane %v7720, 4
  %v8999 = vrot.slane %v7721, 4
  %v9000 = vsel %vm2498, %v8998, %v8999
  %v9001 = vrot.slane %v7722, 4
  %v9002 = vsel %vm2498, %v8999, %v9001
  %v9003 = vrot.slane %v7723, 4
  %v9004 = vrot.slane %v7724, 4
  %v9005 = vsel %vm2498, %v9003, %v9004
  %v9006 = vrot.slane %v7725, 4
  %v9007 = vsel %vm2498, %v9004, %v9006
  %v9008 = vrot.slane %v7726, 4
  %v9009 = vrot.slane %v7727, 4
  %v9010 = vsel %vm2498, %v9008, %v9009
  %v9011 = vrot.slane %v7728, 4
  %v9012 = vsel %vm2498, %v9009, %v9011
  %v9013 = vrot.slane %v7729, 4
  %v9014 = vrot.slane %v7730, 4
  %v9015 = vsel %vm2498, %v9013, %v9014
  %v9016 = vrot.slane %v7731, 4
  %v9017 = vsel %vm2498, %v9014, %v9016
  %v9018 = vrot.slane %v7732, 4
  %v9019 = vrot.slane %v7733, 4
  %v9020 = vsel %vm2498, %v9018, %v9019
  %v9021 = vrot.slane %v7734, 4
  %v9022 = vsel %vm2498, %v9019, %v9021
  %v9023 = vrot.slane %v7735, 4
  %v9024 = vrot.slane %v7736, 4
  %v9025 = vsel %vm2498, %v9023, %v9024
  %v9026 = vrot.slane %v7737, 4
  %v9027 = vsel %vm2498, %v9024, %v9026
  %v9028 = vrot.slane %v7738, 4
  %v9029 = vrot.slane %v7739, 4
  %v9030 = vsel %vm2498, %v9028, %v9029
  %v9031 = vrot.slane %v7740, 4
  %v9032 = vsel %vm2498, %v9029, %v9031
  %v9033 = vrot.slane %v7741, 4
  %v9034 = vrot.slane %v7742, 4
  %v9035 = vsel %vm2498, %v9033, %v9034
  %v9036 = vrot.slane %v7743, 4
  %v9037 = vsel %vm2498, %v9034, %v9036
  %v9038 = vrot.slane %v7744, 4
  %v9039 = vrot.slane %v7745, 4
  %v9040 = vsel %vm2498, %v9038, %v9039
  %v9041 = vrot.slane %v7746, 4
  %v9042 = vsel %vm2498, %v9039, %v9041
  %v9043 = vrot.slane %v7747, 4
  %v9044 = vrot.slane %v7748, 4
  %v9045 = vsel %vm2498, %v9043, %v9044
  %v9046 = vrot.slane %v7749, 4
  %v9047 = vsel %vm2498, %v9044, %v9046
  %v9048 = vrot.slane %v7750, 4
  %v9049 = vrot.slane %v7751, 4
  %v9050 = vsel %vm2498, %v9048, %v9049
  %v9051 = vrot.slane %v7752, 4
  %v9052 = vsel %vm2498, %v9049, %v9051
  %v9053 = vrot.slane %v7753, 4
  %v9054 = vrot.slane %v7754, 4
  %v9055 = vsel %vm2498, %v9053, %v9054
  %v9056 = vrot.slane %v7755, 4
  %v9057 = vsel %vm2498, %v9054, %v9056
  %v9058 = vrot.slane %v7756, 4
  %v9059 = vrot.slane %v7757, 4
  %v9060 = vsel %vm2498, %v9058, %v9059
  %v9061 = vrot.slane %v7758, 4
  %v9062 = vsel %vm2498, %v9059, %v9061
  %v9063 = vrot.slane %v7759, 4
  %v9064 = vrot.slane %v7760, 4
  %v9065 = vsel %vm2498, %v9063, %v9064
  %v9066 = vrot.slane %v7761, 4
  %v9067 = vsel %vm2498, %v9064, %v9066
  %v9068 = vrot.slane %v7762, 4
  %v9069 = vrot.slane %v7763, 4
  %v9070 = vsel %vm2498, %v9068, %v9069
  %v9071 = vrot.slane %v7764, 4
  %v9072 = vsel %vm2498, %v9069, %v9071
  %v9073 = vrot.slane %v7765, 4
  %v9074 = vrot.slane %v7766, 4
  %v9075 = vsel %vm2498, %v9073, %v9074
  %v9076 = vrot.slane %v7767, 4
  %v9077 = vsel %vm2498, %v9074, %v9076
  %v9078 = vrot.slane %v7768, 4
  %v9079 = vrot.slane %v7769, 4
  %v9080 = vsel %vm2498, %v9078, %v9079
  %v9081 = vrot.slane %v7770, 4
  %v9082 = vsel %vm2498, %v9079, %v9081
  %v9179 = vmax.f32 %v8827, %v8925
  %v9180 = vmax.f32 %v8828, %v8927
  %v9181 = vmax.f32 %v8829, %v8926
  %v9182 = vmax.f32 %v8830, %v8930
  %v9183 = vmax.f32 %v8831, %v8932
  %v9184 = vmax.f32 %v8832, %v8931
  %v9185 = vmax.f32 %v8833, %v8935
  %v9186 = vmax.f32 %v8834, %v8937
  %v9187 = vmax.f32 %v8835, %v8936
  %v9188 = vmax.f32 %v8836, %v8940
  %v9189 = vmax.f32 %v8837, %v8942
  %v9190 = vmax.f32 %v8838, %v8941
  %v9191 = vmax.f32 %v8839, %v8945
  %v9192 = vmax.f32 %v8840, %v8947
  %v9193 = vmax.f32 %v8841, %v8946
  %v9194 = vmax.f32 %v8842, %v8950
  %v9195 = vmax.f32 %v8843, %v8952
  %v9196 = vmax.f32 %v8844, %v8951
  %v9197 = vmax.f32 %v8845, %v8955
  %v9198 = vmax.f32 %v8846, %v8957
  %v9199 = vmax.f32 %v8847, %v8956
  %v9200 = vmax.f32 %v8848, %v8960
  %v9201 = vmax.f32 %v8849, %v8962
  %v9202 = vmax.f32 %v8850, %v8961
  %v9203 = vmax.f32 %v8851, %v8965
  %v9204 = vmax.f32 %v8852, %v8967
  %v9205 = vmax.f32 %v8853, %v8966
  %v9206 = vmax.f32 %v8854, %v8970
  %v9207 = vmax.f32 %v8855, %v8972
  %v9208 = vmax.f32 %v8856, %v8971
  %v9209 = vmax.f32 %v8857, %v8975
  %v9210 = vmax.f32 %v8858, %v8977
  %v9211 = vmax.f32 %v8859, %v8976
  %v9212 = vmax.f32 %v8860, %v8980
  %v9213 = vmax.f32 %v8861, %v8982
  %v9214 = vmax.f32 %v8862, %v8981
  %v9215 = vmax.f32 %v8863, %v8985
  %v9216 = vmax.f32 %v8864, %v8987
  %v9217 = vmax.f32 %v8865, %v8986
  %v9218 = vmax.f32 %v8866, %v8990
  %v9219 = vmax.f32 %v8867, %v8992
  %v9220 = vmax.f32 %v8868, %v8991
  %v9221 = vmax.f32 %v8869, %v8995
  %v9222 = vmax.f32 %v8870, %v8997
  %v9223 = vmax.f32 %v8871, %v8996
  %v9224 = vmax.f32 %v8872, %v9000
  %v9225 = vmax.f32 %v8873, %v9002
  %v9226 = vmax.f32 %v8874, %v9001
  %v9227 = vmax.f32 %v8875, %v9005
  %v9228 = vmax.f32 %v8876, %v9007
  %v9229 = vmax.f32 %v8877, %v9006
  %v9230 = vmax.f32 %v8878, %v9010
  %v9231 = vmax.f32 %v8879, %v9012
  %v9232 = vmax.f32 %v8880, %v9011
  %v9233 = vmax.f32 %v8881, %v9015
  %v9234 = vmax.f32 %v8882, %v9017
  %v9235 = vmax.f32 %v8883, %v9016
  %v9236 = vmax.f32 %v8884, %v9020
  %v9237 = vmax.f32 %v8885, %v9022
  %v9238 = vmax.f32 %v8886, %v9021
  %v9239 = vmax.f32 %v8887, %v9025
  %v9240 = vmax.f32 %v8888, %v9027
  %v9241 = vmax.f32 %v8889, %v9026
  %v9242 = vmax.f32 %v8890, %v9030
  %v9243 = vmax.f32 %v8891, %v9032
  %v9244 = vmax.f32 %v8892, %v9031
  %v9245 = vmax.f32 %v8893, %v9035
  %v9246 = vmax.f32 %v8894, %v9037
  %v9247 = vmax.f32 %v8895, %v9036
  %v9248 = vmax.f32 %v8896, %v9040
  %v9249 = vmax.f32 %v8897, %v9042
  %v9250 = vmax.f32 %v8898, %v9041
  %v9251 = vmax.f32 %v8899, %v9045
  %v9252 = vmax.f32 %v8900, %v9047
  %v9253 = vmax.f32 %v8901, %v9046
  %v9254 = vmax.f32 %v8902, %v9050
  %v9255 = vmax.f32 %v8903, %v9052
  %v9256 = vmax.f32 %v8904, %v9051
  %v9257 = vmax.f32 %v8905, %v9055
  %v9258 = vmax.f32 %v8906, %v9057
  %v9259 = vmax.f32 %v8907, %v9056
  %v9260 = vmax.f32 %v8908, %v9060
  %v9261 = vmax.f32 %v8909, %v9062
  %v9262 = vmax.f32 %v8910, %v9061
  %v9263 = vmax.f32 %v8911, %v9065
  %v9264 = vmax.f32 %v8912, %v9067
  %v9265 = vmax.f32 %v8913, %v9066
  %v9266 = vmax.f32 %v8914, %v9070
  %v9267 = vmax.f32 %v8915, %v9072
  %v9268 = vmax.f32 %v8916, %v9071
  %v9269 = vmax.f32 %v8917, %v9075
  %v9270 = vmax.f32 %v8918, %v9077
  %v9271 = vmax.f32 %v8919, %v9076
  %v9272 = vmax.f32 %v8920, %v9080
  %v9273 = vmax.f32 %v8921, %v9082
  %v9274 = vmax.f32 %v8922, %v9081
  %v9371 = vrot.slane %v9179, 2
  %v9372 = vrot.slane %v9180, 2
  %v9373 = vsel %vm1604, %v9371, %v9372
  %v9374 = vrot.slane %v9181, 2
  %v9375 = vsel %vm1604, %v9372, %v9374
  %v9376 = vrot.slane %v9182, 2
  %v9377 = vrot.slane %v9183, 2
  %v9378 = vsel %vm1604, %v9376, %v9377
  %v9379 = vrot.slane %v9184, 2
  %v9380 = vsel %vm1604, %v9377, %v9379
  %v9381 = vrot.slane %v9185, 2
  %v9382 = vrot.slane %v9186, 2
  %v9383 = vsel %vm1604, %v9381, %v9382
  %v9384 = vrot.slane %v9187, 2
  %v9385 = vsel %vm1604, %v9382, %v9384
  %v9386 = vrot.slane %v9188, 2
  %v9387 = vrot.slane %v9189, 2
  %v9388 = vsel %vm1604, %v9386, %v9387
  %v9389 = vrot.slane %v9190, 2
  %v9390 = vsel %vm1604, %v9387, %v9389
  %v9391 = vrot.slane %v9191, 2
  %v9392 = vrot.slane %v9192, 2
  %v9393 = vsel %vm1604, %v9391, %v9392
  %v9394 = vrot.slane %v9193, 2
  %v9395 = vsel %vm1604, %v9392, %v9394
  %v9396 = vrot.slane %v9194, 2
  %v9397 = vrot.slane %v9195, 2
  %v9398 = vsel %vm1604, %v9396, %v9397
  %v9399 = vrot.slane %v9196, 2
  %v9400 = vsel %vm1604, %v9397, %v9399
  %v9401 = vrot.slane %v9197, 2
  %v9402 = vrot.slane %v9198, 2
  %v9403 = vsel %vm1604, %v9401, %v9402
  %v9404 = vrot.slane %v9199, 2
  %v9405 = vsel %vm1604, %v9402, %v9404
  %v9406 = vrot.slane %v9200, 2
  %v9407 = vrot.slane %v9201, 2
  %v9408 = vsel %vm1604, %v9406, %v9407
  %v9409 = vrot.slane %v9202, 2
  %v9410 = vsel %vm1604, %v9407, %v9409
  %v9411 = vrot.slane %v9203, 2
  %v9412 = vrot.slane %v9204, 2
  %v9413 = vsel %vm1604, %v9411, %v9412
  %v9414 = vrot.slane %v9205, 2
  %v9415 = vsel %vm1604, %v9412, %v9414
  %v9416 = vrot.slane %v9206, 2
  %v9417 = vrot.slane %v9207, 2
  %v9418 = vsel %vm1604, %v9416, %v9417
  %v9419 = vrot.slane %v9208, 2
  %v9420 = vsel %vm1604, %v9417, %v9419
  %v9421 = vrot.slane %v9209, 2
  %v9422 = vrot.slane %v9210, 2
  %v9423 = vsel %vm1604, %v9421, %v9422
  %v9424 = vrot.slane %v9211, 2
  %v9425 = vsel %vm1604, %v9422, %v9424
  %v9426 = vrot.slane %v9212, 2
  %v9427 = vrot.slane %v9213, 2
  %v9428 = vsel %vm1604, %v9426, %v9427
  %v9429 = vrot.slane %v9214, 2
  %v9430 = vsel %vm1604, %v9427, %v9429
  %v9431 = vrot.slane %v9215, 2
  %v9432 = vrot.slane %v9216, 2
  %v9433 = vsel %vm1604, %v9431, %v9432
  %v9434 = vrot.slane %v9217, 2
  %v9435 = vsel %vm1604, %v9432, %v9434
  %v9436 = vrot.slane %v9218, 2
  %v9437 = vrot.slane %v9219, 2
  %v9438 = vsel %vm1604, %v9436, %v9437
  %v9439 = vrot.slane %v9220, 2
  %v9440 = vsel %vm1604, %v9437, %v9439
  %v9441 = vrot.slane %v9221, 2
  %v9442 = vrot.slane %v9222, 2
  %v9443 = vsel %vm1604, %v9441, %v9442
  %v9444 = vrot.slane %v9223, 2
  %v9445 = vsel %vm1604, %v9442, %v9444
  %v9446 = vrot.slane %v9224, 2
  %v9447 = vrot.slane %v9225, 2
  %v9448 = vsel %vm1604, %v9446, %v9447
  %v9449 = vrot.slane %v9226, 2
  %v9450 = vsel %vm1604, %v9447, %v9449
  %v9451 = vrot.slane %v9227, 2
  %v9452 = vrot.slane %v9228, 2
  %v9453 = vsel %vm1604, %v9451, %v9452
  %v9454 = vrot.slane %v9229, 2
  %v9455 = vsel %vm1604, %v9452, %v9454
  %v9456 = vrot.slane %v9230, 2
  %v9457 = vrot.slane %v9231, 2
  %v9458 = vsel %vm1604, %v9456, %v9457
  %v9459 = vrot.slane %v9232, 2
  %v9460 = vsel %vm1604, %v9457, %v9459
  %v9461 = vrot.slane %v9233, 2
  %v9462 = vrot.slane %v9234, 2
  %v9463 = vsel %vm1604, %v9461, %v9462
  %v9464 = vrot.slane %v9235, 2
  %v9465 = vsel %vm1604, %v9462, %v9464
  %v9466 = vrot.slane %v9236, 2
  %v9467 = vrot.slane %v9237, 2
  %v9468 = vsel %vm1604, %v9466, %v9467
  %v9469 = vrot.slane %v9238, 2
  %v9470 = vsel %vm1604, %v9467, %v9469
  %v9471 = vrot.slane %v9239, 2
  %v9472 = vrot.slane %v9240, 2
  %v9473 = vsel %vm1604, %v9471, %v9472
  %v9474 = vrot.slane %v9241, 2
  %v9475 = vsel %vm1604, %v9472, %v9474
  %v9476 = vrot.slane %v9242, 2
  %v9477 = vrot.slane %v9243, 2
  %v9478 = vsel %vm1604, %v9476, %v9477
  %v9479 = vrot.slane %v9244, 2
  %v9480 = vsel %vm1604, %v9477, %v9479
  %v9481 = vrot.slane %v9245, 2
  %v9482 = vrot.slane %v9246, 2
  %v9483 = vsel %vm1604, %v9481, %v9482
  %v9484 = vrot.slane %v9247, 2
  %v9485 = vsel %vm1604, %v9482, %v9484
  %v9486 = vrot.slane %v9248, 2
  %v9487 = vrot.slane %v9249, 2
  %v9488 = vsel %vm1604, %v9486, %v9487
  %v9489 = vrot.slane %v9250, 2
  %v9490 = vsel %vm1604, %v9487, %v9489
  %v9491 = vrot.slane %v9251, 2
  %v9492 = vrot.slane %v9252, 2
  %v9493 = vsel %vm1604, %v9491, %v9492
  %v9494 = vrot.slane %v9253, 2
  %v9495 = vsel %vm1604, %v9492, %v9494
  %v9496 = vrot.slane %v9254, 2
  %v9497 = vrot.slane %v9255, 2
  %v9498 = vsel %vm1604, %v9496, %v9497
  %v9499 = vrot.slane %v9256, 2
  %v9500 = vsel %vm1604, %v9497, %v9499
  %v9501 = vrot.slane %v9257, 2
  %v9502 = vrot.slane %v9258, 2
  %v9503 = vsel %vm1604, %v9501, %v9502
  %v9504 = vrot.slane %v9259, 2
  %v9505 = vsel %vm1604, %v9502, %v9504
  %v9506 = vrot.slane %v9260, 2
  %v9507 = vrot.slane %v9261, 2
  %v9508 = vsel %vm1604, %v9506, %v9507
  %v9509 = vrot.slane %v9262, 2
  %v9510 = vsel %vm1604, %v9507, %v9509
  %v9511 = vrot.slane %v9263, 2
  %v9512 = vrot.slane %v9264, 2
  %v9513 = vsel %vm1604, %v9511, %v9512
  %v9514 = vrot.slane %v9265, 2
  %v9515 = vsel %vm1604, %v9512, %v9514
  %v9516 = vrot.slane %v9266, 2
  %v9517 = vrot.slane %v9267, 2
  %v9518 = vsel %vm1604, %v9516, %v9517
  %v9519 = vrot.slane %v9268, 2
  %v9520 = vsel %vm1604, %v9517, %v9519
  %v9521 = vrot.slane %v9269, 2
  %v9522 = vrot.slane %v9270, 2
  %v9523 = vsel %vm1604, %v9521, %v9522
  %v9524 = vrot.slane %v9271, 2
  %v9525 = vsel %vm1604, %v9522, %v9524
  %v9526 = vrot.slane %v9272, 2
  %v9527 = vrot.slane %v9273, 2
  %v9528 = vsel %vm1604, %v9526, %v9527
  %v9529 = vrot.slane %v9274, 2
  %v9530 = vsel %vm1604, %v9527, %v9529
  %v9595 = vpack.c.bf16 %v9375, %v9373
  %v9596 = vpack.c.bf16 %v9380, %v9378
  %v9597 = vpack.c.bf16 %v9385, %v9383
  %v9598 = vpack.c.bf16 %v9390, %v9388
  %v9599 = vpack.c.bf16 %v9395, %v9393
  %v9600 = vpack.c.bf16 %v9400, %v9398
  %v9601 = vpack.c.bf16 %v9405, %v9403
  %v9602 = vpack.c.bf16 %v9410, %v9408
  %v9603 = vpack.c.bf16 %v9415, %v9413
  %v9604 = vpack.c.bf16 %v9420, %v9418
  %v9605 = vpack.c.bf16 %v9425, %v9423
  %v9606 = vpack.c.bf16 %v9430, %v9428
  %v9607 = vpack.c.bf16 %v9435, %v9433
  %v9608 = vpack.c.bf16 %v9440, %v9438
  %v9609 = vpack.c.bf16 %v9445, %v9443
  %v9610 = vpack.c.bf16 %v9450, %v9448
  %v9611 = vpack.c.bf16 %v9455, %v9453
  %v9612 = vpack.c.bf16 %v9460, %v9458
  %v9613 = vpack.c.bf16 %v9465, %v9463
  %v9614 = vpack.c.bf16 %v9470, %v9468
  %v9615 = vpack.c.bf16 %v9475, %v9473
  %v9616 = vpack.c.bf16 %v9480, %v9478
  %v9617 = vpack.c.bf16 %v9485, %v9483
  %v9618 = vpack.c.bf16 %v9490, %v9488
  %v9619 = vpack.c.bf16 %v9495, %v9493
  %v9620 = vpack.c.bf16 %v9500, %v9498
  %v9621 = vpack.c.bf16 %v9505, %v9503
  %v9622 = vpack.c.bf16 %v9510, %v9508
  %v9623 = vpack.c.bf16 %v9515, %v9513
  %v9624 = vpack.c.bf16 %v9520, %v9518
  %v9625 = vpack.c.bf16 %v9525, %v9523
  %v9626 = vpack.c.bf16 %v9530, %v9528
  %s9627 = scalar_lea.vmem %s3, 3
  %v9628 = vld [vmem:[%s9627] sm:$0x1]
  %v9630 = vsel %vm3299, %v9595, 0
  %v9633 = vsel %vm3299, %v9596, 0
  %v9636 = vsel %vm3299, %v9597, 0
  %v9639 = vsel %vm3299, %v9598, 0
  %v9642 = vsel %vm3299, %v9599, 0
  %v9645 = vsel %vm3299, %v9600, 0
  %v9648 = vsel %vm3299, %v9601, 0
  %v9651 = vsel %vm3299, %v9602, 0
  %v9654 = vsel %vm3299, %v9603, 0
  %v9657 = vsel %vm3299, %v9604, 0
  %v9660 = vsel %vm3299, %v9605, 0
  %v9663 = vsel %vm3299, %v9606, 0
  %v9666 = vsel %vm3299, %v9607, 0
  %v9669 = vsel %vm3299, %v9608, 0
  %v9672 = vsel %vm3299, %v9609, 0
  %v9675 = vsel %vm3299, %v9610, 0
  %v9678 = vsel %vm3299, %v9611, 0
  %v9681 = vsel %vm3299, %v9612, 0
  %v9684 = vsel %vm3299, %v9613, 0
  %v9687 = vsel %vm3299, %v9614, 0
  %v9690 = vsel %vm3299, %v9615, 0
  %v9693 = vsel %vm3299, %v9616, 0
  %v9696 = vsel %vm3299, %v9617, 0
  %v9699 = vsel %vm3299, %v9618, 0
  %v9702 = vsel %vm3299, %v9619, 0
  %v9705 = vsel %vm3299, %v9620, 0
  %v9708 = vsel %vm3299, %v9621, 0
  %v9711 = vsel %vm3299, %v9622, 0
  %v9714 = vsel %vm3299, %v9623, 0
  %v9717 = vsel %vm3299, %v9624, 0
  %v9720 = vsel %vm3299, %v9625, 0
  %v9723 = vsel %vm3299, %v9626, 0
  %v9726 = vsel %vm3396, %v9628, 0
  %9728 = vmatprep.subr.bf16.mxu0 0
  %9729 = vmatpush1.bf16.msra.mxu0 %v9726
  %9730 = vmatprep.subr.bf16.mxu0 0
  %9731 = vmatpush1.bf16.msra.mxu0 0
  %9732 = vmatprep.subr.bf16.mxu0 0
  %9733 = vmatpush1.bf16.msra.mxu0 0
  %9734 = vmatprep.subr.bf16.mxu0 0
  %9735 = vmatpush1.bf16.msra.mxu0 0
  %9736 = vmatprep.subr.bf16.mxu0 0
  %9737 = vmatpush1.bf16.msra.mxu0 0
  %9738 = vmatprep.subr.bf16.mxu0 0
  %9739 = vmatpush1.bf16.msra.mxu0 0
  %9740 = vmatprep.subr.bf16.mxu0 0
  %9741 = vmatpush1.bf16.msra.mxu0 0
  %9742 = vmatprep.subr.bf16.mxu0 0
  %9743 = vmatpush1.bf16.msra.mxu0 0
  %9744 = vmatprep.subr.bf16.mxu0 0
  %9745 = vmatpush1.bf16.msra.mxu0 0
  %9746 = vmatprep.subr.bf16.mxu0 0
  %9747 = vmatpush1.bf16.msra.mxu0 0
  %9748 = vmatprep.subr.bf16.mxu0 0
  %9749 = vmatpush1.bf16.msra.mxu0 0
  %9750 = vmatprep.subr.bf16.mxu0 0
  %9751 = vmatpush1.bf16.msra.mxu0 0
  %9752 = vmatprep.subr.bf16.mxu0 0
  %9753 = vmatpush1.bf16.msra.mxu0 0
  %9754 = vmatprep.subr.bf16.mxu0 0
  %9755 = vmatpush1.bf16.msra.mxu0 0
  %9756 = vmatprep.subr.bf16.mxu0 0
  %9757 = vmatpush1.bf16.msra.mxu0 0
  %9758 = vmatprep.subr.bf16.mxu0 0
  %9759 = vmatpush1.bf16.msra.mxu0 0
  %9760 = vmatprep.mubr.bf16.mxu0 0
  %9761 = vmatmul.mubr.bf16.gmra.mrb[0].mxu0 %v9630
  %v9762 = vpop.f32.mrb[0].mxu0
  %v9763 = vadd.f32 0.0, %v9762
  %v9764 = vpop.f32.mrb[0].mxu0
  %v9765 = vpop.f32.mrb[0].mxu0
  %v9766 = vadd.f32 0.0, %v9765
  %v9767 = vpop.f32.mrb[0].mxu0
  %9768 = vmatprep.mubr.bf16.mxu0 0
  %9769 = vmatmul.mubr.bf16.gmra.mrb[0].mxu0 %v9633
  %v9770 = vpop.f32.mrb[0].mxu0
  %v9771 = vadd.f32 0.0, %v9770
  %v9772 = vpop.f32.mrb[0].mxu0
  %v9773 = vpop.f32.mrb[0].mxu0
  %v9774 = vadd.f32 0.0, %v9773
  %v9775 = vpop.f32.mrb[0].mxu0
  %9776 = vmatprep.mubr.bf16.mxu0 0
  %9777 = vmatmul.mubr.bf16.gmra.mrb[0].mxu0 %v9636
  %v9778 = vpop.f32.mrb[0].mxu0
  %v9779 = vadd.f32 0.0, %v9778
  %v9780 = vpop.f32.mrb[0].mxu0
  %v9781 = vpop.f32.mrb[0].mxu0
  %v9782 = vadd.f32 0.0, %v9781
  %v9783 = vpop.f32.mrb[0].mxu0
  %9784 = vmatprep.mubr.bf16.mxu0 0
  %9785 = vmatmul.mubr.bf16.gmra.mrb[0].mxu0 %v9639
  %v9786 = vpop.f32.mrb[0].mxu0
  %v9787 = vadd.f32 0.0, %v9786
  %v9788 = vpop.f32.mrb[0].mxu0
  %v9789 = vpop.f32.mrb[0].mxu0
  %v9790 = vadd.f32 0.0, %v9789
  %v9791 = vpop.f32.mrb[0].mxu0
  %9792 = vmatprep.mubr.bf16.mxu0 0
  %9793 = vmatmul.mubr.bf16.gmra.mrb[0].mxu0 %v9642
  %v9794 = vpop.f32.mrb[0].mxu0
  %v9795 = vadd.f32 0.0, %v9794
  %v9796 = vpop.f32.mrb[0].mxu0
  %v9797 = vpop.f32.mrb[0].mxu0
  %v9798 = vadd.f32 0.0, %v9797
  %v9799 = vpop.f32.mrb[0].mxu0
  %9800 = vmatprep.mubr.bf16.mxu0 0
  %9801 = vmatmul.mubr.bf16.gmra.mrb[0].mxu0 %v9645
  %v9802 = vpop.f32.mrb[0].mxu0
  %v9803 = vadd.f32 0.0, %v9802
  %v9804 = vpop.f32.mrb[0].mxu0
  %v9805 = vpop.f32.mrb[0].mxu0
  %v9806 = vadd.f32 0.0, %v9805
  %v9807 = vpop.f32.mrb[0].mxu0
  %9808 = vmatprep.mubr.bf16.mxu0 0
  %9809 = vmatmul.mubr.bf16.gmra.mrb[0].mxu0 %v9648
  %v9810 = vpop.f32.mrb[0].mxu0
  %v9811 = vadd.f32 0.0, %v9810
  %v9812 = vpop.f32.mrb[0].mxu0
  %v9813 = vpop.f32.mrb[0].mxu0
  %v9814 = vadd.f32 0.0, %v9813
  %v9815 = vpop.f32.mrb[0].mxu0
  %9816 = vmatprep.mubr.bf16.mxu0 0
  %9817 = vmatmul.mubr.bf16.gmra.mrb[0].mxu0 %v9651
  %v9818 = vpop.f32.mrb[0].mxu0
  %v9819 = vadd.f32 0.0, %v9818
  %v9820 = vpop.f32.mrb[0].mxu0
  %v9821 = vpop.f32.mrb[0].mxu0
  %v9822 = vadd.f32 0.0, %v9821
  %v9823 = vpop.f32.mrb[0].mxu0
  %9824 = vmatprep.mubr.bf16.mxu0 0
  %9825 = vmatmul.mubr.bf16.gmra.mrb[0].mxu0 %v9654
  %v9826 = vpop.f32.mrb[0].mxu0
  %v9827 = vadd.f32 0.0, %v9826
  %v9828 = vpop.f32.mrb[0].mxu0
  %v9829 = vpop.f32.mrb[0].mxu0
  %v9830 = vadd.f32 0.0, %v9829
  %v9831 = vpop.f32.mrb[0].mxu0
  %9832 = vmatprep.mubr.bf16.mxu0 0
  %9833 = vmatmul.mubr.bf16.gmra.mrb[0].mxu0 %v9657
  %v9834 = vpop.f32.mrb[0].mxu0
  %v9835 = vadd.f32 0.0, %v9834
  %v9836 = vpop.f32.mrb[0].mxu0
  %v9837 = vpop.f32.mrb[0].mxu0
  %v9838 = vadd.f32 0.0, %v9837
  %v9839 = vpop.f32.mrb[0].mxu0
  %9840 = vmatprep.mubr.bf16.mxu0 0
  %9841 = vmatmul.mubr.bf16.gmra.mrb[0].mxu0 %v9660
  %v9842 = vpop.f32.mrb[0].mxu0
  %v9843 = vadd.f32 0.0, %v9842
  %v9844 = vpop.f32.mrb[0].mxu0
  %v9845 = vpop.f32.mrb[0].mxu0
  %v9846 = vadd.f32 0.0, %v9845
  %v9847 = vpop.f32.mrb[0].mxu0
  %9848 = vmatprep.mubr.bf16.mxu0 0
  %9849 = vmatmul.mubr.bf16.gmra.mrb[0].mxu0 %v9663
  %v9850 = vpop.f32.mrb[0].mxu0
  %v9851 = vadd.f32 0.0, %v9850
  %v9852 = vpop.f32.mrb[0].mxu0
  %v9853 = vpop.f32.mrb[0].mxu0
  %v9854 = vadd.f32 0.0, %v9853
  %v9855 = vpop.f32.mrb[0].mxu0
  %9856 = vmatprep.mubr.bf16.mxu0 0
  %9857 = vmatmul.mubr.bf16.gmra.mrb[0].mxu0 %v9666
  %v9858 = vpop.f32.mrb[0].mxu0
  %v9859 = vadd.f32 0.0, %v9858
  %v9860 = vpop.f32.mrb[0].mxu0
  %v9861 = vpop.f32.mrb[0].mxu0
  %v9862 = vadd.f32 0.0, %v9861
  %v9863 = vpop.f32.mrb[0].mxu0
  %9864 = vmatprep.mubr.bf16.mxu0 0
  %9865 = vmatmul.mubr.bf16.gmra.mrb[0].mxu0 %v9669
  %v9866 = vpop.f32.mrb[0].mxu0
  %v9867 = vadd.f32 0.0, %v9866
  %v9868 = vpop.f32.mrb[0].mxu0
  %v9869 = vpop.f32.mrb[0].mxu0
  %v9870 = vadd.f32 0.0, %v9869
  %v9871 = vpop.f32.mrb[0].mxu0
  %9872 = vmatprep.mubr.bf16.mxu0 0
  %9873 = vmatmul.mubr.bf16.gmra.mrb[0].mxu0 %v9672
  %v9874 = vpop.f32.mrb[0].mxu0
  %v9875 = vadd.f32 0.0, %v9874
  %v9876 = vpop.f32.mrb[0].mxu0
  %v9877 = vpop.f32.mrb[0].mxu0
  %v9878 = vadd.f32 0.0, %v9877
  %v9879 = vpop.f32.mrb[0].mxu0
  %9880 = vmatprep.mubr.bf16.mxu0 0
  %9881 = vmatmul.mubr.bf16.gmra.mrb[0].mxu0 %v9675
  %v9882 = vpop.f32.mrb[0].mxu0
  %v9883 = vadd.f32 0.0, %v9882
  %v9884 = vpop.f32.mrb[0].mxu0
  %v9885 = vpop.f32.mrb[0].mxu0
  %v9886 = vadd.f32 0.0, %v9885
  %v9887 = vpop.f32.mrb[0].mxu0
  %9888 = vmatprep.mubr.bf16.mxu0 0
  %9889 = vmatmul.mubr.bf16.gmra.mrb[0].mxu0 %v9678
  %v9890 = vpop.f32.mrb[0].mxu0
  %v9891 = vadd.f32 0.0, %v9890
  %v9892 = vpop.f32.mrb[0].mxu0
  %v9893 = vpop.f32.mrb[0].mxu0
  %v9894 = vadd.f32 0.0, %v9893
  %v9895 = vpop.f32.mrb[0].mxu0
  %9896 = vmatprep.mubr.bf16.mxu0 0
  %9897 = vmatmul.mubr.bf16.gmra.mrb[0].mxu0 %v9681
  %v9898 = vpop.f32.mrb[0].mxu0
  %v9899 = vadd.f32 0.0, %v9898
  %v9900 = vpop.f32.mrb[0].mxu0
  %v9901 = vpop.f32.mrb[0].mxu0
  %v9902 = vadd.f32 0.0, %v9901
  %v9903 = vpop.f32.mrb[0].mxu0
  %9904 = vmatprep.mubr.bf16.mxu0 0
  %9905 = vmatmul.mubr.bf16.gmra.mrb[0].mxu0 %v9684
  %v9906 = vpop.f32.mrb[0].mxu0
  %v9907 = vadd.f32 0.0, %v9906
  %v9908 = vpop.f32.mrb[0].mxu0
  %v9909 = vpop.f32.mrb[0].mxu0
  %v9910 = vadd.f32 0.0, %v9909
  %v9911 = vpop.f32.mrb[0].mxu0
  %9912 = vmatprep.mubr.bf16.mxu0 0
  %9913 = vmatmul.mubr.bf16.gmra.mrb[0].mxu0 %v9687
  %v9914 = vpop.f32.mrb[0].mxu0
  %v9915 = vadd.f32 0.0, %v9914
  %v9916 = vpop.f32.mrb[0].mxu0
  %v9917 = vpop.f32.mrb[0].mxu0
  %v9918 = vadd.f32 0.0, %v9917
  %v9919 = vpop.f32.mrb[0].mxu0
  %9920 = vmatprep.mubr.bf16.mxu0 0
  %9921 = vmatmul.mubr.bf16.gmra.mrb[0].mxu0 %v9690
  %v9922 = vpop.f32.mrb[0].mxu0
  %v9923 = vadd.f32 0.0, %v9922
  %v9924 = vpop.f32.mrb[0].mxu0
  %v9925 = vpop.f32.mrb[0].mxu0
  %v9926 = vadd.f32 0.0, %v9925
  %v9927 = vpop.f32.mrb[0].mxu0
  %9928 = vmatprep.mubr.bf16.mxu0 0
  %9929 = vmatmul.mubr.bf16.gmra.mrb[0].mxu0 %v9693
  %v9930 = vpop.f32.mrb[0].mxu0
  %v9931 = vadd.f32 0.0, %v9930
  %v9932 = vpop.f32.mrb[0].mxu0
  %v9933 = vpop.f32.mrb[0].mxu0
  %v9934 = vadd.f32 0.0, %v9933
  %v9935 = vpop.f32.mrb[0].mxu0
  %9936 = vmatprep.mubr.bf16.mxu0 0
  %9937 = vmatmul.mubr.bf16.gmra.mrb[0].mxu0 %v9696
  %v9938 = vpop.f32.mrb[0].mxu0
  %v9939 = vadd.f32 0.0, %v9938
  %v9940 = vpop.f32.mrb[0].mxu0
  %v9941 = vpop.f32.mrb[0].mxu0
  %v9942 = vadd.f32 0.0, %v9941
  %v9943 = vpop.f32.mrb[0].mxu0
  %9944 = vmatprep.mubr.bf16.mxu0 0
  %9945 = vmatmul.mubr.bf16.gmra.mrb[0].mxu0 %v9699
  %v9946 = vpop.f32.mrb[0].mxu0
  %v9947 = vadd.f32 0.0, %v9946
  %v9948 = vpop.f32.mrb[0].mxu0
  %v9949 = vpop.f32.mrb[0].mxu0
  %v9950 = vadd.f32 0.0, %v9949
  %v9951 = vpop.f32.mrb[0].mxu0
  %9952 = vmatprep.mubr.bf16.mxu0 0
  %9953 = vmatmul.mubr.bf16.gmra.mrb[0].mxu0 %v9702
  %v9954 = vpop.f32.mrb[0].mxu0
  %v9955 = vadd.f32 0.0, %v9954
  %v9956 = vpop.f32.mrb[0].mxu0
  %v9957 = vpop.f32.mrb[0].mxu0
  %v9958 = vadd.f32 0.0, %v9957
  %v9959 = vpop.f32.mrb[0].mxu0
  %9960 = vmatprep.mubr.bf16.mxu0 0
  %9961 = vmatmul.mubr.bf16.gmra.mrb[0].mxu0 %v9705
  %v9962 = vpop.f32.mrb[0].mxu0
  %v9963 = vadd.f32 0.0, %v9962
  %v9964 = vpop.f32.mrb[0].mxu0
  %v9965 = vpop.f32.mrb[0].mxu0
  %v9966 = vadd.f32 0.0, %v9965
  %v9967 = vpop.f32.mrb[0].mxu0
  %9968 = vmatprep.mubr.bf16.mxu0 0
  %9969 = vmatmul.mubr.bf16.gmra.mrb[0].mxu0 %v9708
  %v9970 = vpop.f32.mrb[0].mxu0
  %v9971 = vadd.f32 0.0, %v9970
  %v9972 = vpop.f32.mrb[0].mxu0
  %v9973 = vpop.f32.mrb[0].mxu0
  %v9974 = vadd.f32 0.0, %v9973
  %v9975 = vpop.f32.mrb[0].mxu0
  %9976 = vmatprep.mubr.bf16.mxu0 0
  %9977 = vmatmul.mubr.bf16.gmra.mrb[0].mxu0 %v9711
  %v9978 = vpop.f32.mrb[0].mxu0
  %v9979 = vadd.f32 0.0, %v9978
  %v9980 = vpop.f32.mrb[0].mxu0
  %v9981 = vpop.f32.mrb[0].mxu0
  %v9982 = vadd.f32 0.0, %v9981
  %v9983 = vpop.f32.mrb[0].mxu0
  %9984 = vmatprep.mubr.bf16.mxu0 0
  %9985 = vmatmul.mubr.bf16.gmra.mrb[0].mxu0 %v9714
  %v9986 = vpop.f32.mrb[0].mxu0
  %v9987 = vadd.f32 0.0, %v9986
  %v9988 = vpop.f32.mrb[0].mxu0
  %v9989 = vpop.f32.mrb[0].mxu0
  %v9990 = vadd.f32 0.0, %v9989
  %v9991 = vpop.f32.mrb[0].mxu0
  %9992 = vmatprep.mubr.bf16.mxu0 0
  %9993 = vmatmul.mubr.bf16.gmra.mrb[0].mxu0 %v9717
  %v9994 = vpop.f32.mrb[0].mxu0
  %v9995 = vadd.f32 0.0, %v9994
  %v9996 = vpop.f32.mrb[0].mxu0
  %v9997 = vpop.f32.mrb[0].mxu0
  %v9998 = vadd.f32 0.0, %v9997
  %v9999 = vpop.f32.mrb[0].mxu0
  %10000 = vmatprep.mubr.bf16.mxu0 0
  %10001 = vmatmul.mubr.bf16.gmra.mrb[0].mxu0 %v9720
  %v10002 = vpop.f32.mrb[0].mxu0
  %v10003 = vadd.f32 0.0, %v10002
  %v10004 = vpop.f32.mrb[0].mxu0
  %v10005 = vpop.f32.mrb[0].mxu0
  %v10006 = vadd.f32 0.0, %v10005
  %v10007 = vpop.f32.mrb[0].mxu0
  %10008 = vmatprep.mubr.bf16.mxu0 0
  %10009 = vmatmul.mubr.bf16.gmra.mrb[0].mxu0 %v9723
  %v10010 = vpop.f32.mrb[0].mxu0
  %v10011 = vadd.f32 0.0, %v10010
  %v10012 = vpop.f32.mrb[0].mxu0
  %v10013 = vpop.f32.mrb[0].mxu0
  %v10014 = vadd.f32 0.0, %v10013
  %v10015 = vpop.f32.mrb[0].mxu0
  %10016 = vdwg.mxu0
  %v10017 = vadd.f32 %v7323, %v9763
  %v10018 = vadd.f32 %v7324, %v9766
  %v10019 = vadd.f32 %v7325, %v9771
  %v10020 = vadd.f32 %v7326, %v9774
  %v10021 = vadd.f32 %v7327, %v9779
  %v10022 = vadd.f32 %v7328, %v9782
  %v10023 = vadd.f32 %v7329, %v9787
  %v10024 = vadd.f32 %v7330, %v9790
  %v10025 = vadd.f32 %v7331, %v9795
  %v10026 = vadd.f32 %v7332, %v9798
  %v10027 = vadd.f32 %v7333, %v9803
  %v10028 = vadd.f32 %v7334, %v9806
  %v10029 = vadd.f32 %v7335, %v9811
  %v10030 = vadd.f32 %v7336, %v9814
  %v10031 = vadd.f32 %v7337, %v9819
  %v10032 = vadd.f32 %v7338, %v9822
  %v10033 = vadd.f32 %v7339, %v9827
  %v10034 = vadd.f32 %v7340, %v9830
  %v10035 = vadd.f32 %v7341, %v9835
  %v10036 = vadd.f32 %v7342, %v9838
  %v10037 = vadd.f32 %v7343, %v9843
  %v10038 = vadd.f32 %v7344, %v9846
  %v10039 = vadd.f32 %v7345, %v9851
  %v10040 = vadd.f32 %v7346, %v9854
  %v10041 = vadd.f32 %v7347, %v9859
  %v10042 = vadd.f32 %v7348, %v9862
  %v10043 = vadd.f32 %v7349, %v9867
  %v10044 = vadd.f32 %v7350, %v9870
  %v10045 = vadd.f32 %v7351, %v9875
  %v10046 = vadd.f32 %v7352, %v9878
  %v10047 = vadd.f32 %v7353, %v9883
  %v10048 = vadd.f32 %v7354, %v9886
  %v10049 = vadd.f32 %v7355, %v9891
  %v10050 = vadd.f32 %v7356, %v9894
  %v10051 = vadd.f32 %v7357, %v9899
  %v10052 = vadd.f32 %v7358, %v9902
  %v10053 = vadd.f32 %v7359, %v9907
  %v10054 = vadd.f32 %v7360, %v9910
  %v10055 = vadd.f32 %v7361, %v9915
  %v10056 = vadd.f32 %v7362, %v9918
  %v10057 = vadd.f32 %v7363, %v9923
  %v10058 = vadd.f32 %v7364, %v9926
  %v10059 = vadd.f32 %v7365, %v9931
  %v10060 = vadd.f32 %v7366, %v9934
  %v10061 = vadd.f32 %v7367, %v9939
  %v10062 = vadd.f32 %v7368, %v9942
  %v10063 = vadd.f32 %v7369, %v9947
  %v10064 = vadd.f32 %v7370, %v9950
  %v10065 = vadd.f32 %v7371, %v9955
  %v10066 = vadd.f32 %v7372, %v9958
  %v10067 = vadd.f32 %v7373, %v9963
  %v10068 = vadd.f32 %v7374, %v9966
  %v10069 = vadd.f32 %v7375, %v9971
  %v10070 = vadd.f32 %v7376, %v9974
  %v10071 = vadd.f32 %v7377, %v9979
  %v10072 = vadd.f32 %v7378, %v9982
  %v10073 = vadd.f32 %v7379, %v9987
  %v10074 = vadd.f32 %v7380, %v9990
  %v10075 = vadd.f32 %v7381, %v9995
  %v10076 = vadd.f32 %v7382, %v9998
  %v10077 = vadd.f32 %v7383, %v10003
  %v10078 = vadd.f32 %v7384, %v10006
  %v10079 = vadd.f32 %v7385, %v10011
  %v10080 = vadd.f32 %v7386, %v10014
  %v10081 = vld [vmem:[%s4] sm:$0x1]
  %v10083 = vlaneseq
  %v10084 = vshrl.u32 %v10083, 7
  %v10085 = vsub.s32 0, %v10084
  %v10086 = vrot.slane %v10081, %v10085
  %v10088 = vadd.f32 %v10017, %v10086
  %v10089 = vadd.f32 %v10018, %v10086
  %v10090 = vadd.f32 %v10019, %v10086
  %v10091 = vadd.f32 %v10020, %v10086
  %v10092 = vadd.f32 %v10021, %v10086
  %v10093 = vadd.f32 %v10022, %v10086
  %v10094 = vadd.f32 %v10023, %v10086
  %v10095 = vadd.f32 %v10024, %v10086
  %v10096 = vadd.f32 %v10025, %v10086
  %v10097 = vadd.f32 %v10026, %v10086
  %v10098 = vadd.f32 %v10027, %v10086
  %v10099 = vadd.f32 %v10028, %v10086
  %v10100 = vadd.f32 %v10029, %v10086
  %v10101 = vadd.f32 %v10030, %v10086
  %v10102 = vadd.f32 %v10031, %v10086
  %v10103 = vadd.f32 %v10032, %v10086
  %v10104 = vadd.f32 %v10033, %v10086
  %v10105 = vadd.f32 %v10034, %v10086
  %v10106 = vadd.f32 %v10035, %v10086
  %v10107 = vadd.f32 %v10036, %v10086
  %v10108 = vadd.f32 %v10037, %v10086
  %v10109 = vadd.f32 %v10038, %v10086
  %v10110 = vadd.f32 %v10039, %v10086
  %v10111 = vadd.f32 %v10040, %v10086
  %v10112 = vadd.f32 %v10041, %v10086
  %v10113 = vadd.f32 %v10042, %v10086
  %v10114 = vadd.f32 %v10043, %v10086
  %v10115 = vadd.f32 %v10044, %v10086
  %v10116 = vadd.f32 %v10045, %v10086
  %v10117 = vadd.f32 %v10046, %v10086
  %v10118 = vadd.f32 %v10047, %v10086
  %v10119 = vadd.f32 %v10048, %v10086
  %v10120 = vadd.f32 %v10049, %v10086
  %v10121 = vadd.f32 %v10050, %v10086
  %v10122 = vadd.f32 %v10051, %v10086
  %v10123 = vadd.f32 %v10052, %v10086
  %v10124 = vadd.f32 %v10053, %v10086
  %v10125 = vadd.f32 %v10054, %v10086
  %v10126 = vadd.f32 %v10055, %v10086
  %v10127 = vadd.f32 %v10056, %v10086
  %v10128 = vadd.f32 %v10057, %v10086
  %v10129 = vadd.f32 %v10058, %v10086
  %v10130 = vadd.f32 %v10059, %v10086
  %v10131 = vadd.f32 %v10060, %v10086
  %v10132 = vadd.f32 %v10061, %v10086
  %v10133 = vadd.f32 %v10062, %v10086
  %v10134 = vadd.f32 %v10063, %v10086
  %v10135 = vadd.f32 %v10064, %v10086
  %v10136 = vadd.f32 %v10065, %v10086
  %v10137 = vadd.f32 %v10066, %v10086
  %v10138 = vadd.f32 %v10067, %v10086
  %v10139 = vadd.f32 %v10068, %v10086
  %v10140 = vadd.f32 %v10069, %v10086
  %v10141 = vadd.f32 %v10070, %v10086
  %v10142 = vadd.f32 %v10071, %v10086
  %v10143 = vadd.f32 %v10072, %v10086
  %v10144 = vadd.f32 %v10073, %v10086
  %v10145 = vadd.f32 %v10074, %v10086
  %v10146 = vadd.f32 %v10075, %v10086
  %v10147 = vadd.f32 %v10076, %v10086
  %v10148 = vadd.f32 %v10077, %v10086
  %v10149 = vadd.f32 %v10078, %v10086
  %v10150 = vadd.f32 %v10079, %v10086
  %v10151 = vadd.f32 %v10080, %v10086
  %v10152 = vmul.f32 %v10088, 0.1
  %v10153 = vmul.f32 %v10089, 0.1
  %v10154 = vmul.f32 %v10090, 0.1
  %v10155 = vmul.f32 %v10091, 0.1
  %v10156 = vmul.f32 %v10092, 0.1
  %v10157 = vmul.f32 %v10093, 0.1
  %v10158 = vmul.f32 %v10094, 0.1
  %v10159 = vmul.f32 %v10095, 0.1
  %v10160 = vmul.f32 %v10096, 0.1
  %v10161 = vmul.f32 %v10097, 0.1
  %v10162 = vmul.f32 %v10098, 0.1
  %v10163 = vmul.f32 %v10099, 0.1
  %v10164 = vmul.f32 %v10100, 0.1
  %v10165 = vmul.f32 %v10101, 0.1
  %v10166 = vmul.f32 %v10102, 0.1
  %v10167 = vmul.f32 %v10103, 0.1
  %v10168 = vmul.f32 %v10104, 0.1
  %v10169 = vmul.f32 %v10105, 0.1
  %v10170 = vmul.f32 %v10106, 0.1
  %v10171 = vmul.f32 %v10107, 0.1
  %v10172 = vmul.f32 %v10108, 0.1
  %v10173 = vmul.f32 %v10109, 0.1
  %v10174 = vmul.f32 %v10110, 0.1
  %v10175 = vmul.f32 %v10111, 0.1
  %v10176 = vmul.f32 %v10112, 0.1
  %v10177 = vmul.f32 %v10113, 0.1
  %v10178 = vmul.f32 %v10114, 0.1
  %v10179 = vmul.f32 %v10115, 0.1
  %v10180 = vmul.f32 %v10116, 0.1
  %v10181 = vmul.f32 %v10117, 0.1
  %v10182 = vmul.f32 %v10118, 0.1
  %v10183 = vmul.f32 %v10119, 0.1
  %v10184 = vmul.f32 %v10120, 0.1
  %v10185 = vmul.f32 %v10121, 0.1
  %v10186 = vmul.f32 %v10122, 0.1
  %v10187 = vmul.f32 %v10123, 0.1
  %v10188 = vmul.f32 %v10124, 0.1
  %v10189 = vmul.f32 %v10125, 0.1
  %v10190 = vmul.f32 %v10126, 0.1
  %v10191 = vmul.f32 %v10127, 0.1
  %v10192 = vmul.f32 %v10128, 0.1
  %v10193 = vmul.f32 %v10129, 0.1
  %v10194 = vmul.f32 %v10130, 0.1
  %v10195 = vmul.f32 %v10131, 0.1
  %v10196 = vmul.f32 %v10132, 0.1
  %v10197 = vmul.f32 %v10133, 0.1
  %v10198 = vmul.f32 %v10134, 0.1
  %v10199 = vmul.f32 %v10135, 0.1
  %v10200 = vmul.f32 %v10136, 0.1
  %v10201 = vmul.f32 %v10137, 0.1
  %v10202 = vmul.f32 %v10138, 0.1
  %v10203 = vmul.f32 %v10139, 0.1
  %v10204 = vmul.f32 %v10140, 0.1
  %v10205 = vmul.f32 %v10141, 0.1
  %v10206 = vmul.f32 %v10142, 0.1
  %v10207 = vmul.f32 %v10143, 0.1
  %v10208 = vmul.f32 %v10144, 0.1
  %v10209 = vmul.f32 %v10145, 0.1
  %v10210 = vmul.f32 %v10146, 0.1
  %v10211 = vmul.f32 %v10147, 0.1
  %v10212 = vmul.f32 %v10148, 0.1
  %v10213 = vmul.f32 %v10149, 0.1
  %v10214 = vmul.f32 %v10150, 0.1
  %v10215 = vmul.f32 %v10151, 0.1
  %v10216 = vmax.f32 %v10088, %v10152
  %v10217 = vmax.f32 %v10089, %v10153
  %v10218 = vmax.f32 %v10090, %v10154
  %v10219 = vmax.f32 %v10091, %v10155
  %v10220 = vmax.f32 %v10092, %v10156
  %v10221 = vmax.f32 %v10093, %v10157
  %v10222 = vmax.f32 %v10094, %v10158
  %v10223 = vmax.f32 %v10095, %v10159
  %v10224 = vmax.f32 %v10096, %v10160
  %v10225 = vmax.f32 %v10097, %v10161
  %v10226 = vmax.f32 %v10098, %v10162
  %v10227 = vmax.f32 %v10099, %v10163
  %v10228 = vmax.f32 %v10100, %v10164
  %v10229 = vmax.f32 %v10101, %v10165
  %v10230 = vmax.f32 %v10102, %v10166
  %v10231 = vmax.f32 %v10103, %v10167
  %v10232 = vmax.f32 %v10104, %v10168
  %v10233 = vmax.f32 %v10105, %v10169
  %v10234 = vmax.f32 %v10106, %v10170
  %v10235 = vmax.f32 %v10107, %v10171
  %v10236 = vmax.f32 %v10108, %v10172
  %v10237 = vmax.f32 %v10109, %v10173
  %v10238 = vmax.f32 %v10110, %v10174
  %v10239 = vmax.f32 %v10111, %v10175
  %v10240 = vmax.f32 %v10112, %v10176
  %v10241 = vmax.f32 %v10113, %v10177
  %v10242 = vmax.f32 %v10114, %v10178
  %v10243 = vmax.f32 %v10115, %v10179
  %v10244 = vmax.f32 %v10116, %v10180
  %v10245 = vmax.f32 %v10117, %v10181
  %v10246 = vmax.f32 %v10118, %v10182
  %v10247 = vmax.f32 %v10119, %v10183
  %v10248 = vmax.f32 %v10120, %v10184
  %v10249 = vmax.f32 %v10121, %v10185
  %v10250 = vmax.f32 %v10122, %v10186
  %v10251 = vmax.f32 %v10123, %v10187
  %v10252 = vmax.f32 %v10124, %v10188
  %v10253 = vmax.f32 %v10125, %v10189
  %v10254 = vmax.f32 %v10126, %v10190
  %v10255 = vmax.f32 %v10127, %v10191
  %v10256 = vmax.f32 %v10128, %v10192
  %v10257 = vmax.f32 %v10129, %v10193
  %v10258 = vmax.f32 %v10130, %v10194
  %v10259 = vmax.f32 %v10131, %v10195
  %v10260 = vmax.f32 %v10132, %v10196
  %v10261 = vmax.f32 %v10133, %v10197
  %v10262 = vmax.f32 %v10134, %v10198
  %v10263 = vmax.f32 %v10135, %v10199
  %v10264 = vmax.f32 %v10136, %v10200
  %v10265 = vmax.f32 %v10137, %v10201
  %v10266 = vmax.f32 %v10138, %v10202
  %v10267 = vmax.f32 %v10139, %v10203
  %v10268 = vmax.f32 %v10140, %v10204
  %v10269 = vmax.f32 %v10141, %v10205
  %v10270 = vmax.f32 %v10142, %v10206
  %v10271 = vmax.f32 %v10143, %v10207
  %v10272 = vmax.f32 %v10144, %v10208
  %v10273 = vmax.f32 %v10145, %v10209
  %v10274 = vmax.f32 %v10146, %v10210
  %v10275 = vmax.f32 %v10147, %v10211
  %v10276 = vmax.f32 %v10148, %v10212
  %v10277 = vmax.f32 %v10149, %v10213
  %v10278 = vmax.f32 %v10150, %v10214
  %v10279 = vmax.f32 %v10151, %v10215
  %vm10280 = vcmask 64512
  %10281 = vst.msk [vmem:[%s5] sm:$0xff] %vm10280, %v10216
  %10282 = vst.msk [vmem:[%s5 + $0x8] sm:$0xff] %vm10280, %v10217
  %10283 = vst.msk [vmem:[%s5 + $0x10] sm:$0xff] %vm10280, %v10218
  %10284 = vst.msk [vmem:[%s5 + $0x18] sm:$0xff] %vm10280, %v10219
  %10285 = vst.msk [vmem:[%s5 + $0x20] sm:$0xff] %vm10280, %v10220
  %10286 = vst.msk [vmem:[%s5 + $0x28] sm:$0xff] %vm10280, %v10221
  %10287 = vst.msk [vmem:[%s5 + $0x30] sm:$0xff] %vm10280, %v10222
  %10288 = vst.msk [vmem:[%s5 + $0x38] sm:$0xff] %vm10280, %v10223
  %10289 = vst.msk [vmem:[%s5 + $0x40] sm:$0xff] %vm10280, %v10224
  %10290 = vst.msk [vmem:[%s5 + $0x48] sm:$0xff] %vm10280, %v10225
  %10291 = vst.msk [vmem:[%s5 + $0x50] sm:$0xff] %vm10280, %v10226
  %10292 = vst.msk [vmem:[%s5 + $0x58] sm:$0xff] %vm10280, %v10227
  %10293 = vst.msk [vmem:[%s5 + $0x60] sm:$0xff] %vm10280, %v10228
  %10294 = vst.msk [vmem:[%s5 + $0x68] sm:$0xff] %vm10280, %v10229
  %10295 = vst.msk [vmem:[%s5 + $0x70] sm:$0xff] %vm10280, %v10230
  %10296 = vst.msk [vmem:[%s5 + $0x78] sm:$0xff] %vm10280, %v10231
  %10297 = vst.msk [vmem:[%s5 + $0x80] sm:$0xff] %vm10280, %v10232
  %10298 = vst.msk [vmem:[%s5 + $0x88] sm:$0xff] %vm10280, %v10233
  %10299 = vst.msk [vmem:[%s5 + $0x90] sm:$0xff] %vm10280, %v10234
  %10300 = vst.msk [vmem:[%s5 + $0x98] sm:$0xff] %vm10280, %v10235
  %10301 = vst.msk [vmem:[%s5 + $0xa0] sm:$0xff] %vm10280, %v10236
  %10302 = vst.msk [vmem:[%s5 + $0xa8] sm:$0xff] %vm10280, %v10237
  %10303 = vst.msk [vmem:[%s5 + $0xb0] sm:$0xff] %vm10280, %v10238
  %10304 = vst.msk [vmem:[%s5 + $0xb8] sm:$0xff] %vm10280, %v10239
  %10305 = vst.msk [vmem:[%s5 + $0xc0] sm:$0xff] %vm10280, %v10240
  %10306 = vst.msk [vmem:[%s5 + $0xc8] sm:$0xff] %vm10280, %v10241
  %10307 = vst.msk [vmem:[%s5 + $0xd0] sm:$0xff] %vm10280, %v10242
  %10308 = vst.msk [vmem:[%s5 + $0xd8] sm:$0xff] %vm10280, %v10243
  %10309 = vst.msk [vmem:[%s5 + $0xe0] sm:$0xff] %vm10280, %v10244
  %10310 = vst.msk [vmem:[%s5 + $0xe8] sm:$0xff] %vm10280, %v10245
  %10311 = vst.msk [vmem:[%s5 + $0xf0] sm:$0xff] %vm10280, %v10246
  %10312 = vst.msk [vmem:[%s5 + $0xf8] sm:$0xff] %vm10280, %v10247
  %10313 = vst.msk [vmem:[%s5 + $0x100] sm:$0xff] %vm10280, %v10248
  %10314 = vst.msk [vmem:[%s5 + $0x108] sm:$0xff] %vm10280, %v10249
  %10315 = vst.msk [vmem:[%s5 + $0x110] sm:$0xff] %vm10280, %v10250
  %10316 = vst.msk [vmem:[%s5 + $0x118] sm:$0xff] %vm10280, %v10251
  %10317 = vst.msk [vmem:[%s5 + $0x120] sm:$0xff] %vm10280, %v10252
  %10318 = vst.msk [vmem:[%s5 + $0x128] sm:$0xff] %vm10280, %v10253
  %10319 = vst.msk [vmem:[%s5 + $0x130] sm:$0xff] %vm10280, %v10254
  %10320 = vst.msk [vmem:[%s5 + $0x138] sm:$0xff] %vm10280, %v10255
  %10321 = vst.msk [vmem:[%s5 + $0x140] sm:$0xff] %vm10280, %v10256
  %10322 = vst.msk [vmem:[%s5 + $0x148] sm:$0xff] %vm10280, %v10257
  %10323 = vst.msk [vmem:[%s5 + $0x150] sm:$0xff] %vm10280, %v10258
  %10324 = vst.msk [vmem:[%s5 + $0x158] sm:$0xff] %vm10280, %v10259
  %10325 = vst.msk [vmem:[%s5 + $0x160] sm:$0xff] %vm10280, %v10260
  %10326 = vst.msk [vmem:[%s5 + $0x168] sm:$0xff] %vm10280, %v10261
  %10327 = vst.msk [vmem:[%s5 + $0x170] sm:$0xff] %vm10280, %v10262
  %10328 = vst.msk [vmem:[%s5 + $0x178] sm:$0xff] %vm10280, %v10263
  %10329 = vst.msk [vmem:[%s5 + $0x180] sm:$0xff] %vm10280, %v10264
  %10330 = vst.msk [vmem:[%s5 + $0x188] sm:$0xff] %vm10280, %v10265
  %10331 = vst.msk [vmem:[%s5 + $0x190] sm:$0xff] %vm10280, %v10266
  %10332 = vst.msk [vmem:[%s5 + $0x198] sm:$0xff] %vm10280, %v10267
  %10333 = vst.msk [vmem:[%s5 + $0x1a0] sm:$0xff] %vm10280, %v10268
  %10334 = vst.msk [vmem:[%s5 + $0x1a8] sm:$0xff] %vm10280, %v10269
  %10335 = vst.msk [vmem:[%s5 + $0x1b0] sm:$0xff] %vm10280, %v10270
  %10336 = vst.msk [vmem:[%s5 + $0x1b8] sm:$0xff] %vm10280, %v10271
  %10337 = vst.msk [vmem:[%s5 + $0x1c0] sm:$0xff] %vm10280, %v10272
  %10338 = vst.msk [vmem:[%s5 + $0x1c8] sm:$0xff] %vm10280, %v10273
  %10339 = vst.msk [vmem:[%s5 + $0x1d0] sm:$0xff] %vm10280, %v10274
  %10340 = vst.msk [vmem:[%s5 + $0x1d8] sm:$0xff] %vm10280, %v10275
  %10341 = vst.msk [vmem:[%s5 + $0x1e0] sm:$0xff] %vm10280, %v10276
  %10342 = vst.msk [vmem:[%s5 + $0x1e8] sm:$0xff] %vm10280, %v10277
  %10343 = vst.msk [vmem:[%s5 + $0x1f0] sm:$0xff] %vm10280, %v10278
  %10344 = vst.msk [vmem:[%s5 + $0x1f8] sm:$0xff] %vm10280, %v10279
  // Predicated region
  $region22: #{tpu_custom_call.1} parent=0 // pred_check
    _
  $region23: #{tpu_custom_call.1} parent=0 // pred_check_branch
    %10346 = sbr.rel (0) target = $region25
  $region24: #{tpu_custom_call.1} parent=0 // pred_region
    _
  $region25: #{tpu_custom_call.1} parent=0 // pred_fallthru
    _
  // Predicated region
  $region26: #{tpu_custom_call.1} parent=0 // pred_check
    _
  $region27: #{tpu_custom_call.1} parent=0 // pred_check_branch
    %10348 = sbr.rel (0) target = $region29
  $region28: #{tpu_custom_call.1} parent=0 // pred_region
    _
  $region29: #{tpu_custom_call.1} parent=0 // pred_fallthru
    _

</llo_original>
